<compile_context>
chip_gen: v6e
topology: v6e:2x2x1
jax: 0.10.0
libtpu: 0.0.40
codegen_flags: <defaults>
</compile_context>

<pallas_src>
import functools

import jax
import jax.numpy as jnp
from jax.experimental import pallas as pl
from jax.experimental.pallas import tpu as pltpu

_VMEM_LIMIT = 48 * 1024 * 1024  # <= v7x physical 64 MiB with headroom


def _cparams(dims):
    return pltpu.CompilerParams(dimension_semantics=dims,
                                vmem_limit_bytes=_VMEM_LIMIT)


def _round_up(n, m):
    return ((n + m - 1) // m) * m


def _pick_lane_tile(L, cap=4096):
    """Largest 128-multiple lane tile that divides L (full L if L <= cap)."""
    if L <= cap:
        return L
    for t in range(cap - (cap % 128), 127, -128):
        if L % t == 0:
            return t
    # TODO(synk): no 128-multiple divisor <= cap -> fall back to one full tile;
    #             spatially tile + mask in-kernel for huge odd-length images.
    return L


# ----------------------------------------------------------------------------
# Kernel 1: fused splitconv1/splitconv2 (one stacked matmul, SiLU on half 2)
# ----------------------------------------------------------------------------
def _split_kernel(x_ref, w_ref, b_ref, o1_ref, o2_ref, *, ch, pad_ch):
    y = jnp.dot(w_ref[...], x_ref[0], preferred_element_type=jnp.float32)
    y = y + b_ref[...]
    o1_ref[0] = y[0:ch, :].astype(o1_ref.dtype)
    h2 = y[pad_ch:pad_ch + ch, :]
    o2_ref[0] = (h2 * jax.nn.sigmoid(h2)).astype(o2_ref.dtype)


def split_convs(h, w1, b1, w2, b2):
    # h: (N, C, H, W); w1/w2: (Ch, C); returns (x1, silu(h2)) both (N, Ch, H, W)
    N, C, H, W = h.shape
    Ch = w1.shape[0]
    pad_ch = _round_up(Ch, 8)
    L = H * W
    lt = _pick_lane_tile(L)
    nL = L // lt
    wcat = jnp.zeros((pad_ch + Ch, C), jnp.float32)
    wcat = wcat.at[:Ch].set(w1).at[pad_ch:].set(w2)
    bcat = jnp.zeros((pad_ch + Ch, 1), jnp.float32)
    bcat = bcat.at[:Ch, 0].set(b1).at[pad_ch:, 0].set(b2)
    x1, h2 = pl.pallas_call(
        functools.partial(_split_kernel, ch=Ch, pad_ch=pad_ch),
        out_shape=(jax.ShapeDtypeStruct((N, Ch, L), h.dtype),
                   jax.ShapeDtypeStruct((N, Ch, L), h.dtype)),
        grid=(N, nL),
        in_specs=[pl.BlockSpec((1, C, lt), lambda n, l: (n, 0, l)),
                  pl.BlockSpec(wcat.shape, lambda n, l: (0, 0)),
                  pl.BlockSpec(bcat.shape, lambda n, l: (0, 0))],
        out_specs=(pl.BlockSpec((1, Ch, lt), lambda n, l: (n, 0, l)),
                   pl.BlockSpec((1, Ch, lt), lambda n, l: (n, 0, l))),
        compiler_params=_cparams(("parallel", "parallel")),
    )(h.reshape(N, C, L), wcat, bcat)
    return x1.reshape(N, Ch, H, W), h2.reshape(N, Ch, H, W)


# ----------------------------------------------------------------------------
# Kernel 2: spectral block (fused).  amp = |ft| in-kernel; amp & phase stacked
# on sublanes (8-aligned) and pushed through block-diagonal conv weights (one
# matmul per layer), LeakyReLU(0.1), cos/sin, optional complex multiply by ft.
# ----------------------------------------------------------------------------
def _spectral_kernel(fr_ref, fi_ref, ph_ref, w0_ref, b0_ref, w1_ref, b1_ref,
                     or_ref, oi_ref, stk_ref, *, ci, co, pad_ci, pad_co, mul):
    fr = fr_ref[0]
    fi = fi_ref[0]
    if pad_ci != ci:  # keep zero-weight padding rows free of VMEM garbage
        stk_ref[...] = jnp.zeros(stk_ref.shape, stk_ref.dtype)
    stk_ref[0:ci, :] = jnp.sqrt(fr * fr + fi * fi)          # amp, fused
    stk_ref[pad_ci:pad_ci + ci, :] = ph_ref[0]               # phase
    y = jnp.dot(w0_ref[...], stk_ref[...], preferred_element_type=jnp.float32)
    y = y + b0_ref[...]
    y = jnp.where(y >= 0, y, 0.1 * y)                        # LeakyReLU(0.1)
    y = jnp.dot(w1_ref[...], y, preferred_element_type=jnp.float32)
    y = y + b1_ref[...]
    a = y[0:co, :]
    p = y[pad_co:pad_co + co, :]
    gr = a * jnp.cos(p)
    gi = a * jnp.sin(p)
    if mul:                                                  # (gr+i gi)*(fr+i fi)
        rr = gr * fr - gi * fi
        ii = gr * fi + gi * fr
    else:
        rr, ii = gr, gi
    or_ref[0] = rr.astype(or_ref.dtype)
    oi_ref[0] = ii.astype(oi_ref.dtype)


def spectral_block(fr, fi, pha, amp_params, pha_params, mul):
    # fr, fi, pha: (N, Ci, L) float32
    N, Ci, L = fr.shape
    (wa0, ba0), (wa1, ba1) = amp_params
    (wp0, bp0), (wp1, bp1) = pha_params
    Cm = wa0.shape[0]
    Co = wa1.shape[0]
    if mul:
        assert Ci == Co, "complex-multiply path requires in == out channels"
    pad_ci = _round_up(Ci, 8)
    pad_co = _round_up(Co, 8)
    # layer 0: amp weights read scratch rows [0:Ci], phase rows [pad_ci:pad_ci+Ci]
    w0 = jnp.zeros((2 * Cm, 2 * pad_ci), jnp.float32)
    w0 = w0.at[:Cm, :Ci].set(wa0).at[Cm:, pad_ci:pad_ci + Ci].set(wp0)
    b0 = jnp.concatenate([ba0, bp0]).reshape(2 * Cm, 1)
    # layer 1: amp-chain output at rows [0:Co], phase chain at [pad_co:pad_co+Co]
    w1 = jnp.zeros((pad_co + Co, 2 * Cm), jnp.float32)
    w1 = w1.at[:Co, :Cm].set(wa1).at[pad_co:, Cm:].set(wp1)
    b1 = jnp.zeros((pad_co + Co, 1), jnp.float32)
    b1 = b1.at[:Co, 0].set(ba1).at[pad_co:, 0].set(bp1)

    lt = _pick_lane_tile(L)
    nL = L // lt

    def data(c):
        return pl.BlockSpec((1, c, lt), lambda n, l: (n, 0, l))

    def full(a):
        return pl.BlockSpec(a.shape, lambda n, l: (0, 0))

    re, im = pl.pallas_call(
        functools.partial(_spectral_kernel, ci=Ci, co=Co, pad_ci=pad_ci,
                          pad_co=pad_co, mul=mul),
        out_shape=(jax.ShapeDtypeStruct((N, Co, L), jnp.float32),
                   jax.ShapeDtypeStruct((N, Co, L), jnp.float32)),
        grid=(N, nL),
        in_specs=[data(Ci), data(Ci), data(Ci),
                  full(w0), full(b0), full(w1), full(b1)],
        out_specs=(data(Co), data(Co)),
        scratch_shapes=[pltpu.VMEM((2 * pad_ci, lt), jnp.float32)],
        compiler_params=_cparams(("parallel", "parallel")),
    )(fr, fi, pha, w0, b0, w1, b1)
    return re, im


# ----------------------------------------------------------------------------
# Kernel 3: GroupNorm (eps=1e-6, affine), all groups of one batch per step,
#           f32 stats via a tiny group-aggregation matmul, optional fused
#           residual add (norm1) and SiLU (norm2).
# ----------------------------------------------------------------------------
def _gn_compute(x, g_ref, b_ref, agg_ref, o_ref, eps, act, inv_count):
    # x: (C, HW) f32; agg[i, j] = 1 if channels i, j share a group.
    gsum = jnp.dot(agg_ref[...], x, preferred_element_type=jnp.float32)
    mean = jnp.sum(gsum, axis=1, keepdims=True) * inv_count           # (C, 1)
    xc = x - mean
    gsq = jnp.dot(agg_ref[...], xc * xc, preferred_element_type=jnp.float32)
    var = jnp.sum(gsq, axis=1, keepdims=True) * inv_count             # biased
    y = xc * jax.lax.rsqrt(var + eps)
    y = y * g_ref[...] + b_ref[...]
    if act == "silu":
        y = y * jax.nn.sigmoid(y)
    o_ref[0] = y.astype(o_ref.dtype)


def _gn_kernel(x_ref, g_ref, b_ref, agg_ref, o_ref, *, eps, act, inv_count):
    _gn_compute(x_ref[0].astype(jnp.float32), g_ref, b_ref, agg_ref, o_ref,
                eps, act, inv_count)


def _gn_add_kernel(x_ref, r_ref, g_ref, b_ref, agg_ref, o_ref, *, eps, act,
                   inv_count):
    x = x_ref[0].astype(jnp.float32) + r_ref[0].astype(jnp.float32)
    _gn_compute(x, g_ref, b_ref, agg_ref, o_ref, eps, act, inv_count)


def group_norm(x, gamma, beta, num_groups=4, eps=1e-6, act="none", residual=None):
    # GN(x + residual) if residual is not None else GN(x); gamma/beta: (C,)
    N, C, H, W = x.shape
    G = num_groups
    Cg = C // G
    HW = H * W
    inv = 1.0 / float(Cg * HW)
    x2 = x.reshape(N, C, HW)
    g2 = gamma.reshape(C, 1)
    b2 = beta.reshape(C, 1)
    gid = jnp.arange(C, dtype=jnp.int32) // Cg
    agg = (gid[:, None] == gid[None, :]).astype(jnp.float32)          # (C, C)
    row = pl.BlockSpec((1, C, HW), lambda n: (n, 0, 0))

    def small(a):
        return pl.BlockSpec(a.shape, lambda n: (0, 0))

    cp = _cparams(("parallel",))
    if residual is None:
        out = pl.pallas_call(
            functools.partial(_gn_kernel, eps=eps, act=act, inv_count=inv),
            out_shape=jax.ShapeDtypeStruct((N, C, HW), x.dtype),
            grid=(N,),
            in_specs=[row, small(g2), small(b2), small(agg)],
            out_specs=row,
            compiler_params=cp,
        )(x2, g2, b2, agg)
    else:
        r2 = residual.reshape(N, C, HW)
        out = pl.pallas_call(
            functools.partial(_gn_add_kernel, eps=eps, act=act, inv_count=inv),
            out_shape=jax.ShapeDtypeStruct((N, C, HW), x.dtype),
            grid=(N,),
            in_specs=[row, row, small(g2), small(b2), small(agg)],
            out_specs=row,
            compiler_params=cp,
        )(x2, r2, g2, b2, agg)
    return out.reshape(N, C, H, W)


# ----------------------------------------------------------------------------
# Kernel 4: fused depthwise 3x3 (pad=1) + pointwise 1x1.
#   z = sum_t (pw * dw_t) @ shift_t(x) + b_eff.  Input is H-padded only and
#   kept flat/lane-dense; left/right borders are fixed by two masks, so the
#   output is stored lane-dense (Co, H*W) with no padded-column writeback.
# ----------------------------------------------------------------------------
def _dwsep_kernel(xp_ref, ml_ref, mr_ref, m_ref, b_ref, o_ref, *, W, HW):
    x = xp_ref[0]                                   # (C, P), P = HW + 2W + 2
    acc = [None, None, None]                        # per kernel column kw
    for kw in range(3):
        for kh in range(3):
            s = kh * W + kw
            d = jnp.dot(m_ref[kh * 3 + kw], x[:, s:s + HW],
                        preferred_element_type=jnp.float32)
            acc[kw] = d if acc[kw] is None else acc[kw] + d
    out = acc[1] + ml_ref[...] * acc[0] + mr_ref[...] * acc[2] + b_ref[...]
    o_ref[0] = out.astype(o_ref.dtype)


def dwsep_conv(x, dw_w, dw_b, pw_w, pw_b):
    # x: (N, C, H, W); dw_w: (C, 3, 3); dw_b: (C,); pw_w: (Co, C); pw_b: (Co,)
    N, C, H, W = x.shape
    Co = pw_w.shape[0]
    HW = H * W
    P = HW + 2 * W + 2
    xp = jnp.pad(x.reshape(N, C, HW), ((0, 0), (0, 0), (W + 1, W + 1)))

    # border masks (invalid left / right neighbour columns)
    col = jnp.arange(HW, dtype=jnp.int32) % W
    ml = (col != 0).astype(jnp.float32).reshape(1, HW)
    mr = (col != W - 1).astype(jnp.float32).reshape(1, HW)

    # fold depthwise filter through the pointwise conv (tiny precompute)
    dw9 = dw_w.reshape(C, 9)
    m = pw_w[None, :, :] * jnp.transpose(dw9)[:, None, :]              # (9, Co, C)
    b_eff = pw_b + pw_w @ dw_b                                         # (Co,)

    out = pl.pallas_call(
        functools.partial(_dwsep_kernel, W=W, HW=HW),
        out_shape=jax.ShapeDtypeStruct((N, Co, HW), x.dtype),
        grid=(N,),
        in_specs=[pl.BlockSpec((1, C, P), lambda n: (n, 0, 0)),
                  pl.BlockSpec((1, HW), lambda n: (0, 0)),
                  pl.BlockSpec((1, HW), lambda n: (0, 0)),
                  pl.BlockSpec((9, Co, C), lambda n: (0, 0, 0)),
                  pl.BlockSpec((Co, 1), lambda n: (0, 0))],
        out_specs=pl.BlockSpec((1, Co, HW), lambda n: (n, 0, 0)),
        compiler_params=_cparams(("parallel",)),
    )(xp, ml, mr, m, b_eff.reshape(Co, 1))
    return out.reshape(N, Co, H, W)


# ----------------------------------------------------------------------------
# Kernel 5: fused  out = x + mergeconv(concat([x1 + x1_ft2, h2])) + bias
#   -> single matmul against the full (Cout, 2*Coh) weight via a sublane-
#   aligned VMEM concat; both residual adds fused.
# ----------------------------------------------------------------------------
def _merge_kernel(x_ref, x1a_ref, x1b_ref, h2_ref, w_ref, b_ref, o_ref, cat_ref,
                  *, coh, pad_coh):
    if pad_coh != coh:
        cat_ref[...] = jnp.zeros(cat_ref.shape, cat_ref.dtype)
    cat_ref[0:coh, :] = (x1a_ref[0].astype(jnp.float32)
                         + x1b_ref[0].astype(jnp.float32))
    cat_ref[pad_coh:pad_coh + coh, :] = h2_ref[0].astype(jnp.float32)
    y = jnp.dot(w_ref[...], cat_ref[...], preferred_element_type=jnp.float32)
    y = y + b_ref[...] + x_ref[0].astype(jnp.float32)
    o_ref[0] = y.astype(o_ref.dtype)


def merge_residual(x, x1, x1b, h2, wm, bm):
    N, C, H, W = x.shape
    Cout, C2 = wm.shape
    Coh = C2 // 2
    pad_coh = _round_up(Coh, 8)
    L = H * W
    lt = _pick_lane_tile(L)
    nL = L // lt
    wm_p = jnp.zeros((Cout, pad_coh + Coh), jnp.float32)
    wm_p = wm_p.at[:, :Coh].set(wm[:, :Coh]).at[:, pad_coh:].set(wm[:, Coh:])
    out = pl.pallas_call(
        functools.partial(_merge_kernel, coh=Coh, pad_coh=pad_coh),
        out_shape=jax.ShapeDtypeStruct((N, Cout, L), x.dtype),
        grid=(N, nL),
        in_specs=[pl.BlockSpec((1, C, lt), lambda n, l: (n, 0, l)),
                  pl.BlockSpec((1, Coh, lt), lambda n, l: (n, 0, l)),
                  pl.BlockSpec((1, Coh, lt), lambda n, l: (n, 0, l)),
                  pl.BlockSpec((1, Coh, lt), lambda n, l: (n, 0, l)),
                  pl.BlockSpec(wm_p.shape, lambda n, l: (0, 0)),
                  pl.BlockSpec((Cout, 1), lambda n, l: (0, 0))],
        out_specs=pl.BlockSpec((1, Cout, lt), lambda n, l: (n, 0, l)),
        scratch_shapes=[pltpu.VMEM((pad_coh + Coh, lt), jnp.float32)],
        compiler_params=_cparams(("parallel", "parallel")),
    )(x.reshape(N, C, L), x1.reshape(N, Coh, L), x1b.reshape(N, Coh, L),
      h2.reshape(N, Coh, L), wm_p, bm.reshape(Cout, 1))
    return out.reshape(N, Cout, H, W)


# ----------------------------------------------------------------------------
# Full forward pass (in_channels == out_channels path of Res_four4)
# ----------------------------------------------------------------------------
def res_four4_forward(x, params):
    N, C, H, W = x.shape
    Cout = params["mergeconv_w"].shape[0]
    assert C == Cout  # identity shortcut path only (see TODO at top)
    HW = H * W
    Cf = C // 2 + 1
    Ch = C // 2
    Coh = Cout // 2

    # ---- channel-dim FFT branch:  h = irfft( g(ft) * ft ) ----
    ft = jnp.fft.rfft(x, axis=1)                         # (N, Cf, H, W) complex64
    fr = jnp.real(ft).reshape(N, Cf, HW)
    fi = jnp.imag(ft).reshape(N, Cf, HW)
    ph = jnp.angle(ft).reshape(N, Cf, HW)                # atan2 kept in XLA
    hr, hi = spectral_block(fr, fi, ph, params["ampconv0"], params["phaconv0"],
                            mul=True)
    hc = jax.lax.complex(hr, hi).reshape(N, Cf, H, W)
    h = jnp.fft.irfft(hc, n=C, axis=1).astype(x.dtype)

    # ---- h = norm1(x + h)   (residual add fused into the GN kernel) ----
    h = group_norm(h, params["norm1_g"], params["norm1_b"], num_groups=4,
                   eps=1e-6, residual=x)

    # ---- fused splitconv1 / splitconv2 (+SiLU on the second half) ----
    x1, h2 = split_convs(h, params["splitconv1_w"], params["splitconv1_b"],
                         params["splitconv2_w"], params["splitconv2_b"])

    # ---- x1 branch: rfft2 -> spectral (fused complex mul) -> irfft2 ----
    x1f = jnp.fft.rfft2(x1, axes=(-2, -1))               # (N, Ch, H, Wf)
    Wf = W // 2 + 1
    Lf = H * Wf
    fr1 = jnp.real(x1f).reshape(N, Ch, Lf)
    fi1 = jnp.imag(x1f).reshape(N, Ch, Lf)
    ph1 = jnp.angle(x1f).reshape(N, Ch, Lf)
    gr, gi = spectral_block(fr1, fi1, ph1, params["ampconv"], params["phaconv"],
                            mul=True)                    # in==out -> x1_ft * g
    x1f2 = jax.lax.complex(gr, gi).reshape(N, Coh, H, Wf)
    x1b = jnp.fft.irfft2(x1f2, s=(H, W), axes=(-2, -1)).astype(x.dtype)
    # (x1 = x1 + x1b) is fused into the merge kernel below.

    # ---- h branch: conv1 -> norm2 -> SiLU -> (dropout=id) -> conv2 ----
    h2 = dwsep_conv(h2, params["conv1_dw_w"], params["conv1_dw_b"],
                    params["conv1_pw_w"], params["conv1_pw_b"])
    h2 = group_norm(h2, params["norm2_g"], params["norm2_b"], num_groups=4,
                    eps=1e-6, act="silu")
    h2 = dwsep_conv(h2, params["conv2_dw_w"], params["conv2_dw_b"],
                    params["conv2_pw_w"], params["conv2_pw_b"])

    # ---- fused concat + mergeconv + residual adds ----
    return merge_residual(x, x1, x1b, h2, params["mergeconv_w"],
                          params["mergeconv_b"])


# ----------------------------------------------------------------------------
# Deterministic parameter init (shapes follow the PyTorch module __init__)
# ----------------------------------------------------------------------------
def init_params(key, C, Cout):
    keys = iter(jax.random.split(key, 64))

    def nk():
        return next(keys)

    def conv1x1(co, ci):
        w = jax.random.normal(nk(), (co, ci), jnp.float32) * 0.2
        b = jax.random.normal(nk(), (co,), jnp.float32) * 0.05
        return w, b

    Cf = C // 2 + 1
    Ch = C // 2
    Coh = Cout // 2
    p = {}
    p["ampconv0"] = (conv1x1(Cf, Cf), conv1x1(Cf, Cf))
    p["phaconv0"] = (conv1x1(Cf, Cf), conv1x1(Cf, Cf))
    p["norm1_g"] = jnp.ones((C,), jnp.float32)
    p["norm1_b"] = jnp.zeros((C,), jnp.float32)
    p["splitconv1_w"], p["splitconv1_b"] = conv1x1(Ch, C)
    p["splitconv2_w"], p["splitconv2_b"] = conv1x1(Ch, C)
    p["ampconv"] = (conv1x1(Coh, Ch), conv1x1(Coh, Coh))
    p["phaconv"] = (conv1x1(Coh, Ch), conv1x1(Coh, Coh))
    p["conv1_dw_w"] = jax.random.normal(nk(), (Ch, 3, 3), jnp.float32) * 0.2
    p["conv1_dw_b"] = jax.random.normal(nk(), (Ch,), jnp.float32) * 0.05
    p["conv1_pw_w"], p["conv1_pw_b"] = conv1x1(Coh, Ch)
    p["norm2_g"] = jnp.ones((Coh,), jnp.float32)
    p["norm2_b"] = jnp.zeros((Coh,), jnp.float32)
    p["conv2_dw_w"] = jax.random.normal(nk(), (Coh, 3, 3), jnp.float32) * 0.2
    p["conv2_dw_b"] = jax.random.normal(nk(), (Coh,), jnp.float32) * 0.05
    p["conv2_pw_w"], p["conv2_pw_b"] = conv1x1(Coh, Coh)
    p["mergeconv_w"], p["mergeconv_b"] = conv1x1(Cout, Cout)
    return p


if __name__ == "__main__":
    key = jax.random.PRNGKey(0)
    kx, kp = jax.random.split(key)
    # in_channels = out_channels = 8 (divisible by 4 groups; C//2 too)
    N, C, H, W = 2, 8, 16, 16
    x = jax.random.normal(kx, (N, C, H, W), jnp.float32)
    params = init_params(kp, C, C)

    fwd = jax.jit(res_four4_forward)
    out = fwd(x, params)
    jax.block_until_ready(out)
    assert out.shape == (N, C, H, W)
    assert bool(jnp.all(jnp.isfinite(out)))
    print("KERNEL_OK")
</pallas_src>

<mosaic_0001>
module attributes {stable_mosaic.version = 11 : i64} {
  func.func @_spectral_kernel(%arg0: i32, %arg1: i32, %arg2: memref<1x5x256xf32, #tpu.memory_space<vmem>>, %arg3: memref<1x5x256xf32, #tpu.memory_space<vmem>>, %arg4: memref<1x5x256xf32, #tpu.memory_space<vmem>>, %arg5: memref<10x16xf32, #tpu.memory_space<vmem>>, %arg6: memref<10x1xf32, #tpu.memory_space<vmem>>, %arg7: memref<13x10xf32, #tpu.memory_space<vmem>>, %arg8: memref<13x1xf32, #tpu.memory_space<vmem>>, %arg9: memref<1x5x256xf32, #tpu.memory_space<vmem>>, %arg10: memref<1x5x256xf32, #tpu.memory_space<vmem>>, %arg11: memref<16x256xf32, #tpu.memory_space<vmem>>) attributes {dimension_semantics = [#tpu.dimension_semantics<parallel>, #tpu.dimension_semantics<parallel>], iteration_bounds = array<i64: 2, 1>, scalar_prefetch = 0 : i64, scratch_operands = 1 : i64, tpu.core_type = #tpu.core_type<tc>, window_params = [{transform_indices = @transform_0, window_bounds = array<i64: 1, 5, 256>}, {transform_indices = @transform_1, window_bounds = array<i64: 1, 5, 256>}, {transform_indices = @transform_2, window_bounds = array<i64: 1, 5, 256>}, {pipeline_mode = #tpu.pipeline_mode<synchronous>, transform_indices = @transform_3, window_bounds = array<i64: 10, 16>}, {pipeline_mode = #tpu.pipeline_mode<synchronous>, transform_indices = @transform_4, window_bounds = array<i64: 10, 1>}, {pipeline_mode = #tpu.pipeline_mode<synchronous>, transform_indices = @transform_5, window_bounds = array<i64: 13, 10>}, {pipeline_mode = #tpu.pipeline_mode<synchronous>, transform_indices = @transform_6, window_bounds = array<i64: 13, 1>}, {transform_indices = @transform_7, window_bounds = array<i64: 1, 5, 256>}, {transform_indices = @transform_8, window_bounds = array<i64: 1, 5, 256>}]} {
    %c0 = arith.constant 0 : index
    %c0_0 = arith.constant 0 : index
    %c0_1 = arith.constant 0 : index
    %0 = vector.load %arg2[%c0, %c0_0, %c0_1] : memref<1x5x256xf32, #tpu.memory_space<vmem>>, vector<1x5x256xf32>
    %1 = vector.shape_cast %0 : vector<1x5x256xf32> to vector<5x256xf32>
    %c0_2 = arith.constant 0 : index
    %c0_3 = arith.constant 0 : index
    %c0_4 = arith.constant 0 : index
    %2 = vector.load %arg3[%c0_2, %c0_3, %c0_4] : memref<1x5x256xf32, #tpu.memory_space<vmem>>, vector<1x5x256xf32>
    %3 = vector.shape_cast %2 : vector<1x5x256xf32> to vector<5x256xf32>
    %cst = arith.constant 0.000000e+00 : f32
    %4 = vector.broadcast %cst : f32 to vector<16x256xf32>
    %c0_5 = arith.constant 0 : index
    %c0_6 = arith.constant 0 : index
    %5 = vector.load %arg11[%c0_5, %c0_6] : memref<16x256xf32, #tpu.memory_space<vmem>>, vector<16x256xf32>
    tpu.vector_store %arg11[%c0_5, %c0_6], %4 {strides = array<i32>} : memref<16x256xf32, #tpu.memory_space<vmem>>, vector<16x256xf32>,
    %6 = arith.mulf %1, %1 : vector<5x256xf32>
    %7 = arith.mulf %3, %3 : vector<5x256xf32>
    %8 = arith.addf %6, %7 : vector<5x256xf32>
    %9 = math.sqrt %8 : vector<5x256xf32>
    %c0_7 = arith.constant 0 : index
    %c0_8 = arith.constant 0 : index
    %10 = vector.load %arg11[%c0_7, %c0_8] : memref<16x256xf32, #tpu.memory_space<vmem>>, vector<5x256xf32>
    tpu.vector_store %arg11[%c0_7, %c0_8], %9 {strides = array<i32>} : memref<16x256xf32, #tpu.memory_space<vmem>>, vector<5x256xf32>,
    %c0_9 = arith.constant 0 : index
    %c0_10 = arith.constant 0 : index
    %c0_11 = arith.constant 0 : index
    %11 = vector.load %arg4[%c0_9, %c0_10, %c0_11] : memref<1x5x256xf32, #tpu.memory_space<vmem>>, vector<1x5x256xf32>
    %12 = vector.shape_cast %11 : vector<1x5x256xf32> to vector<5x256xf32>
    %c8 = arith.constant 8 : index
    %c0_12 = arith.constant 0 : index
    %13 = vector.load %arg11[%c8, %c0_12] : memref<16x256xf32, #tpu.memory_space<vmem>>, vector<5x256xf32>
    tpu.vector_store %arg11[%c8, %c0_12], %12 {strides = array<i32>} : memref<16x256xf32, #tpu.memory_space<vmem>>, vector<5x256xf32>,
    %c0_13 = arith.constant 0 : index
    %c0_14 = arith.constant 0 : index
    %14 = vector.load %arg5[%c0_13, %c0_14] : memref<10x16xf32, #tpu.memory_space<vmem>>, vector<10x16xf32>
    %c0_15 = arith.constant 0 : index
    %c0_16 = arith.constant 0 : index
    %15 = vector.load %arg11[%c0_15, %c0_16] : memref<16x256xf32, #tpu.memory_space<vmem>>, vector<16x256xf32>
    %cst_17 = arith.constant dense<0.000000e+00> : vector<10x256xf32>
    %16 = tpu.matmul %14, %15, %cst_17 {dimension_numbers = #tpu.dot_dimension_numbers<[1], [0], [0], [1], [0, 0, 1, 1], [], []>} : vector<10x16xf32>, vector<16x256xf32>, vector<10x256xf32> -> vector<10x256xf32>
    %c0_18 = arith.constant 0 : index
    %c0_19 = arith.constant 0 : index
    %17 = vector.load %arg6[%c0_18, %c0_19] : memref<10x1xf32, #tpu.memory_space<vmem>>, vector<10x1xf32>
    %18 = vector.broadcast %17 : vector<10x1xf32> to vector<10x256xf32>
    %19 = arith.addf %16, %18 : vector<10x256xf32>
    %cst_20 = arith.constant 0.000000e+00 : f32
    %20 = vector.broadcast %cst_20 : f32 to vector<10x256xf32>
    %21 = arith.cmpf oge, %19, %20 : vector<10x256xf32>
    %cst_21 = arith.constant 1.000000e-01 : f32
    %22 = vector.broadcast %cst_21 : f32 to vector<10x256xf32>
    %23 = arith.mulf %22, %19 : vector<10x256xf32>
    %24 = arith.select %21, %19, %23 : vector<10x256xi1>, vector<10x256xf32>
    %c0_22 = arith.constant 0 : index
    %c0_23 = arith.constant 0 : index
    %25 = vector.load %arg7[%c0_22, %c0_23] : memref<13x10xf32, #tpu.memory_space<vmem>>, vector<13x10xf32>
    %cst_24 = arith.constant dense<0.000000e+00> : vector<13x256xf32>
    %26 = tpu.matmul %25, %24, %cst_24 {dimension_numbers = #tpu.dot_dimension_numbers<[1], [0], [0], [1], [0, 0, 1, 1], [], []>} : vector<13x10xf32>, vector<10x256xf32>, vector<13x256xf32> -> vector<13x256xf32>
    %c0_25 = arith.constant 0 : index
    %c0_26 = arith.constant 0 : index
    %27 = vector.load %arg8[%c0_25, %c0_26] : memref<13x1xf32, #tpu.memory_space<vmem>>, vector<13x1xf32>
    %28 = vector.broadcast %27 : vector<13x1xf32> to vector<13x256xf32>
    %29 = arith.addf %26, %28 : vector<13x256xf32>
    %30 = vector.extract_strided_slice %29 {offsets = [0, 0], sizes = [5, 256], strides = [1, 1]} : vector<13x256xf32> to vector<5x256xf32>
    %31 = vector.extract_strided_slice %29 {offsets = [8, 0], sizes = [5, 256], strides = [1, 1]} : vector<13x256xf32> to vector<5x256xf32>
    %32 = math.cos %31 : vector<5x256xf32>
    %33 = arith.mulf %30, %32 : vector<5x256xf32>
    %34 = math.sin %31 : vector<5x256xf32>
    %35 = arith.mulf %30, %34 : vector<5x256xf32>
    %36 = arith.mulf %33, %1 : vector<5x256xf32>
    %37 = arith.mulf %35, %3 : vector<5x256xf32>
    %38 = arith.subf %36, %37 : vector<5x256xf32>
    %39 = arith.mulf %33, %3 : vector<5x256xf32>
    %40 = arith.mulf %35, %1 : vector<5x256xf32>
    %41 = arith.addf %39, %40 : vector<5x256xf32>
    %c0_27 = arith.constant 0 : index
    %c0_28 = arith.constant 0 : index
    %c0_29 = arith.constant 0 : index
    %42 = vector.load %arg9[%c0_27, %c0_28, %c0_29] : memref<1x5x256xf32, #tpu.memory_space<vmem>>, vector<1x5x256xf32>
    %43 = vector.shape_cast %42 : vector<1x5x256xf32> to vector<5x256xf32>
    %44 = vector.shape_cast %38 : vector<5x256xf32> to vector<1x5x256xf32>
    tpu.vector_store %arg9[%c0_27, %c0_28, %c0_29], %44 {strides = array<i32>} : memref<1x5x256xf32, #tpu.memory_space<vmem>>, vector<1x5x256xf32>,
    %c0_30 = arith.constant 0 : index
    %c0_31 = arith.constant 0 : index
    %c0_32 = arith.constant 0 : index
    %45 = vector.load %arg10[%c0_30, %c0_31, %c0_32] : memref<1x5x256xf32, #tpu.memory_space<vmem>>, vector<1x5x256xf32>
    %46 = vector.shape_cast %45 : vector<1x5x256xf32> to vector<5x256xf32>
    %47 = vector.shape_cast %41 : vector<5x256xf32> to vector<1x5x256xf32>
    tpu.vector_store %arg10[%c0_30, %c0_31, %c0_32], %47 {strides = array<i32>} : memref<1x5x256xf32, #tpu.memory_space<vmem>>, vector<1x5x256xf32>,
    return
  }
  func.func @transform_0(%arg0: i32, %arg1: i32) -> (i32, i32, i32) {
    %c0_i32 = arith.constant 0 : i32
    %c0_i32_0 = arith.constant 0 : i32
    return %arg0, %c0_i32, %arg1 : i32, i32, i32
  }
  func.func @transform_1(%arg0: i32, %arg1: i32) -> (i32, i32, i32) {
    %c0_i32 = arith.constant 0 : i32
    %c0_i32_0 = arith.constant 0 : i32
    return %arg0, %c0_i32, %arg1 : i32, i32, i32
  }
  func.func @transform_2(%arg0: i32, %arg1: i32) -> (i32, i32, i32) {
    %c0_i32 = arith.constant 0 : i32
    %c0_i32_0 = arith.constant 0 : i32
    return %arg0, %c0_i32, %arg1 : i32, i32, i32
  }
  func.func @transform_3(%arg0: i32, %arg1: i32) -> (i32, i32) {
    %c0_i32 = arith.constant 0 : i32
    %c0_i32_0 = arith.constant 0 : i32
    %c0_i32_1 = arith.constant 0 : i32
    return %c0_i32, %c0_i32_0 : i32, i32
  }
  func.func @transform_4(%arg0: i32, %arg1: i32) -> (i32, i32) {
    %c0_i32 = arith.constant 0 : i32
    %c0_i32_0 = arith.constant 0 : i32
    %c0_i32_1 = arith.constant 0 : i32
    return %c0_i32, %c0_i32_0 : i32, i32
  }
  func.func @transform_5(%arg0: i32, %arg1: i32) -> (i32, i32) {
    %c0_i32 = arith.constant 0 : i32
    %c0_i32_0 = arith.constant 0 : i32
    %c0_i32_1 = arith.constant 0 : i32
    return %c0_i32, %c0_i32_0 : i32, i32
  }
  func.func @transform_6(%arg0: i32, %arg1: i32) -> (i32, i32) {
    %c0_i32 = arith.constant 0 : i32
    %c0_i32_0 = arith.constant 0 : i32
    %c0_i32_1 = arith.constant 0 : i32
    return %c0_i32, %c0_i32_0 : i32, i32
  }
  func.func @transform_7(%arg0: i32, %arg1: i32) -> (i32, i32, i32) {
    %c0_i32 = arith.constant 0 : i32
    %c0_i32_0 = arith.constant 0 : i32
    return %arg0, %c0_i32, %arg1 : i32, i32, i32
  }
  func.func @transform_8(%arg0: i32, %arg1: i32) -> (i32, i32, i32) {
    %c0_i32 = arith.constant 0 : i32
    %c0_i32_0 = arith.constant 0 : i32
    return %arg0, %c0_i32, %arg1 : i32, i32, i32
  }
}

module attributes {stable_mosaic.version = 11 : i64} {
  func.func @_gn_add_kernel(%arg0: i32, %arg1: memref<1x8x256xf32, #tpu.memory_space<vmem>>, %arg2: memref<1x8x256xf32, #tpu.memory_space<vmem>>, %arg3: memref<8x1xf32, #tpu.memory_space<vmem>>, %arg4: memref<8x1xf32, #tpu.memory_space<vmem>>, %arg5: memref<8x8xf32, #tpu.memory_space<vmem>>, %arg6: memref<1x8x256xf32, #tpu.memory_space<vmem>>) attributes {dimension_semantics = [#tpu.dimension_semantics<parallel>], iteration_bounds = array<i64: 2>, scalar_prefetch = 0 : i64, scratch_operands = 0 : i64, tpu.core_type = #tpu.core_type<tc>, window_params = [{transform_indices = @transform_0, window_bounds = array<i64: 1, 8, 256>}, {transform_indices = @transform_1, window_bounds = array<i64: 1, 8, 256>}, {pipeline_mode = #tpu.pipeline_mode<synchronous>, transform_indices = @transform_2, window_bounds = array<i64: 8, 1>}, {pipeline_mode = #tpu.pipeline_mode<synchronous>, transform_indices = @transform_3, window_bounds = array<i64: 8, 1>}, {pipeline_mode = #tpu.pipeline_mode<synchronous>, transform_indices = @transform_4, window_bounds = array<i64: 8, 8>}, {transform_indices = @transform_5, window_bounds = array<i64: 1, 8, 256>}]} {
    %c0 = arith.constant 0 : index
    %c0_0 = arith.constant 0 : index
    %c0_1 = arith.constant 0 : index
    %0 = vector.load %arg1[%c0, %c0_0, %c0_1] : memref<1x8x256xf32, #tpu.memory_space<vmem>>, vector<1x8x256xf32>
    %1 = vector.shape_cast %0 : vector<1x8x256xf32> to vector<8x256xf32>
    %c0_2 = arith.constant 0 : index
    %c0_3 = arith.constant 0 : index
    %c0_4 = arith.constant 0 : index
    %2 = vector.load %arg2[%c0_2, %c0_3, %c0_4] : memref<1x8x256xf32, #tpu.memory_space<vmem>>, vector<1x8x256xf32>
    %3 = vector.shape_cast %2 : vector<1x8x256xf32> to vector<8x256xf32>
    %4 = arith.addf %1, %3 : vector<8x256xf32>
    %c0_5 = arith.constant 0 : index
    %c0_6 = arith.constant 0 : index
    %5 = vector.load %arg5[%c0_5, %c0_6] : memref<8x8xf32, #tpu.memory_space<vmem>>, vector<8x8xf32>
    %cst = arith.constant dense<0.000000e+00> : vector<8x256xf32>
    %6 = tpu.matmul %5, %4, %cst {dimension_numbers = #tpu.dot_dimension_numbers<[1], [0], [0], [1], [0, 0, 1, 1], [], []>} : vector<8x8xf32>, vector<8x256xf32>, vector<8x256xf32> -> vector<8x256xf32>
    %cst_7 = arith.constant dense<0.000000e+00> : vector<8xf32>
    %7 = vector.multi_reduction <add>, %6, %cst_7 [1] : vector<8x256xf32> to vector<8xf32>
    %8 = vector.shape_cast %7 : vector<8xf32> to vector<8x1xf32>
    %cst_8 = arith.constant 0.001953125 : f32
    %9 = vector.broadcast %cst_8 : f32 to vector<8x1xf32>
    %10 = arith.mulf %8, %9 : vector<8x1xf32>
    %11 = vector.broadcast %10 : vector<8x1xf32> to vector<8x256xf32>
    %12 = arith.subf %4, %11 : vector<8x256xf32>
    %c0_9 = arith.constant 0 : index
    %c0_10 = arith.constant 0 : index
    %13 = vector.load %arg5[%c0_9, %c0_10] : memref<8x8xf32, #tpu.memory_space<vmem>>, vector<8x8xf32>
    %14 = arith.mulf %12, %12 : vector<8x256xf32>
    %cst_11 = arith.constant dense<0.000000e+00> : vector<8x256xf32>
    %15 = tpu.matmul %13, %14, %cst_11 {dimension_numbers = #tpu.dot_dimension_numbers<[1], [0], [0], [1], [0, 0, 1, 1], [], []>} : vector<8x8xf32>, vector<8x256xf32>, vector<8x256xf32> -> vector<8x256xf32>
    %cst_12 = arith.constant dense<0.000000e+00> : vector<8xf32>
    %16 = vector.multi_reduction <add>, %15, %cst_12 [1] : vector<8x256xf32> to vector<8xf32>
    %17 = vector.shape_cast %16 : vector<8xf32> to vector<8x1xf32>
    %cst_13 = arith.constant 0.001953125 : f32
    %18 = vector.broadcast %cst_13 : f32 to vector<8x1xf32>
    %19 = arith.mulf %17, %18 : vector<8x1xf32>
    %cst_14 = arith.constant 9.99999997E-7 : f32
    %20 = vector.broadcast %cst_14 : f32 to vector<8x1xf32>
    %21 = arith.addf %19, %20 : vector<8x1xf32>
    %22 = math.rsqrt %21 : vector<8x1xf32>
    %23 = vector.broadcast %22 : vector<8x1xf32> to vector<8x256xf32>
    %24 = arith.mulf %12, %23 : vector<8x256xf32>
    %c0_15 = arith.constant 0 : index
    %c0_16 = arith.constant 0 : index
    %25 = vector.load %arg3[%c0_15, %c0_16] : memref<8x1xf32, #tpu.memory_space<vmem>>, vector<8x1xf32>
    %26 = vector.broadcast %25 : vector<8x1xf32> to vector<8x256xf32>
    %27 = arith.mulf %24, %26 : vector<8x256xf32>
    %c0_17 = arith.constant 0 : index
    %c0_18 = arith.constant 0 : index
    %28 = vector.load %arg4[%c0_17, %c0_18] : memref<8x1xf32, #tpu.memory_space<vmem>>, vector<8x1xf32>
    %29 = vector.broadcast %28 : vector<8x1xf32> to vector<8x256xf32>
    %30 = arith.addf %27, %29 : vector<8x256xf32>
    %c0_19 = arith.constant 0 : index
    %c0_20 = arith.constant 0 : index
    %c0_21 = arith.constant 0 : index
    %31 = vector.load %arg6[%c0_19, %c0_20, %c0_21] : memref<1x8x256xf32, #tpu.memory_space<vmem>>, vector<1x8x256xf32>
    %32 = vector.shape_cast %31 : vector<1x8x256xf32> to vector<8x256xf32>
    %33 = vector.shape_cast %30 : vector<8x256xf32> to vector<1x8x256xf32>
    tpu.vector_store %arg6[%c0_19, %c0_20, %c0_21], %33 {strides = array<i32>} : memref<1x8x256xf32, #tpu.memory_space<vmem>>, vector<1x8x256xf32>,
    return
  }
  func.func @transform_0(%arg0: i32) -> (i32, i32, i32) {
    %c0_i32 = arith.constant 0 : i32
    %c0_i32_0 = arith.constant 0 : i32
    %c0_i32_1 = arith.constant 0 : i32
    return %arg0, %c0_i32, %c0_i32_0 : i32, i32, i32
  }
  func.func @transform_1(%arg0: i32) -> (i32, i32, i32) {
    %c0_i32 = arith.constant 0 : i32
    %c0_i32_0 = arith.constant 0 : i32
    %c0_i32_1 = arith.constant 0 : i32
    return %arg0, %c0_i32, %c0_i32_0 : i32, i32, i32
  }
  func.func @transform_2(%arg0: i32) -> (i32, i32) {
    %c0_i32 = arith.constant 0 : i32
    %c0_i32_0 = arith.constant 0 : i32
    %c0_i32_1 = arith.constant 0 : i32
    return %c0_i32, %c0_i32_0 : i32, i32
  }
  func.func @transform_3(%arg0: i32) -> (i32, i32) {
    %c0_i32 = arith.constant 0 : i32
    %c0_i32_0 = arith.constant 0 : i32
    %c0_i32_1 = arith.constant 0 : i32
    return %c0_i32, %c0_i32_0 : i32, i32
  }
  func.func @transform_4(%arg0: i32) -> (i32, i32) {
    %c0_i32 = arith.constant 0 : i32
    %c0_i32_0 = arith.constant 0 : i32
    %c0_i32_1 = arith.constant 0 : i32
    return %c0_i32, %c0_i32_0 : i32, i32
  }
  func.func @transform_5(%arg0: i32) -> (i32, i32, i32) {
    %c0_i32 = arith.constant 0 : i32
    %c0_i32_0 = arith.constant 0 : i32
    %c0_i32_1 = arith.constant 0 : i32
    return %arg0, %c0_i32, %c0_i32_0 : i32, i32, i32
  }
}

module attributes {stable_mosaic.version = 11 : i64} {
  func.func @_split_kernel(%arg0: i32, %arg1: i32, %arg2: memref<1x8x256xf32, #tpu.memory_space<vmem>>, %arg3: memref<12x8xf32, #tpu.memory_space<vmem>>, %arg4: memref<12x1xf32, #tpu.memory_space<vmem>>, %arg5: memref<1x4x256xf32, #tpu.memory_space<vmem>>, %arg6: memref<1x4x256xf32, #tpu.memory_space<vmem>>) attributes {dimension_semantics = [#tpu.dimension_semantics<parallel>, #tpu.dimension_semantics<parallel>], iteration_bounds = array<i64: 2, 1>, scalar_prefetch = 0 : i64, scratch_operands = 0 : i64, tpu.core_type = #tpu.core_type<tc>, window_params = [{transform_indices = @transform_0, window_bounds = array<i64: 1, 8, 256>}, {pipeline_mode = #tpu.pipeline_mode<synchronous>, transform_indices = @transform_1, window_bounds = array<i64: 12, 8>}, {pipeline_mode = #tpu.pipeline_mode<synchronous>, transform_indices = @transform_2, window_bounds = array<i64: 12, 1>}, {transform_indices = @transform_3, window_bounds = array<i64: 1, 4, 256>}, {transform_indices = @transform_4, window_bounds = array<i64: 1, 4, 256>}]} {
    %c0 = arith.constant 0 : index
    %c0_0 = arith.constant 0 : index
    %0 = vector.load %arg3[%c0, %c0_0] : memref<12x8xf32, #tpu.memory_space<vmem>>, vector<12x8xf32>
    %c0_1 = arith.constant 0 : index
    %c0_2 = arith.constant 0 : index
    %c0_3 = arith.constant 0 : index
    %1 = vector.load %arg2[%c0_1, %c0_2, %c0_3] : memref<1x8x256xf32, #tpu.memory_space<vmem>>, vector<1x8x256xf32>
    %2 = vector.shape_cast %1 : vector<1x8x256xf32> to vector<8x256xf32>
    %cst = arith.constant dense<0.000000e+00> : vector<12x256xf32>
    %3 = tpu.matmul %0, %2, %cst {dimension_numbers = #tpu.dot_dimension_numbers<[1], [0], [0], [1], [0, 0, 1, 1], [], []>} : vector<12x8xf32>, vector<8x256xf32>, vector<12x256xf32> -> vector<12x256xf32>
    %c0_4 = arith.constant 0 : index
    %c0_5 = arith.constant 0 : index
    %4 = vector.load %arg4[%c0_4, %c0_5] : memref<12x1xf32, #tpu.memory_space<vmem>>, vector<12x1xf32>
    %5 = vector.broadcast %4 : vector<12x1xf32> to vector<12x256xf32>
    %6 = arith.addf %3, %5 : vector<12x256xf32>
    %7 = vector.extract_strided_slice %6 {offsets = [0, 0], sizes = [4, 256], strides = [1, 1]} : vector<12x256xf32> to vector<4x256xf32>
    %c0_6 = arith.constant 0 : index
    %c0_7 = arith.constant 0 : index
    %c0_8 = arith.constant 0 : index
    %8 = vector.load %arg5[%c0_6, %c0_7, %c0_8] : memref<1x4x256xf32, #tpu.memory_space<vmem>>, vector<1x4x256xf32>
    %9 = vector.shape_cast %8 : vector<1x4x256xf32> to vector<4x256xf32>
    %10 = vector.shape_cast %7 : vector<4x256xf32> to vector<1x4x256xf32>
    tpu.vector_store %arg5[%c0_6, %c0_7, %c0_8], %10 {strides = array<i32>} : memref<1x4x256xf32, #tpu.memory_space<vmem>>, vector<1x4x256xf32>,
    %11 = vector.extract_strided_slice %6 {offsets = [8, 0], sizes = [4, 256], strides = [1, 1]} : vector<12x256xf32> to vector<4x256xf32>
    %12 = arith.negf %11 : vector<4x256xf32>
    %13 = math.exp %12 : vector<4x256xf32>
    %cst_9 = arith.constant 1.000000e+00 : f32
    %14 = vector.broadcast %cst_9 : f32 to vector<4x256xf32>
    %15 = arith.addf %14, %13 : vector<4x256xf32>
    %16 = arith.divf %14, %15 : vector<4x256xf32>
    %17 = arith.mulf %11, %16 : vector<4x256xf32>
    %c0_10 = arith.constant 0 : index
    %c0_11 = arith.constant 0 : index
    %c0_12 = arith.constant 0 : index
    %18 = vector.load %arg6[%c0_10, %c0_11, %c0_12] : memref<1x4x256xf32, #tpu.memory_space<vmem>>, vector<1x4x256xf32>
    %19 = vector.shape_cast %18 : vector<1x4x256xf32> to vector<4x256xf32>
    %20 = vector.shape_cast %17 : vector<4x256xf32> to vector<1x4x256xf32>
    tpu.vector_store %arg6[%c0_10, %c0_11, %c0_12], %20 {strides = array<i32>} : memref<1x4x256xf32, #tpu.memory_space<vmem>>, vector<1x4x256xf32>,
    return
  }
  func.func @transform_0(%arg0: i32, %arg1: i32) -> (i32, i32, i32) {
    %c0_i32 = arith.constant 0 : i32
    %c0_i32_0 = arith.constant 0 : i32
    return %arg0, %c0_i32, %arg1 : i32, i32, i32
  }
  func.func @transform_1(%arg0: i32, %arg1: i32) -> (i32, i32) {
    %c0_i32 = arith.constant 0 : i32
    %c0_i32_0 = arith.constant 0 : i32
    %c0_i32_1 = arith.constant 0 : i32
    return %c0_i32, %c0_i32_0 : i32, i32
  }
  func.func @transform_2(%arg0: i32, %arg1: i32) -> (i32, i32) {
    %c0_i32 = arith.constant 0 : i32
    %c0_i32_0 = arith.constant 0 : i32
    %c0_i32_1 = arith.constant 0 : i32
    return %c0_i32, %c0_i32_0 : i32, i32
  }
  func.func @transform_3(%arg0: i32, %arg1: i32) -> (i32, i32, i32) {
    %c0_i32 = arith.constant 0 : i32
    %c0_i32_0 = arith.constant 0 : i32
    return %arg0, %c0_i32, %arg1 : i32, i32, i32
  }
  func.func @transform_4(%arg0: i32, %arg1: i32) -> (i32, i32, i32) {
    %c0_i32 = arith.constant 0 : i32
    %c0_i32_0 = arith.constant 0 : i32
    return %arg0, %c0_i32, %arg1 : i32, i32, i32
  }
}

module attributes {stable_mosaic.version = 11 : i64} {
  func.func @_spectral_kernel(%arg0: i32, %arg1: i32, %arg2: memref<1x4x144xf32, #tpu.memory_space<vmem>>, %arg3: memref<1x4x144xf32, #tpu.memory_space<vmem>>, %arg4: memref<1x4x144xf32, #tpu.memory_space<vmem>>, %arg5: memref<8x16xf32, #tpu.memory_space<vmem>>, %arg6: memref<8x1xf32, #tpu.memory_space<vmem>>, %arg7: memref<12x8xf32, #tpu.memory_space<vmem>>, %arg8: memref<12x1xf32, #tpu.memory_space<vmem>>, %arg9: memref<1x4x144xf32, #tpu.memory_space<vmem>>, %arg10: memref<1x4x144xf32, #tpu.memory_space<vmem>>, %arg11: memref<16x144xf32, #tpu.memory_space<vmem>>) attributes {dimension_semantics = [#tpu.dimension_semantics<parallel>, #tpu.dimension_semantics<parallel>], iteration_bounds = array<i64: 2, 1>, scalar_prefetch = 0 : i64, scratch_operands = 1 : i64, tpu.core_type = #tpu.core_type<tc>, window_params = [{transform_indices = @transform_0, window_bounds = array<i64: 1, 4, 144>}, {transform_indices = @transform_1, window_bounds = array<i64: 1, 4, 144>}, {transform_indices = @transform_2, window_bounds = array<i64: 1, 4, 144>}, {pipeline_mode = #tpu.pipeline_mode<synchronous>, transform_indices = @transform_3, window_bounds = array<i64: 8, 16>}, {pipeline_mode = #tpu.pipeline_mode<synchronous>, transform_indices = @transform_4, window_bounds = array<i64: 8, 1>}, {pipeline_mode = #tpu.pipeline_mode<synchronous>, transform_indices = @transform_5, window_bounds = array<i64: 12, 8>}, {pipeline_mode = #tpu.pipeline_mode<synchronous>, transform_indices = @transform_6, window_bounds = array<i64: 12, 1>}, {transform_indices = @transform_7, window_bounds = array<i64: 1, 4, 144>}, {transform_indices = @transform_8, window_bounds = array<i64: 1, 4, 144>}]} {
    %c0 = arith.constant 0 : index
    %c0_0 = arith.constant 0 : index
    %c0_1 = arith.constant 0 : index
    %0 = vector.load %arg2[%c0, %c0_0, %c0_1] : memref<1x4x144xf32, #tpu.memory_space<vmem>>, vector<1x4x144xf32>
    %1 = vector.shape_cast %0 : vector<1x4x144xf32> to vector<4x144xf32>
    %c0_2 = arith.constant 0 : index
    %c0_3 = arith.constant 0 : index
    %c0_4 = arith.constant 0 : index
    %2 = vector.load %arg3[%c0_2, %c0_3, %c0_4] : memref<1x4x144xf32, #tpu.memory_space<vmem>>, vector<1x4x144xf32>
    %3 = vector.shape_cast %2 : vector<1x4x144xf32> to vector<4x144xf32>
    %cst = arith.constant 0.000000e+00 : f32
    %4 = vector.broadcast %cst : f32 to vector<16x144xf32>
    %c0_5 = arith.constant 0 : index
    %c0_6 = arith.constant 0 : index
    %5 = vector.load %arg11[%c0_5, %c0_6] : memref<16x144xf32, #tpu.memory_space<vmem>>, vector<16x144xf32>
    tpu.vector_store %arg11[%c0_5, %c0_6], %4 {strides = array<i32>} : memref<16x144xf32, #tpu.memory_space<vmem>>, vector<16x144xf32>,
    %6 = arith.mulf %1, %1 : vector<4x144xf32>
    %7 = arith.mulf %3, %3 : vector<4x144xf32>
    %8 = arith.addf %6, %7 : vector<4x144xf32>
    %9 = math.sqrt %8 : vector<4x144xf32>
    %c0_7 = arith.constant 0 : index
    %c0_8 = arith.constant 0 : index
    %10 = vector.load %arg11[%c0_7, %c0_8] : memref<16x144xf32, #tpu.memory_space<vmem>>, vector<4x144xf32>
    tpu.vector_store %arg11[%c0_7, %c0_8], %9 {strides = array<i32>} : memref<16x144xf32, #tpu.memory_space<vmem>>, vector<4x144xf32>,
    %c0_9 = arith.constant 0 : index
    %c0_10 = arith.constant 0 : index
    %c0_11 = arith.constant 0 : index
    %11 = vector.load %arg4[%c0_9, %c0_10, %c0_11] : memref<1x4x144xf32, #tpu.memory_space<vmem>>, vector<1x4x144xf32>
    %12 = vector.shape_cast %11 : vector<1x4x144xf32> to vector<4x144xf32>
    %c8 = arith.constant 8 : index
    %c0_12 = arith.constant 0 : index
    %13 = vector.load %arg11[%c8, %c0_12] : memref<16x144xf32, #tpu.memory_space<vmem>>, vector<4x144xf32>
    tpu.vector_store %arg11[%c8, %c0_12], %12 {strides = array<i32>} : memref<16x144xf32, #tpu.memory_space<vmem>>, vector<4x144xf32>,
    %c0_13 = arith.constant 0 : index
    %c0_14 = arith.constant 0 : index
    %14 = vector.load %arg5[%c0_13, %c0_14] : memref<8x16xf32, #tpu.memory_space<vmem>>, vector<8x16xf32>
    %c0_15 = arith.constant 0 : index
    %c0_16 = arith.constant 0 : index
    %15 = vector.load %arg11[%c0_15, %c0_16] : memref<16x144xf32, #tpu.memory_space<vmem>>, vector<16x144xf32>
    %cst_17 = arith.constant dense<0.000000e+00> : vector<8x144xf32>
    %16 = tpu.matmul %14, %15, %cst_17 {dimension_numbers = #tpu.dot_dimension_numbers<[1], [0], [0], [1], [0, 0, 1, 1], [], []>} : vector<8x16xf32>, vector<16x144xf32>, vector<8x144xf32> -> vector<8x144xf32>
    %c0_18 = arith.constant 0 : index
    %c0_19 = arith.constant 0 : index
    %17 = vector.load %arg6[%c0_18, %c0_19] : memref<8x1xf32, #tpu.memory_space<vmem>>, vector<8x1xf32>
    %18 = vector.broadcast %17 : vector<8x1xf32> to vector<8x144xf32>
    %19 = arith.addf %16, %18 : vector<8x144xf32>
    %cst_20 = arith.constant 0.000000e+00 : f32
    %20 = vector.broadcast %cst_20 : f32 to vector<8x144xf32>
    %21 = arith.cmpf oge, %19, %20 : vector<8x144xf32>
    %cst_21 = arith.constant 1.000000e-01 : f32
    %22 = vector.broadcast %cst_21 : f32 to vector<8x144xf32>
    %23 = arith.mulf %22, %19 : vector<8x144xf32>
    %24 = arith.select %21, %19, %23 : vector<8x144xi1>, vector<8x144xf32>
    %c0_22 = arith.constant 0 : index
    %c0_23 = arith.constant 0 : index
    %25 = vector.load %arg7[%c0_22, %c0_23] : memref<12x8xf32, #tpu.memory_space<vmem>>, vector<12x8xf32>
    %cst_24 = arith.constant dense<0.000000e+00> : vector<12x144xf32>
    %26 = tpu.matmul %25, %24, %cst_24 {dimension_numbers = #tpu.dot_dimension_numbers<[1], [0], [0], [1], [0, 0, 1, 1], [], []>} : vector<12x8xf32>, vector<8x144xf32>, vector<12x144xf32> -> vector<12x144xf32>
    %c0_25 = arith.constant 0 : index
    %c0_26 = arith.constant 0 : index
    %27 = vector.load %arg8[%c0_25, %c0_26] : memref<12x1xf32, #tpu.memory_space<vmem>>, vector<12x1xf32>
    %28 = vector.broadcast %27 : vector<12x1xf32> to vector<12x144xf32>
    %29 = arith.addf %26, %28 : vector<12x144xf32>
    %30 = vector.extract_strided_slice %29 {offsets = [0, 0], sizes = [4, 144], strides = [1, 1]} : vector<12x144xf32> to vector<4x144xf32>
    %31 = vector.extract_strided_slice %29 {offsets = [8, 0], sizes = [4, 144], strides = [1, 1]} : vector<12x144xf32> to vector<4x144xf32>
    %32 = math.cos %31 : vector<4x144xf32>
    %33 = arith.mulf %30, %32 : vector<4x144xf32>
    %34 = math.sin %31 : vector<4x144xf32>
    %35 = arith.mulf %30, %34 : vector<4x144xf32>
    %36 = arith.mulf %33, %1 : vector<4x144xf32>
    %37 = arith.mulf %35, %3 : vector<4x144xf32>
    %38 = arith.subf %36, %37 : vector<4x144xf32>
    %39 = arith.mulf %33, %3 : vector<4x144xf32>
    %40 = arith.mulf %35, %1 : vector<4x144xf32>
    %41 = arith.addf %39, %40 : vector<4x144xf32>
    %c0_27 = arith.constant 0 : index
    %c0_28 = arith.constant 0 : index
    %c0_29 = arith.constant 0 : index
    %42 = vector.load %arg9[%c0_27, %c0_28, %c0_29] : memref<1x4x144xf32, #tpu.memory_space<vmem>>, vector<1x4x144xf32>
    %43 = vector.shape_cast %42 : vector<1x4x144xf32> to vector<4x144xf32>
    %44 = vector.shape_cast %38 : vector<4x144xf32> to vector<1x4x144xf32>
    tpu.vector_store %arg9[%c0_27, %c0_28, %c0_29], %44 {strides = array<i32>} : memref<1x4x144xf32, #tpu.memory_space<vmem>>, vector<1x4x144xf32>,
    %c0_30 = arith.constant 0 : index
    %c0_31 = arith.constant 0 : index
    %c0_32 = arith.constant 0 : index
    %45 = vector.load %arg10[%c0_30, %c0_31, %c0_32] : memref<1x4x144xf32, #tpu.memory_space<vmem>>, vector<1x4x144xf32>
    %46 = vector.shape_cast %45 : vector<1x4x144xf32> to vector<4x144xf32>
    %47 = vector.shape_cast %41 : vector<4x144xf32> to vector<1x4x144xf32>
    tpu.vector_store %arg10[%c0_30, %c0_31, %c0_32], %47 {strides = array<i32>} : memref<1x4x144xf32, #tpu.memory_space<vmem>>, vector<1x4x144xf32>,
    return
  }
  func.func @transform_0(%arg0: i32, %arg1: i32) -> (i32, i32, i32) {
    %c0_i32 = arith.constant 0 : i32
    %c0_i32_0 = arith.constant 0 : i32
    return %arg0, %c0_i32, %arg1 : i32, i32, i32
  }
  func.func @transform_1(%arg0: i32, %arg1: i32) -> (i32, i32, i32) {
    %c0_i32 = arith.constant 0 : i32
    %c0_i32_0 = arith.constant 0 : i32
    return %arg0, %c0_i32, %arg1 : i32, i32, i32
  }
  func.func @transform_2(%arg0: i32, %arg1: i32) -> (i32, i32, i32) {
    %c0_i32 = arith.constant 0 : i32
    %c0_i32_0 = arith.constant 0 : i32
    return %arg0, %c0_i32, %arg1 : i32, i32, i32
  }
  func.func @transform_3(%arg0: i32, %arg1: i32) -> (i32, i32) {
    %c0_i32 = arith.constant 0 : i32
    %c0_i32_0 = arith.constant 0 : i32
    %c0_i32_1 = arith.constant 0 : i32
    return %c0_i32, %c0_i32_0 : i32, i32
  }
  func.func @transform_4(%arg0: i32, %arg1: i32) -> (i32, i32) {
    %c0_i32 = arith.constant 0 : i32
    %c0_i32_0 = arith.constant 0 : i32
    %c0_i32_1 = arith.constant 0 : i32
    return %c0_i32, %c0_i32_0 : i32, i32
  }
  func.func @transform_5(%arg0: i32, %arg1: i32) -> (i32, i32) {
    %c0_i32 = arith.constant 0 : i32
    %c0_i32_0 = arith.constant 0 : i32
    %c0_i32_1 = arith.constant 0 : i32
    return %c0_i32, %c0_i32_0 : i32, i32
  }
  func.func @transform_6(%arg0: i32, %arg1: i32) -> (i32, i32) {
    %c0_i32 = arith.constant 0 : i32
    %c0_i32_0 = arith.constant 0 : i32
    %c0_i32_1 = arith.constant 0 : i32
    return %c0_i32, %c0_i32_0 : i32, i32
  }
  func.func @transform_7(%arg0: i32, %arg1: i32) -> (i32, i32, i32) {
    %c0_i32 = arith.constant 0 : i32
    %c0_i32_0 = arith.constant 0 : i32
    return %arg0, %c0_i32, %arg1 : i32, i32, i32
  }
  func.func @transform_8(%arg0: i32, %arg1: i32) -> (i32, i32, i32) {
    %c0_i32 = arith.constant 0 : i32
    %c0_i32_0 = arith.constant 0 : i32
    return %arg0, %c0_i32, %arg1 : i32, i32, i32
  }
}

module attributes {stable_mosaic.version = 11 : i64} {
  func.func @_dwsep_kernel(%arg0: i32, %arg1: memref<1x4x290xf32, #tpu.memory_space<vmem>>, %arg2: memref<1x256xf32, #tpu.memory_space<vmem>>, %arg3: memref<1x256xf32, #tpu.memory_space<vmem>>, %arg4: memref<9x4x4xf32, #tpu.memory_space<vmem>>, %arg5: memref<4x1xf32, #tpu.memory_space<vmem>>, %arg6: memref<1x4x256xf32, #tpu.memory_space<vmem>>) attributes {dimension_semantics = [#tpu.dimension_semantics<parallel>], iteration_bounds = array<i64: 2>, scalar_prefetch = 0 : i64, scratch_operands = 0 : i64, tpu.core_type = #tpu.core_type<tc>, window_params = [{transform_indices = @transform_0, window_bounds = array<i64: 1, 4, 290>}, {pipeline_mode = #tpu.pipeline_mode<synchronous>, transform_indices = @transform_1, window_bounds = array<i64: 1, 256>}, {pipeline_mode = #tpu.pipeline_mode<synchronous>, transform_indices = @transform_2, window_bounds = array<i64: 1, 256>}, {pipeline_mode = #tpu.pipeline_mode<synchronous>, transform_indices = @transform_3, window_bounds = array<i64: 9, 4, 4>}, {pipeline_mode = #tpu.pipeline_mode<synchronous>, transform_indices = @transform_4, window_bounds = array<i64: 4, 1>}, {transform_indices = @transform_5, window_bounds = array<i64: 1, 4, 256>}]} {
    %c0 = arith.constant 0 : index
    %c0_0 = arith.constant 0 : index
    %c0_1 = arith.constant 0 : index
    %0 = vector.load %arg1[%c0, %c0_0, %c0_1] : memref<1x4x290xf32, #tpu.memory_space<vmem>>, vector<1x4x290xf32>
    %1 = vector.shape_cast %0 : vector<1x4x290xf32> to vector<4x290xf32>
    %c0_2 = arith.constant 0 : index
    %c0_3 = arith.constant 0 : index
    %c0_4 = arith.constant 0 : index
    %2 = vector.load %arg4[%c0_2, %c0_3, %c0_4] : memref<9x4x4xf32, #tpu.memory_space<vmem>>, vector<1x4x4xf32>
    %3 = vector.shape_cast %2 : vector<1x4x4xf32> to vector<4x4xf32>
    %4 = vector.extract_strided_slice %1 {offsets = [0, 0], sizes = [4, 256], strides = [1, 1]} : vector<4x290xf32> to vector<4x256xf32>
    %cst = arith.constant dense<0.000000e+00> : vector<4x256xf32>
    %5 = tpu.matmul %3, %4, %cst {dimension_numbers = #tpu.dot_dimension_numbers<[1], [0], [0], [1], [0, 0, 1, 1], [], []>} : vector<4x4xf32>, vector<4x256xf32>, vector<4x256xf32> -> vector<4x256xf32>
    %c3 = arith.constant 3 : index
    %c0_5 = arith.constant 0 : index
    %c0_6 = arith.constant 0 : index
    %6 = vector.load %arg4[%c3, %c0_5, %c0_6] : memref<9x4x4xf32, #tpu.memory_space<vmem>>, vector<1x4x4xf32>
    %7 = vector.shape_cast %6 : vector<1x4x4xf32> to vector<4x4xf32>
    %8 = vector.extract_strided_slice %1 {offsets = [0, 16], sizes = [4, 256], strides = [1, 1]} : vector<4x290xf32> to vector<4x256xf32>
    %cst_7 = arith.constant dense<0.000000e+00> : vector<4x256xf32>
    %9 = tpu.matmul %7, %8, %cst_7 {dimension_numbers = #tpu.dot_dimension_numbers<[1], [0], [0], [1], [0, 0, 1, 1], [], []>} : vector<4x4xf32>, vector<4x256xf32>, vector<4x256xf32> -> vector<4x256xf32>
    %10 = arith.addf %5, %9 : vector<4x256xf32>
    %c6 = arith.constant 6 : index
    %c0_8 = arith.constant 0 : index
    %c0_9 = arith.constant 0 : index
    %11 = vector.load %arg4[%c6, %c0_8, %c0_9] : memref<9x4x4xf32, #tpu.memory_space<vmem>>, vector<1x4x4xf32>
    %12 = vector.shape_cast %11 : vector<1x4x4xf32> to vector<4x4xf32>
    %13 = vector.extract_strided_slice %1 {offsets = [0, 32], sizes = [4, 256], strides = [1, 1]} : vector<4x290xf32> to vector<4x256xf32>
    %cst_10 = arith.constant dense<0.000000e+00> : vector<4x256xf32>
    %14 = tpu.matmul %12, %13, %cst_10 {dimension_numbers = #tpu.dot_dimension_numbers<[1], [0], [0], [1], [0, 0, 1, 1], [], []>} : vector<4x4xf32>, vector<4x256xf32>, vector<4x256xf32> -> vector<4x256xf32>
    %15 = arith.addf %10, %14 : vector<4x256xf32>
    %c1 = arith.constant 1 : index
    %c0_11 = arith.constant 0 : index
    %c0_12 = arith.constant 0 : index
    %16 = vector.load %arg4[%c1, %c0_11, %c0_12] : memref<9x4x4xf32, #tpu.memory_space<vmem>>, vector<1x4x4xf32>
    %17 = vector.shape_cast %16 : vector<1x4x4xf32> to vector<4x4xf32>
    %18 = vector.extract_strided_slice %1 {offsets = [0, 1], sizes = [4, 256], strides = [1, 1]} : vector<4x290xf32> to vector<4x256xf32>
    %cst_13 = arith.constant dense<0.000000e+00> : vector<4x256xf32>
    %19 = tpu.matmul %17, %18, %cst_13 {dimension_numbers = #tpu.dot_dimension_numbers<[1], [0], [0], [1], [0, 0, 1, 1], [], []>} : vector<4x4xf32>, vector<4x256xf32>, vector<4x256xf32> -> vector<4x256xf32>
    %c4 = arith.constant 4 : index
    %c0_14 = arith.constant 0 : index
    %c0_15 = arith.constant 0 : index
    %20 = vector.load %arg4[%c4, %c0_14, %c0_15] : memref<9x4x4xf32, #tpu.memory_space<vmem>>, vector<1x4x4xf32>
    %21 = vector.shape_cast %20 : vector<1x4x4xf32> to vector<4x4xf32>
    %22 = vector.extract_strided_slice %1 {offsets = [0, 17], sizes = [4, 256], strides = [1, 1]} : vector<4x290xf32> to vector<4x256xf32>
    %cst_16 = arith.constant dense<0.000000e+00> : vector<4x256xf32>
    %23 = tpu.matmul %21, %22, %cst_16 {dimension_numbers = #tpu.dot_dimension_numbers<[1], [0], [0], [1], [0, 0, 1, 1], [], []>} : vector<4x4xf32>, vector<4x256xf32>, vector<4x256xf32> -> vector<4x256xf32>
    %24 = arith.addf %19, %23 : vector<4x256xf32>
    %c7 = arith.constant 7 : index
    %c0_17 = arith.constant 0 : index
    %c0_18 = arith.constant 0 : index
    %25 = vector.load %arg4[%c7, %c0_17, %c0_18] : memref<9x4x4xf32, #tpu.memory_space<vmem>>, vector<1x4x4xf32>
    %26 = vector.shape_cast %25 : vector<1x4x4xf32> to vector<4x4xf32>
    %27 = vector.extract_strided_slice %1 {offsets = [0, 33], sizes = [4, 256], strides = [1, 1]} : vector<4x290xf32> to vector<4x256xf32>
    %cst_19 = arith.constant dense<0.000000e+00> : vector<4x256xf32>
    %28 = tpu.matmul %26, %27, %cst_19 {dimension_numbers = #tpu.dot_dimension_numbers<[1], [0], [0], [1], [0, 0, 1, 1], [], []>} : vector<4x4xf32>, vector<4x256xf32>, vector<4x256xf32> -> vector<4x256xf32>
    %29 = arith.addf %24, %28 : vector<4x256xf32>
    %c2 = arith.constant 2 : index
    %c0_20 = arith.constant 0 : index
    %c0_21 = arith.constant 0 : index
    %30 = vector.load %arg4[%c2, %c0_20, %c0_21] : memref<9x4x4xf32, #tpu.memory_space<vmem>>, vector<1x4x4xf32>
    %31 = vector.shape_cast %30 : vector<1x4x4xf32> to vector<4x4xf32>
    %32 = vector.extract_strided_slice %1 {offsets = [0, 2], sizes = [4, 256], strides = [1, 1]} : vector<4x290xf32> to vector<4x256xf32>
    %cst_22 = arith.constant dense<0.000000e+00> : vector<4x256xf32>
    %33 = tpu.matmul %31, %32, %cst_22 {dimension_numbers = #tpu.dot_dimension_numbers<[1], [0], [0], [1], [0, 0, 1, 1], [], []>} : vector<4x4xf32>, vector<4x256xf32>, vector<4x256xf32> -> vector<4x256xf32>
    %c5 = arith.constant 5 : index
    %c0_23 = arith.constant 0 : index
    %c0_24 = arith.constant 0 : index
    %34 = vector.load %arg4[%c5, %c0_23, %c0_24] : memref<9x4x4xf32, #tpu.memory_space<vmem>>, vector<1x4x4xf32>
    %35 = vector.shape_cast %34 : vector<1x4x4xf32> to vector<4x4xf32>
    %36 = vector.extract_strided_slice %1 {offsets = [0, 18], sizes = [4, 256], strides = [1, 1]} : vector<4x290xf32> to vector<4x256xf32>
    %cst_25 = arith.constant dense<0.000000e+00> : vector<4x256xf32>
    %37 = tpu.matmul %35, %36, %cst_25 {dimension_numbers = #tpu.dot_dimension_numbers<[1], [0], [0], [1], [0, 0, 1, 1], [], []>} : vector<4x4xf32>, vector<4x256xf32>, vector<4x256xf32> -> vector<4x256xf32>
    %38 = arith.addf %33, %37 : vector<4x256xf32>
    %c8 = arith.constant 8 : index
    %c0_26 = arith.constant 0 : index
    %c0_27 = arith.constant 0 : index
    %39 = vector.load %arg4[%c8, %c0_26, %c0_27] : memref<9x4x4xf32, #tpu.memory_space<vmem>>, vector<1x4x4xf32>
    %40 = vector.shape_cast %39 : vector<1x4x4xf32> to vector<4x4xf32>
    %41 = vector.extract_strided_slice %1 {offsets = [0, 34], sizes = [4, 256], strides = [1, 1]} : vector<4x290xf32> to vector<4x256xf32>
    %cst_28 = arith.constant dense<0.000000e+00> : vector<4x256xf32>
    %42 = tpu.matmul %40, %41, %cst_28 {dimension_numbers = #tpu.dot_dimension_numbers<[1], [0], [0], [1], [0, 0, 1, 1], [], []>} : vector<4x4xf32>, vector<4x256xf32>, vector<4x256xf32> -> vector<4x256xf32>
    %43 = arith.addf %38, %42 : vector<4x256xf32>
    %c0_29 = arith.constant 0 : index
    %c0_30 = arith.constant 0 : index
    %44 = vector.load %arg2[%c0_29, %c0_30] : memref<1x256xf32, #tpu.memory_space<vmem>>, vector<1x256xf32>
    %45 = vector.broadcast %44 : vector<1x256xf32> to vector<4x256xf32>
    %46 = arith.mulf %45, %15 : vector<4x256xf32>
    %47 = arith.addf %29, %46 : vector<4x256xf32>
    %c0_31 = arith.constant 0 : index
    %c0_32 = arith.constant 0 : index
    %48 = vector.load %arg3[%c0_31, %c0_32] : memref<1x256xf32, #tpu.memory_space<vmem>>, vector<1x256xf32>
    %49 = vector.broadcast %48 : vector<1x256xf32> to vector<4x256xf32>
    %50 = arith.mulf %49, %43 : vector<4x256xf32>
    %51 = arith.addf %47, %50 : vector<4x256xf32>
    %c0_33 = arith.constant 0 : index
    %c0_34 = arith.constant 0 : index
    %52 = vector.load %arg5[%c0_33, %c0_34] : memref<4x1xf32, #tpu.memory_space<vmem>>, vector<4x1xf32>
    %53 = vector.broadcast %52 : vector<4x1xf32> to vector<4x256xf32>
    %54 = arith.addf %51, %53 : vector<4x256xf32>
    %c0_35 = arith.constant 0 : index
    %c0_36 = arith.constant 0 : index
    %c0_37 = arith.constant 0 : index
    %55 = vector.load %arg6[%c0_35, %c0_36, %c0_37] : memref<1x4x256xf32, #tpu.memory_space<vmem>>, vector<1x4x256xf32>
    %56 = vector.shape_cast %55 : vector<1x4x256xf32> to vector<4x256xf32>
    %57 = vector.shape_cast %54 : vector<4x256xf32> to vector<1x4x256xf32>
    tpu.vector_store %arg6[%c0_35, %c0_36, %c0_37], %57 {strides = array<i32>} : memref<1x4x256xf32, #tpu.memory_space<vmem>>, vector<1x4x256xf32>,
    return
  }
  func.func @transform_0(%arg0: i32) -> (i32, i32, i32) {
    %c0_i32 = arith.constant 0 : i32
    %c0_i32_0 = arith.constant 0 : i32
    %c0_i32_1 = arith.constant 0 : i32
    return %arg0, %c0_i32, %c0_i32_0 : i32, i32, i32
  }
  func.func @transform_1(%arg0: i32) -> (i32, i32) {
    %c0_i32 = arith.constant 0 : i32
    %c0_i32_0 = arith.constant 0 : i32
    %c0_i32_1 = arith.constant 0 : i32
    return %c0_i32, %c0_i32_0 : i32, i32
  }
  func.func @transform_2(%arg0: i32) -> (i32, i32) {
    %c0_i32 = arith.constant 0 : i32
    %c0_i32_0 = arith.constant 0 : i32
    %c0_i32_1 = arith.constant 0 : i32
    return %c0_i32, %c0_i32_0 : i32, i32
  }
  func.func @transform_3(%arg0: i32) -> (i32, i32, i32) {
    %c0_i32 = arith.constant 0 : i32
    %c0_i32_0 = arith.constant 0 : i32
    %c0_i32_1 = arith.constant 0 : i32
    %c0_i32_2 = arith.constant 0 : i32
    return %c0_i32, %c0_i32_0, %c0_i32_1 : i32, i32, i32
  }
  func.func @transform_4(%arg0: i32) -> (i32, i32) {
    %c0_i32 = arith.constant 0 : i32
    %c0_i32_0 = arith.constant 0 : i32
    %c0_i32_1 = arith.constant 0 : i32
    return %c0_i32, %c0_i32_0 : i32, i32
  }
  func.func @transform_5(%arg0: i32) -> (i32, i32, i32) {
    %c0_i32 = arith.constant 0 : i32
    %c0_i32_0 = arith.constant 0 : i32
    %c0_i32_1 = arith.constant 0 : i32
    return %arg0, %c0_i32, %c0_i32_0 : i32, i32, i32
  }
}

module attributes {stable_mosaic.version = 11 : i64} {
  func.func @_gn_kernel(%arg0: i32, %arg1: memref<1x4x256xf32, #tpu.memory_space<vmem>>, %arg2: memref<4x1xf32, #tpu.memory_space<vmem>>, %arg3: memref<4x1xf32, #tpu.memory_space<vmem>>, %arg4: memref<4x4xf32, #tpu.memory_space<vmem>>, %arg5: memref<1x4x256xf32, #tpu.memory_space<vmem>>) attributes {dimension_semantics = [#tpu.dimension_semantics<parallel>], iteration_bounds = array<i64: 2>, scalar_prefetch = 0 : i64, scratch_operands = 0 : i64, tpu.core_type = #tpu.core_type<tc>, window_params = [{transform_indices = @transform_0, window_bounds = array<i64: 1, 4, 256>}, {pipeline_mode = #tpu.pipeline_mode<synchronous>, transform_indices = @transform_1, window_bounds = array<i64: 4, 1>}, {pipeline_mode = #tpu.pipeline_mode<synchronous>, transform_indices = @transform_2, window_bounds = array<i64: 4, 1>}, {pipeline_mode = #tpu.pipeline_mode<synchronous>, transform_indices = @transform_3, window_bounds = array<i64: 4, 4>}, {transform_indices = @transform_4, window_bounds = array<i64: 1, 4, 256>}]} {
    %c0 = arith.constant 0 : index
    %c0_0 = arith.constant 0 : index
    %c0_1 = arith.constant 0 : index
    %0 = vector.load %arg1[%c0, %c0_0, %c0_1] : memref<1x4x256xf32, #tpu.memory_space<vmem>>, vector<1x4x256xf32>
    %1 = vector.shape_cast %0 : vector<1x4x256xf32> to vector<4x256xf32>
    %c0_2 = arith.constant 0 : index
    %c0_3 = arith.constant 0 : index
    %2 = vector.load %arg4[%c0_2, %c0_3] : memref<4x4xf32, #tpu.memory_space<vmem>>, vector<4x4xf32>
    %cst = arith.constant dense<0.000000e+00> : vector<4x256xf32>
    %3 = tpu.matmul %2, %1, %cst {dimension_numbers = #tpu.dot_dimension_numbers<[1], [0], [0], [1], [0, 0, 1, 1], [], []>} : vector<4x4xf32>, vector<4x256xf32>, vector<4x256xf32> -> vector<4x256xf32>
    %cst_4 = arith.constant dense<0.000000e+00> : vector<4xf32>
    %4 = vector.multi_reduction <add>, %3, %cst_4 [1] : vector<4x256xf32> to vector<4xf32>
    %5 = vector.shape_cast %4 : vector<4xf32> to vector<4x1xf32>
    %cst_5 = arith.constant 3.906250e-03 : f32
    %6 = vector.broadcast %cst_5 : f32 to vector<4x1xf32>
    %7 = arith.mulf %5, %6 : vector<4x1xf32>
    %8 = vector.broadcast %7 : vector<4x1xf32> to vector<4x256xf32>
    %9 = arith.subf %1, %8 : vector<4x256xf32>
    %c0_6 = arith.constant 0 : index
    %c0_7 = arith.constant 0 : index
    %10 = vector.load %arg4[%c0_6, %c0_7] : memref<4x4xf32, #tpu.memory_space<vmem>>, vector<4x4xf32>
    %11 = arith.mulf %9, %9 : vector<4x256xf32>
    %cst_8 = arith.constant dense<0.000000e+00> : vector<4x256xf32>
    %12 = tpu.matmul %10, %11, %cst_8 {dimension_numbers = #tpu.dot_dimension_numbers<[1], [0], [0], [1], [0, 0, 1, 1], [], []>} : vector<4x4xf32>, vector<4x256xf32>, vector<4x256xf32> -> vector<4x256xf32>
    %cst_9 = arith.constant dense<0.000000e+00> : vector<4xf32>
    %13 = vector.multi_reduction <add>, %12, %cst_9 [1] : vector<4x256xf32> to vector<4xf32>
    %14 = vector.shape_cast %13 : vector<4xf32> to vector<4x1xf32>
    %cst_10 = arith.constant 3.906250e-03 : f32
    %15 = vector.broadcast %cst_10 : f32 to vector<4x1xf32>
    %16 = arith.mulf %14, %15 : vector<4x1xf32>
    %cst_11 = arith.constant 9.99999997E-7 : f32
    %17 = vector.broadcast %cst_11 : f32 to vector<4x1xf32>
    %18 = arith.addf %16, %17 : vector<4x1xf32>
    %19 = math.rsqrt %18 : vector<4x1xf32>
    %20 = vector.broadcast %19 : vector<4x1xf32> to vector<4x256xf32>
    %21 = arith.mulf %9, %20 : vector<4x256xf32>
    %c0_12 = arith.constant 0 : index
    %c0_13 = arith.constant 0 : index
    %22 = vector.load %arg2[%c0_12, %c0_13] : memref<4x1xf32, #tpu.memory_space<vmem>>, vector<4x1xf32>
    %23 = vector.broadcast %22 : vector<4x1xf32> to vector<4x256xf32>
    %24 = arith.mulf %21, %23 : vector<4x256xf32>
    %c0_14 = arith.constant 0 : index
    %c0_15 = arith.constant 0 : index
    %25 = vector.load %arg3[%c0_14, %c0_15] : memref<4x1xf32, #tpu.memory_space<vmem>>, vector<4x1xf32>
    %26 = vector.broadcast %25 : vector<4x1xf32> to vector<4x256xf32>
    %27 = arith.addf %24, %26 : vector<4x256xf32>
    %28 = arith.negf %27 : vector<4x256xf32>
    %29 = math.exp %28 : vector<4x256xf32>
    %cst_16 = arith.constant 1.000000e+00 : f32
    %30 = vector.broadcast %cst_16 : f32 to vector<4x256xf32>
    %31 = arith.addf %30, %29 : vector<4x256xf32>
    %32 = arith.divf %30, %31 : vector<4x256xf32>
    %33 = arith.mulf %27, %32 : vector<4x256xf32>
    %c0_17 = arith.constant 0 : index
    %c0_18 = arith.constant 0 : index
    %c0_19 = arith.constant 0 : index
    %34 = vector.load %arg5[%c0_17, %c0_18, %c0_19] : memref<1x4x256xf32, #tpu.memory_space<vmem>>, vector<1x4x256xf32>
    %35 = vector.shape_cast %34 : vector<1x4x256xf32> to vector<4x256xf32>
    %36 = vector.shape_cast %33 : vector<4x256xf32> to vector<1x4x256xf32>
    tpu.vector_store %arg5[%c0_17, %c0_18, %c0_19], %36 {strides = array<i32>} : memref<1x4x256xf32, #tpu.memory_space<vmem>>, vector<1x4x256xf32>,
    return
  }
  func.func @transform_0(%arg0: i32) -> (i32, i32, i32) {
    %c0_i32 = arith.constant 0 : i32
    %c0_i32_0 = arith.constant 0 : i32
    %c0_i32_1 = arith.constant 0 : i32
    return %arg0, %c0_i32, %c0_i32_0 : i32, i32, i32
  }
  func.func @transform_1(%arg0: i32) -> (i32, i32) {
    %c0_i32 = arith.constant 0 : i32
    %c0_i32_0 = arith.constant 0 : i32
    %c0_i32_1 = arith.constant 0 : i32
    return %c0_i32, %c0_i32_0 : i32, i32
  }
  func.func @transform_2(%arg0: i32) -> (i32, i32) {
    %c0_i32 = arith.constant 0 : i32
    %c0_i32_0 = arith.constant 0 : i32
    %c0_i32_1 = arith.constant 0 : i32
    return %c0_i32, %c0_i32_0 : i32, i32
  }
  func.func @transform_3(%arg0: i32) -> (i32, i32) {
    %c0_i32 = arith.constant 0 : i32
    %c0_i32_0 = arith.constant 0 : i32
    %c0_i32_1 = arith.constant 0 : i32
    return %c0_i32, %c0_i32_0 : i32, i32
  }
  func.func @transform_4(%arg0: i32) -> (i32, i32, i32) {
    %c0_i32 = arith.constant 0 : i32
    %c0_i32_0 = arith.constant 0 : i32
    %c0_i32_1 = arith.constant 0 : i32
    return %arg0, %c0_i32, %c0_i32_0 : i32, i32, i32
  }
}

module attributes {stable_mosaic.version = 11 : i64} {
  func.func @_merge_kernel(%arg0: i32, %arg1: i32, %arg2: memref<1x8x256xf32, #tpu.memory_space<vmem>>, %arg3: memref<1x4x256xf32, #tpu.memory_space<vmem>>, %arg4: memref<1x4x256xf32, #tpu.memory_space<vmem>>, %arg5: memref<1x4x256xf32, #tpu.memory_space<vmem>>, %arg6: memref<8x12xf32, #tpu.memory_space<vmem>>, %arg7: memref<8x1xf32, #tpu.memory_space<vmem>>, %arg8: memref<1x8x256xf32, #tpu.memory_space<vmem>>, %arg9: memref<12x256xf32, #tpu.memory_space<vmem>>) attributes {dimension_semantics = [#tpu.dimension_semantics<parallel>, #tpu.dimension_semantics<parallel>], iteration_bounds = array<i64: 2, 1>, scalar_prefetch = 0 : i64, scratch_operands = 1 : i64, tpu.core_type = #tpu.core_type<tc>, window_params = [{transform_indices = @transform_0, window_bounds = array<i64: 1, 8, 256>}, {transform_indices = @transform_1, window_bounds = array<i64: 1, 4, 256>}, {transform_indices = @transform_2, window_bounds = array<i64: 1, 4, 256>}, {transform_indices = @transform_3, window_bounds = array<i64: 1, 4, 256>}, {pipeline_mode = #tpu.pipeline_mode<synchronous>, transform_indices = @transform_4, window_bounds = array<i64: 8, 12>}, {pipeline_mode = #tpu.pipeline_mode<synchronous>, transform_indices = @transform_5, window_bounds = array<i64: 8, 1>}, {transform_indices = @transform_6, window_bounds = array<i64: 1, 8, 256>}]} {
    %cst = arith.constant 0.000000e+00 : f32
    %0 = vector.broadcast %cst : f32 to vector<12x256xf32>
    %c0 = arith.constant 0 : index
    %c0_0 = arith.constant 0 : index
    %1 = vector.load %arg9[%c0, %c0_0] : memref<12x256xf32, #tpu.memory_space<vmem>>, vector<12x256xf32>
    tpu.vector_store %arg9[%c0, %c0_0], %0 {strides = array<i32>} : memref<12x256xf32, #tpu.memory_space<vmem>>, vector<12x256xf32>,
    %c0_1 = arith.constant 0 : index
    %c0_2 = arith.constant 0 : index
    %c0_3 = arith.constant 0 : index
    %2 = vector.load %arg3[%c0_1, %c0_2, %c0_3] : memref<1x4x256xf32, #tpu.memory_space<vmem>>, vector<1x4x256xf32>
    %3 = vector.shape_cast %2 : vector<1x4x256xf32> to vector<4x256xf32>
    %c0_4 = arith.constant 0 : index
    %c0_5 = arith.constant 0 : index
    %c0_6 = arith.constant 0 : index
    %4 = vector.load %arg4[%c0_4, %c0_5, %c0_6] : memref<1x4x256xf32, #tpu.memory_space<vmem>>, vector<1x4x256xf32>
    %5 = vector.shape_cast %4 : vector<1x4x256xf32> to vector<4x256xf32>
    %6 = arith.addf %3, %5 : vector<4x256xf32>
    %c0_7 = arith.constant 0 : index
    %c0_8 = arith.constant 0 : index
    %7 = vector.load %arg9[%c0_7, %c0_8] : memref<12x256xf32, #tpu.memory_space<vmem>>, vector<4x256xf32>
    tpu.vector_store %arg9[%c0_7, %c0_8], %6 {strides = array<i32>} : memref<12x256xf32, #tpu.memory_space<vmem>>, vector<4x256xf32>,
    %c0_9 = arith.constant 0 : index
    %c0_10 = arith.constant 0 : index
    %c0_11 = arith.constant 0 : index
    %8 = vector.load %arg5[%c0_9, %c0_10, %c0_11] : memref<1x4x256xf32, #tpu.memory_space<vmem>>, vector<1x4x256xf32>
    %9 = vector.shape_cast %8 : vector<1x4x256xf32> to vector<4x256xf32>
    %c8 = arith.constant 8 : index
    %c0_12 = arith.constant 0 : index
    %10 = vector.load %arg9[%c8, %c0_12] : memref<12x256xf32, #tpu.memory_space<vmem>>, vector<4x256xf32>
    tpu.vector_store %arg9[%c8, %c0_12], %9 {strides = array<i32>} : memref<12x256xf32, #tpu.memory_space<vmem>>, vector<4x256xf32>,
    %c0_13 = arith.constant 0 : index
    %c0_14 = arith.constant 0 : index
    %11 = vector.load %arg6[%c0_13, %c0_14] : memref<8x12xf32, #tpu.memory_space<vmem>>, vector<8x12xf32>
    %c0_15 = arith.constant 0 : index
    %c0_16 = arith.constant 0 : index
    %12 = vector.load %arg9[%c0_15, %c0_16] : memref<12x256xf32, #tpu.memory_space<vmem>>, vector<12x256xf32>
    %cst_17 = arith.constant dense<0.000000e+00> : vector<8x256xf32>
    %13 = tpu.matmul %11, %12, %cst_17 {dimension_numbers = #tpu.dot_dimension_numbers<[1], [0], [0], [1], [0, 0, 1, 1], [], []>} : vector<8x12xf32>, vector<12x256xf32>, vector<8x256xf32> -> vector<8x256xf32>
    %c0_18 = arith.constant 0 : index
    %c0_19 = arith.constant 0 : index
    %14 = vector.load %arg7[%c0_18, %c0_19] : memref<8x1xf32, #tpu.memory_space<vmem>>, vector<8x1xf32>
    %15 = vector.broadcast %14 : vector<8x1xf32> to vector<8x256xf32>
    %16 = arith.addf %13, %15 : vector<8x256xf32>
    %c0_20 = arith.constant 0 : index
    %c0_21 = arith.constant 0 : index
    %c0_22 = arith.constant 0 : index
    %17 = vector.load %arg2[%c0_20, %c0_21, %c0_22] : memref<1x8x256xf32, #tpu.memory_space<vmem>>, vector<1x8x256xf32>
    %18 = vector.shape_cast %17 : vector<1x8x256xf32> to vector<8x256xf32>
    %19 = arith.addf %16, %18 : vector<8x256xf32>
    %c0_23 = arith.constant 0 : index
    %c0_24 = arith.constant 0 : index
    %c0_25 = arith.constant 0 : index
    %20 = vector.load %arg8[%c0_23, %c0_24, %c0_25] : memref<1x8x256xf32, #tpu.memory_space<vmem>>, vector<1x8x256xf32>
    %21 = vector.shape_cast %20 : vector<1x8x256xf32> to vector<8x256xf32>
    %22 = vector.shape_cast %19 : vector<8x256xf32> to vector<1x8x256xf32>
    tpu.vector_store %arg8[%c0_23, %c0_24, %c0_25], %22 {strides = array<i32>} : memref<1x8x256xf32, #tpu.memory_space<vmem>>, vector<1x8x256xf32>,
    return
  }
  func.func @transform_0(%arg0: i32, %arg1: i32) -> (i32, i32, i32) {
    %c0_i32 = arith.constant 0 : i32
    %c0_i32_0 = arith.constant 0 : i32
    return %arg0, %c0_i32, %arg1 : i32, i32, i32
  }
  func.func @transform_1(%arg0: i32, %arg1: i32) -> (i32, i32, i32) {
    %c0_i32 = arith.constant 0 : i32
    %c0_i32_0 = arith.constant 0 : i32
    return %arg0, %c0_i32, %arg1 : i32, i32, i32
  }
  func.func @transform_2(%arg0: i32, %arg1: i32) -> (i32, i32, i32) {
    %c0_i32 = arith.constant 0 : i32
    %c0_i32_0 = arith.constant 0 : i32
    return %arg0, %c0_i32, %arg1 : i32, i32, i32
  }
  func.func @transform_3(%arg0: i32, %arg1: i32) -> (i32, i32, i32) {
    %c0_i32 = arith.constant 0 : i32
    %c0_i32_0 = arith.constant 0 : i32
    return %arg0, %c0_i32, %arg1 : i32, i32, i32
  }
  func.func @transform_4(%arg0: i32, %arg1: i32) -> (i32, i32) {
    %c0_i32 = arith.constant 0 : i32
    %c0_i32_0 = arith.constant 0 : i32
    %c0_i32_1 = arith.constant 0 : i32
    return %c0_i32, %c0_i32_0 : i32, i32
  }
  func.func @transform_5(%arg0: i32, %arg1: i32) -> (i32, i32) {
    %c0_i32 = arith.constant 0 : i32
    %c0_i32_0 = arith.constant 0 : i32
    %c0_i32_1 = arith.constant 0 : i32
    return %c0_i32, %c0_i32_0 : i32, i32
  }
  func.func @transform_6(%arg0: i32, %arg1: i32) -> (i32, i32, i32) {
    %c0_i32 = arith.constant 0 : i32
    %c0_i32_0 = arith.constant 0 : i32
    return %arg0, %c0_i32, %arg1 : i32, i32, i32
  }
}

</mosaic_0001>

<llo_original>
// kernel: reverse.0
$region0: #{reverse.0}
  %s0 = inlined_call_operand.vmem [shape: f32[2,16,16,3], index: 0, kind: input, shape index: {}]
  %s1 = inlined_call_operand.vmem [shape: f32[2,16,16,3], index: 1, kind: output, shape index: {}]
  $region1: #{reverse.0} parent=0
    #allocation0 [shape = 'u8[262144]{0}', space=vmem, size = 0x40000, scoped, tag = 'operand span for operand 0']
    #allocation1 [shape = 'u8[131072]{0}', space=vmem, size = 0x20000, scoped, tag = 'packed  for operand 0']
    #allocation2 [shape = 'u8[131072]{0}', space=vmem, size = 0x20000, scoped, tag = 'operand span for operand 1']
    #allocation3 [shape = 'u8[65536]{0}', space=vmem, size = 0x10000, scoped, tag = 'packed  for operand 1']
    %s2 = scalar_lea.vmem [#allocation1], 4
    // Predicated region
    $region2: #{reverse.0} parent=1 // pred_check
      _
    $region3: #{reverse.0} parent=1 // pred_check_branch
      %4 = sbr.rel (0) target = $region5
    $region4: #{reverse.0} parent=1 // pred_region
      // Predicated region
      $region6: #{reverse.0} parent=4 // pred_check
        _
      $region7: #{reverse.0} parent=4 // pred_check_branch
        %6 = sbr.rel target = $region9
      $region8: #{reverse.0} parent=4 // pred_region
        // Predicated region
        $region21: #{reverse.0} parent=8 // pred_check
          _
        $region22: #{reverse.0} parent=8 // pred_check_branch
          %84 = sbr.rel (0) target = $region24
        $region23: #{reverse.0} parent=8 // pred_region
          loop: start=0, step=1, limit=1
          $region25: #{reverse.0} parent=23 // loop_pre_header
            _
          $region26: #{reverse.0} parent=23 // loop_header
            %s86 = sphi 0, %s90
            %p87 = scmp.ge.s32.totalorder %s86, 1
            %s91 = sphi %s0, %s0
            %s92 = sphi %s2, %s2
          $region27: #{reverse.0} parent=23 // loop_header_branch
            %89 = sbr.rel (%p87) target = $region31
          $region28: #{reverse.0} parent=23 // loop_body
            _
          $region29: #{reverse.0} parent=23 // loop_footer
            %s90 = sadd.s32 1, %s86
          $region30: #{reverse.0} parent=23 // loop_footer_branch
            %85 = sbr.rel target = $region26
          $region31: #{reverse.0} parent=23 // loop_exit
            _
          %s94 = ssub.s32 16, 1
          loop: start=0, step=1, limit=1
          $region32: #{reverse.0} parent=23 // loop_pre_header
            _
          $region33: #{reverse.0} parent=23 // loop_header
            %s96 = sphi 0, %s100
            %p97 = scmp.ge.s32.totalorder %s96, 1
            %s101 = sphi %s0, %s0
            %s102 = sphi %s2, %s2
          $region34: #{reverse.0} parent=23 // loop_header_branch
            %99 = sbr.rel (%p97) target = $region38
          $region35: #{reverse.0} parent=23 // loop_body
            %v103 = vld [vmem:[%s101] sm:%s94]
            %104 = vst [vmem:[%s102] sm:%s94] %v103
            %v105 = vld [vmem:[%s101 + $0x4] sm:%s94]
            %106 = vst [vmem:[%s102 + $0x8] sm:%s94] %v105
            %v107 = vld [vmem:[%s101 + $0x8] sm:%s94]
            %108 = vst [vmem:[%s102 + $0x10] sm:%s94] %v107
            %v109 = vld [vmem:[%s101 + $0xc] sm:%s94]
            %110 = vst [vmem:[%s102 + $0x18] sm:%s94] %v109
            %v111 = vld [vmem:[%s101 + $0x10] sm:%s94]
            %112 = vst [vmem:[%s102 + $0x20] sm:%s94] %v111
            %v113 = vld [vmem:[%s101 + $0x14] sm:%s94]
            %114 = vst [vmem:[%s102 + $0x28] sm:%s94] %v113
            %v115 = vld [vmem:[%s101 + $0x18] sm:%s94]
            %116 = vst [vmem:[%s102 + $0x30] sm:%s94] %v115
            %v117 = vld [vmem:[%s101 + $0x1c] sm:%s94]
            %118 = vst [vmem:[%s102 + $0x38] sm:%s94] %v117
            %v119 = vld [vmem:[%s101 + $0x20] sm:%s94]
            %120 = vst [vmem:[%s102 + $0x40] sm:%s94] %v119
            %v121 = vld [vmem:[%s101 + $0x24] sm:%s94]
            %122 = vst [vmem:[%s102 + $0x48] sm:%s94] %v121
            %v123 = vld [vmem:[%s101 + $0x28] sm:%s94]
            %124 = vst [vmem:[%s102 + $0x50] sm:%s94] %v123
            %v125 = vld [vmem:[%s101 + $0x2c] sm:%s94]
            %126 = vst [vmem:[%s102 + $0x58] sm:%s94] %v125
            %v127 = vld [vmem:[%s101 + $0x30] sm:%s94]
            %128 = vst [vmem:[%s102 + $0x60] sm:%s94] %v127
            %v129 = vld [vmem:[%s101 + $0x34] sm:%s94]
            %130 = vst [vmem:[%s102 + $0x68] sm:%s94] %v129
            %v131 = vld [vmem:[%s101 + $0x38] sm:%s94]
            %132 = vst [vmem:[%s102 + $0x70] sm:%s94] %v131
            %v133 = vld [vmem:[%s101 + $0x3c] sm:%s94]
            %134 = vst [vmem:[%s102 + $0x78] sm:%s94] %v133
            %v135 = vld [vmem:[%s101 + $0x40] sm:%s94]
            %136 = vst [vmem:[%s102 + $0x80] sm:%s94] %v135
            %v137 = vld [vmem:[%s101 + $0x44] sm:%s94]
            %138 = vst [vmem:[%s102 + $0x88] sm:%s94] %v137
            %v139 = vld [vmem:[%s101 + $0x48] sm:%s94]
            %140 = vst [vmem:[%s102 + $0x90] sm:%s94] %v139
            %v141 = vld [vmem:[%s101 + $0x4c] sm:%s94]
            %142 = vst [vmem:[%s102 + $0x98] sm:%s94] %v141
            %v143 = vld [vmem:[%s101 + $0x50] sm:%s94]
            %144 = vst [vmem:[%s102 + $0xa0] sm:%s94] %v143
            %v145 = vld [vmem:[%s101 + $0x54] sm:%s94]
            %146 = vst [vmem:[%s102 + $0xa8] sm:%s94] %v145
            %v147 = vld [vmem:[%s101 + $0x58] sm:%s94]
            %148 = vst [vmem:[%s102 + $0xb0] sm:%s94] %v147
            %v149 = vld [vmem:[%s101 + $0x5c] sm:%s94]
            %150 = vst [vmem:[%s102 + $0xb8] sm:%s94] %v149
            %v151 = vld [vmem:[%s101 + $0x60] sm:%s94]
            %152 = vst [vmem:[%s102 + $0xc0] sm:%s94] %v151
            %v153 = vld [vmem:[%s101 + $0x64] sm:%s94]
            %154 = vst [vmem:[%s102 + $0xc8] sm:%s94] %v153
            %v155 = vld [vmem:[%s101 + $0x68] sm:%s94]
            %156 = vst [vmem:[%s102 + $0xd0] sm:%s94] %v155
            %v157 = vld [vmem:[%s101 + $0x6c] sm:%s94]
            %158 = vst [vmem:[%s102 + $0xd8] sm:%s94] %v157
            %v159 = vld [vmem:[%s101 + $0x70] sm:%s94]
            %160 = vst [vmem:[%s102 + $0xe0] sm:%s94] %v159
            %v161 = vld [vmem:[%s101 + $0x74] sm:%s94]
            %162 = vst [vmem:[%s102 + $0xe8] sm:%s94] %v161
            %v163 = vld [vmem:[%s101 + $0x78] sm:%s94]
            %164 = vst [vmem:[%s102 + $0xf0] sm:%s94] %v163
            %v165 = vld [vmem:[%s101 + $0x7c] sm:%s94]
            %166 = vst [vmem:[%s102 + $0xf8] sm:%s94] %v165
          $region36: #{reverse.0} parent=23 // loop_footer
            %s100 = sadd.s32 1, %s96
          $region37: #{reverse.0} parent=23 // loop_footer_branch
            %95 = sbr.rel target = $region33
          $region38: #{reverse.0} parent=23 // loop_exit
            _
        $region24: #{reverse.0} parent=8 // pred_fallthru
          _
      $region9: #{reverse.0} parent=4 // pred_fallthru
        _
      // Predicated region
      $region10: #{reverse.0} parent=4 // pred_check
        _
      $region11: #{reverse.0} parent=4 // pred_check_branch
        %8 = sbr.rel (0) target = $region13
      $region12: #{reverse.0} parent=4 // pred_region
        %s10 = ssub.s32 16, 1
        loop: start=0, step=1, limit=1
        $region14: #{reverse.0} parent=12 // loop_pre_header
          _
        $region15: #{reverse.0} parent=12 // loop_header
          %s12 = sphi 0, %s16
          %p13 = scmp.ge.s32.totalorder %s12, 1
          %s17 = sphi %s0, %s0
          %s18 = sphi %s2, %s2
        $region16: #{reverse.0} parent=12 // loop_header_branch
          %15 = sbr.rel (%p13) target = $region20
        $region17: #{reverse.0} parent=12 // loop_body
          %v19 = vld [vmem:[%s17] sm:%s10]
          %20 = vst [vmem:[%s18] sm:%s10] %v19
          %v21 = vld [vmem:[%s17 + $0x4] sm:%s10]
          %22 = vst [vmem:[%s18 + $0x8] sm:%s10] %v21
          %v23 = vld [vmem:[%s17 + $0x8] sm:%s10]
          %24 = vst [vmem:[%s18 + $0x10] sm:%s10] %v23
          %v25 = vld [vmem:[%s17 + $0xc] sm:%s10]
          %26 = vst [vmem:[%s18 + $0x18] sm:%s10] %v25
          %v27 = vld [vmem:[%s17 + $0x10] sm:%s10]
          %28 = vst [vmem:[%s18 + $0x20] sm:%s10] %v27
          %v29 = vld [vmem:[%s17 + $0x14] sm:%s10]
          %30 = vst [vmem:[%s18 + $0x28] sm:%s10] %v29
          %v31 = vld [vmem:[%s17 + $0x18] sm:%s10]
          %32 = vst [vmem:[%s18 + $0x30] sm:%s10] %v31
          %v33 = vld [vmem:[%s17 + $0x1c] sm:%s10]
          %34 = vst [vmem:[%s18 + $0x38] sm:%s10] %v33
          %v35 = vld [vmem:[%s17 + $0x20] sm:%s10]
          %36 = vst [vmem:[%s18 + $0x40] sm:%s10] %v35
          %v37 = vld [vmem:[%s17 + $0x24] sm:%s10]
          %38 = vst [vmem:[%s18 + $0x48] sm:%s10] %v37
          %v39 = vld [vmem:[%s17 + $0x28] sm:%s10]
          %40 = vst [vmem:[%s18 + $0x50] sm:%s10] %v39
          %v41 = vld [vmem:[%s17 + $0x2c] sm:%s10]
          %42 = vst [vmem:[%s18 + $0x58] sm:%s10] %v41
          %v43 = vld [vmem:[%s17 + $0x30] sm:%s10]
          %44 = vst [vmem:[%s18 + $0x60] sm:%s10] %v43
          %v45 = vld [vmem:[%s17 + $0x34] sm:%s10]
          %46 = vst [vmem:[%s18 + $0x68] sm:%s10] %v45
          %v47 = vld [vmem:[%s17 + $0x38] sm:%s10]
          %48 = vst [vmem:[%s18 + $0x70] sm:%s10] %v47
          %v49 = vld [vmem:[%s17 + $0x3c] sm:%s10]
          %50 = vst [vmem:[%s18 + $0x78] sm:%s10] %v49
          %v51 = vld [vmem:[%s17 + $0x40] sm:%s10]
          %52 = vst [vmem:[%s18 + $0x80] sm:%s10] %v51
          %v53 = vld [vmem:[%s17 + $0x44] sm:%s10]
          %54 = vst [vmem:[%s18 + $0x88] sm:%s10] %v53
          %v55 = vld [vmem:[%s17 + $0x48] sm:%s10]
          %56 = vst [vmem:[%s18 + $0x90] sm:%s10] %v55
          %v57 = vld [vmem:[%s17 + $0x4c] sm:%s10]
          %58 = vst [vmem:[%s18 + $0x98] sm:%s10] %v57
          %v59 = vld [vmem:[%s17 + $0x50] sm:%s10]
          %60 = vst [vmem:[%s18 + $0xa0] sm:%s10] %v59
          %v61 = vld [vmem:[%s17 + $0x54] sm:%s10]
          %62 = vst [vmem:[%s18 + $0xa8] sm:%s10] %v61
          %v63 = vld [vmem:[%s17 + $0x58] sm:%s10]
          %64 = vst [vmem:[%s18 + $0xb0] sm:%s10] %v63
          %v65 = vld [vmem:[%s17 + $0x5c] sm:%s10]
          %66 = vst [vmem:[%s18 + $0xb8] sm:%s10] %v65
          %v67 = vld [vmem:[%s17 + $0x60] sm:%s10]
          %68 = vst [vmem:[%s18 + $0xc0] sm:%s10] %v67
          %v69 = vld [vmem:[%s17 + $0x64] sm:%s10]
          %70 = vst [vmem:[%s18 + $0xc8] sm:%s10] %v69
          %v71 = vld [vmem:[%s17 + $0x68] sm:%s10]
          %72 = vst [vmem:[%s18 + $0xd0] sm:%s10] %v71
          %v73 = vld [vmem:[%s17 + $0x6c] sm:%s10]
          %74 = vst [vmem:[%s18 + $0xd8] sm:%s10] %v73
          %v75 = vld [vmem:[%s17 + $0x70] sm:%s10]
          %76 = vst [vmem:[%s18 + $0xe0] sm:%s10] %v75
          %v77 = vld [vmem:[%s17 + $0x74] sm:%s10]
          %78 = vst [vmem:[%s18 + $0xe8] sm:%s10] %v77
          %v79 = vld [vmem:[%s17 + $0x78] sm:%s10]
          %80 = vst [vmem:[%s18 + $0xf0] sm:%s10] %v79
          %v81 = vld [vmem:[%s17 + $0x7c] sm:%s10]
          %82 = vst [vmem:[%s18 + $0xf8] sm:%s10] %v81
        $region18: #{reverse.0} parent=12 // loop_footer
          %s16 = sadd.s32 1, %s12
        $region19: #{reverse.0} parent=12 // loop_footer_branch
          %11 = sbr.rel target = $region15
        $region20: #{reverse.0} parent=12 // loop_exit
          _
      $region13: #{reverse.0} parent=4 // pred_fallthru
        _
    $region5: #{reverse.0} parent=1 // pred_fallthru
      _
    %167 = vnop
    %s169 = sshll.u32 1, 4
    %s170 = ssub.s32 %s169, 1
    %s171 = smul.addr 4, 63
    %s172 = scalar_lea.vmem [#allocation1], %s171
    %v173 = vld [vmem:[%s172] sm:%s170]
    %s174 = scalar_lea.vmem [#allocation0], 504
    %175 = vst [vmem:[%s174] sm:%s170] %v173
    %s176 = smul.addr 4, 62
    %s177 = scalar_lea.vmem [#allocation1], %s176
    %v178 = vld [vmem:[%s177] sm:%s170]
    %s179 = scalar_lea.vmem [#allocation0], 496
    %180 = vst [vmem:[%s179] sm:%s170] %v178
    %s181 = smul.addr 4, 61
    %s182 = scalar_lea.vmem [#allocation1], %s181
    %v183 = vld [vmem:[%s182] sm:%s170]
    %s184 = scalar_lea.vmem [#allocation0], 488
    %185 = vst [vmem:[%s184] sm:%s170] %v183
    %s186 = smul.addr 4, 60
    %s187 = scalar_lea.vmem [#allocation1], %s186
    %v188 = vld [vmem:[%s187] sm:%s170]
    %s189 = scalar_lea.vmem [#allocation0], 480
    %190 = vst [vmem:[%s189] sm:%s170] %v188
    %s191 = smul.addr 4, 59
    %s192 = scalar_lea.vmem [#allocation1], %s191
    %v193 = vld [vmem:[%s192] sm:%s170]
    %s194 = scalar_lea.vmem [#allocation0], 472
    %195 = vst [vmem:[%s194] sm:%s170] %v193
    %s196 = smul.addr 4, 58
    %s197 = scalar_lea.vmem [#allocation1], %s196
    %v198 = vld [vmem:[%s197] sm:%s170]
    %s199 = scalar_lea.vmem [#allocation0], 464
    %200 = vst [vmem:[%s199] sm:%s170] %v198
    %s201 = smul.addr 4, 57
    %s202 = scalar_lea.vmem [#allocation1], %s201
    %v203 = vld [vmem:[%s202] sm:%s170]
    %s204 = scalar_lea.vmem [#allocation0], 456
    %205 = vst [vmem:[%s204] sm:%s170] %v203
    %s206 = smul.addr 4, 56
    %s207 = scalar_lea.vmem [#allocation1], %s206
    %v208 = vld [vmem:[%s207] sm:%s170]
    %s209 = scalar_lea.vmem [#allocation0], 448
    %210 = vst [vmem:[%s209] sm:%s170] %v208
    %s211 = smul.addr 4, 55
    %s212 = scalar_lea.vmem [#allocation1], %s211
    %v213 = vld [vmem:[%s212] sm:%s170]
    %s214 = scalar_lea.vmem [#allocation0], 440
    %215 = vst [vmem:[%s214] sm:%s170] %v213
    %s216 = smul.addr 4, 54
    %s217 = scalar_lea.vmem [#allocation1], %s216
    %v218 = vld [vmem:[%s217] sm:%s170]
    %s219 = scalar_lea.vmem [#allocation0], 432
    %220 = vst [vmem:[%s219] sm:%s170] %v218
    %s221 = smul.addr 4, 53
    %s222 = scalar_lea.vmem [#allocation1], %s221
    %v223 = vld [vmem:[%s222] sm:%s170]
    %s224 = scalar_lea.vmem [#allocation0], 424
    %225 = vst [vmem:[%s224] sm:%s170] %v223
    %s226 = smul.addr 4, 52
    %s227 = scalar_lea.vmem [#allocation1], %s226
    %v228 = vld [vmem:[%s227] sm:%s170]
    %s229 = scalar_lea.vmem [#allocation0], 416
    %230 = vst [vmem:[%s229] sm:%s170] %v228
    %s231 = smul.addr 4, 51
    %s232 = scalar_lea.vmem [#allocation1], %s231
    %v233 = vld [vmem:[%s232] sm:%s170]
    %s234 = scalar_lea.vmem [#allocation0], 408
    %235 = vst [vmem:[%s234] sm:%s170] %v233
    %s236 = smul.addr 4, 50
    %s237 = scalar_lea.vmem [#allocation1], %s236
    %v238 = vld [vmem:[%s237] sm:%s170]
    %s239 = scalar_lea.vmem [#allocation0], 400
    %240 = vst [vmem:[%s239] sm:%s170] %v238
    %s241 = smul.addr 4, 49
    %s242 = scalar_lea.vmem [#allocation1], %s241
    %v243 = vld [vmem:[%s242] sm:%s170]
    %s244 = scalar_lea.vmem [#allocation0], 392
    %245 = vst [vmem:[%s244] sm:%s170] %v243
    %s246 = smul.addr 4, 48
    %s247 = scalar_lea.vmem [#allocation1], %s246
    %v248 = vld [vmem:[%s247] sm:%s170]
    %s249 = scalar_lea.vmem [#allocation0], 384
    %250 = vst [vmem:[%s249] sm:%s170] %v248
    %s251 = smul.addr 4, 47
    %s252 = scalar_lea.vmem [#allocation1], %s251
    %v253 = vld [vmem:[%s252] sm:%s170]
    %s254 = scalar_lea.vmem [#allocation0], 376
    %255 = vst [vmem:[%s254] sm:%s170] %v253
    %s256 = smul.addr 4, 46
    %s257 = scalar_lea.vmem [#allocation1], %s256
    %v258 = vld [vmem:[%s257] sm:%s170]
    %s259 = scalar_lea.vmem [#allocation0], 368
    %260 = vst [vmem:[%s259] sm:%s170] %v258
    %s261 = smul.addr 4, 45
    %s262 = scalar_lea.vmem [#allocation1], %s261
    %v263 = vld [vmem:[%s262] sm:%s170]
    %s264 = scalar_lea.vmem [#allocation0], 360
    %265 = vst [vmem:[%s264] sm:%s170] %v263
    %s266 = smul.addr 4, 44
    %s267 = scalar_lea.vmem [#allocation1], %s266
    %v268 = vld [vmem:[%s267] sm:%s170]
    %s269 = scalar_lea.vmem [#allocation0], 352
    %270 = vst [vmem:[%s269] sm:%s170] %v268
    %s271 = smul.addr 4, 43
    %s272 = scalar_lea.vmem [#allocation1], %s271
    %v273 = vld [vmem:[%s272] sm:%s170]
    %s274 = scalar_lea.vmem [#allocation0], 344
    %275 = vst [vmem:[%s274] sm:%s170] %v273
    %s276 = smul.addr 4, 42
    %s277 = scalar_lea.vmem [#allocation1], %s276
    %v278 = vld [vmem:[%s277] sm:%s170]
    %s279 = scalar_lea.vmem [#allocation0], 336
    %280 = vst [vmem:[%s279] sm:%s170] %v278
    %s281 = smul.addr 4, 41
    %s282 = scalar_lea.vmem [#allocation1], %s281
    %v283 = vld [vmem:[%s282] sm:%s170]
    %s284 = scalar_lea.vmem [#allocation0], 328
    %285 = vst [vmem:[%s284] sm:%s170] %v283
    %s286 = smul.addr 4, 40
    %s287 = scalar_lea.vmem [#allocation1], %s286
    %v288 = vld [vmem:[%s287] sm:%s170]
    %s289 = scalar_lea.vmem [#allocation0], 320
    %290 = vst [vmem:[%s289] sm:%s170] %v288
    %s291 = smul.addr 4, 39
    %s292 = scalar_lea.vmem [#allocation1], %s291
    %v293 = vld [vmem:[%s292] sm:%s170]
    %s294 = scalar_lea.vmem [#allocation0], 312
    %295 = vst [vmem:[%s294] sm:%s170] %v293
    %s296 = smul.addr 4, 38
    %s297 = scalar_lea.vmem [#allocation1], %s296
    %v298 = vld [vmem:[%s297] sm:%s170]
    %s299 = scalar_lea.vmem [#allocation0], 304
    %300 = vst [vmem:[%s299] sm:%s170] %v298
    %s301 = smul.addr 4, 37
    %s302 = scalar_lea.vmem [#allocation1], %s301
    %v303 = vld [vmem:[%s302] sm:%s170]
    %s304 = scalar_lea.vmem [#allocation0], 296
    %305 = vst [vmem:[%s304] sm:%s170] %v303
    %s306 = smul.addr 4, 36
    %s307 = scalar_lea.vmem [#allocation1], %s306
    %v308 = vld [vmem:[%s307] sm:%s170]
    %s309 = scalar_lea.vmem [#allocation0], 288
    %310 = vst [vmem:[%s309] sm:%s170] %v308
    %s311 = smul.addr 4, 35
    %s312 = scalar_lea.vmem [#allocation1], %s311
    %v313 = vld [vmem:[%s312] sm:%s170]
    %s314 = scalar_lea.vmem [#allocation0], 280
    %315 = vst [vmem:[%s314] sm:%s170] %v313
    %s316 = smul.addr 4, 34
    %s317 = scalar_lea.vmem [#allocation1], %s316
    %v318 = vld [vmem:[%s317] sm:%s170]
    %s319 = scalar_lea.vmem [#allocation0], 272
    %320 = vst [vmem:[%s319] sm:%s170] %v318
    %s321 = smul.addr 4, 33
    %s322 = scalar_lea.vmem [#allocation1], %s321
    %v323 = vld [vmem:[%s322] sm:%s170]
    %s324 = scalar_lea.vmem [#allocation0], 264
    %325 = vst [vmem:[%s324] sm:%s170] %v323
    %s326 = smul.addr 4, 32
    %s327 = scalar_lea.vmem [#allocation1], %s326
    %v328 = vld [vmem:[%s327] sm:%s170]
    %s329 = scalar_lea.vmem [#allocation0], 256
    %330 = vst [vmem:[%s329] sm:%s170] %v328
    %s331 = smul.addr 4, 31
    %s332 = scalar_lea.vmem [#allocation1], %s331
    %v333 = vld [vmem:[%s332] sm:%s170]
    %s334 = scalar_lea.vmem [#allocation0], 248
    %335 = vst [vmem:[%s334] sm:%s170] %v333
    %s336 = smul.addr 4, 30
    %s337 = scalar_lea.vmem [#allocation1], %s336
    %v338 = vld [vmem:[%s337] sm:%s170]
    %s339 = scalar_lea.vmem [#allocation0], 240
    %340 = vst [vmem:[%s339] sm:%s170] %v338
    %s341 = smul.addr 4, 29
    %s342 = scalar_lea.vmem [#allocation1], %s341
    %v343 = vld [vmem:[%s342] sm:%s170]
    %s344 = scalar_lea.vmem [#allocation0], 232
    %345 = vst [vmem:[%s344] sm:%s170] %v343
    %s346 = smul.addr 4, 28
    %s347 = scalar_lea.vmem [#allocation1], %s346
    %v348 = vld [vmem:[%s347] sm:%s170]
    %s349 = scalar_lea.vmem [#allocation0], 224
    %350 = vst [vmem:[%s349] sm:%s170] %v348
    %s351 = smul.addr 4, 27
    %s352 = scalar_lea.vmem [#allocation1], %s351
    %v353 = vld [vmem:[%s352] sm:%s170]
    %s354 = scalar_lea.vmem [#allocation0], 216
    %355 = vst [vmem:[%s354] sm:%s170] %v353
    %s356 = smul.addr 4, 26
    %s357 = scalar_lea.vmem [#allocation1], %s356
    %v358 = vld [vmem:[%s357] sm:%s170]
    %s359 = scalar_lea.vmem [#allocation0], 208
    %360 = vst [vmem:[%s359] sm:%s170] %v358
    %s361 = smul.addr 4, 25
    %s362 = scalar_lea.vmem [#allocation1], %s361
    %v363 = vld [vmem:[%s362] sm:%s170]
    %s364 = scalar_lea.vmem [#allocation0], 200
    %365 = vst [vmem:[%s364] sm:%s170] %v363
    %s366 = smul.addr 4, 24
    %s367 = scalar_lea.vmem [#allocation1], %s366
    %v368 = vld [vmem:[%s367] sm:%s170]
    %s369 = scalar_lea.vmem [#allocation0], 192
    %370 = vst [vmem:[%s369] sm:%s170] %v368
    %s371 = smul.addr 4, 23
    %s372 = scalar_lea.vmem [#allocation1], %s371
    %v373 = vld [vmem:[%s372] sm:%s170]
    %s374 = scalar_lea.vmem [#allocation0], 184
    %375 = vst [vmem:[%s374] sm:%s170] %v373
    %s376 = smul.addr 4, 22
    %s377 = scalar_lea.vmem [#allocation1], %s376
    %v378 = vld [vmem:[%s377] sm:%s170]
    %s379 = scalar_lea.vmem [#allocation0], 176
    %380 = vst [vmem:[%s379] sm:%s170] %v378
    %s381 = smul.addr 4, 21
    %s382 = scalar_lea.vmem [#allocation1], %s381
    %v383 = vld [vmem:[%s382] sm:%s170]
    %s384 = scalar_lea.vmem [#allocation0], 168
    %385 = vst [vmem:[%s384] sm:%s170] %v383
    %s386 = smul.addr 4, 20
    %s387 = scalar_lea.vmem [#allocation1], %s386
    %v388 = vld [vmem:[%s387] sm:%s170]
    %s389 = scalar_lea.vmem [#allocation0], 160
    %390 = vst [vmem:[%s389] sm:%s170] %v388
    %s391 = smul.addr 4, 19
    %s392 = scalar_lea.vmem [#allocation1], %s391
    %v393 = vld [vmem:[%s392] sm:%s170]
    %s394 = scalar_lea.vmem [#allocation0], 152
    %395 = vst [vmem:[%s394] sm:%s170] %v393
    %s396 = smul.addr 4, 18
    %s397 = scalar_lea.vmem [#allocation1], %s396
    %v398 = vld [vmem:[%s397] sm:%s170]
    %s399 = scalar_lea.vmem [#allocation0], 144
    %400 = vst [vmem:[%s399] sm:%s170] %v398
    %s401 = smul.addr 4, 17
    %s402 = scalar_lea.vmem [#allocation1], %s401
    %v403 = vld [vmem:[%s402] sm:%s170]
    %s404 = scalar_lea.vmem [#allocation0], 136
    %405 = vst [vmem:[%s404] sm:%s170] %v403
    %s406 = smul.addr 4, 16
    %s407 = scalar_lea.vmem [#allocation1], %s406
    %v408 = vld [vmem:[%s407] sm:%s170]
    %s409 = scalar_lea.vmem [#allocation0], 128
    %410 = vst [vmem:[%s409] sm:%s170] %v408
    %s411 = smul.addr 4, 15
    %s412 = scalar_lea.vmem [#allocation1], %s411
    %v413 = vld [vmem:[%s412] sm:%s170]
    %s414 = scalar_lea.vmem [#allocation0], 120
    %415 = vst [vmem:[%s414] sm:%s170] %v413
    %s416 = smul.addr 4, 14
    %s417 = scalar_lea.vmem [#allocation1], %s416
    %v418 = vld [vmem:[%s417] sm:%s170]
    %s419 = scalar_lea.vmem [#allocation0], 112
    %420 = vst [vmem:[%s419] sm:%s170] %v418
    %s421 = smul.addr 4, 13
    %s422 = scalar_lea.vmem [#allocation1], %s421
    %v423 = vld [vmem:[%s422] sm:%s170]
    %s424 = scalar_lea.vmem [#allocation0], 104
    %425 = vst [vmem:[%s424] sm:%s170] %v423
    %s426 = smul.addr 4, 12
    %s427 = scalar_lea.vmem [#allocation1], %s426
    %v428 = vld [vmem:[%s427] sm:%s170]
    %s429 = scalar_lea.vmem [#allocation0], 96
    %430 = vst [vmem:[%s429] sm:%s170] %v428
    %s431 = smul.addr 4, 11
    %s432 = scalar_lea.vmem [#allocation1], %s431
    %v433 = vld [vmem:[%s432] sm:%s170]
    %s434 = scalar_lea.vmem [#allocation0], 88
    %435 = vst [vmem:[%s434] sm:%s170] %v433
    %s436 = smul.addr 4, 10
    %s437 = scalar_lea.vmem [#allocation1], %s436
    %v438 = vld [vmem:[%s437] sm:%s170]
    %s439 = scalar_lea.vmem [#allocation0], 80
    %440 = vst [vmem:[%s439] sm:%s170] %v438
    %s441 = smul.addr 4, 9
    %s442 = scalar_lea.vmem [#allocation1], %s441
    %v443 = vld [vmem:[%s442] sm:%s170]
    %s444 = scalar_lea.vmem [#allocation0], 72
    %445 = vst [vmem:[%s444] sm:%s170] %v443
    %s446 = smul.addr 4, 8
    %s447 = scalar_lea.vmem [#allocation1], %s446
    %v448 = vld [vmem:[%s447] sm:%s170]
    %s449 = scalar_lea.vmem [#allocation0], 64
    %450 = vst [vmem:[%s449] sm:%s170] %v448
    %s451 = smul.addr 4, 7
    %s452 = scalar_lea.vmem [#allocation1], %s451
    %v453 = vld [vmem:[%s452] sm:%s170]
    %s454 = scalar_lea.vmem [#allocation0], 56
    %455 = vst [vmem:[%s454] sm:%s170] %v453
    %s456 = smul.addr 4, 6
    %s457 = scalar_lea.vmem [#allocation1], %s456
    %v458 = vld [vmem:[%s457] sm:%s170]
    %s459 = scalar_lea.vmem [#allocation0], 48
    %460 = vst [vmem:[%s459] sm:%s170] %v458
    %s461 = smul.addr 4, 5
    %s462 = scalar_lea.vmem [#allocation1], %s461
    %v463 = vld [vmem:[%s462] sm:%s170]
    %s464 = scalar_lea.vmem [#allocation0], 40
    %465 = vst [vmem:[%s464] sm:%s170] %v463
    %s466 = smul.addr 4, 4
    %s467 = scalar_lea.vmem [#allocation1], %s466
    %v468 = vld [vmem:[%s467] sm:%s170]
    %s469 = scalar_lea.vmem [#allocation0], 32
    %470 = vst [vmem:[%s469] sm:%s170] %v468
    %s471 = smul.addr 4, 3
    %s472 = scalar_lea.vmem [#allocation1], %s471
    %v473 = vld [vmem:[%s472] sm:%s170]
    %s474 = scalar_lea.vmem [#allocation0], 24
    %475 = vst [vmem:[%s474] sm:%s170] %v473
    %s476 = smul.addr 4, 2
    %s477 = scalar_lea.vmem [#allocation1], %s476
    %v478 = vld [vmem:[%s477] sm:%s170]
    %s479 = scalar_lea.vmem [#allocation0], 16
    %480 = vst [vmem:[%s479] sm:%s170] %v478
    %s481 = scalar_lea.vmem [#allocation1], 4
    %v482 = vld [vmem:[%s481] sm:%s170]
    %s483 = scalar_lea.vmem [#allocation0], 8
    %484 = vst [vmem:[%s483] sm:%s170] %v482
    %v485 = vld [vmem:[#allocation1] sm:%s170]
    %486 = vst [vmem:[#allocation0] sm:%s170] %v485
    %s487 = scalar_lea.vmem [#allocation0], 7
    %v488 = vld [vmem:[%s487] ss:$-1 sm:$0xff]
    %v489 = vrot.slane %v488, 5
    %490 = vst [vmem:[#allocation2] sm:$0xff] %v489
    %s491 = scalar_lea.vmem [#allocation0], 8
    %s492 = scalar_lea.vmem %s491, 7 [#allocation0]
    %v493 = vld [vmem:[%s492] ss:$-1 sm:$0xff]
    %v494 = vrot.slane %v493, 5
    %v495 = vlaneseq
    %v496 = vshrl.u32 %v495, 7
    %vm497 = vcmp.lt.s32.totalorder %v496, 3
    %498 = vst.msk [vmem:[#allocation2] sm:$0xff] %vm497, %v494
    %s499 = scalar_lea.vmem [#allocation2], 8
    %s500 = scalar_lea.vmem [#allocation0], 16
    %s501 = scalar_lea.vmem %s500, 7 [#allocation0]
    %v502 = vld [vmem:[%s501] ss:$-1 sm:$0xff]
    %v503 = vrot.slane %v502, 5
    %504 = vst [vmem:[%s499] sm:$0xff] %v503
    %s505 = scalar_lea.vmem %s500, 8 [#allocation0]
    %s506 = scalar_lea.vmem %s505, 7 [#allocation0]
    %v507 = vld [vmem:[%s506] ss:$-1 sm:$0xff]
    %v508 = vrot.slane %v507, 5
    %v509 = vlaneseq
    %v510 = vshrl.u32 %v509, 7
    %vm511 = vcmp.lt.s32.totalorder %v510, 3
    %512 = vst.msk [vmem:[%s499] sm:$0xff] %vm511, %v508
    %s513 = scalar_lea.vmem [#allocation2], 16
    %s514 = scalar_lea.vmem [#allocation0], 32
    %s515 = scalar_lea.vmem %s514, 7 [#allocation0]
    %v516 = vld [vmem:[%s515] ss:$-1 sm:$0xff]
    %v517 = vrot.slane %v516, 5
    %518 = vst [vmem:[%s513] sm:$0xff] %v517
    %s519 = scalar_lea.vmem %s514, 8 [#allocation0]
    %s520 = scalar_lea.vmem %s519, 7 [#allocation0]
    %v521 = vld [vmem:[%s520] ss:$-1 sm:$0xff]
    %v522 = vrot.slane %v521, 5
    %v523 = vlaneseq
    %v524 = vshrl.u32 %v523, 7
    %vm525 = vcmp.lt.s32.totalorder %v524, 3
    %526 = vst.msk [vmem:[%s513] sm:$0xff] %vm525, %v522
    %s527 = scalar_lea.vmem [#allocation2], 24
    %s528 = scalar_lea.vmem [#allocation0], 48
    %s529 = scalar_lea.vmem %s528, 7 [#allocation0]
    %v530 = vld [vmem:[%s529] ss:$-1 sm:$0xff]
    %v531 = vrot.slane %v530, 5
    %532 = vst [vmem:[%s527] sm:$0xff] %v531
    %s533 = scalar_lea.vmem %s528, 8 [#allocation0]
    %s534 = scalar_lea.vmem %s533, 7 [#allocation0]
    %v535 = vld [vmem:[%s534] ss:$-1 sm:$0xff]
    %v536 = vrot.slane %v535, 5
    %v537 = vlaneseq
    %v538 = vshrl.u32 %v537, 7
    %vm539 = vcmp.lt.s32.totalorder %v538, 3
    %540 = vst.msk [vmem:[%s527] sm:$0xff] %vm539, %v536
    %s541 = scalar_lea.vmem [#allocation2], 32
    %s542 = scalar_lea.vmem [#allocation0], 64
    %s543 = scalar_lea.vmem %s542, 7 [#allocation0]
    %v544 = vld [vmem:[%s543] ss:$-1 sm:$0xff]
    %v545 = vrot.slane %v544, 5
    %546 = vst [vmem:[%s541] sm:$0xff] %v545
    %s547 = scalar_lea.vmem %s542, 8 [#allocation0]
    %s548 = scalar_lea.vmem %s547, 7 [#allocation0]
    %v549 = vld [vmem:[%s548] ss:$-1 sm:$0xff]
    %v550 = vrot.slane %v549, 5
    %v551 = vlaneseq
    %v552 = vshrl.u32 %v551, 7
    %vm553 = vcmp.lt.s32.totalorder %v552, 3
    %554 = vst.msk [vmem:[%s541] sm:$0xff] %vm553, %v550
    %s555 = scalar_lea.vmem [#allocation2], 40
    %s556 = scalar_lea.vmem [#allocation0], 80
    %s557 = scalar_lea.vmem %s556, 7 [#allocation0]
    %v558 = vld [vmem:[%s557] ss:$-1 sm:$0xff]
    %v559 = vrot.slane %v558, 5
    %560 = vst [vmem:[%s555] sm:$0xff] %v559
    %s561 = scalar_lea.vmem %s556, 8 [#allocation0]
    %s562 = scalar_lea.vmem %s561, 7 [#allocation0]
    %v563 = vld [vmem:[%s562] ss:$-1 sm:$0xff]
    %v564 = vrot.slane %v563, 5
    %v565 = vlaneseq
    %v566 = vshrl.u32 %v565, 7
    %vm567 = vcmp.lt.s32.totalorder %v566, 3
    %568 = vst.msk [vmem:[%s555] sm:$0xff] %vm567, %v564
    %s569 = scalar_lea.vmem [#allocation2], 48
    %s570 = scalar_lea.vmem [#allocation0], 96
    %s571 = scalar_lea.vmem %s570, 7 [#allocation0]
    %v572 = vld [vmem:[%s571] ss:$-1 sm:$0xff]
    %v573 = vrot.slane %v572, 5
    %574 = vst [vmem:[%s569] sm:$0xff] %v573
    %s575 = scalar_lea.vmem %s570, 8 [#allocation0]
    %s576 = scalar_lea.vmem %s575, 7 [#allocation0]
    %v577 = vld [vmem:[%s576] ss:$-1 sm:$0xff]
    %v578 = vrot.slane %v577, 5
    %v579 = vlaneseq
    %v580 = vshrl.u32 %v579, 7
    %vm581 = vcmp.lt.s32.totalorder %v580, 3
    %582 = vst.msk [vmem:[%s569] sm:$0xff] %vm581, %v578
    %s583 = scalar_lea.vmem [#allocation2], 56
    %s584 = scalar_lea.vmem [#allocation0], 112
    %s585 = scalar_lea.vmem %s584, 7 [#allocation0]
    %v586 = vld [vmem:[%s585] ss:$-1 sm:$0xff]
    %v587 = vrot.slane %v586, 5
    %588 = vst [vmem:[%s583] sm:$0xff] %v587
    %s589 = scalar_lea.vmem %s584, 8 [#allocation0]
    %s590 = scalar_lea.vmem %s589, 7 [#allocation0]
    %v591 = vld [vmem:[%s590] ss:$-1 sm:$0xff]
    %v592 = vrot.slane %v591, 5
    %v593 = vlaneseq
    %v594 = vshrl.u32 %v593, 7
    %vm595 = vcmp.lt.s32.totalorder %v594, 3
    %596 = vst.msk [vmem:[%s583] sm:$0xff] %vm595, %v592
    %s597 = scalar_lea.vmem [#allocation2], 64
    %s598 = scalar_lea.vmem [#allocation0], 128
    %s599 = scalar_lea.vmem %s598, 7 [#allocation0]
    %v600 = vld [vmem:[%s599] ss:$-1 sm:$0xff]
    %v601 = vrot.slane %v600, 5
    %602 = vst [vmem:[%s597] sm:$0xff] %v601
    %s603 = scalar_lea.vmem %s598, 8 [#allocation0]
    %s604 = scalar_lea.vmem %s603, 7 [#allocation0]
    %v605 = vld [vmem:[%s604] ss:$-1 sm:$0xff]
    %v606 = vrot.slane %v605, 5
    %v607 = vlaneseq
    %v608 = vshrl.u32 %v607, 7
    %vm609 = vcmp.lt.s32.totalorder %v608, 3
    %610 = vst.msk [vmem:[%s597] sm:$0xff] %vm609, %v606
    %s611 = scalar_lea.vmem [#allocation2], 72
    %s612 = scalar_lea.vmem [#allocation0], 144
    %s613 = scalar_lea.vmem %s612, 7 [#allocation0]
    %v614 = vld [vmem:[%s613] ss:$-1 sm:$0xff]
    %v615 = vrot.slane %v614, 5
    %616 = vst [vmem:[%s611] sm:$0xff] %v615
    %s617 = scalar_lea.vmem %s612, 8 [#allocation0]
    %s618 = scalar_lea.vmem %s617, 7 [#allocation0]
    %v619 = vld [vmem:[%s618] ss:$-1 sm:$0xff]
    %v620 = vrot.slane %v619, 5
    %v621 = vlaneseq
    %v622 = vshrl.u32 %v621, 7
    %vm623 = vcmp.lt.s32.totalorder %v622, 3
    %624 = vst.msk [vmem:[%s611] sm:$0xff] %vm623, %v620
    %s625 = scalar_lea.vmem [#allocation2], 80
    %s626 = scalar_lea.vmem [#allocation0], 160
    %s627 = scalar_lea.vmem %s626, 7 [#allocation0]
    %v628 = vld [vmem:[%s627] ss:$-1 sm:$0xff]
    %v629 = vrot.slane %v628, 5
    %630 = vst [vmem:[%s625] sm:$0xff] %v629
    %s631 = scalar_lea.vmem %s626, 8 [#allocation0]
    %s632 = scalar_lea.vmem %s631, 7 [#allocation0]
    %v633 = vld [vmem:[%s632] ss:$-1 sm:$0xff]
    %v634 = vrot.slane %v633, 5
    %v635 = vlaneseq
    %v636 = vshrl.u32 %v635, 7
    %vm637 = vcmp.lt.s32.totalorder %v636, 3
    %638 = vst.msk [vmem:[%s625] sm:$0xff] %vm637, %v634
    %s639 = scalar_lea.vmem [#allocation2], 88
    %s640 = scalar_lea.vmem [#allocation0], 176
    %s641 = scalar_lea.vmem %s640, 7 [#allocation0]
    %v642 = vld [vmem:[%s641] ss:$-1 sm:$0xff]
    %v643 = vrot.slane %v642, 5
    %644 = vst [vmem:[%s639] sm:$0xff] %v643
    %s645 = scalar_lea.vmem %s640, 8 [#allocation0]
    %s646 = scalar_lea.vmem %s645, 7 [#allocation0]
    %v647 = vld [vmem:[%s646] ss:$-1 sm:$0xff]
    %v648 = vrot.slane %v647, 5
    %v649 = vlaneseq
    %v650 = vshrl.u32 %v649, 7
    %vm651 = vcmp.lt.s32.totalorder %v650, 3
    %652 = vst.msk [vmem:[%s639] sm:$0xff] %vm651, %v648
    %s653 = scalar_lea.vmem [#allocation2], 96
    %s654 = scalar_lea.vmem [#allocation0], 192
    %s655 = scalar_lea.vmem %s654, 7 [#allocation0]
    %v656 = vld [vmem:[%s655] ss:$-1 sm:$0xff]
    %v657 = vrot.slane %v656, 5
    %658 = vst [vmem:[%s653] sm:$0xff] %v657
    %s659 = scalar_lea.vmem %s654, 8 [#allocation0]
    %s660 = scalar_lea.vmem %s659, 7 [#allocation0]
    %v661 = vld [vmem:[%s660] ss:$-1 sm:$0xff]
    %v662 = vrot.slane %v661, 5
    %v663 = vlaneseq
    %v664 = vshrl.u32 %v663, 7
    %vm665 = vcmp.lt.s32.totalorder %v664, 3
    %666 = vst.msk [vmem:[%s653] sm:$0xff] %vm665, %v662
    %s667 = scalar_lea.vmem [#allocation2], 104
    %s668 = scalar_lea.vmem [#allocation0], 208
    %s669 = scalar_lea.vmem %s668, 7 [#allocation0]
    %v670 = vld [vmem:[%s669] ss:$-1 sm:$0xff]
    %v671 = vrot.slane %v670, 5
    %672 = vst [vmem:[%s667] sm:$0xff] %v671
    %s673 = scalar_lea.vmem %s668, 8 [#allocation0]
    %s674 = scalar_lea.vmem %s673, 7 [#allocation0]
    %v675 = vld [vmem:[%s674] ss:$-1 sm:$0xff]
    %v676 = vrot.slane %v675, 5
    %v677 = vlaneseq
    %v678 = vshrl.u32 %v677, 7
    %vm679 = vcmp.lt.s32.totalorder %v678, 3
    %680 = vst.msk [vmem:[%s667] sm:$0xff] %vm679, %v676
    %s681 = scalar_lea.vmem [#allocation2], 112
    %s682 = scalar_lea.vmem [#allocation0], 224
    %s683 = scalar_lea.vmem %s682, 7 [#allocation0]
    %v684 = vld [vmem:[%s683] ss:$-1 sm:$0xff]
    %v685 = vrot.slane %v684, 5
    %686 = vst [vmem:[%s681] sm:$0xff] %v685
    %s687 = scalar_lea.vmem %s682, 8 [#allocation0]
    %s688 = scalar_lea.vmem %s687, 7 [#allocation0]
    %v689 = vld [vmem:[%s688] ss:$-1 sm:$0xff]
    %v690 = vrot.slane %v689, 5
    %v691 = vlaneseq
    %v692 = vshrl.u32 %v691, 7
    %vm693 = vcmp.lt.s32.totalorder %v692, 3
    %694 = vst.msk [vmem:[%s681] sm:$0xff] %vm693, %v690
    %s695 = scalar_lea.vmem [#allocation2], 120
    %s696 = scalar_lea.vmem [#allocation0], 240
    %s697 = scalar_lea.vmem %s696, 7 [#allocation0]
    %v698 = vld [vmem:[%s697] ss:$-1 sm:$0xff]
    %v699 = vrot.slane %v698, 5
    %700 = vst [vmem:[%s695] sm:$0xff] %v699
    %s701 = scalar_lea.vmem %s696, 8 [#allocation0]
    %s702 = scalar_lea.vmem %s701, 7 [#allocation0]
    %v703 = vld [vmem:[%s702] ss:$-1 sm:$0xff]
    %v704 = vrot.slane %v703, 5
    %v705 = vlaneseq
    %v706 = vshrl.u32 %v705, 7
    %vm707 = vcmp.lt.s32.totalorder %v706, 3
    %708 = vst.msk [vmem:[%s695] sm:$0xff] %vm707, %v704
    %s709 = scalar_lea.vmem [#allocation2], 128
    %s710 = scalar_lea.vmem [#allocation0], 256
    %s711 = scalar_lea.vmem %s710, 7 [#allocation0]
    %v712 = vld [vmem:[%s711] ss:$-1 sm:$0xff]
    %v713 = vrot.slane %v712, 5
    %714 = vst [vmem:[%s709] sm:$0xff] %v713
    %s715 = scalar_lea.vmem %s710, 8 [#allocation0]
    %s716 = scalar_lea.vmem %s715, 7 [#allocation0]
    %v717 = vld [vmem:[%s716] ss:$-1 sm:$0xff]
    %v718 = vrot.slane %v717, 5
    %v719 = vlaneseq
    %v720 = vshrl.u32 %v719, 7
    %vm721 = vcmp.lt.s32.totalorder %v720, 3
    %722 = vst.msk [vmem:[%s709] sm:$0xff] %vm721, %v718
    %s723 = scalar_lea.vmem [#allocation2], 136
    %s724 = scalar_lea.vmem [#allocation0], 272
    %s725 = scalar_lea.vmem %s724, 7 [#allocation0]
    %v726 = vld [vmem:[%s725] ss:$-1 sm:$0xff]
    %v727 = vrot.slane %v726, 5
    %728 = vst [vmem:[%s723] sm:$0xff] %v727
    %s729 = scalar_lea.vmem %s724, 8 [#allocation0]
    %s730 = scalar_lea.vmem %s729, 7 [#allocation0]
    %v731 = vld [vmem:[%s730] ss:$-1 sm:$0xff]
    %v732 = vrot.slane %v731, 5
    %v733 = vlaneseq
    %v734 = vshrl.u32 %v733, 7
    %vm735 = vcmp.lt.s32.totalorder %v734, 3
    %736 = vst.msk [vmem:[%s723] sm:$0xff] %vm735, %v732
    %s737 = scalar_lea.vmem [#allocation2], 144
    %s738 = scalar_lea.vmem [#allocation0], 288
    %s739 = scalar_lea.vmem %s738, 7 [#allocation0]
    %v740 = vld [vmem:[%s739] ss:$-1 sm:$0xff]
    %v741 = vrot.slane %v740, 5
    %742 = vst [vmem:[%s737] sm:$0xff] %v741
    %s743 = scalar_lea.vmem %s738, 8 [#allocation0]
    %s744 = scalar_lea.vmem %s743, 7 [#allocation0]
    %v745 = vld [vmem:[%s744] ss:$-1 sm:$0xff]
    %v746 = vrot.slane %v745, 5
    %v747 = vlaneseq
    %v748 = vshrl.u32 %v747, 7
    %vm749 = vcmp.lt.s32.totalorder %v748, 3
    %750 = vst.msk [vmem:[%s737] sm:$0xff] %vm749, %v746
    %s751 = scalar_lea.vmem [#allocation2], 152
    %s752 = scalar_lea.vmem [#allocation0], 304
    %s753 = scalar_lea.vmem %s752, 7 [#allocation0]
    %v754 = vld [vmem:[%s753] ss:$-1 sm:$0xff]
    %v755 = vrot.slane %v754, 5
    %756 = vst [vmem:[%s751] sm:$0xff] %v755
    %s757 = scalar_lea.vmem %s752, 8 [#allocation0]
    %s758 = scalar_lea.vmem %s757, 7 [#allocation0]
    %v759 = vld [vmem:[%s758] ss:$-1 sm:$0xff]
    %v760 = vrot.slane %v759, 5
    %v761 = vlaneseq
    %v762 = vshrl.u32 %v761, 7
    %vm763 = vcmp.lt.s32.totalorder %v762, 3
    %764 = vst.msk [vmem:[%s751] sm:$0xff] %vm763, %v760
    %s765 = scalar_lea.vmem [#allocation2], 160
    %s766 = scalar_lea.vmem [#allocation0], 320
    %s767 = scalar_lea.vmem %s766, 7 [#allocation0]
    %v768 = vld [vmem:[%s767] ss:$-1 sm:$0xff]
    %v769 = vrot.slane %v768, 5
    %770 = vst [vmem:[%s765] sm:$0xff] %v769
    %s771 = scalar_lea.vmem %s766, 8 [#allocation0]
    %s772 = scalar_lea.vmem %s771, 7 [#allocation0]
    %v773 = vld [vmem:[%s772] ss:$-1 sm:$0xff]
    %v774 = vrot.slane %v773, 5
    %v775 = vlaneseq
    %v776 = vshrl.u32 %v775, 7
    %vm777 = vcmp.lt.s32.totalorder %v776, 3
    %778 = vst.msk [vmem:[%s765] sm:$0xff] %vm777, %v774
    %s779 = scalar_lea.vmem [#allocation2], 168
    %s780 = scalar_lea.vmem [#allocation0], 336
    %s781 = scalar_lea.vmem %s780, 7 [#allocation0]
    %v782 = vld [vmem:[%s781] ss:$-1 sm:$0xff]
    %v783 = vrot.slane %v782, 5
    %784 = vst [vmem:[%s779] sm:$0xff] %v783
    %s785 = scalar_lea.vmem %s780, 8 [#allocation0]
    %s786 = scalar_lea.vmem %s785, 7 [#allocation0]
    %v787 = vld [vmem:[%s786] ss:$-1 sm:$0xff]
    %v788 = vrot.slane %v787, 5
    %v789 = vlaneseq
    %v790 = vshrl.u32 %v789, 7
    %vm791 = vcmp.lt.s32.totalorder %v790, 3
    %792 = vst.msk [vmem:[%s779] sm:$0xff] %vm791, %v788
    %s793 = scalar_lea.vmem [#allocation2], 176
    %s794 = scalar_lea.vmem [#allocation0], 352
    %s795 = scalar_lea.vmem %s794, 7 [#allocation0]
    %v796 = vld [vmem:[%s795] ss:$-1 sm:$0xff]
    %v797 = vrot.slane %v796, 5
    %798 = vst [vmem:[%s793] sm:$0xff] %v797
    %s799 = scalar_lea.vmem %s794, 8 [#allocation0]
    %s800 = scalar_lea.vmem %s799, 7 [#allocation0]
    %v801 = vld [vmem:[%s800] ss:$-1 sm:$0xff]
    %v802 = vrot.slane %v801, 5
    %v803 = vlaneseq
    %v804 = vshrl.u32 %v803, 7
    %vm805 = vcmp.lt.s32.totalorder %v804, 3
    %806 = vst.msk [vmem:[%s793] sm:$0xff] %vm805, %v802
    %s807 = scalar_lea.vmem [#allocation2], 184
    %s808 = scalar_lea.vmem [#allocation0], 368
    %s809 = scalar_lea.vmem %s808, 7 [#allocation0]
    %v810 = vld [vmem:[%s809] ss:$-1 sm:$0xff]
    %v811 = vrot.slane %v810, 5
    %812 = vst [vmem:[%s807] sm:$0xff] %v811
    %s813 = scalar_lea.vmem %s808, 8 [#allocation0]
    %s814 = scalar_lea.vmem %s813, 7 [#allocation0]
    %v815 = vld [vmem:[%s814] ss:$-1 sm:$0xff]
    %v816 = vrot.slane %v815, 5
    %v817 = vlaneseq
    %v818 = vshrl.u32 %v817, 7
    %vm819 = vcmp.lt.s32.totalorder %v818, 3
    %820 = vst.msk [vmem:[%s807] sm:$0xff] %vm819, %v816
    %s821 = scalar_lea.vmem [#allocation2], 192
    %s822 = scalar_lea.vmem [#allocation0], 384
    %s823 = scalar_lea.vmem %s822, 7 [#allocation0]
    %v824 = vld [vmem:[%s823] ss:$-1 sm:$0xff]
    %v825 = vrot.slane %v824, 5
    %826 = vst [vmem:[%s821] sm:$0xff] %v825
    %s827 = scalar_lea.vmem %s822, 8 [#allocation0]
    %s828 = scalar_lea.vmem %s827, 7 [#allocation0]
    %v829 = vld [vmem:[%s828] ss:$-1 sm:$0xff]
    %v830 = vrot.slane %v829, 5
    %v831 = vlaneseq
    %v832 = vshrl.u32 %v831, 7
    %vm833 = vcmp.lt.s32.totalorder %v832, 3
    %834 = vst.msk [vmem:[%s821] sm:$0xff] %vm833, %v830
    %s835 = scalar_lea.vmem [#allocation2], 200
    %s836 = scalar_lea.vmem [#allocation0], 400
    %s837 = scalar_lea.vmem %s836, 7 [#allocation0]
    %v838 = vld [vmem:[%s837] ss:$-1 sm:$0xff]
    %v839 = vrot.slane %v838, 5
    %840 = vst [vmem:[%s835] sm:$0xff] %v839
    %s841 = scalar_lea.vmem %s836, 8 [#allocation0]
    %s842 = scalar_lea.vmem %s841, 7 [#allocation0]
    %v843 = vld [vmem:[%s842] ss:$-1 sm:$0xff]
    %v844 = vrot.slane %v843, 5
    %v845 = vlaneseq
    %v846 = vshrl.u32 %v845, 7
    %vm847 = vcmp.lt.s32.totalorder %v846, 3
    %848 = vst.msk [vmem:[%s835] sm:$0xff] %vm847, %v844
    %s849 = scalar_lea.vmem [#allocation2], 208
    %s850 = scalar_lea.vmem [#allocation0], 416
    %s851 = scalar_lea.vmem %s850, 7 [#allocation0]
    %v852 = vld [vmem:[%s851] ss:$-1 sm:$0xff]
    %v853 = vrot.slane %v852, 5
    %854 = vst [vmem:[%s849] sm:$0xff] %v853
    %s855 = scalar_lea.vmem %s850, 8 [#allocation0]
    %s856 = scalar_lea.vmem %s855, 7 [#allocation0]
    %v857 = vld [vmem:[%s856] ss:$-1 sm:$0xff]
    %v858 = vrot.slane %v857, 5
    %v859 = vlaneseq
    %v860 = vshrl.u32 %v859, 7
    %vm861 = vcmp.lt.s32.totalorder %v860, 3
    %862 = vst.msk [vmem:[%s849] sm:$0xff] %vm861, %v858
    %s863 = scalar_lea.vmem [#allocation2], 216
    %s864 = scalar_lea.vmem [#allocation0], 432
    %s865 = scalar_lea.vmem %s864, 7 [#allocation0]
    %v866 = vld [vmem:[%s865] ss:$-1 sm:$0xff]
    %v867 = vrot.slane %v866, 5
    %868 = vst [vmem:[%s863] sm:$0xff] %v867
    %s869 = scalar_lea.vmem %s864, 8 [#allocation0]
    %s870 = scalar_lea.vmem %s869, 7 [#allocation0]
    %v871 = vld [vmem:[%s870] ss:$-1 sm:$0xff]
    %v872 = vrot.slane %v871, 5
    %v873 = vlaneseq
    %v874 = vshrl.u32 %v873, 7
    %vm875 = vcmp.lt.s32.totalorder %v874, 3
    %876 = vst.msk [vmem:[%s863] sm:$0xff] %vm875, %v872
    %s877 = scalar_lea.vmem [#allocation2], 224
    %s878 = scalar_lea.vmem [#allocation0], 448
    %s879 = scalar_lea.vmem %s878, 7 [#allocation0]
    %v880 = vld [vmem:[%s879] ss:$-1 sm:$0xff]
    %v881 = vrot.slane %v880, 5
    %882 = vst [vmem:[%s877] sm:$0xff] %v881
    %s883 = scalar_lea.vmem %s878, 8 [#allocation0]
    %s884 = scalar_lea.vmem %s883, 7 [#allocation0]
    %v885 = vld [vmem:[%s884] ss:$-1 sm:$0xff]
    %v886 = vrot.slane %v885, 5
    %v887 = vlaneseq
    %v888 = vshrl.u32 %v887, 7
    %vm889 = vcmp.lt.s32.totalorder %v888, 3
    %890 = vst.msk [vmem:[%s877] sm:$0xff] %vm889, %v886
    %s891 = scalar_lea.vmem [#allocation2], 232
    %s892 = scalar_lea.vmem [#allocation0], 464
    %s893 = scalar_lea.vmem %s892, 7 [#allocation0]
    %v894 = vld [vmem:[%s893] ss:$-1 sm:$0xff]
    %v895 = vrot.slane %v894, 5
    %896 = vst [vmem:[%s891] sm:$0xff] %v895
    %s897 = scalar_lea.vmem %s892, 8 [#allocation0]
    %s898 = scalar_lea.vmem %s897, 7 [#allocation0]
    %v899 = vld [vmem:[%s898] ss:$-1 sm:$0xff]
    %v900 = vrot.slane %v899, 5
    %v901 = vlaneseq
    %v902 = vshrl.u32 %v901, 7
    %vm903 = vcmp.lt.s32.totalorder %v902, 3
    %904 = vst.msk [vmem:[%s891] sm:$0xff] %vm903, %v900
    %s905 = scalar_lea.vmem [#allocation2], 240
    %s906 = scalar_lea.vmem [#allocation0], 480
    %s907 = scalar_lea.vmem %s906, 7 [#allocation0]
    %v908 = vld [vmem:[%s907] ss:$-1 sm:$0xff]
    %v909 = vrot.slane %v908, 5
    %910 = vst [vmem:[%s905] sm:$0xff] %v909
    %s911 = scalar_lea.vmem %s906, 8 [#allocation0]
    %s912 = scalar_lea.vmem %s911, 7 [#allocation0]
    %v913 = vld [vmem:[%s912] ss:$-1 sm:$0xff]
    %v914 = vrot.slane %v913, 5
    %v915 = vlaneseq
    %v916 = vshrl.u32 %v915, 7
    %vm917 = vcmp.lt.s32.totalorder %v916, 3
    %918 = vst.msk [vmem:[%s905] sm:$0xff] %vm917, %v914
    %s919 = scalar_lea.vmem [#allocation2], 248
    %s920 = scalar_lea.vmem [#allocation0], 496
    %s921 = scalar_lea.vmem %s920, 7 [#allocation0]
    %v922 = vld [vmem:[%s921] ss:$-1 sm:$0xff]
    %v923 = vrot.slane %v922, 5
    %924 = vst [vmem:[%s919] sm:$0xff] %v923
    %s925 = scalar_lea.vmem %s920, 8 [#allocation0]
    %s926 = scalar_lea.vmem %s925, 7 [#allocation0]
    %v927 = vld [vmem:[%s926] ss:$-1 sm:$0xff]
    %v928 = vrot.slane %v927, 5
    %v929 = vlaneseq
    %v930 = vshrl.u32 %v929, 7
    %vm931 = vcmp.lt.s32.totalorder %v930, 3
    %932 = vst.msk [vmem:[%s919] sm:$0xff] %vm931, %v928
    %s934 = sshll.u32 1, 4
    %s935 = ssub.s32 %s934, 1
    %v937 = vld [vmem:[#allocation2] sm:%s935]
    %s938 = sshll.u32 1, 4
    %s939 = ssub.s32 %s938, 1
    %940 = vst [vmem:[#allocation3] sm:%s939] %v937
    %s941 = scalar_lea.vmem [#allocation2], 8
    %v942 = vld [vmem:[%s941] sm:%s935]
    %s943 = sshll.u32 1, 4
    %s944 = ssub.s32 %s943, 1
    %s945 = scalar_lea.vmem [#allocation3], 4
    %946 = vst [vmem:[%s945] sm:%s944] %v942
    %s947 = scalar_lea.vmem [#allocation2], 16
    %v948 = vld [vmem:[%s947] sm:%s935]
    %s949 = sshll.u32 1, 4
    %s950 = ssub.s32 %s949, 1
    %s951 = smul.addr 4, 2
    %s952 = scalar_lea.vmem [#allocation3], %s951
    %953 = vst [vmem:[%s952] sm:%s950] %v948
    %s954 = scalar_lea.vmem [#allocation2], 24
    %v955 = vld [vmem:[%s954] sm:%s935]
    %s956 = sshll.u32 1, 4
    %s957 = ssub.s32 %s956, 1
    %s958 = smul.addr 4, 3
    %s959 = scalar_lea.vmem [#allocation3], %s958
    %960 = vst [vmem:[%s959] sm:%s957] %v955
    %s961 = scalar_lea.vmem [#allocation2], 32
    %v962 = vld [vmem:[%s961] sm:%s935]
    %s963 = sshll.u32 1, 4
    %s964 = ssub.s32 %s963, 1
    %s965 = smul.addr 4, 4
    %s966 = scalar_lea.vmem [#allocation3], %s965
    %967 = vst [vmem:[%s966] sm:%s964] %v962
    %s968 = scalar_lea.vmem [#allocation2], 40
    %v969 = vld [vmem:[%s968] sm:%s935]
    %s970 = sshll.u32 1, 4
    %s971 = ssub.s32 %s970, 1
    %s972 = smul.addr 4, 5
    %s973 = scalar_lea.vmem [#allocation3], %s972
    %974 = vst [vmem:[%s973] sm:%s971] %v969
    %s975 = scalar_lea.vmem [#allocation2], 48
    %v976 = vld [vmem:[%s975] sm:%s935]
    %s977 = sshll.u32 1, 4
    %s978 = ssub.s32 %s977, 1
    %s979 = smul.addr 4, 6
    %s980 = scalar_lea.vmem [#allocation3], %s979
    %981 = vst [vmem:[%s980] sm:%s978] %v976
    %s982 = scalar_lea.vmem [#allocation2], 56
    %v983 = vld [vmem:[%s982] sm:%s935]
    %s984 = sshll.u32 1, 4
    %s985 = ssub.s32 %s984, 1
    %s986 = smul.addr 4, 7
    %s987 = scalar_lea.vmem [#allocation3], %s986
    %988 = vst [vmem:[%s987] sm:%s985] %v983
    %s989 = scalar_lea.vmem [#allocation2], 64
    %v990 = vld [vmem:[%s989] sm:%s935]
    %s991 = sshll.u32 1, 4
    %s992 = ssub.s32 %s991, 1
    %s993 = smul.addr 4, 8
    %s994 = scalar_lea.vmem [#allocation3], %s993
    %995 = vst [vmem:[%s994] sm:%s992] %v990
    %s996 = scalar_lea.vmem [#allocation2], 72
    %v997 = vld [vmem:[%s996] sm:%s935]
    %s998 = sshll.u32 1, 4
    %s999 = ssub.s32 %s998, 1
    %s1000 = smul.addr 4, 9
    %s1001 = scalar_lea.vmem [#allocation3], %s1000
    %1002 = vst [vmem:[%s1001] sm:%s999] %v997
    %s1003 = scalar_lea.vmem [#allocation2], 80
    %v1004 = vld [vmem:[%s1003] sm:%s935]
    %s1005 = sshll.u32 1, 4
    %s1006 = ssub.s32 %s1005, 1
    %s1007 = smul.addr 4, 10
    %s1008 = scalar_lea.vmem [#allocation3], %s1007
    %1009 = vst [vmem:[%s1008] sm:%s1006] %v1004
    %s1010 = scalar_lea.vmem [#allocation2], 88
    %v1011 = vld [vmem:[%s1010] sm:%s935]
    %s1012 = sshll.u32 1, 4
    %s1013 = ssub.s32 %s1012, 1
    %s1014 = smul.addr 4, 11
    %s1015 = scalar_lea.vmem [#allocation3], %s1014
    %1016 = vst [vmem:[%s1015] sm:%s1013] %v1011
    %s1017 = scalar_lea.vmem [#allocation2], 96
    %v1018 = vld [vmem:[%s1017] sm:%s935]
    %s1019 = sshll.u32 1, 4
    %s1020 = ssub.s32 %s1019, 1
    %s1021 = smul.addr 4, 12
    %s1022 = scalar_lea.vmem [#allocation3], %s1021
    %1023 = vst [vmem:[%s1022] sm:%s1020] %v1018
    %s1024 = scalar_lea.vmem [#allocation2], 104
    %v1025 = vld [vmem:[%s1024] sm:%s935]
    %s1026 = sshll.u32 1, 4
    %s1027 = ssub.s32 %s1026, 1
    %s1028 = smul.addr 4, 13
    %s1029 = scalar_lea.vmem [#allocation3], %s1028
    %1030 = vst [vmem:[%s1029] sm:%s1027] %v1025
    %s1031 = scalar_lea.vmem [#allocation2], 112
    %v1032 = vld [vmem:[%s1031] sm:%s935]
    %s1033 = sshll.u32 1, 4
    %s1034 = ssub.s32 %s1033, 1
    %s1035 = smul.addr 4, 14
    %s1036 = scalar_lea.vmem [#allocation3], %s1035
    %1037 = vst [vmem:[%s1036] sm:%s1034] %v1032
    %s1038 = scalar_lea.vmem [#allocation2], 120
    %v1039 = vld [vmem:[%s1038] sm:%s935]
    %s1040 = sshll.u32 1, 4
    %s1041 = ssub.s32 %s1040, 1
    %s1042 = smul.addr 4, 15
    %s1043 = scalar_lea.vmem [#allocation3], %s1042
    %1044 = vst [vmem:[%s1043] sm:%s1041] %v1039
    %s1045 = scalar_lea.vmem [#allocation2], 128
    %v1046 = vld [vmem:[%s1045] sm:%s935]
    %s1047 = sshll.u32 1, 4
    %s1048 = ssub.s32 %s1047, 1
    %s1049 = smul.addr 4, 16
    %s1050 = scalar_lea.vmem [#allocation3], %s1049
    %1051 = vst [vmem:[%s1050] sm:%s1048] %v1046
    %s1052 = scalar_lea.vmem [#allocation2], 136
    %v1053 = vld [vmem:[%s1052] sm:%s935]
    %s1054 = sshll.u32 1, 4
    %s1055 = ssub.s32 %s1054, 1
    %s1056 = smul.addr 4, 17
    %s1057 = scalar_lea.vmem [#allocation3], %s1056
    %1058 = vst [vmem:[%s1057] sm:%s1055] %v1053
    %s1059 = scalar_lea.vmem [#allocation2], 144
    %v1060 = vld [vmem:[%s1059] sm:%s935]
    %s1061 = sshll.u32 1, 4
    %s1062 = ssub.s32 %s1061, 1
    %s1063 = smul.addr 4, 18
    %s1064 = scalar_lea.vmem [#allocation3], %s1063
    %1065 = vst [vmem:[%s1064] sm:%s1062] %v1060
    %s1066 = scalar_lea.vmem [#allocation2], 152
    %v1067 = vld [vmem:[%s1066] sm:%s935]
    %s1068 = sshll.u32 1, 4
    %s1069 = ssub.s32 %s1068, 1
    %s1070 = smul.addr 4, 19
    %s1071 = scalar_lea.vmem [#allocation3], %s1070
    %1072 = vst [vmem:[%s1071] sm:%s1069] %v1067
    %s1073 = scalar_lea.vmem [#allocation2], 160
    %v1074 = vld [vmem:[%s1073] sm:%s935]
    %s1075 = sshll.u32 1, 4
    %s1076 = ssub.s32 %s1075, 1
    %s1077 = smul.addr 4, 20
    %s1078 = scalar_lea.vmem [#allocation3], %s1077
    %1079 = vst [vmem:[%s1078] sm:%s1076] %v1074
    %s1080 = scalar_lea.vmem [#allocation2], 168
    %v1081 = vld [vmem:[%s1080] sm:%s935]
    %s1082 = sshll.u32 1, 4
    %s1083 = ssub.s32 %s1082, 1
    %s1084 = smul.addr 4, 21
    %s1085 = scalar_lea.vmem [#allocation3], %s1084
    %1086 = vst [vmem:[%s1085] sm:%s1083] %v1081
    %s1087 = scalar_lea.vmem [#allocation2], 176
    %v1088 = vld [vmem:[%s1087] sm:%s935]
    %s1089 = sshll.u32 1, 4
    %s1090 = ssub.s32 %s1089, 1
    %s1091 = smul.addr 4, 22
    %s1092 = scalar_lea.vmem [#allocation3], %s1091
    %1093 = vst [vmem:[%s1092] sm:%s1090] %v1088
    %s1094 = scalar_lea.vmem [#allocation2], 184
    %v1095 = vld [vmem:[%s1094] sm:%s935]
    %s1096 = sshll.u32 1, 4
    %s1097 = ssub.s32 %s1096, 1
    %s1098 = smul.addr 4, 23
    %s1099 = scalar_lea.vmem [#allocation3], %s1098
    %1100 = vst [vmem:[%s1099] sm:%s1097] %v1095
    %s1101 = scalar_lea.vmem [#allocation2], 192
    %v1102 = vld [vmem:[%s1101] sm:%s935]
    %s1103 = sshll.u32 1, 4
    %s1104 = ssub.s32 %s1103, 1
    %s1105 = smul.addr 4, 24
    %s1106 = scalar_lea.vmem [#allocation3], %s1105
    %1107 = vst [vmem:[%s1106] sm:%s1104] %v1102
    %s1108 = scalar_lea.vmem [#allocation2], 200
    %v1109 = vld [vmem:[%s1108] sm:%s935]
    %s1110 = sshll.u32 1, 4
    %s1111 = ssub.s32 %s1110, 1
    %s1112 = smul.addr 4, 25
    %s1113 = scalar_lea.vmem [#allocation3], %s1112
    %1114 = vst [vmem:[%s1113] sm:%s1111] %v1109
    %s1115 = scalar_lea.vmem [#allocation2], 208
    %v1116 = vld [vmem:[%s1115] sm:%s935]
    %s1117 = sshll.u32 1, 4
    %s1118 = ssub.s32 %s1117, 1
    %s1119 = smul.addr 4, 26
    %s1120 = scalar_lea.vmem [#allocation3], %s1119
    %1121 = vst [vmem:[%s1120] sm:%s1118] %v1116
    %s1122 = scalar_lea.vmem [#allocation2], 216
    %v1123 = vld [vmem:[%s1122] sm:%s935]
    %s1124 = sshll.u32 1, 4
    %s1125 = ssub.s32 %s1124, 1
    %s1126 = smul.addr 4, 27
    %s1127 = scalar_lea.vmem [#allocation3], %s1126
    %1128 = vst [vmem:[%s1127] sm:%s1125] %v1123
    %s1129 = scalar_lea.vmem [#allocation2], 224
    %v1130 = vld [vmem:[%s1129] sm:%s935]
    %s1131 = sshll.u32 1, 4
    %s1132 = ssub.s32 %s1131, 1
    %s1133 = smul.addr 4, 28
    %s1134 = scalar_lea.vmem [#allocation3], %s1133
    %1135 = vst [vmem:[%s1134] sm:%s1132] %v1130
    %s1136 = scalar_lea.vmem [#allocation2], 232
    %v1137 = vld [vmem:[%s1136] sm:%s935]
    %s1138 = sshll.u32 1, 4
    %s1139 = ssub.s32 %s1138, 1
    %s1140 = smul.addr 4, 29
    %s1141 = scalar_lea.vmem [#allocation3], %s1140
    %1142 = vst [vmem:[%s1141] sm:%s1139] %v1137
    %s1143 = scalar_lea.vmem [#allocation2], 240
    %v1144 = vld [vmem:[%s1143] sm:%s935]
    %s1145 = sshll.u32 1, 4
    %s1146 = ssub.s32 %s1145, 1
    %s1147 = smul.addr 4, 30
    %s1148 = scalar_lea.vmem [#allocation3], %s1147
    %1149 = vst [vmem:[%s1148] sm:%s1146] %v1144
    %s1150 = scalar_lea.vmem [#allocation2], 248
    %v1151 = vld [vmem:[%s1150] sm:%s935]
    %s1152 = sshll.u32 1, 4
    %s1153 = ssub.s32 %s1152, 1
    %s1154 = smul.addr 4, 31
    %s1155 = scalar_lea.vmem [#allocation3], %s1154
    %1156 = vst [vmem:[%s1155] sm:%s1153] %v1151
    // Predicated region
    $region39: #{reverse.0} parent=1 // pred_check
      _
    $region40: #{reverse.0} parent=1 // pred_check_branch
      %1158 = sbr.rel (0) target = $region42
    $region41: #{reverse.0} parent=1 // pred_region
      // Predicated region
      $region43: #{reverse.0} parent=41 // pred_check
        _
      $region44: #{reverse.0} parent=41 // pred_check_branch
        %1160 = sbr.rel target = $region46
      $region45: #{reverse.0} parent=41 // pred_region
        // Predicated region
        $region58: #{reverse.0} parent=45 // pred_check
          _
        $region59: #{reverse.0} parent=45 // pred_check_branch
          %1238 = sbr.rel (0) target = $region61
        $region60: #{reverse.0} parent=45 // pred_region
          loop: start=0, step=1, limit=1
          $region62: #{reverse.0} parent=60 // loop_pre_header
            _
          $region63: #{reverse.0} parent=60 // loop_header
            %s1240 = sphi 0, %s1244
            %p1241 = scmp.ge.s32.totalorder %s1240, 1
            %s1245 = sphi [#allocation3], [#allocation3]
            %s1246 = sphi %s1, %s1
          $region64: #{reverse.0} parent=60 // loop_header_branch
            %1243 = sbr.rel (%p1241) target = $region68
          $region65: #{reverse.0} parent=60 // loop_body
            _
          $region66: #{reverse.0} parent=60 // loop_footer
            %s1244 = sadd.s32 1, %s1240
          $region67: #{reverse.0} parent=60 // loop_footer_branch
            %1239 = sbr.rel target = $region63
          $region68: #{reverse.0} parent=60 // loop_exit
            _
          %s1248 = ssub.s32 16, 1
          loop: start=0, step=1, limit=1
          $region69: #{reverse.0} parent=60 // loop_pre_header
            _
          $region70: #{reverse.0} parent=60 // loop_header
            %s1250 = sphi 0, %s1254
            %p1251 = scmp.ge.s32.totalorder %s1250, 1
            %s1255 = sphi [#allocation3], [#allocation3]
            %s1256 = sphi %s1, %s1
          $region71: #{reverse.0} parent=60 // loop_header_branch
            %1253 = sbr.rel (%p1251) target = $region75
          $region72: #{reverse.0} parent=60 // loop_body
            %v1257 = vld [vmem:[%s1255] sm:%s1248]
            %1258 = vst [vmem:[%s1256] sm:%s1248] %v1257
            %v1259 = vld [vmem:[%s1255 + $0x4] sm:%s1248]
            %1260 = vst [vmem:[%s1256 + $0x4] sm:%s1248] %v1259
            %v1261 = vld [vmem:[%s1255 + $0x8] sm:%s1248]
            %1262 = vst [vmem:[%s1256 + $0x8] sm:%s1248] %v1261
            %v1263 = vld [vmem:[%s1255 + $0xc] sm:%s1248]
            %1264 = vst [vmem:[%s1256 + $0xc] sm:%s1248] %v1263
            %v1265 = vld [vmem:[%s1255 + $0x10] sm:%s1248]
            %1266 = vst [vmem:[%s1256 + $0x10] sm:%s1248] %v1265
            %v1267 = vld [vmem:[%s1255 + $0x14] sm:%s1248]
            %1268 = vst [vmem:[%s1256 + $0x14] sm:%s1248] %v1267
            %v1269 = vld [vmem:[%s1255 + $0x18] sm:%s1248]
            %1270 = vst [vmem:[%s1256 + $0x18] sm:%s1248] %v1269
            %v1271 = vld [vmem:[%s1255 + $0x1c] sm:%s1248]
            %1272 = vst [vmem:[%s1256 + $0x1c] sm:%s1248] %v1271
            %v1273 = vld [vmem:[%s1255 + $0x20] sm:%s1248]
            %1274 = vst [vmem:[%s1256 + $0x20] sm:%s1248] %v1273
            %v1275 = vld [vmem:[%s1255 + $0x24] sm:%s1248]
            %1276 = vst [vmem:[%s1256 + $0x24] sm:%s1248] %v1275
            %v1277 = vld [vmem:[%s1255 + $0x28] sm:%s1248]
            %1278 = vst [vmem:[%s1256 + $0x28] sm:%s1248] %v1277
            %v1279 = vld [vmem:[%s1255 + $0x2c] sm:%s1248]
            %1280 = vst [vmem:[%s1256 + $0x2c] sm:%s1248] %v1279
            %v1281 = vld [vmem:[%s1255 + $0x30] sm:%s1248]
            %1282 = vst [vmem:[%s1256 + $0x30] sm:%s1248] %v1281
            %v1283 = vld [vmem:[%s1255 + $0x34] sm:%s1248]
            %1284 = vst [vmem:[%s1256 + $0x34] sm:%s1248] %v1283
            %v1285 = vld [vmem:[%s1255 + $0x38] sm:%s1248]
            %1286 = vst [vmem:[%s1256 + $0x38] sm:%s1248] %v1285
            %v1287 = vld [vmem:[%s1255 + $0x3c] sm:%s1248]
            %1288 = vst [vmem:[%s1256 + $0x3c] sm:%s1248] %v1287
            %v1289 = vld [vmem:[%s1255 + $0x40] sm:%s1248]
            %1290 = vst [vmem:[%s1256 + $0x40] sm:%s1248] %v1289
            %v1291 = vld [vmem:[%s1255 + $0x44] sm:%s1248]
            %1292 = vst [vmem:[%s1256 + $0x44] sm:%s1248] %v1291
            %v1293 = vld [vmem:[%s1255 + $0x48] sm:%s1248]
            %1294 = vst [vmem:[%s1256 + $0x48] sm:%s1248] %v1293
            %v1295 = vld [vmem:[%s1255 + $0x4c] sm:%s1248]
            %1296 = vst [vmem:[%s1256 + $0x4c] sm:%s1248] %v1295
            %v1297 = vld [vmem:[%s1255 + $0x50] sm:%s1248]
            %1298 = vst [vmem:[%s1256 + $0x50] sm:%s1248] %v1297
            %v1299 = vld [vmem:[%s1255 + $0x54] sm:%s1248]
            %1300 = vst [vmem:[%s1256 + $0x54] sm:%s1248] %v1299
            %v1301 = vld [vmem:[%s1255 + $0x58] sm:%s1248]
            %1302 = vst [vmem:[%s1256 + $0x58] sm:%s1248] %v1301
            %v1303 = vld [vmem:[%s1255 + $0x5c] sm:%s1248]
            %1304 = vst [vmem:[%s1256 + $0x5c] sm:%s1248] %v1303
            %v1305 = vld [vmem:[%s1255 + $0x60] sm:%s1248]
            %1306 = vst [vmem:[%s1256 + $0x60] sm:%s1248] %v1305
            %v1307 = vld [vmem:[%s1255 + $0x64] sm:%s1248]
            %1308 = vst [vmem:[%s1256 + $0x64] sm:%s1248] %v1307
            %v1309 = vld [vmem:[%s1255 + $0x68] sm:%s1248]
            %1310 = vst [vmem:[%s1256 + $0x68] sm:%s1248] %v1309
            %v1311 = vld [vmem:[%s1255 + $0x6c] sm:%s1248]
            %1312 = vst [vmem:[%s1256 + $0x6c] sm:%s1248] %v1311
            %v1313 = vld [vmem:[%s1255 + $0x70] sm:%s1248]
            %1314 = vst [vmem:[%s1256 + $0x70] sm:%s1248] %v1313
            %v1315 = vld [vmem:[%s1255 + $0x74] sm:%s1248]
            %1316 = vst [vmem:[%s1256 + $0x74] sm:%s1248] %v1315
            %v1317 = vld [vmem:[%s1255 + $0x78] sm:%s1248]
            %1318 = vst [vmem:[%s1256 + $0x78] sm:%s1248] %v1317
            %v1319 = vld [vmem:[%s1255 + $0x7c] sm:%s1248]
            %1320 = vst [vmem:[%s1256 + $0x7c] sm:%s1248] %v1319
          $region73: #{reverse.0} parent=60 // loop_footer
            %s1254 = sadd.s32 1, %s1250
          $region74: #{reverse.0} parent=60 // loop_footer_branch
            %1249 = sbr.rel target = $region70
          $region75: #{reverse.0} parent=60 // loop_exit
            _
        $region61: #{reverse.0} parent=45 // pred_fallthru
          _
      $region46: #{reverse.0} parent=41 // pred_fallthru
        _
      // Predicated region
      $region47: #{reverse.0} parent=41 // pred_check
        _
      $region48: #{reverse.0} parent=41 // pred_check_branch
        %1162 = sbr.rel (0) target = $region50
      $region49: #{reverse.0} parent=41 // pred_region
        %s1164 = ssub.s32 16, 1
        loop: start=0, step=1, limit=1
        $region51: #{reverse.0} parent=49 // loop_pre_header
          _
        $region52: #{reverse.0} parent=49 // loop_header
          %s1166 = sphi 0, %s1170
          %p1167 = scmp.ge.s32.totalorder %s1166, 1
          %s1171 = sphi [#allocation3], [#allocation3]
          %s1172 = sphi %s1, %s1
        $region53: #{reverse.0} parent=49 // loop_header_branch
          %1169 = sbr.rel (%p1167) target = $region57
        $region54: #{reverse.0} parent=49 // loop_body
          %v1173 = vld [vmem:[%s1171] sm:%s1164]
          %1174 = vst [vmem:[%s1172] sm:%s1164] %v1173
          %v1175 = vld [vmem:[%s1171 + $0x4] sm:%s1164]
          %1176 = vst [vmem:[%s1172 + $0x4] sm:%s1164] %v1175
          %v1177 = vld [vmem:[%s1171 + $0x8] sm:%s1164]
          %1178 = vst [vmem:[%s1172 + $0x8] sm:%s1164] %v1177
          %v1179 = vld [vmem:[%s1171 + $0xc] sm:%s1164]
          %1180 = vst [vmem:[%s1172 + $0xc] sm:%s1164] %v1179
          %v1181 = vld [vmem:[%s1171 + $0x10] sm:%s1164]
          %1182 = vst [vmem:[%s1172 + $0x10] sm:%s1164] %v1181
          %v1183 = vld [vmem:[%s1171 + $0x14] sm:%s1164]
          %1184 = vst [vmem:[%s1172 + $0x14] sm:%s1164] %v1183
          %v1185 = vld [vmem:[%s1171 + $0x18] sm:%s1164]
          %1186 = vst [vmem:[%s1172 + $0x18] sm:%s1164] %v1185
          %v1187 = vld [vmem:[%s1171 + $0x1c] sm:%s1164]
          %1188 = vst [vmem:[%s1172 + $0x1c] sm:%s1164] %v1187
          %v1189 = vld [vmem:[%s1171 + $0x20] sm:%s1164]
          %1190 = vst [vmem:[%s1172 + $0x20] sm:%s1164] %v1189
          %v1191 = vld [vmem:[%s1171 + $0x24] sm:%s1164]
          %1192 = vst [vmem:[%s1172 + $0x24] sm:%s1164] %v1191
          %v1193 = vld [vmem:[%s1171 + $0x28] sm:%s1164]
          %1194 = vst [vmem:[%s1172 + $0x28] sm:%s1164] %v1193
          %v1195 = vld [vmem:[%s1171 + $0x2c] sm:%s1164]
          %1196 = vst [vmem:[%s1172 + $0x2c] sm:%s1164] %v1195
          %v1197 = vld [vmem:[%s1171 + $0x30] sm:%s1164]
          %1198 = vst [vmem:[%s1172 + $0x30] sm:%s1164] %v1197
          %v1199 = vld [vmem:[%s1171 + $0x34] sm:%s1164]
          %1200 = vst [vmem:[%s1172 + $0x34] sm:%s1164] %v1199
          %v1201 = vld [vmem:[%s1171 + $0x38] sm:%s1164]
          %1202 = vst [vmem:[%s1172 + $0x38] sm:%s1164] %v1201
          %v1203 = vld [vmem:[%s1171 + $0x3c] sm:%s1164]
          %1204 = vst [vmem:[%s1172 + $0x3c] sm:%s1164] %v1203
          %v1205 = vld [vmem:[%s1171 + $0x40] sm:%s1164]
          %1206 = vst [vmem:[%s1172 + $0x40] sm:%s1164] %v1205
          %v1207 = vld [vmem:[%s1171 + $0x44] sm:%s1164]
          %1208 = vst [vmem:[%s1172 + $0x44] sm:%s1164] %v1207
          %v1209 = vld [vmem:[%s1171 + $0x48] sm:%s1164]
          %1210 = vst [vmem:[%s1172 + $0x48] sm:%s1164] %v1209
          %v1211 = vld [vmem:[%s1171 + $0x4c] sm:%s1164]
          %1212 = vst [vmem:[%s1172 + $0x4c] sm:%s1164] %v1211
          %v1213 = vld [vmem:[%s1171 + $0x50] sm:%s1164]
          %1214 = vst [vmem:[%s1172 + $0x50] sm:%s1164] %v1213
          %v1215 = vld [vmem:[%s1171 + $0x54] sm:%s1164]
          %1216 = vst [vmem:[%s1172 + $0x54] sm:%s1164] %v1215
          %v1217 = vld [vmem:[%s1171 + $0x58] sm:%s1164]
          %1218 = vst [vmem:[%s1172 + $0x58] sm:%s1164] %v1217
          %v1219 = vld [vmem:[%s1171 + $0x5c] sm:%s1164]
          %1220 = vst [vmem:[%s1172 + $0x5c] sm:%s1164] %v1219
          %v1221 = vld [vmem:[%s1171 + $0x60] sm:%s1164]
          %1222 = vst [vmem:[%s1172 + $0x60] sm:%s1164] %v1221
          %v1223 = vld [vmem:[%s1171 + $0x64] sm:%s1164]
          %1224 = vst [vmem:[%s1172 + $0x64] sm:%s1164] %v1223
          %v1225 = vld [vmem:[%s1171 + $0x68] sm:%s1164]
          %1226 = vst [vmem:[%s1172 + $0x68] sm:%s1164] %v1225
          %v1227 = vld [vmem:[%s1171 + $0x6c] sm:%s1164]
          %1228 = vst [vmem:[%s1172 + $0x6c] sm:%s1164] %v1227
          %v1229 = vld [vmem:[%s1171 + $0x70] sm:%s1164]
          %1230 = vst [vmem:[%s1172 + $0x70] sm:%s1164] %v1229
          %v1231 = vld [vmem:[%s1171 + $0x74] sm:%s1164]
          %1232 = vst [vmem:[%s1172 + $0x74] sm:%s1164] %v1231
          %v1233 = vld [vmem:[%s1171 + $0x78] sm:%s1164]
          %1234 = vst [vmem:[%s1172 + $0x78] sm:%s1164] %v1233
          %v1235 = vld [vmem:[%s1171 + $0x7c] sm:%s1164]
          %1236 = vst [vmem:[%s1172 + $0x7c] sm:%s1164] %v1235
        $region55: #{reverse.0} parent=49 // loop_footer
          %s1170 = sadd.s32 1, %s1166
        $region56: #{reverse.0} parent=49 // loop_footer_branch
          %1165 = sbr.rel target = $region52
        $region57: #{reverse.0} parent=49 // loop_exit
          _
      $region50: #{reverse.0} parent=41 // pred_fallthru
        _
    $region42: #{reverse.0} parent=1 // pred_fallthru
      _
    %1321 = vnop

// kernel: res_four4_forward.8
$region0: #{res_four4_forward.8}
  #allocation0 [shape = 'u32[]', space=smem, size = 0x4, offset = 0x4, fixed_abs, tag = 'smem constant byte address 0x4 - core index']
  #allocation1 [shape = 'u32[144,128]{1,0:T(1,128)}', space=vmem, size = 0x12000, scoped, tag = 'internal scratch']
  #allocation2 [shape = 'f32[16,256]{1,0:T(8,128)}', space=vmem, size = 0x4000, scoped, tag = 'scratch operand']
  %s0 = inlined_call_operand.vmem [shape: f32[2,5,256], index: 0, kind: input, shape index: {}]
  %s1 = inlined_call_operand.vmem [shape: f32[2,5,256], index: 1, kind: input, shape index: {}]
  %s2 = inlined_call_operand.vmem [shape: f32[2,5,256], index: 2, kind: input, shape index: {}]
  %s3 = inlined_call_operand.vmem [shape: f32[10,16], index: 3, kind: input, shape index: {}]
  %s4 = inlined_call_operand.vmem [shape: f32[10,1], index: 4, kind: input, shape index: {}]
  %s5 = inlined_call_operand.vmem [shape: f32[13,10], index: 5, kind: input, shape index: {}]
  %s6 = inlined_call_operand.vmem [shape: f32[13,1], index: 6, kind: input, shape index: {}]
  %s7 = inlined_call_operand.vmem [shape: f32[2,5,256], index: 7, kind: output, shape index: {0}]
  %s8 = inlined_call_operand.vmem [shape: f32[2,5,256], index: 8, kind: output, shape index: {1}]
  %9 = xla_tuple %s7, %s8
  %s10 = sld [smem:[#allocation0]]
  $region69: #{res_four4_forward.8} parent=0
    _
  %s12 = ssub.s32 1, %s10
  %s13 = scalar_select 0, %s12, %s10
  loop: start=0, step=1, limit=4
  $region2: #{res_four4_forward.8} parent=0 // loop_pre_header
    _
  $region3: #{res_four4_forward.8} parent=0 // loop_header
    %s15 = sphi 0, %s19
    %p16 = scmp.ge.s32.totalorder %s15, 4
    %s22 = sphi 0, %s34
    %s23 = sphi 0, %s30
    %s24 = sphi 0, %s22
    %s25 = sphi 0, %s23
    %s26 = sphi 0, %s24
    %s27 = sphi 0, %s25
    %s39 = sphi 0, %s41
    %s42 = sphi 0, %s39
    %s43 = sphi 0, %s42
    %s59 = sphi 0, %s43
    %s67 = sphi 0, %s69
    %s70 = sphi 0, %s67
    %s71 = sphi 0, %s70
    %s87 = sphi 0, %s71
    %s95 = sphi 0, %s97
    %s98 = sphi 0, %s95
    %s99 = sphi 0, %s98
    %s115 = sphi 0, %s99
    %s119 = sphi 0, %s119
    %s121 = sphi 0, %s119
    %s122 = sphi 0, %s121
    %s136 = sphi 0, %s122
    %s140 = sphi 0, %s140
    %s142 = sphi 0, %s140
    %s143 = sphi 0, %s142
    %s157 = sphi 0, %s143
    %s161 = sphi 0, %s161
    %s163 = sphi 0, %s161
    %s164 = sphi 0, %s163
    %s178 = sphi 0, %s164
    %s182 = sphi 0, %s182
    %s184 = sphi 0, %s182
    %s185 = sphi 0, %s184
    %s199 = sphi 0, %s185
    %s207 = sphi 0, %s209
    %s210 = sphi 0, %s207
    %s211 = sphi 0, %s210
    %s227 = sphi 0, %s211
    %s235 = sphi 0, %s237
    %s238 = sphi 0, %s235
    %s239 = sphi 0, %s238
    %s255 = sphi 0, %s239
  $region4: #{res_four4_forward.8} parent=0 // loop_header_branch
    %18 = sbr.rel (%p16) target = $region8
  $region5: #{res_four4_forward.8} parent=0 // loop_body
    %s20 = ssub.s32 %s15, 1
    %s21 = ssub.s32 %s15, 2
    %s28 = sadd.s32 1, %s23
    %p29 = scmp.ge.s32.totalorder %s28, 1
    %s30 = scalar_select %p29, 0, %s28
    %s31 = sadd.s32 1, %s22
    %s32 = scalar_select %p29, %s31, %s22
    %p33 = scmp.ge.s32.totalorder %s32, 2
    %s34 = scalar_select %p33, 0, %s32
    %s35 = ssub.s32 %s22, %s34
    %s36 = ssub.s32 %s23, %s30
    %s37 = sor.u32 %s35, %s36
    %p38 = scmp.eq.s32.totalorder %s37, 0
    %s40 = sadd.s32 %s39, 1
    %s41 = scalar_select %p38, %s39, %s40
    %p44 = pneg %p38
    %p45 = scmp.eq.s32.totalorder %s15, 1
    %p46 = por %p44, %p45
    %p47 = scmp.ne.s32.totalorder %s39, %s42
    %p48 = scmp.eq.s32.totalorder %s15, 0
    %p49 = por %p47, %p48
    %p50 = scmp.ne.s32.totalorder %s39, %s42
    %p51 = scmp.eq.s32.totalorder %s20, 1
    %p52 = por %p50, %p51
    %p53 = scmp.ne.s32.totalorder %s42, %s43
    %p54 = scmp.eq.s32.totalorder %s20, 0
    %p55 = por %p53, %p54
    %p56 = scmp.ne.s32.totalorder %s42, %s43
    %p57 = scmp.eq.s32.totalorder %s21, 1
    %p58 = por %p56, %p57
    %p60 = scmp.ne.s32.totalorder %s43, %s59
    %p61 = scmp.eq.s32.totalorder %s21, 0
    %p62 = por %p60, %p61
    %s63 = ssub.s32 %s22, %s34
    %s64 = ssub.s32 %s23, %s30
    %s65 = sor.u32 %s63, %s64
    %p66 = scmp.eq.s32.totalorder %s65, 0
    %s68 = sadd.s32 %s67, 1
    %s69 = scalar_select %p66, %s67, %s68
    %p72 = pneg %p66
    %p73 = scmp.eq.s32.totalorder %s15, 1
    %p74 = por %p72, %p73
    %p75 = scmp.ne.s32.totalorder %s67, %s70
    %p76 = scmp.eq.s32.totalorder %s15, 0
    %p77 = por %p75, %p76
    %p78 = scmp.ne.s32.totalorder %s67, %s70
    %p79 = scmp.eq.s32.totalorder %s20, 1
    %p80 = por %p78, %p79
    %p81 = scmp.ne.s32.totalorder %s70, %s71
    %p82 = scmp.eq.s32.totalorder %s20, 0
    %p83 = por %p81, %p82
    %p84 = scmp.ne.s32.totalorder %s70, %s71
    %p85 = scmp.eq.s32.totalorder %s21, 1
    %p86 = por %p84, %p85
    %p88 = scmp.ne.s32.totalorder %s71, %s87
    %p89 = scmp.eq.s32.totalorder %s21, 0
    %p90 = por %p88, %p89
    %s91 = ssub.s32 %s22, %s34
    %s92 = ssub.s32 %s23, %s30
    %s93 = sor.u32 %s91, %s92
    %p94 = scmp.eq.s32.totalorder %s93, 0
    %s96 = sadd.s32 %s95, 1
    %s97 = scalar_select %p94, %s95, %s96
    %p100 = pneg %p94
    %p101 = scmp.eq.s32.totalorder %s15, 1
    %p102 = por %p100, %p101
    %p103 = scmp.ne.s32.totalorder %s95, %s98
    %p104 = scmp.eq.s32.totalorder %s15, 0
    %p105 = por %p103, %p104
    %p106 = scmp.ne.s32.totalorder %s95, %s98
    %p107 = scmp.eq.s32.totalorder %s20, 1
    %p108 = por %p106, %p107
    %p109 = scmp.ne.s32.totalorder %s98, %s99
    %p110 = scmp.eq.s32.totalorder %s20, 0
    %p111 = por %p109, %p110
    %p112 = scmp.ne.s32.totalorder %s98, %s99
    %p113 = scmp.eq.s32.totalorder %s21, 1
    %p114 = por %p112, %p113
    %p116 = scmp.ne.s32.totalorder %s99, %s115
    %p117 = scmp.eq.s32.totalorder %s21, 0
    %p118 = por %p116, %p117
    %s120 = sadd.s32 %s119, 1
    %p123 = scmp.eq.s32.totalorder %s15, 1
    %p124 = scmp.ne.s32.totalorder %s119, %s121
    %p125 = scmp.eq.s32.totalorder %s15, 0
    %p126 = por %p124, %p125
    %p127 = scmp.ne.s32.totalorder %s119, %s121
    %p128 = scmp.eq.s32.totalorder %s20, 1
    %p129 = por %p127, %p128
    %p130 = scmp.ne.s32.totalorder %s121, %s122
    %p131 = scmp.eq.s32.totalorder %s20, 0
    %p132 = por %p130, %p131
    %p133 = scmp.ne.s32.totalorder %s121, %s122
    %p134 = scmp.eq.s32.totalorder %s21, 1
    %p135 = por %p133, %p134
    %p137 = scmp.ne.s32.totalorder %s122, %s136
    %p138 = scmp.eq.s32.totalorder %s21, 0
    %p139 = por %p137, %p138
    %s141 = sadd.s32 %s140, 1
    %p144 = scmp.eq.s32.totalorder %s15, 1
    %p145 = scmp.ne.s32.totalorder %s140, %s142
    %p146 = scmp.eq.s32.totalorder %s15, 0
    %p147 = por %p145, %p146
    %p148 = scmp.ne.s32.totalorder %s140, %s142
    %p149 = scmp.eq.s32.totalorder %s20, 1
    %p150 = por %p148, %p149
    %p151 = scmp.ne.s32.totalorder %s142, %s143
    %p152 = scmp.eq.s32.totalorder %s20, 0
    %p153 = por %p151, %p152
    %p154 = scmp.ne.s32.totalorder %s142, %s143
    %p155 = scmp.eq.s32.totalorder %s21, 1
    %p156 = por %p154, %p155
    %p158 = scmp.ne.s32.totalorder %s143, %s157
    %p159 = scmp.eq.s32.totalorder %s21, 0
    %p160 = por %p158, %p159
    %s162 = sadd.s32 %s161, 1
    %p165 = scmp.eq.s32.totalorder %s15, 1
    %p166 = scmp.ne.s32.totalorder %s161, %s163
    %p167 = scmp.eq.s32.totalorder %s15, 0
    %p168 = por %p166, %p167
    %p169 = scmp.ne.s32.totalorder %s161, %s163
    %p170 = scmp.eq.s32.totalorder %s20, 1
    %p171 = por %p169, %p170
    %p172 = scmp.ne.s32.totalorder %s163, %s164
    %p173 = scmp.eq.s32.totalorder %s20, 0
    %p174 = por %p172, %p173
    %p175 = scmp.ne.s32.totalorder %s163, %s164
    %p176 = scmp.eq.s32.totalorder %s21, 1
    %p177 = por %p175, %p176
    %p179 = scmp.ne.s32.totalorder %s164, %s178
    %p180 = scmp.eq.s32.totalorder %s21, 0
    %p181 = por %p179, %p180
    %s183 = sadd.s32 %s182, 1
    %p186 = scmp.eq.s32.totalorder %s15, 1
    %p187 = scmp.ne.s32.totalorder %s182, %s184
    %p188 = scmp.eq.s32.totalorder %s15, 0
    %p189 = por %p187, %p188
    %p190 = scmp.ne.s32.totalorder %s182, %s184
    %p191 = scmp.eq.s32.totalorder %s20, 1
    %p192 = por %p190, %p191
    %p193 = scmp.ne.s32.totalorder %s184, %s185
    %p194 = scmp.eq.s32.totalorder %s20, 0
    %p195 = por %p193, %p194
    %p196 = scmp.ne.s32.totalorder %s184, %s185
    %p197 = scmp.eq.s32.totalorder %s21, 1
    %p198 = por %p196, %p197
    %p200 = scmp.ne.s32.totalorder %s185, %s199
    %p201 = scmp.eq.s32.totalorder %s21, 0
    %p202 = por %p200, %p201
    %s203 = ssub.s32 %s22, %s34
    %s204 = ssub.s32 %s23, %s30
    %s205 = sor.u32 %s203, %s204
    %p206 = scmp.eq.s32.totalorder %s205, 0
    %s208 = sadd.s32 %s207, 1
    %s209 = scalar_select %p206, %s207, %s208
    %p212 = pneg %p206
    %p213 = scmp.eq.s32.totalorder %s15, 1
    %p214 = por %p212, %p213
    %p215 = scmp.ne.s32.totalorder %s207, %s210
    %p216 = scmp.eq.s32.totalorder %s15, 0
    %p217 = por %p215, %p216
    %p218 = scmp.ne.s32.totalorder %s207, %s210
    %p219 = scmp.eq.s32.totalorder %s20, 1
    %p220 = por %p218, %p219
    %p221 = scmp.ne.s32.totalorder %s210, %s211
    %p222 = scmp.eq.s32.totalorder %s20, 0
    %p223 = por %p221, %p222
    %p224 = scmp.ne.s32.totalorder %s210, %s211
    %p225 = scmp.eq.s32.totalorder %s21, 1
    %p226 = por %p224, %p225
    %p228 = scmp.ne.s32.totalorder %s211, %s227
    %p229 = scmp.eq.s32.totalorder %s21, 0
    %p230 = por %p228, %p229
    %s231 = ssub.s32 %s22, %s34
    %s232 = ssub.s32 %s23, %s30
    %s233 = sor.u32 %s231, %s232
    %p234 = scmp.eq.s32.totalorder %s233, 0
    %s236 = sadd.s32 %s235, 1
    %s237 = scalar_select %p234, %s235, %s236
    %p240 = pneg %p234
    %p241 = scmp.eq.s32.totalorder %s15, 1
    %p242 = por %p240, %p241
    %p243 = scmp.ne.s32.totalorder %s235, %s238
    %p244 = scmp.eq.s32.totalorder %s15, 0
    %p245 = por %p243, %p244
    %p246 = scmp.ne.s32.totalorder %s235, %s238
    %p247 = scmp.eq.s32.totalorder %s20, 1
    %p248 = por %p246, %p247
    %p249 = scmp.ne.s32.totalorder %s238, %s239
    %p250 = scmp.eq.s32.totalorder %s20, 0
    %p251 = por %p249, %p250
    %p252 = scmp.ne.s32.totalorder %s238, %s239
    %p253 = scmp.eq.s32.totalorder %s21, 1
    %p254 = por %p252, %p253
    %p256 = scmp.ne.s32.totalorder %s239, %s255
    %p257 = scmp.eq.s32.totalorder %s21, 0
    %p258 = por %p256, %p257
    %p259 = scmp.le.s32.totalorder 1, %s15
    %p260 = scmp.lt.s32.totalorder %s15, 3
    %p261 = pnand %p259, %p260
    %p262 = pneg %p261
    // Predicated region
    $region9: #{res_four4_forward.8} parent=5 // pred_check
      _
    $region10: #{res_four4_forward.8} parent=5 // pred_check_branch
      %264 = sbr.rel (%p261) target = $region12
    $region11: #{res_four4_forward.8} parent=5 // pred_region
      %s265 = ssub.s32 %s15, 1
      // Predicated region
      $region13: #{res_four4_forward.8} parent=11 // pred_check
        %p266 = pneg %p132
      $region14: #{res_four4_forward.8} parent=11 // pred_check_branch
        %268 = sbr.rel (%p266) target = $region16
      $region15: #{res_four4_forward.8} parent=11 // pred_region
        _
      $region16: #{res_four4_forward.8} parent=11 // pred_fallthru
        _
      // Predicated region
      $region17: #{res_four4_forward.8} parent=11 // pred_check
        %p269 = pneg %p153
      $region18: #{res_four4_forward.8} parent=11 // pred_check_branch
        %271 = sbr.rel (%p269) target = $region20
      $region19: #{res_four4_forward.8} parent=11 // pred_region
        _
      $region20: #{res_four4_forward.8} parent=11 // pred_fallthru
        _
      // Predicated region
      $region21: #{res_four4_forward.8} parent=11 // pred_check
        %p272 = pneg %p174
      $region22: #{res_four4_forward.8} parent=11 // pred_check_branch
        %274 = sbr.rel (%p272) target = $region24
      $region23: #{res_four4_forward.8} parent=11 // pred_region
        _
      $region24: #{res_four4_forward.8} parent=11 // pred_fallthru
        _
      // Predicated region
      $region25: #{res_four4_forward.8} parent=11 // pred_check
        %p275 = pneg %p195
      $region26: #{res_four4_forward.8} parent=11 // pred_check_branch
        %277 = sbr.rel (%p275) target = $region28
      $region27: #{res_four4_forward.8} parent=11 // pred_region
        _
      $region28: #{res_four4_forward.8} parent=11 // pred_fallthru
        _
    $region12: #{res_four4_forward.8} parent=5 // pred_fallthru
      _
    %p278 = scmp.lt.s32.totalorder %s15, 2
    // Predicated region
    $region29: #{res_four4_forward.8} parent=5 // pred_check
      %p279 = pneg %p278
    $region30: #{res_four4_forward.8} parent=5 // pred_check_branch
      %281 = sbr.rel (%p279) target = $region32
    $region31: #{res_four4_forward.8} parent=5 // pred_region
      // Predicated region
      $region33: #{res_four4_forward.8} parent=31 // pred_check
        %p282 = pneg %p49
      $region34: #{res_four4_forward.8} parent=31 // pred_check_branch
        %284 = sbr.rel (%p282) target = $region36
      $region35: #{res_four4_forward.8} parent=31 // pred_region
        %s285 = smul.u32 2, %s23
        %p286 = scmp.lt.s32.totalorder %s22, 1
        %s287 = scalar_select %p286, %s22, 1
        %p288 = scmp.lt.s32.totalorder %s285, 1
        %s289 = scalar_select %p288, %s285, 1
        %s290 = smul.addr %s287, 2
        %s291 = sadd.s32 %s289, %s290
        %s292 = smul.addr %s291, 8
        %s293 = scalar_lea.vmem %s0, %s292
        %s294 = smul.u32 2, %s23
      $region36: #{res_four4_forward.8} parent=31 // pred_fallthru
        _
      // Predicated region
      $region37: #{res_four4_forward.8} parent=31 // pred_check
        %p295 = pneg %p77
      $region38: #{res_four4_forward.8} parent=31 // pred_check_branch
        %297 = sbr.rel (%p295) target = $region40
      $region39: #{res_four4_forward.8} parent=31 // pred_region
        %s298 = smul.u32 2, %s23
        %p299 = scmp.lt.s32.totalorder %s22, 1
        %s300 = scalar_select %p299, %s22, 1
        %p301 = scmp.lt.s32.totalorder %s298, 1
        %s302 = scalar_select %p301, %s298, 1
        %s303 = smul.addr %s300, 2
        %s304 = sadd.s32 %s302, %s303
        %s305 = smul.addr %s304, 8
        %s306 = scalar_lea.vmem %s1, %s305
        %s307 = smul.u32 2, %s23
      $region40: #{res_four4_forward.8} parent=31 // pred_fallthru
        _
      // Predicated region
      $region41: #{res_four4_forward.8} parent=31 // pred_check
        %p308 = pneg %p105
      $region42: #{res_four4_forward.8} parent=31 // pred_check_branch
        %310 = sbr.rel (%p308) target = $region44
      $region43: #{res_four4_forward.8} parent=31 // pred_region
        %s311 = smul.u32 2, %s23
        %p312 = scmp.lt.s32.totalorder %s22, 1
        %s313 = scalar_select %p312, %s22, 1
        %p314 = scmp.lt.s32.totalorder %s311, 1
        %s315 = scalar_select %p314, %s311, 1
        %s316 = smul.addr %s313, 2
        %s317 = sadd.s32 %s315, %s316
        %s318 = smul.addr %s317, 8
        %s319 = scalar_lea.vmem %s2, %s318
        %s320 = smul.u32 2, %s23
      $region44: #{res_four4_forward.8} parent=31 // pred_fallthru
        _
    $region32: #{res_four4_forward.8} parent=5 // pred_fallthru
      _
    %p321 = scmp.le.s32.totalorder 1, %s15
    %p322 = scmp.lt.s32.totalorder %s15, 3
    %p323 = pnand %p321, %p322
    %p324 = pneg %p323
    // Predicated region
    $region45: #{res_four4_forward.8} parent=5 // pred_check
      _
    $region46: #{res_four4_forward.8} parent=5 // pred_check_branch
      %326 = sbr.rel (%p323) target = $region48
    $region47: #{res_four4_forward.8} parent=5 // pred_region
      %s327 = ssub.s32 %s15, 1
      %s328 = smul.u32 2, %s25
      %p329 = scmp.lt.s32.totalorder %s24, 1
      %s330 = scalar_select %p329, %s24, 1
      %p331 = scmp.lt.s32.totalorder %s328, 1
      %s332 = scalar_select %p331, %s328, 1
      %s333 = smul.addr %s330, 2
      %s334 = sadd.s32 %s332, %s333
      %s335 = smul.addr %s334, 8
      %s336 = scalar_lea.vmem %s0, %s335
      %p337 = pneg %p55
      %p338 = pneg %p52
      %s339 = smul.u32 2, %s25
      %p340 = scmp.lt.s32.totalorder %s24, 1
      %s341 = scalar_select %p340, %s24, 1
      %p342 = scmp.lt.s32.totalorder %s339, 1
      %s343 = scalar_select %p342, %s339, 1
      %s344 = smul.addr %s341, 2
      %s345 = sadd.s32 %s343, %s344
      %s346 = smul.addr %s345, 8
      %s347 = scalar_lea.vmem %s1, %s346
      %p348 = pneg %p83
      %p349 = pneg %p80
      %s350 = smul.u32 2, %s25
      %p351 = scmp.lt.s32.totalorder %s24, 1
      %s352 = scalar_select %p351, %s24, 1
      %p353 = scmp.lt.s32.totalorder %s350, 1
      %s354 = scalar_select %p353, %s350, 1
      %s355 = smul.addr %s352, 2
      %s356 = sadd.s32 %s354, %s355
      %s357 = smul.addr %s356, 8
      %s358 = scalar_lea.vmem %s2, %s357
      %p359 = pneg %p111
      %p360 = pneg %p108
      %p361 = pneg %p132
      %p362 = pneg %p129
      %p363 = pneg %p153
      %p364 = pneg %p150
      %p365 = pneg %p174
      %p366 = pneg %p171
      %p367 = pneg %p195
      %p368 = pneg %p192
      %p369 = pneg %p223
      %p370 = pneg %p220
      %s371 = smul.u32 2, %s25
      %p372 = scmp.lt.s32.totalorder %s24, 1
      %s373 = scalar_select %p372, %s24, 1
      %p374 = scmp.lt.s32.totalorder %s371, 1
      %s375 = scalar_select %p374, %s371, 1
      %s376 = smul.addr %s373, 2
      %s377 = sadd.s32 %s375, %s376
      %s378 = smul.addr %s377, 8
      %s379 = scalar_lea.vmem %s7, %s378
      %p380 = pneg %p251
      %p381 = pneg %p248
      %s382 = smul.u32 2, %s25
      %p383 = scmp.lt.s32.totalorder %s24, 1
      %s384 = scalar_select %p383, %s24, 1
      %p385 = scmp.lt.s32.totalorder %s382, 1
      %s386 = scalar_select %p385, %s382, 1
      %s387 = smul.addr %s384, 2
      %s388 = sadd.s32 %s386, %s387
      %s389 = smul.addr %s388, 8
      %s390 = scalar_lea.vmem %s8, %s389
      %s391 = smul.u32 2, %s25
      %p392 = scmp.lt.s32.totalorder %s24, 1
      %s393 = scalar_select %p392, %s24, 1
      %p394 = scmp.lt.s32.totalorder %s391, 1
      %s395 = scalar_select %p394, %s391, 1
      %s396 = smul.addr %s393, 2
      %s397 = sadd.s32 %s395, %s396
      %s398 = smul.addr %s397, 8
      %s399 = scalar_lea.vmem %s0, %s398
      %s400 = smul.u32 2, %s25
      %s401 = smul.u32 2, %s25
      %p402 = scmp.lt.s32.totalorder %s24, 1
      %s403 = scalar_select %p402, %s24, 1
      %p404 = scmp.lt.s32.totalorder %s401, 1
      %s405 = scalar_select %p404, %s401, 1
      %s406 = smul.addr %s403, 2
      %s407 = sadd.s32 %s405, %s406
      %s408 = smul.addr %s407, 8
      %s409 = scalar_lea.vmem %s1, %s408
      %s410 = smul.u32 2, %s25
      %s411 = smul.u32 2, %s25
      %p412 = scmp.lt.s32.totalorder %s24, 1
      %s413 = scalar_select %p412, %s24, 1
      %p414 = scmp.lt.s32.totalorder %s411, 1
      %s415 = scalar_select %p414, %s411, 1
      %s416 = smul.addr %s413, 2
      %s417 = sadd.s32 %s415, %s416
      %s418 = smul.addr %s417, 8
      %s419 = scalar_lea.vmem %s2, %s418
      %s420 = smul.u32 2, %s25
      %s421 = smul.u32 2, %s25
      %p422 = scmp.lt.s32.totalorder %s24, 1
      %s423 = scalar_select %p422, %s24, 1
      %p424 = scmp.lt.s32.totalorder %s421, 1
      %s425 = scalar_select %p424, %s421, 1
      %s426 = smul.addr %s423, 2
      %s427 = sadd.s32 %s425, %s426
      %s428 = smul.addr %s427, 8
      %s429 = scalar_lea.vmem %s7, %s428
      %s430 = smul.u32 2, %s25
      %s431 = smul.u32 2, %s25
      %p432 = scmp.lt.s32.totalorder %s24, 1
      %s433 = scalar_select %p432, %s24, 1
      %p434 = scmp.lt.s32.totalorder %s431, 1
      %s435 = scalar_select %p434, %s431, 1
      %s436 = smul.addr %s433, 2
      %s437 = sadd.s32 %s435, %s436
      %s438 = smul.addr %s437, 8
      %s439 = scalar_lea.vmem %s8, %s438
      %s440 = smul.u32 2, %s25
      %v441 = vld [vmem:[%s399] sm:$0x1f]
      %v442 = vld [vmem:[%s399 + $0x8] sm:$0x1f]
      %v443 = vld [vmem:[%s409] sm:$0x1f]
      %v444 = vld [vmem:[%s409 + $0x8] sm:$0x1f]
      %445 = vst [vmem:[#allocation2] sm:$0xff] 0.0
      %446 = vst [vmem:[#allocation2 + $0x8] sm:$0xff] 0.0
      %447 = vst [vmem:[#allocation2 + $0x10] sm:$0xff] 0.0
      %448 = vst [vmem:[#allocation2 + $0x18] sm:$0xff] 0.0
      %v449 = vmul.f32 %v441, %v441
      %v450 = vmul.f32 %v442, %v442
      %v451 = vmul.f32 %v443, %v443
      %v452 = vmul.f32 %v444, %v444
      %v453 = vadd.f32 %v449, %v451
      %v454 = vadd.f32 %v450, %v452
      %v455 = vrsqrt.pop %v453
      %v456 = vmul.f32 %v453, %v455
      %vm457 = vcmp.eq.f32.partialorder %v453, inf
      %v458 = vsel %vm457, %v453, %v456
      %vm459 = vcmp.eq.f32.partialorder %v453, 0.0
      %v460 = vand.u32 %v453, 2147483648
      %v461 = vsel %vm459, %v460, %v458
      %v462 = vrsqrt.pop %v454
      %v463 = vmul.f32 %v454, %v462
      %vm464 = vcmp.eq.f32.partialorder %v454, inf
      %v465 = vsel %vm464, %v454, %v463
      %vm466 = vcmp.eq.f32.partialorder %v454, 0.0
      %v467 = vand.u32 %v454, 2147483648
      %v468 = vsel %vm466, %v467, %v465
      %469 = vst [vmem:[#allocation2] sm:$0x1f] %v461
      %470 = vst [vmem:[#allocation2 + $0x8] sm:$0x1f] %v468
      %v471 = vld [vmem:[%s419] sm:$0x1f]
      %v472 = vld [vmem:[%s419 + $0x8] sm:$0x1f]
      %473 = vst [vmem:[#allocation2 + $0x10] sm:$0x1f] %v471
      %474 = vst [vmem:[#allocation2 + $0x18] sm:$0x1f] %v472
      %v475 = vld [vmem:[%s3] sm:$0xff]
      %v476 = vld [vmem:[%s3 + $0x8] sm:$0x3]
      %v477 = vld [vmem:[#allocation2] sm:$0xff]
      %v478 = vld [vmem:[#allocation2 + $0x8] sm:$0xff]
      %v479 = vld [vmem:[#allocation2 + $0x10] sm:$0xff]
      %v480 = vld [vmem:[#allocation2 + $0x18] sm:$0xff]
      %v481 = vld [vmem:[%s4] sm:$0xff]
      %v482 = vld [vmem:[%s4 + $0x8] sm:$0x3]
      %484 = vset.pattern.permute.xlu0 0
      %485 = vperm.xlu0 %484, %v481
      %v486 = vpop.permute.xlu0 %485
      %489 = vset.pattern.permute.xlu0 0
      %490 = vperm.xlu0 %489, %v482
      %v491 = vpop.permute.xlu0 %490
      %vm493 = vcmask 130048
      %v495 = vsel %vm493, %v475, 0
      %v498 = vsel %vm493, %v476, 0
      %500 = vmatprep.subr.mxu0 0.0
      %501 = vmatpush1.msra.mxu0 0.0
      %502 = vmatprep.subr.mxu0 0.0
      %503 = vmatpush1.msra.mxu0 0.0
      %504 = vmatprep.subr.mxu0 0.0
      %505 = vmatpush1.msra.mxu0 0.0
      %506 = vmatprep.subr.mxu0 0.0
      %507 = vmatpush1.msra.mxu0 0.0
      %508 = vmatprep.subr.mxu0 0.0
      %509 = vmatpush1.msra.mxu0 0.0
      %510 = vmatprep.subr.mxu0 0.0
      %511 = vmatpush1.msra.mxu0 0.0
      %512 = vmatprep.subr.mxu0 0.0
      %513 = vmatpush1.msra.mxu0 0.0
      %514 = vmatprep.subr.mxu0 0.0
      %515 = vmatpush1.msra.mxu0 0.0
      %516 = vmatprep.subr.mxu0 0.0
      %517 = vmatpush1.msra.mxu0 0.0
      %518 = vmatprep.subr.mxu0 0.0
      %519 = vmatpush1.msra.mxu0 0.0
      %520 = vmatprep.subr.mxu0 0.0
      %521 = vmatpush1.msra.mxu0 0.0
      %522 = vmatprep.subr.mxu0 0.0
      %523 = vmatpush1.msra.mxu0 0.0
      %524 = vmatprep.subr.mxu0 0.0
      %525 = vmatpush1.msra.mxu0 0.0
      %526 = vmatprep.subr.mxu0 0.0
      %527 = vmatpush1.msra.mxu0 0.0
      %528 = vmatprep.subr.mxu0 %v480
      %529 = vmatpush1.msra.mxu0 %v479
      %530 = vmatprep.subr.mxu0 %v478
      %531 = vmatpush1.msra.mxu0 %v477
      %532 = vmatprep.subr.mxu0 0.0
      %533 = vmatpush2.msra.mxu0 0.0
      %534 = vmatprep.subr.mxu0 0.0
      %535 = vmatpush2.msra.mxu0 0.0
      %536 = vmatprep.subr.mxu0 0.0
      %537 = vmatpush2.msra.mxu0 0.0
      %538 = vmatprep.subr.mxu0 0.0
      %539 = vmatpush2.msra.mxu0 0.0
      %540 = vmatprep.subr.mxu0 0.0
      %541 = vmatpush2.msra.mxu0 0.0
      %542 = vmatprep.subr.mxu0 0.0
      %543 = vmatpush2.msra.mxu0 0.0
      %544 = vmatprep.subr.mxu0 0.0
      %545 = vmatpush2.msra.mxu0 0.0
      %546 = vmatprep.subr.mxu0 0.0
      %547 = vmatpush2.msra.mxu0 0.0
      %548 = vmatprep.subr.mxu0 0.0
      %549 = vmatpush2.msra.mxu0 0.0
      %550 = vmatprep.subr.mxu0 0.0
      %551 = vmatpush2.msra.mxu0 0.0
      %552 = vmatprep.subr.mxu0 0.0
      %553 = vmatpush2.msra.mxu0 0.0
      %554 = vmatprep.subr.mxu0 0.0
      %555 = vmatpush2.msra.mxu0 0.0
      %556 = vmatprep.subr.mxu0 0.0
      %557 = vmatpush2.msra.mxu0 0.0
      %558 = vmatprep.subr.mxu0 0.0
      %559 = vmatpush2.msra.mxu0 0.0
      %560 = vmatprep.subr.mxu0 0.0
      %561 = vmatpush2.msra.mxu0 0.0
      %562 = vmatprep.subr.mxu0 0.0
      %563 = vmatpush2.msra.mxu0 0.0
      %564 = vmatprep.mubr.f32.mxu0 0.0
      %565 = vmatmul.mubr.f32.gmra.mxu0 %v495
      %v566 = vpop.f32.mrf.mxu0
      %v567 = vadd.f32 %v486, %v566
      %v568 = vpop.f32.mrf.mxu0
      %v569 = vadd.f32 %v486, %v568
      %570 = vmatprep.mubr.f32.mxu0 0.0
      %571 = vmatmul.mubr.f32.gmra.mxu0 %v498
      %v572 = vpop.f32.mrf.mxu0
      %v573 = vadd.f32 %v491, %v572
      %v574 = vpop.f32.mrf.mxu0
      %v575 = vadd.f32 %v491, %v574
      %576 = vdwg.mxu0
      %vm577 = vcmp.ge.f32.partialorder %v567, 0.0
      %vm578 = vcmp.ge.f32.partialorder %v569, 0.0
      %vm579 = vcmp.ge.f32.partialorder %v573, 0.0
      %vm580 = vcmp.ge.f32.partialorder %v575, 0.0
      %v581 = vmul.f32 %v567, 0.1
      %v582 = vmul.f32 %v569, 0.1
      %v583 = vmul.f32 %v573, 0.1
      %v584 = vmul.f32 %v575, 0.1
      %v585 = vsel %vm577, %v567, %v581
      %v586 = vsel %vm578, %v569, %v582
      %v587 = vsel %vm579, %v573, %v583
      %v588 = vsel %vm580, %v575, %v584
      %v589 = vld [vmem:[%s5] sm:$0xff]
      %v590 = vld [vmem:[%s5 + $0x8] sm:$0x1f]
      %v591 = vld [vmem:[%s6] sm:$0xff]
      %v592 = vld [vmem:[%s6 + $0x8] sm:$0x1f]
      %594 = vset.pattern.permute.xlu0 0
      %595 = vperm.xlu0 %594, %v591
      %v596 = vpop.permute.xlu0 %595
      %599 = vset.pattern.permute.xlu0 0
      %600 = vperm.xlu0 %599, %v592
      %v601 = vpop.permute.xlu0 %600
      %vm603 = vcmask 80896
      %v605 = vsel %vm603, %v589, 0
      %v608 = vsel %vm603, %v590, 0
      %vm610 = vcmask 1041408
      %v612 = vsel %vm610, %v587, 0
      %v615 = vsel %vm610, %v588, 0
      %617 = vmatprep.subr.mxu0 0.0
      %618 = vmatpush1.msra.mxu0 0.0
      %619 = vmatprep.subr.mxu0 0.0
      %620 = vmatpush1.msra.mxu0 0.0
      %621 = vmatprep.subr.mxu0 0.0
      %622 = vmatpush1.msra.mxu0 0.0
      %623 = vmatprep.subr.mxu0 0.0
      %624 = vmatpush1.msra.mxu0 0.0
      %625 = vmatprep.subr.mxu0 0.0
      %626 = vmatpush1.msra.mxu0 0.0
      %627 = vmatprep.subr.mxu0 0.0
      %628 = vmatpush1.msra.mxu0 0.0
      %629 = vmatprep.subr.mxu0 0.0
      %630 = vmatpush1.msra.mxu0 0.0
      %631 = vmatprep.subr.mxu0 0.0
      %632 = vmatpush1.msra.mxu0 0.0
      %633 = vmatprep.subr.mxu0 0.0
      %634 = vmatpush1.msra.mxu0 0.0
      %635 = vmatprep.subr.mxu0 0.0
      %636 = vmatpush1.msra.mxu0 0.0
      %637 = vmatprep.subr.mxu0 0.0
      %638 = vmatpush1.msra.mxu0 0.0
      %639 = vmatprep.subr.mxu0 0.0
      %640 = vmatpush1.msra.mxu0 0.0
      %641 = vmatprep.subr.mxu0 0.0
      %642 = vmatpush1.msra.mxu0 0.0
      %643 = vmatprep.subr.mxu0 0.0
      %644 = vmatpush1.msra.mxu0 0.0
      %645 = vmatprep.subr.mxu0 %v615
      %646 = vmatpush1.msra.mxu0 %v612
      %647 = vmatprep.subr.mxu0 %v586
      %648 = vmatpush1.msra.mxu0 %v585
      %649 = vmatprep.subr.mxu0 0.0
      %650 = vmatpush2.msra.mxu0 0.0
      %651 = vmatprep.subr.mxu0 0.0
      %652 = vmatpush2.msra.mxu0 0.0
      %653 = vmatprep.subr.mxu0 0.0
      %654 = vmatpush2.msra.mxu0 0.0
      %655 = vmatprep.subr.mxu0 0.0
      %656 = vmatpush2.msra.mxu0 0.0
      %657 = vmatprep.subr.mxu0 0.0
      %658 = vmatpush2.msra.mxu0 0.0
      %659 = vmatprep.subr.mxu0 0.0
      %660 = vmatpush2.msra.mxu0 0.0
      %661 = vmatprep.subr.mxu0 0.0
      %662 = vmatpush2.msra.mxu0 0.0
      %663 = vmatprep.subr.mxu0 0.0
      %664 = vmatpush2.msra.mxu0 0.0
      %665 = vmatprep.subr.mxu0 0.0
      %666 = vmatpush2.msra.mxu0 0.0
      %667 = vmatprep.subr.mxu0 0.0
      %668 = vmatpush2.msra.mxu0 0.0
      %669 = vmatprep.subr.mxu0 0.0
      %670 = vmatpush2.msra.mxu0 0.0
      %671 = vmatprep.subr.mxu0 0.0
      %672 = vmatpush2.msra.mxu0 0.0
      %673 = vmatprep.subr.mxu0 0.0
      %674 = vmatpush2.msra.mxu0 0.0
      %675 = vmatprep.subr.mxu0 0.0
      %676 = vmatpush2.msra.mxu0 0.0
      %677 = vmatprep.subr.mxu0 0.0
      %678 = vmatpush2.msra.mxu0 0.0
      %679 = vmatprep.subr.mxu0 0.0
      %680 = vmatpush2.msra.mxu0 0.0
      %681 = vmatprep.mubr.f32.mxu0 0.0
      %682 = vmatmul.mubr.f32.gmra.mxu0 %v605
      %v683 = vpop.f32.mrf.mxu0
      %v684 = vadd.f32 %v596, %v683
      %v685 = vpop.f32.mrf.mxu0
      %v686 = vadd.f32 %v596, %v685
      %687 = vmatprep.mubr.f32.mxu0 0.0
      %688 = vmatmul.mubr.f32.gmra.mxu0 %v608
      %v689 = vpop.f32.mrf.mxu0
      %v690 = vadd.f32 %v601, %v689
      %v691 = vpop.f32.mrf.mxu0
      %v692 = vadd.f32 %v601, %v691
      %693 = vdwg.mxu0
      %v694 = vand.u32 2147483647, %v690
      %vm695 = vcmp.le.f32.partialorder %v694, 0.7853982
      %vm696 = vcmp.lt.s32.totalorder %v690, 0
      %v697 = vand.u32 %v690, 2139095040
      %v698 = vshrl.u32 %v697, 23
      %v699 = vsub.s32 %v698, 127
      %v700 = vand.u32 2147483647, %v690
      %v701 = vand.u32 %v700, 8388607
      %v702 = vor.u32 %v701, 8388608
      %v703 = vsub.s32 0, %v702
      %v704 = vadd.s32 %v699, 1
      %vm705 = vcmp.gt.s32.totalorder %v704, 0
      %v706 = vsel %vm705, %v704, 0
      %v707 = vshrl.u32 %v706, 5
      %v708 = vand.u32 %v706, 31
      %v709 = vsub.s32 32, %v708
      %v710 = vshrl.u32 683565275, %v709
      %v711 = vshll.u32 683565275, %v708
      %v712 = vshrl.u32 2475754826, %v709
      %v713 = vor.u32 %v711, %v712
      %v714 = vshll.u32 2475754826, %v708
      %v715 = vshrl.u32 2131351028, %v709
      %v716 = vor.u32 %v714, %v715
      %v717 = vshll.u32 2131351028, %v708
      %v718 = vshrl.u32 2102212464, %v709
      %v719 = vor.u32 %v717, %v718
      %v720 = vshll.u32 2102212464, %v708
      %v721 = vshrl.u32 920167782, %v709
      %v722 = vor.u32 %v720, %v721
      %v723 = vshll.u32 920167782, %v708
      %v724 = vshrl.u32 1326507024, %v709
      %v725 = vor.u32 %v723, %v724
      %vm726 = vcmp.lt.s32.totalorder %v707, 1
      %vm727 = vcmp.lt.s32.totalorder %v707, 2
      %vm728 = vcmp.lt.s32.totalorder %v707, 3
      %vm729 = vcmp.lt.s32.totalorder %v707, 4
      %v730 = vsel %vm726, %v710, %v713
      %v731 = vsel %vm729, %v719, 2102212464
      %v732 = vsel %vm728, %v716, %v731
      %v733 = vsel %vm727, %v730, %v732
      %v734 = vsel %vm726, %v713, %v716
      %v735 = vsel %vm729, %v722, 920167782
      %v736 = vsel %vm728, %v719, %v735
      %v737 = vsel %vm727, %v734, %v736
      %v738 = vsel %vm726, %v716, %v719
      %v739 = vsel %vm729, %v725, 1326507024
      %v740 = vsel %vm728, %v722, %v739
      %v741 = vsel %vm727, %v738, %v740
      %v742 = vshll.u32 %v702, 8
      %v743 = vmul.u32.u64.compose %v742, %v741
      %v744 = vextract.low.u32 %v743
      %v745 = vextract.high.u32 %v743
      %v746 = vmul.u32.u64.compose %v742, %v737
      %v747 = vextract.low.u32 %v746
      %v748 = vextract.high.u32 %v746
      %v749 = vmul.u32 %v742, %v733
      %v750 = vadd.s32 %v745, %v747
      %vm751 = vc.u32 %v745, %v747
      %v752 = vadd.s32 %v748, 1
      %v753 = vsel %vm751, %v752, %v748
      %v754 = vadd.s32 %v749, %v753
      %v755 = vadd.s32 %v754, 536870912
      %v756 = vshrl.u32 %v755, 30
      %v757 = vshll.u32 %v756, 30
      %v758 = vsub.s32 %v754, %v757
      %vm759 = vcmp.lt.s32.totalorder %v758, 0
      %v760 = vsub.s32 0, %v758
      %v761 = vsel %vm759, %v760, %v758
      %v762 = vclz %v761
      %v763 = vsub.s32 %v762, 2
      %vm764 = vcmp.gt.s32.totalorder 0, %v763
      %v765 = vsel %vm764, 0, %v763
      %v766 = vsub.s32 32, %v765
      %v767 = vshll.u32 %v758, %v765
      %v768 = vshrl.u32 %v750, %v766
      %v769 = vor.u32 %v767, %v768
      %v770 = vsub.s32 4294967266, %v765
      %v771 = vadd.s32 %v770, 127
      %v772 = vshll.u32 %v771, 23
      %v773 = vor.u32 4788187, %v772
      %v774 = vand.u32 2147483647, %v773
      %v776 = vcvt.s32.f32 %v769
      %v777 = vmul.f32 %v776, %v774
      %v778 = vxor.u32 %v777, 2147483648
      %v779 = vsel %vm696, %v778, %v777
      %v780 = vsub.s32 4, %v756
      %v781 = vsel %vm696, %v780, %v756
      %v782 = vsel %vm695, %v690, %v779
      %v783 = vsel %vm695, 0, %v781
      %v784 = vcosq.f32.pop %v782
      %v785 = vsinq.f32.pop %v782
      %vm786 = vweird.f32 %v690
      %v787 = vand.u32 %v783, 3
      %vm788 = vcmp.lt.s32.totalorder %v787, 2
      %vm789 = vcmp.eq.s32.totalorder %v787, 0
      %v790 = vxor.u32 %v785, 2147483648
      %v791 = vsel %vm789, %v784, %v790
      %vm792 = vcmp.eq.s32.totalorder %v787, 2
      %v793 = vxor.u32 %v784, 2147483648
      %v794 = vsel %vm792, %v793, %v785
      %v795 = vsel %vm788, %v791, %v794
      %v796 = vsel %vm786, nan, %v795
      %v797 = vand.u32 2147483647, %v692
      %vm798 = vcmp.le.f32.partialorder %v797, 0.7853982
      %vm799 = vcmp.lt.s32.totalorder %v692, 0
      %v800 = vand.u32 %v692, 2139095040
      %v801 = vshrl.u32 %v800, 23
      %v802 = vsub.s32 %v801, 127
      %v803 = vand.u32 2147483647, %v692
      %v804 = vand.u32 %v803, 8388607
      %v805 = vor.u32 %v804, 8388608
      %v806 = vsub.s32 0, %v805
      %v807 = vadd.s32 %v802, 1
      %vm808 = vcmp.gt.s32.totalorder %v807, 0
      %v809 = vsel %vm808, %v807, 0
      %v810 = vshrl.u32 %v809, 5
      %v811 = vand.u32 %v809, 31
      %v812 = vsub.s32 32, %v811
      %v813 = vshrl.u32 683565275, %v812
      %v814 = vshll.u32 683565275, %v811
      %v815 = vshrl.u32 2475754826, %v812
      %v816 = vor.u32 %v814, %v815
      %v817 = vshll.u32 2475754826, %v811
      %v818 = vshrl.u32 2131351028, %v812
      %v819 = vor.u32 %v817, %v818
      %v820 = vshll.u32 2131351028, %v811
      %v821 = vshrl.u32 2102212464, %v812
      %v822 = vor.u32 %v820, %v821
      %v823 = vshll.u32 2102212464, %v811
      %v824 = vshrl.u32 920167782, %v812
      %v825 = vor.u32 %v823, %v824
      %v826 = vshll.u32 920167782, %v811
      %v827 = vshrl.u32 1326507024, %v812
      %v828 = vor.u32 %v826, %v827
      %vm829 = vcmp.lt.s32.totalorder %v810, 1
      %vm830 = vcmp.lt.s32.totalorder %v810, 2
      %vm831 = vcmp.lt.s32.totalorder %v810, 3
      %vm832 = vcmp.lt.s32.totalorder %v810, 4
      %v833 = vsel %vm829, %v813, %v816
      %v834 = vsel %vm832, %v822, 2102212464
      %v835 = vsel %vm831, %v819, %v834
      %v836 = vsel %vm830, %v833, %v835
      %v837 = vsel %vm829, %v816, %v819
      %v838 = vsel %vm832, %v825, 920167782
      %v839 = vsel %vm831, %v822, %v838
      %v840 = vsel %vm830, %v837, %v839
      %v841 = vsel %vm829, %v819, %v822
      %v842 = vsel %vm832, %v828, 1326507024
      %v843 = vsel %vm831, %v825, %v842
      %v844 = vsel %vm830, %v841, %v843
      %v845 = vshll.u32 %v805, 8
      %v846 = vmul.u32.u64.compose %v845, %v844
      %v847 = vextract.low.u32 %v846
      %v848 = vextract.high.u32 %v846
      %v849 = vmul.u32.u64.compose %v845, %v840
      %v850 = vextract.low.u32 %v849
      %v851 = vextract.high.u32 %v849
      %v852 = vmul.u32 %v845, %v836
      %v853 = vadd.s32 %v848, %v850
      %vm854 = vc.u32 %v848, %v850
      %v855 = vadd.s32 %v851, 1
      %v856 = vsel %vm854, %v855, %v851
      %v857 = vadd.s32 %v852, %v856
      %v858 = vadd.s32 %v857, 536870912
      %v859 = vshrl.u32 %v858, 30
      %v860 = vshll.u32 %v859, 30
      %v861 = vsub.s32 %v857, %v860
      %vm862 = vcmp.lt.s32.totalorder %v861, 0
      %v863 = vsub.s32 0, %v861
      %v864 = vsel %vm862, %v863, %v861
      %v865 = vclz %v864
      %v866 = vsub.s32 %v865, 2
      %vm867 = vcmp.gt.s32.totalorder 0, %v866
      %v868 = vsel %vm867, 0, %v866
      %v869 = vsub.s32 32, %v868
      %v870 = vshll.u32 %v861, %v868
      %v871 = vshrl.u32 %v853, %v869
      %v872 = vor.u32 %v870, %v871
      %v873 = vsub.s32 4294967266, %v868
      %v874 = vadd.s32 %v873, 127
      %v875 = vshll.u32 %v874, 23
      %v876 = vor.u32 4788187, %v875
      %v877 = vand.u32 2147483647, %v876
      %v879 = vcvt.s32.f32 %v872
      %v880 = vmul.f32 %v879, %v877
      %v881 = vxor.u32 %v880, 2147483648
      %v882 = vsel %vm799, %v881, %v880
      %v883 = vsub.s32 4, %v859
      %v884 = vsel %vm799, %v883, %v859
      %v885 = vsel %vm798, %v692, %v882
      %v886 = vsel %vm798, 0, %v884
      %v887 = vcosq.f32.pop %v885
      %v888 = vsinq.f32.pop %v885
      %vm889 = vweird.f32 %v692
      %v890 = vand.u32 %v886, 3
      %vm891 = vcmp.lt.s32.totalorder %v890, 2
      %vm892 = vcmp.eq.s32.totalorder %v890, 0
      %v893 = vxor.u32 %v888, 2147483648
      %v894 = vsel %vm892, %v887, %v893
      %vm895 = vcmp.eq.s32.totalorder %v890, 2
      %v896 = vxor.u32 %v887, 2147483648
      %v897 = vsel %vm895, %v896, %v888
      %v898 = vsel %vm891, %v894, %v897
      %v899 = vsel %vm889, nan, %v898
      %v900 = vmul.f32 %v684, %v796
      %v901 = vmul.f32 %v686, %v899
      %v902 = vand.u32 2147483647, %v690
      %vm903 = vcmp.le.f32.partialorder %v902, 0.7853982
      %vm904 = vcmp.lt.s32.totalorder %v690, 0
      %v905 = vand.u32 %v690, 2139095040
      %v906 = vshrl.u32 %v905, 23
      %v907 = vsub.s32 %v906, 127
      %v908 = vand.u32 2147483647, %v690
      %v909 = vand.u32 %v908, 8388607
      %v910 = vor.u32 %v909, 8388608
      %v911 = vsub.s32 0, %v910
      %v912 = vadd.s32 %v907, 1
      %vm913 = vcmp.gt.s32.totalorder %v912, 0
      %v914 = vsel %vm913, %v912, 0
      %v915 = vshrl.u32 %v914, 5
      %v916 = vand.u32 %v914, 31
      %v917 = vsub.s32 32, %v916
      %v918 = vshrl.u32 683565275, %v917
      %v919 = vshll.u32 683565275, %v916
      %v920 = vshrl.u32 2475754826, %v917
      %v921 = vor.u32 %v919, %v920
      %v922 = vshll.u32 2475754826, %v916
      %v923 = vshrl.u32 2131351028, %v917
      %v924 = vor.u32 %v922, %v923
      %v925 = vshll.u32 2131351028, %v916
      %v926 = vshrl.u32 2102212464, %v917
      %v927 = vor.u32 %v925, %v926
      %v928 = vshll.u32 2102212464, %v916
      %v929 = vshrl.u32 920167782, %v917
      %v930 = vor.u32 %v928, %v929
      %v931 = vshll.u32 920167782, %v916
      %v932 = vshrl.u32 1326507024, %v917
      %v933 = vor.u32 %v931, %v932
      %vm934 = vcmp.lt.s32.totalorder %v915, 1
      %vm935 = vcmp.lt.s32.totalorder %v915, 2
      %vm936 = vcmp.lt.s32.totalorder %v915, 3
      %vm937 = vcmp.lt.s32.totalorder %v915, 4
      %v938 = vsel %vm934, %v918, %v921
      %v939 = vsel %vm937, %v927, 2102212464
      %v940 = vsel %vm936, %v924, %v939
      %v941 = vsel %vm935, %v938, %v940
      %v942 = vsel %vm934, %v921, %v924
      %v943 = vsel %vm937, %v930, 920167782
      %v944 = vsel %vm936, %v927, %v943
      %v945 = vsel %vm935, %v942, %v944
      %v946 = vsel %vm934, %v924, %v927
      %v947 = vsel %vm937, %v933, 1326507024
      %v948 = vsel %vm936, %v930, %v947
      %v949 = vsel %vm935, %v946, %v948
      %v950 = vshll.u32 %v910, 8
      %v951 = vmul.u32.u64.compose %v950, %v949
      %v952 = vextract.low.u32 %v951
      %v953 = vextract.high.u32 %v951
      %v954 = vmul.u32.u64.compose %v950, %v945
      %v955 = vextract.low.u32 %v954
      %v956 = vextract.high.u32 %v954
      %v957 = vmul.u32 %v950, %v941
      %v958 = vadd.s32 %v953, %v955
      %vm959 = vc.u32 %v953, %v955
      %v960 = vadd.s32 %v956, 1
      %v961 = vsel %vm959, %v960, %v956
      %v962 = vadd.s32 %v957, %v961
      %v963 = vadd.s32 %v962, 536870912
      %v964 = vshrl.u32 %v963, 30
      %v965 = vshll.u32 %v964, 30
      %v966 = vsub.s32 %v962, %v965
      %vm967 = vcmp.lt.s32.totalorder %v966, 0
      %v968 = vsub.s32 0, %v966
      %v969 = vsel %vm967, %v968, %v966
      %v970 = vclz %v969
      %v971 = vsub.s32 %v970, 2
      %vm972 = vcmp.gt.s32.totalorder 0, %v971
      %v973 = vsel %vm972, 0, %v971
      %v974 = vsub.s32 32, %v973
      %v975 = vshll.u32 %v966, %v973
      %v976 = vshrl.u32 %v958, %v974
      %v977 = vor.u32 %v975, %v976
      %v978 = vsub.s32 4294967266, %v973
      %v979 = vadd.s32 %v978, 127
      %v980 = vshll.u32 %v979, 23
      %v981 = vor.u32 4788187, %v980
      %v982 = vand.u32 2147483647, %v981
      %v984 = vcvt.s32.f32 %v977
      %v985 = vmul.f32 %v984, %v982
      %v986 = vxor.u32 %v985, 2147483648
      %v987 = vsel %vm904, %v986, %v985
      %v988 = vsub.s32 4, %v964
      %v989 = vsel %vm904, %v988, %v964
      %v990 = vsel %vm903, %v690, %v987
      %v991 = vsel %vm903, 0, %v989
      %v992 = vcosq.f32.pop %v990
      %v993 = vsinq.f32.pop %v990
      %vm994 = vweird.f32 %v690
      %v995 = vadd.s32 %v991, 3
      %v996 = vand.u32 %v995, 3
      %vm997 = vcmp.lt.s32.totalorder %v996, 2
      %vm998 = vcmp.eq.s32.totalorder %v996, 0
      %v999 = vxor.u32 %v993, 2147483648
      %v1000 = vsel %vm998, %v992, %v999
      %vm1001 = vcmp.eq.s32.totalorder %v996, 2
      %v1002 = vxor.u32 %v992, 2147483648
      %v1003 = vsel %vm1001, %v1002, %v993
      %v1004 = vsel %vm997, %v1000, %v1003
      %v1005 = vsel %vm994, nan, %v1004
      %v1006 = vand.u32 2147483647, %v692
      %vm1007 = vcmp.le.f32.partialorder %v1006, 0.7853982
      %vm1008 = vcmp.lt.s32.totalorder %v692, 0
      %v1009 = vand.u32 %v692, 2139095040
      %v1010 = vshrl.u32 %v1009, 23
      %v1011 = vsub.s32 %v1010, 127
      %v1012 = vand.u32 2147483647, %v692
      %v1013 = vand.u32 %v1012, 8388607
      %v1014 = vor.u32 %v1013, 8388608
      %v1015 = vsub.s32 0, %v1014
      %v1016 = vadd.s32 %v1011, 1
      %vm1017 = vcmp.gt.s32.totalorder %v1016, 0
      %v1018 = vsel %vm1017, %v1016, 0
      %v1019 = vshrl.u32 %v1018, 5
      %v1020 = vand.u32 %v1018, 31
      %v1021 = vsub.s32 32, %v1020
      %v1022 = vshrl.u32 683565275, %v1021
      %v1023 = vshll.u32 683565275, %v1020
      %v1024 = vshrl.u32 2475754826, %v1021
      %v1025 = vor.u32 %v1023, %v1024
      %v1026 = vshll.u32 2475754826, %v1020
      %v1027 = vshrl.u32 2131351028, %v1021
      %v1028 = vor.u32 %v1026, %v1027
      %v1029 = vshll.u32 2131351028, %v1020
      %v1030 = vshrl.u32 2102212464, %v1021
      %v1031 = vor.u32 %v1029, %v1030
      %v1032 = vshll.u32 2102212464, %v1020
      %v1033 = vshrl.u32 920167782, %v1021
      %v1034 = vor.u32 %v1032, %v1033
      %v1035 = vshll.u32 920167782, %v1020
      %v1036 = vshrl.u32 1326507024, %v1021
      %v1037 = vor.u32 %v1035, %v1036
      %vm1038 = vcmp.lt.s32.totalorder %v1019, 1
      %vm1039 = vcmp.lt.s32.totalorder %v1019, 2
      %vm1040 = vcmp.lt.s32.totalorder %v1019, 3
      %vm1041 = vcmp.lt.s32.totalorder %v1019, 4
      %v1042 = vsel %vm1038, %v1022, %v1025
      %v1043 = vsel %vm1041, %v1031, 2102212464
      %v1044 = vsel %vm1040, %v1028, %v1043
      %v1045 = vsel %vm1039, %v1042, %v1044
      %v1046 = vsel %vm1038, %v1025, %v1028
      %v1047 = vsel %vm1041, %v1034, 920167782
      %v1048 = vsel %vm1040, %v1031, %v1047
      %v1049 = vsel %vm1039, %v1046, %v1048
      %v1050 = vsel %vm1038, %v1028, %v1031
      %v1051 = vsel %vm1041, %v1037, 1326507024
      %v1052 = vsel %vm1040, %v1034, %v1051
      %v1053 = vsel %vm1039, %v1050, %v1052
      %v1054 = vshll.u32 %v1014, 8
      %v1055 = vmul.u32.u64.compose %v1054, %v1053
      %v1056 = vextract.low.u32 %v1055
      %v1057 = vextract.high.u32 %v1055
      %v1058 = vmul.u32.u64.compose %v1054, %v1049
      %v1059 = vextract.low.u32 %v1058
      %v1060 = vextract.high.u32 %v1058
      %v1061 = vmul.u32 %v1054, %v1045
      %v1062 = vadd.s32 %v1057, %v1059
      %vm1063 = vc.u32 %v1057, %v1059
      %v1064 = vadd.s32 %v1060, 1
      %v1065 = vsel %vm1063, %v1064, %v1060
      %v1066 = vadd.s32 %v1061, %v1065
      %v1067 = vadd.s32 %v1066, 536870912
      %v1068 = vshrl.u32 %v1067, 30
      %v1069 = vshll.u32 %v1068, 30
      %v1070 = vsub.s32 %v1066, %v1069
      %vm1071 = vcmp.lt.s32.totalorder %v1070, 0
      %v1072 = vsub.s32 0, %v1070
      %v1073 = vsel %vm1071, %v1072, %v1070
      %v1074 = vclz %v1073
      %v1075 = vsub.s32 %v1074, 2
      %vm1076 = vcmp.gt.s32.totalorder 0, %v1075
      %v1077 = vsel %vm1076, 0, %v1075
      %v1078 = vsub.s32 32, %v1077
      %v1079 = vshll.u32 %v1070, %v1077
      %v1080 = vshrl.u32 %v1062, %v1078
      %v1081 = vor.u32 %v1079, %v1080
      %v1082 = vsub.s32 4294967266, %v1077
      %v1083 = vadd.s32 %v1082, 127
      %v1084 = vshll.u32 %v1083, 23
      %v1085 = vor.u32 4788187, %v1084
      %v1086 = vand.u32 2147483647, %v1085
      %v1088 = vcvt.s32.f32 %v1081
      %v1089 = vmul.f32 %v1088, %v1086
      %v1090 = vxor.u32 %v1089, 2147483648
      %v1091 = vsel %vm1008, %v1090, %v1089
      %v1092 = vsub.s32 4, %v1068
      %v1093 = vsel %vm1008, %v1092, %v1068
      %v1094 = vsel %vm1007, %v692, %v1091
      %v1095 = vsel %vm1007, 0, %v1093
      %v1096 = vcosq.f32.pop %v1094
      %v1097 = vsinq.f32.pop %v1094
      %vm1098 = vweird.f32 %v692
      %v1099 = vadd.s32 %v1095, 3
      %v1100 = vand.u32 %v1099, 3
      %vm1101 = vcmp.lt.s32.totalorder %v1100, 2
      %vm1102 = vcmp.eq.s32.totalorder %v1100, 0
      %v1103 = vxor.u32 %v1097, 2147483648
      %v1104 = vsel %vm1102, %v1096, %v1103
      %vm1105 = vcmp.eq.s32.totalorder %v1100, 2
      %v1106 = vxor.u32 %v1096, 2147483648
      %v1107 = vsel %vm1105, %v1106, %v1097
      %v1108 = vsel %vm1101, %v1104, %v1107
      %v1109 = vsel %vm1098, nan, %v1108
      %v1110 = vmul.f32 %v684, %v1005
      %v1111 = vmul.f32 %v686, %v1109
      %v1112 = vmul.f32 %v900, %v441
      %v1113 = vmul.f32 %v901, %v442
      %v1114 = vmul.f32 %v1110, %v443
      %v1115 = vmul.f32 %v1111, %v444
      %v1116 = vsub.f32 %v1112, %v1114
      %v1117 = vsub.f32 %v1113, %v1115
      %v1118 = vmul.f32 %v900, %v443
      %v1119 = vmul.f32 %v901, %v444
      %v1120 = vmul.f32 %v1110, %v441
      %v1121 = vmul.f32 %v1111, %v442
      %v1122 = vadd.f32 %v1118, %v1120
      %v1123 = vadd.f32 %v1119, %v1121
      %1124 = vst [vmem:[%s429] sm:$0x1f] %v1116
      %1125 = vst [vmem:[%s429 + $0x8] sm:$0x1f] %v1117
      %1126 = vst [vmem:[%s439] sm:$0x1f] %v1122
      %1127 = vst [vmem:[%s439 + $0x8] sm:$0x1f] %v1123
      %s1128 = smul.u32 2, %s25
      %p1129 = scmp.lt.s32.totalorder %s24, 1
      %s1130 = scalar_select %p1129, %s24, 1
      %p1131 = scmp.lt.s32.totalorder %s1128, 1
      %s1132 = scalar_select %p1131, %s1128, 1
      %s1133 = smul.addr %s1130, 2
      %s1134 = sadd.s32 %s1132, %s1133
      %s1135 = smul.addr %s1134, 8
      %s1136 = scalar_lea.vmem %s7, %s1135
      %s1137 = smul.u32 2, %s25
      %p1138 = scmp.lt.s32.totalorder %s24, 1
      %s1139 = scalar_select %p1138, %s24, 1
      %p1140 = scmp.lt.s32.totalorder %s1137, 1
      %s1141 = scalar_select %p1140, %s1137, 1
      %s1142 = smul.addr %s1139, 2
      %s1143 = sadd.s32 %s1141, %s1142
      %s1144 = smul.addr %s1143, 8
      %s1145 = scalar_lea.vmem %s8, %s1144
      // Predicated region
      $region49: #{res_four4_forward.8} parent=47 // pred_check
        %p1146 = pneg %p220
      $region50: #{res_four4_forward.8} parent=47 // pred_check_branch
        %1148 = sbr.rel (%p1146) target = $region52
      $region51: #{res_four4_forward.8} parent=47 // pred_region
        %s1149 = smul.u32 2, %s25
      $region52: #{res_four4_forward.8} parent=47 // pred_fallthru
        _
      // Predicated region
      $region53: #{res_four4_forward.8} parent=47 // pred_check
        %p1150 = pneg %p248
      $region54: #{res_four4_forward.8} parent=47 // pred_check_branch
        %1152 = sbr.rel (%p1150) target = $region56
      $region55: #{res_four4_forward.8} parent=47 // pred_region
        %s1153 = smul.u32 2, %s25
      $region56: #{res_four4_forward.8} parent=47 // pred_fallthru
        _
    $region48: #{res_four4_forward.8} parent=5 // pred_fallthru
      _
    %p1154 = scmp.le.s32.totalorder 2, %s15
    // Predicated region
    $region57: #{res_four4_forward.8} parent=5 // pred_check
      %p1155 = pneg %p1154
    $region58: #{res_four4_forward.8} parent=5 // pred_check_branch
      %1157 = sbr.rel (%p1155) target = $region60
    $region59: #{res_four4_forward.8} parent=5 // pred_region
      %s1158 = ssub.s32 %s15, 2
      // Predicated region
      $region61: #{res_four4_forward.8} parent=59 // pred_check
        %p1159 = pneg %p226
      $region62: #{res_four4_forward.8} parent=59 // pred_check_branch
        %1161 = sbr.rel (%p1159) target = $region64
      $region63: #{res_four4_forward.8} parent=59 // pred_region
        %s1162 = smul.u32 2, %s27
        %p1163 = scmp.lt.s32.totalorder %s26, 1
        %s1164 = scalar_select %p1163, %s26, 1
        %p1165 = scmp.lt.s32.totalorder %s1162, 1
        %s1166 = scalar_select %p1165, %s1162, 1
        %s1167 = smul.addr %s1164, 2
        %s1168 = sadd.s32 %s1166, %s1167
        %s1169 = smul.addr %s1168, 8
        %s1170 = scalar_lea.vmem %s7, %s1169
      $region64: #{res_four4_forward.8} parent=59 // pred_fallthru
        _
      // Predicated region
      $region65: #{res_four4_forward.8} parent=59 // pred_check
        %p1171 = pneg %p254
      $region66: #{res_four4_forward.8} parent=59 // pred_check_branch
        %1173 = sbr.rel (%p1171) target = $region68
      $region67: #{res_four4_forward.8} parent=59 // pred_region
        %s1174 = smul.u32 2, %s27
        %p1175 = scmp.lt.s32.totalorder %s26, 1
        %s1176 = scalar_select %p1175, %s26, 1
        %p1177 = scmp.lt.s32.totalorder %s1174, 1
        %s1178 = scalar_select %p1177, %s1174, 1
        %s1179 = smul.addr %s1176, 2
        %s1180 = sadd.s32 %s1178, %s1179
        %s1181 = smul.addr %s1180, 8
        %s1182 = scalar_lea.vmem %s8, %s1181
      $region68: #{res_four4_forward.8} parent=59 // pred_fallthru
        _
    $region60: #{res_four4_forward.8} parent=5 // pred_fallthru
      _
  $region6: #{res_four4_forward.8} parent=0 // loop_footer
    %s19 = sadd.s32 1, %s15
  $region7: #{res_four4_forward.8} parent=0 // loop_footer_branch
    %14 = sbr.rel target = $region3
  $region8: #{res_four4_forward.8} parent=0 // loop_exit
    _

// kernel: res_four4_forward.9
$region0: #{res_four4_forward.9}
  #allocation0 [shape = 'u32[]', space=smem, size = 0x4, offset = 0x4, fixed_abs, tag = 'smem constant byte address 0x4 - core index']
  #allocation1 [shape = 'u32[144,128]{1,0:T(1,128)}', space=vmem, size = 0x12000, scoped, tag = 'internal scratch']
  %s0 = inlined_call_operand.vmem [shape: f32[2,8,256], index: 0, kind: input, shape index: {}]
  %s1 = inlined_call_operand.vmem [shape: f32[2,8,256], index: 1, kind: input, shape index: {}]
  %s2 = inlined_call_operand.vmem [shape: f32[8,1], index: 2, kind: input, shape index: {}]
  %s3 = inlined_call_operand.vmem [shape: f32[8,1], index: 3, kind: input, shape index: {}]
  %s4 = inlined_call_operand.vmem [shape: f32[8,8], index: 4, kind: input, shape index: {}]
  %s5 = inlined_call_operand.vmem [shape: f32[2,8,256], index: 5, kind: output, shape index: {}]
  %s6 = sld [smem:[#allocation0]]
  $region53: #{res_four4_forward.9} parent=0
    _
  %s8 = ssub.s32 1, %s6
  %s9 = scalar_select 0, %s8, %s6
  loop: start=0, step=1, limit=4
  $region2: #{res_four4_forward.9} parent=0 // loop_pre_header
    _
  $region3: #{res_four4_forward.9} parent=0 // loop_header
    %s11 = sphi 0, %s15
    %p12 = scmp.ge.s32.totalorder %s11, 4
    %s21 = sphi 0, %s23
    %s24 = sphi 0, %s21
    %s25 = sphi 0, %s24
    %s41 = sphi 0, %s25
    %s47 = sphi 0, %s49
    %s50 = sphi 0, %s47
    %s51 = sphi 0, %s50
    %s67 = sphi 0, %s51
    %s71 = sphi 0, %s71
    %s73 = sphi 0, %s71
    %s74 = sphi 0, %s73
    %s88 = sphi 0, %s74
    %s92 = sphi 0, %s92
    %s94 = sphi 0, %s92
    %s95 = sphi 0, %s94
    %s109 = sphi 0, %s95
    %s113 = sphi 0, %s113
    %s115 = sphi 0, %s113
    %s116 = sphi 0, %s115
    %s130 = sphi 0, %s116
    %s136 = sphi 0, %s138
    %s139 = sphi 0, %s136
    %s140 = sphi 0, %s139
    %s156 = sphi 0, %s140
  $region4: #{res_four4_forward.9} parent=0 // loop_header_branch
    %14 = sbr.rel (%p12) target = $region8
  $region5: #{res_four4_forward.9} parent=0 // loop_body
    %s16 = ssub.s32 %s11, 1
    %s17 = ssub.s32 %s11, 2
    %s18 = sadd.s32 %s11, 1
    %s19 = ssub.s32 %s11, %s18
    %p20 = scmp.eq.s32.totalorder %s19, 0
    %s22 = sadd.s32 %s21, 1
    %s23 = scalar_select %p20, %s21, %s22
    %p26 = pneg %p20
    %p27 = scmp.eq.s32.totalorder %s11, 1
    %p28 = por %p26, %p27
    %p29 = scmp.ne.s32.totalorder %s21, %s24
    %p30 = scmp.eq.s32.totalorder %s11, 0
    %p31 = por %p29, %p30
    %p32 = scmp.ne.s32.totalorder %s21, %s24
    %p33 = scmp.eq.s32.totalorder %s16, 1
    %p34 = por %p32, %p33
    %p35 = scmp.ne.s32.totalorder %s24, %s25
    %p36 = scmp.eq.s32.totalorder %s16, 0
    %p37 = por %p35, %p36
    %p38 = scmp.ne.s32.totalorder %s24, %s25
    %p39 = scmp.eq.s32.totalorder %s17, 1
    %p40 = por %p38, %p39
    %p42 = scmp.ne.s32.totalorder %s25, %s41
    %p43 = scmp.eq.s32.totalorder %s17, 0
    %p44 = por %p42, %p43
    %s45 = ssub.s32 %s11, %s18
    %p46 = scmp.eq.s32.totalorder %s45, 0
    %s48 = sadd.s32 %s47, 1
    %s49 = scalar_select %p46, %s47, %s48
    %p52 = pneg %p46
    %p53 = scmp.eq.s32.totalorder %s11, 1
    %p54 = por %p52, %p53
    %p55 = scmp.ne.s32.totalorder %s47, %s50
    %p56 = scmp.eq.s32.totalorder %s11, 0
    %p57 = por %p55, %p56
    %p58 = scmp.ne.s32.totalorder %s47, %s50
    %p59 = scmp.eq.s32.totalorder %s16, 1
    %p60 = por %p58, %p59
    %p61 = scmp.ne.s32.totalorder %s50, %s51
    %p62 = scmp.eq.s32.totalorder %s16, 0
    %p63 = por %p61, %p62
    %p64 = scmp.ne.s32.totalorder %s50, %s51
    %p65 = scmp.eq.s32.totalorder %s17, 1
    %p66 = por %p64, %p65
    %p68 = scmp.ne.s32.totalorder %s51, %s67
    %p69 = scmp.eq.s32.totalorder %s17, 0
    %p70 = por %p68, %p69
    %s72 = sadd.s32 %s71, 1
    %p75 = scmp.eq.s32.totalorder %s11, 1
    %p76 = scmp.ne.s32.totalorder %s71, %s73
    %p77 = scmp.eq.s32.totalorder %s11, 0
    %p78 = por %p76, %p77
    %p79 = scmp.ne.s32.totalorder %s71, %s73
    %p80 = scmp.eq.s32.totalorder %s16, 1
    %p81 = por %p79, %p80
    %p82 = scmp.ne.s32.totalorder %s73, %s74
    %p83 = scmp.eq.s32.totalorder %s16, 0
    %p84 = por %p82, %p83
    %p85 = scmp.ne.s32.totalorder %s73, %s74
    %p86 = scmp.eq.s32.totalorder %s17, 1
    %p87 = por %p85, %p86
    %p89 = scmp.ne.s32.totalorder %s74, %s88
    %p90 = scmp.eq.s32.totalorder %s17, 0
    %p91 = por %p89, %p90
    %s93 = sadd.s32 %s92, 1
    %p96 = scmp.eq.s32.totalorder %s11, 1
    %p97 = scmp.ne.s32.totalorder %s92, %s94
    %p98 = scmp.eq.s32.totalorder %s11, 0
    %p99 = por %p97, %p98
    %p100 = scmp.ne.s32.totalorder %s92, %s94
    %p101 = scmp.eq.s32.totalorder %s16, 1
    %p102 = por %p100, %p101
    %p103 = scmp.ne.s32.totalorder %s94, %s95
    %p104 = scmp.eq.s32.totalorder %s16, 0
    %p105 = por %p103, %p104
    %p106 = scmp.ne.s32.totalorder %s94, %s95
    %p107 = scmp.eq.s32.totalorder %s17, 1
    %p108 = por %p106, %p107
    %p110 = scmp.ne.s32.totalorder %s95, %s109
    %p111 = scmp.eq.s32.totalorder %s17, 0
    %p112 = por %p110, %p111
    %s114 = sadd.s32 %s113, 1
    %p117 = scmp.eq.s32.totalorder %s11, 1
    %p118 = scmp.ne.s32.totalorder %s113, %s115
    %p119 = scmp.eq.s32.totalorder %s11, 0
    %p120 = por %p118, %p119
    %p121 = scmp.ne.s32.totalorder %s113, %s115
    %p122 = scmp.eq.s32.totalorder %s16, 1
    %p123 = por %p121, %p122
    %p124 = scmp.ne.s32.totalorder %s115, %s116
    %p125 = scmp.eq.s32.totalorder %s16, 0
    %p126 = por %p124, %p125
    %p127 = scmp.ne.s32.totalorder %s115, %s116
    %p128 = scmp.eq.s32.totalorder %s17, 1
    %p129 = por %p127, %p128
    %p131 = scmp.ne.s32.totalorder %s116, %s130
    %p132 = scmp.eq.s32.totalorder %s17, 0
    %p133 = por %p131, %p132
    %s134 = ssub.s32 %s11, %s18
    %p135 = scmp.eq.s32.totalorder %s134, 0
    %s137 = sadd.s32 %s136, 1
    %s138 = scalar_select %p135, %s136, %s137
    %p141 = pneg %p135
    %p142 = scmp.eq.s32.totalorder %s11, 1
    %p143 = por %p141, %p142
    %p144 = scmp.ne.s32.totalorder %s136, %s139
    %p145 = scmp.eq.s32.totalorder %s11, 0
    %p146 = por %p144, %p145
    %p147 = scmp.ne.s32.totalorder %s136, %s139
    %p148 = scmp.eq.s32.totalorder %s16, 1
    %p149 = por %p147, %p148
    %p150 = scmp.ne.s32.totalorder %s139, %s140
    %p151 = scmp.eq.s32.totalorder %s16, 0
    %p152 = por %p150, %p151
    %p153 = scmp.ne.s32.totalorder %s139, %s140
    %p154 = scmp.eq.s32.totalorder %s17, 1
    %p155 = por %p153, %p154
    %p157 = scmp.ne.s32.totalorder %s140, %s156
    %p158 = scmp.eq.s32.totalorder %s17, 0
    %p159 = por %p157, %p158
    %p160 = scmp.le.s32.totalorder 1, %s11
    %p161 = scmp.lt.s32.totalorder %s11, 3
    %p162 = pnand %p160, %p161
    %p163 = pneg %p162
    // Predicated region
    $region9: #{res_four4_forward.9} parent=5 // pred_check
      _
    $region10: #{res_four4_forward.9} parent=5 // pred_check_branch
      %165 = sbr.rel (%p162) target = $region12
    $region11: #{res_four4_forward.9} parent=5 // pred_region
      %s166 = ssub.s32 %s11, 1
      // Predicated region
      $region13: #{res_four4_forward.9} parent=11 // pred_check
        %p167 = pneg %p84
      $region14: #{res_four4_forward.9} parent=11 // pred_check_branch
        %169 = sbr.rel (%p167) target = $region16
      $region15: #{res_four4_forward.9} parent=11 // pred_region
        _
      $region16: #{res_four4_forward.9} parent=11 // pred_fallthru
        _
      // Predicated region
      $region17: #{res_four4_forward.9} parent=11 // pred_check
        %p170 = pneg %p105
      $region18: #{res_four4_forward.9} parent=11 // pred_check_branch
        %172 = sbr.rel (%p170) target = $region20
      $region19: #{res_four4_forward.9} parent=11 // pred_region
        _
      $region20: #{res_four4_forward.9} parent=11 // pred_fallthru
        _
      // Predicated region
      $region21: #{res_four4_forward.9} parent=11 // pred_check
        %p173 = pneg %p126
      $region22: #{res_four4_forward.9} parent=11 // pred_check_branch
        %175 = sbr.rel (%p173) target = $region24
      $region23: #{res_four4_forward.9} parent=11 // pred_region
        _
      $region24: #{res_four4_forward.9} parent=11 // pred_fallthru
        _
    $region12: #{res_four4_forward.9} parent=5 // pred_fallthru
      _
    %p176 = scmp.lt.s32.totalorder %s11, 2
    // Predicated region
    $region25: #{res_four4_forward.9} parent=5 // pred_check
      %p177 = pneg %p176
    $region26: #{res_four4_forward.9} parent=5 // pred_check_branch
      %179 = sbr.rel (%p177) target = $region28
    $region27: #{res_four4_forward.9} parent=5 // pred_region
      // Predicated region
      $region29: #{res_four4_forward.9} parent=27 // pred_check
        %p180 = pneg %p31
      $region30: #{res_four4_forward.9} parent=27 // pred_check_branch
        %182 = sbr.rel (%p180) target = $region32
      $region31: #{res_four4_forward.9} parent=27 // pred_region
        %p183 = scmp.lt.s32.totalorder %s11, 1
        %s184 = scalar_select %p183, %s11, 1
        %s185 = smul.addr %s184, 2
        %s186 = smul.addr %s185, 8
        %s187 = scalar_lea.vmem %s0, %s186
      $region32: #{res_four4_forward.9} parent=27 // pred_fallthru
        _
      // Predicated region
      $region33: #{res_four4_forward.9} parent=27 // pred_check
        %p188 = pneg %p57
      $region34: #{res_four4_forward.9} parent=27 // pred_check_branch
        %190 = sbr.rel (%p188) target = $region36
      $region35: #{res_four4_forward.9} parent=27 // pred_region
        %p191 = scmp.lt.s32.totalorder %s11, 1
        %s192 = scalar_select %p191, %s11, 1
        %s193 = smul.addr %s192, 2
        %s194 = smul.addr %s193, 8
        %s195 = scalar_lea.vmem %s1, %s194
      $region36: #{res_four4_forward.9} parent=27 // pred_fallthru
        _
    $region28: #{res_four4_forward.9} parent=5 // pred_fallthru
      _
    %p196 = scmp.le.s32.totalorder 1, %s11
    %p197 = scmp.lt.s32.totalorder %s11, 3
    %p198 = pnand %p196, %p197
    %p199 = pneg %p198
    // Predicated region
    $region37: #{res_four4_forward.9} parent=5 // pred_check
      _
    $region38: #{res_four4_forward.9} parent=5 // pred_check_branch
      %201 = sbr.rel (%p198) target = $region40
    $region39: #{res_four4_forward.9} parent=5 // pred_region
      %s202 = ssub.s32 %s11, 1
      %p203 = scmp.lt.s32.totalorder %s16, 1
      %s204 = scalar_select %p203, %s16, 1
      %s205 = smul.addr %s204, 2
      %s206 = smul.addr %s205, 8
      %s207 = scalar_lea.vmem %s0, %s206
      %p208 = pneg %p37
      %p209 = pneg %p34
      %p210 = scmp.lt.s32.totalorder %s16, 1
      %s211 = scalar_select %p210, %s16, 1
      %s212 = smul.addr %s211, 2
      %s213 = smul.addr %s212, 8
      %s214 = scalar_lea.vmem %s1, %s213
      %p215 = pneg %p63
      %p216 = pneg %p60
      %p217 = pneg %p84
      %p218 = pneg %p81
      %p219 = pneg %p105
      %p220 = pneg %p102
      %p221 = pneg %p126
      %p222 = pneg %p123
      %p223 = pneg %p152
      %p224 = pneg %p149
      %p225 = scmp.lt.s32.totalorder %s16, 1
      %s226 = scalar_select %p225, %s16, 1
      %s227 = smul.addr %s226, 2
      %s228 = smul.addr %s227, 8
      %s229 = scalar_lea.vmem %s5, %s228
      %p230 = scmp.lt.s32.totalorder %s16, 1
      %s231 = scalar_select %p230, %s16, 1
      %s232 = smul.addr %s231, 2
      %s233 = smul.addr %s232, 8
      %s234 = scalar_lea.vmem %s0, %s233
      %p235 = scmp.lt.s32.totalorder %s16, 1
      %s236 = scalar_select %p235, %s16, 1
      %s237 = smul.addr %s236, 2
      %s238 = smul.addr %s237, 8
      %s239 = scalar_lea.vmem %s1, %s238
      %p240 = scmp.lt.s32.totalorder %s16, 1
      %s241 = scalar_select %p240, %s16, 1
      %s242 = smul.addr %s241, 2
      %s243 = smul.addr %s242, 8
      %s244 = scalar_lea.vmem %s5, %s243
      %v245 = vld [vmem:[%s234] sm:$0xff]
      %v246 = vld [vmem:[%s234 + $0x8] sm:$0xff]
      %v247 = vld [vmem:[%s239] sm:$0xff]
      %v248 = vld [vmem:[%s239 + $0x8] sm:$0xff]
      %v249 = vadd.f32 %v245, %v247
      %v250 = vadd.f32 %v246, %v248
      %v251 = vld [vmem:[%s4] sm:$0xff]
      %vm252 = vcmask 64512
      %v254 = vsel %vm252, %v251, 0
      %256 = vmatprep.subr.mxu0 0.0
      %257 = vmatpush1.msra.mxu0 0.0
      %258 = vmatprep.subr.mxu0 0.0
      %259 = vmatpush1.msra.mxu0 0.0
      %260 = vmatprep.subr.mxu0 0.0
      %261 = vmatpush1.msra.mxu0 0.0
      %262 = vmatprep.subr.mxu0 0.0
      %263 = vmatpush1.msra.mxu0 0.0
      %264 = vmatprep.subr.mxu0 0.0
      %265 = vmatpush1.msra.mxu0 0.0
      %266 = vmatprep.subr.mxu0 0.0
      %267 = vmatpush1.msra.mxu0 0.0
      %268 = vmatprep.subr.mxu0 0.0
      %269 = vmatpush1.msra.mxu0 0.0
      %270 = vmatprep.subr.mxu0 0.0
      %271 = vmatpush1.msra.mxu0 0.0
      %272 = vmatprep.subr.mxu0 0.0
      %273 = vmatpush1.msra.mxu0 0.0
      %274 = vmatprep.subr.mxu0 0.0
      %275 = vmatpush1.msra.mxu0 0.0
      %276 = vmatprep.subr.mxu0 0.0
      %277 = vmatpush1.msra.mxu0 0.0
      %278 = vmatprep.subr.mxu0 0.0
      %279 = vmatpush1.msra.mxu0 0.0
      %280 = vmatprep.subr.mxu0 0.0
      %281 = vmatpush1.msra.mxu0 0.0
      %282 = vmatprep.subr.mxu0 0.0
      %283 = vmatpush1.msra.mxu0 0.0
      %284 = vmatprep.subr.mxu0 0.0
      %285 = vmatpush1.msra.mxu0 0.0
      %286 = vmatprep.subr.mxu0 %v250
      %287 = vmatpush1.msra.mxu0 %v249
      %288 = vmatprep.subr.mxu0 0.0
      %289 = vmatpush2.msra.mxu0 0.0
      %290 = vmatprep.subr.mxu0 0.0
      %291 = vmatpush2.msra.mxu0 0.0
      %292 = vmatprep.subr.mxu0 0.0
      %293 = vmatpush2.msra.mxu0 0.0
      %294 = vmatprep.subr.mxu0 0.0
      %295 = vmatpush2.msra.mxu0 0.0
      %296 = vmatprep.subr.mxu0 0.0
      %297 = vmatpush2.msra.mxu0 0.0
      %298 = vmatprep.subr.mxu0 0.0
      %299 = vmatpush2.msra.mxu0 0.0
      %300 = vmatprep.subr.mxu0 0.0
      %301 = vmatpush2.msra.mxu0 0.0
      %302 = vmatprep.subr.mxu0 0.0
      %303 = vmatpush2.msra.mxu0 0.0
      %304 = vmatprep.subr.mxu0 0.0
      %305 = vmatpush2.msra.mxu0 0.0
      %306 = vmatprep.subr.mxu0 0.0
      %307 = vmatpush2.msra.mxu0 0.0
      %308 = vmatprep.subr.mxu0 0.0
      %309 = vmatpush2.msra.mxu0 0.0
      %310 = vmatprep.subr.mxu0 0.0
      %311 = vmatpush2.msra.mxu0 0.0
      %312 = vmatprep.subr.mxu0 0.0
      %313 = vmatpush2.msra.mxu0 0.0
      %314 = vmatprep.subr.mxu0 0.0
      %315 = vmatpush2.msra.mxu0 0.0
      %316 = vmatprep.subr.mxu0 0.0
      %317 = vmatpush2.msra.mxu0 0.0
      %318 = vmatprep.subr.mxu0 0.0
      %319 = vmatpush2.msra.mxu0 0.0
      %320 = vmatprep.mubr.f32.mxu0 0.0
      %321 = vmatmul.mubr.f32.gmra.mxu0 %v254
      %v322 = vpop.f32.mrf.mxu0
      %v323 = vadd.f32 0.0, %v322
      %v324 = vpop.f32.mrf.mxu0
      %v325 = vadd.f32 0.0, %v324
      %326 = vdwg.mxu0
      %v327 = vadd.f32 %v323, %v325
      %328 = vadd.xlane.f32.xlu0 %v327
      %v329 = vpop.xlane.xlu0 %328
      %v330 = vmul.f32 %v329, 0.001953125
      %v331 = vsub.f32 %v249, %v330
      %v332 = vsub.f32 %v250, %v330
      %v333 = vmul.f32 %v331, %v331
      %v334 = vmul.f32 %v332, %v332
      %335 = vmatprep.subr.mxu0 0.0
      %336 = vmatpush1.msra.mxu0 0.0
      %337 = vmatprep.subr.mxu0 0.0
      %338 = vmatpush1.msra.mxu0 0.0
      %339 = vmatprep.subr.mxu0 0.0
      %340 = vmatpush1.msra.mxu0 0.0
      %341 = vmatprep.subr.mxu0 0.0
      %342 = vmatpush1.msra.mxu0 0.0
      %343 = vmatprep.subr.mxu0 0.0
      %344 = vmatpush1.msra.mxu0 0.0
      %345 = vmatprep.subr.mxu0 0.0
      %346 = vmatpush1.msra.mxu0 0.0
      %347 = vmatprep.subr.mxu0 0.0
      %348 = vmatpush1.msra.mxu0 0.0
      %349 = vmatprep.subr.mxu0 0.0
      %350 = vmatpush1.msra.mxu0 0.0
      %351 = vmatprep.subr.mxu0 0.0
      %352 = vmatpush1.msra.mxu0 0.0
      %353 = vmatprep.subr.mxu0 0.0
      %354 = vmatpush1.msra.mxu0 0.0
      %355 = vmatprep.subr.mxu0 0.0
      %356 = vmatpush1.msra.mxu0 0.0
      %357 = vmatprep.subr.mxu0 0.0
      %358 = vmatpush1.msra.mxu0 0.0
      %359 = vmatprep.subr.mxu0 0.0
      %360 = vmatpush1.msra.mxu0 0.0
      %361 = vmatprep.subr.mxu0 0.0
      %362 = vmatpush1.msra.mxu0 0.0
      %363 = vmatprep.subr.mxu0 0.0
      %364 = vmatpush1.msra.mxu0 0.0
      %365 = vmatprep.subr.mxu0 %v334
      %366 = vmatpush1.msra.mxu0 %v333
      %367 = vmatprep.subr.mxu0 0.0
      %368 = vmatpush2.msra.mxu0 0.0
      %369 = vmatprep.subr.mxu0 0.0
      %370 = vmatpush2.msra.mxu0 0.0
      %371 = vmatprep.subr.mxu0 0.0
      %372 = vmatpush2.msra.mxu0 0.0
      %373 = vmatprep.subr.mxu0 0.0
      %374 = vmatpush2.msra.mxu0 0.0
      %375 = vmatprep.subr.mxu0 0.0
      %376 = vmatpush2.msra.mxu0 0.0
      %377 = vmatprep.subr.mxu0 0.0
      %378 = vmatpush2.msra.mxu0 0.0
      %379 = vmatprep.subr.mxu0 0.0
      %380 = vmatpush2.msra.mxu0 0.0
      %381 = vmatprep.subr.mxu0 0.0
      %382 = vmatpush2.msra.mxu0 0.0
      %383 = vmatprep.subr.mxu0 0.0
      %384 = vmatpush2.msra.mxu0 0.0
      %385 = vmatprep.subr.mxu0 0.0
      %386 = vmatpush2.msra.mxu0 0.0
      %387 = vmatprep.subr.mxu0 0.0
      %388 = vmatpush2.msra.mxu0 0.0
      %389 = vmatprep.subr.mxu0 0.0
      %390 = vmatpush2.msra.mxu0 0.0
      %391 = vmatprep.subr.mxu0 0.0
      %392 = vmatpush2.msra.mxu0 0.0
      %393 = vmatprep.subr.mxu0 0.0
      %394 = vmatpush2.msra.mxu0 0.0
      %395 = vmatprep.subr.mxu0 0.0
      %396 = vmatpush2.msra.mxu0 0.0
      %397 = vmatprep.subr.mxu0 0.0
      %398 = vmatpush2.msra.mxu0 0.0
      %399 = vmatprep.mubr.f32.mxu0 0.0
      %400 = vmatmul.mubr.f32.gmra.mxu0 %v254
      %v401 = vpop.f32.mrf.mxu0
      %v402 = vadd.f32 0.0, %v401
      %v403 = vpop.f32.mrf.mxu0
      %v404 = vadd.f32 0.0, %v403
      %405 = vdwg.mxu0
      %v406 = vadd.f32 %v402, %v404
      %407 = vadd.xlane.f32.xlu0 %v406
      %v408 = vpop.xlane.xlu0 %407
      %v409 = vmul.f32 %v408, 0.001953125
      %v410 = vadd.f32 %v409, 1e-06
      %v411 = vrsqrt.pop %v410
      %v412 = vmul.f32 %v331, %v411
      %v413 = vmul.f32 %v332, %v411
      %v414 = vld [vmem:[%s2] sm:$0xff]
      %416 = vset.pattern.permute.xlu0 0
      %417 = vperm.xlu0 %416, %v414
      %v418 = vpop.permute.xlu0 %417
      %v420 = vmul.f32 %v412, %v418
      %v421 = vmul.f32 %v413, %v418
      %v422 = vld [vmem:[%s3] sm:$0xff]
      %424 = vset.pattern.permute.xlu0 0
      %425 = vperm.xlu0 %424, %v422
      %v426 = vpop.permute.xlu0 %425
      %v428 = vadd.f32 %v420, %v426
      %v429 = vadd.f32 %v421, %v426
      %430 = vst [vmem:[%s244] sm:$0xff] %v428
      %431 = vst [vmem:[%s244 + $0x8] sm:$0xff] %v429
      %p432 = scmp.lt.s32.totalorder %s16, 1
      %s433 = scalar_select %p432, %s16, 1
      %s434 = smul.addr %s433, 2
      %s435 = smul.addr %s434, 8
      %s436 = scalar_lea.vmem %s5, %s435
      // Predicated region
      $region41: #{res_four4_forward.9} parent=39 // pred_check
        %p437 = pneg %p149
      $region42: #{res_four4_forward.9} parent=39 // pred_check_branch
        %439 = sbr.rel (%p437) target = $region44
      $region43: #{res_four4_forward.9} parent=39 // pred_region
        _
      $region44: #{res_four4_forward.9} parent=39 // pred_fallthru
        _
    $region40: #{res_four4_forward.9} parent=5 // pred_fallthru
      _
    %p440 = scmp.le.s32.totalorder 2, %s11
    // Predicated region
    $region45: #{res_four4_forward.9} parent=5 // pred_check
      %p441 = pneg %p440
    $region46: #{res_four4_forward.9} parent=5 // pred_check_branch
      %443 = sbr.rel (%p441) target = $region48
    $region47: #{res_four4_forward.9} parent=5 // pred_region
      %s444 = ssub.s32 %s11, 2
      // Predicated region
      $region49: #{res_four4_forward.9} parent=47 // pred_check
        %p445 = pneg %p155
      $region50: #{res_four4_forward.9} parent=47 // pred_check_branch
        %447 = sbr.rel (%p445) target = $region52
      $region51: #{res_four4_forward.9} parent=47 // pred_region
        %p448 = scmp.lt.s32.totalorder %s17, 1
        %s449 = scalar_select %p448, %s17, 1
        %s450 = smul.addr %s449, 2
        %s451 = smul.addr %s450, 8
        %s452 = scalar_lea.vmem %s5, %s451
      $region52: #{res_four4_forward.9} parent=47 // pred_fallthru
        _
    $region48: #{res_four4_forward.9} parent=5 // pred_fallthru
      _
  $region6: #{res_four4_forward.9} parent=0 // loop_footer
    %s15 = sadd.s32 1, %s11
  $region7: #{res_four4_forward.9} parent=0 // loop_footer_branch
    %10 = sbr.rel target = $region3
  $region8: #{res_four4_forward.9} parent=0 // loop_exit
    _

// kernel: res_four4_forward.10
$region0: #{res_four4_forward.10}
  #allocation0 [shape = 'u32[]', space=smem, size = 0x4, offset = 0x4, fixed_abs, tag = 'smem constant byte address 0x4 - core index']
  #allocation1 [shape = 'u32[144,128]{1,0:T(1,128)}', space=vmem, size = 0x12000, scoped, tag = 'internal scratch']
  %s0 = inlined_call_operand.vmem [shape: f32[2,8,256], index: 0, kind: input, shape index: {}]
  %s1 = inlined_call_operand.vmem [shape: f32[12,8], index: 1, kind: input, shape index: {}]
  %s2 = inlined_call_operand.vmem [shape: f32[12,1], index: 2, kind: input, shape index: {}]
  %s3 = inlined_call_operand.vmem [shape: f32[2,4,256], index: 3, kind: output, shape index: {0}]
  %s4 = inlined_call_operand.vmem [shape: f32[2,4,256], index: 4, kind: output, shape index: {1}]
  %5 = xla_tuple %s3, %s4
  %s6 = sld [smem:[#allocation0]]
  $region53: #{res_four4_forward.10} parent=0
    _
  %s8 = ssub.s32 1, %s6
  %s9 = scalar_select 0, %s8, %s6
  loop: start=0, step=1, limit=4
  $region2: #{res_four4_forward.10} parent=0 // loop_pre_header
    _
  $region3: #{res_four4_forward.10} parent=0 // loop_header
    %s11 = sphi 0, %s15
    %p12 = scmp.ge.s32.totalorder %s11, 4
    %s18 = sphi 0, %s30
    %s19 = sphi 0, %s26
    %s20 = sphi 0, %s18
    %s21 = sphi 0, %s19
    %s22 = sphi 0, %s20
    %s23 = sphi 0, %s21
    %s35 = sphi 0, %s37
    %s38 = sphi 0, %s35
    %s39 = sphi 0, %s38
    %s55 = sphi 0, %s39
    %s59 = sphi 0, %s59
    %s61 = sphi 0, %s59
    %s62 = sphi 0, %s61
    %s76 = sphi 0, %s62
    %s80 = sphi 0, %s80
    %s82 = sphi 0, %s80
    %s83 = sphi 0, %s82
    %s97 = sphi 0, %s83
    %s105 = sphi 0, %s107
    %s108 = sphi 0, %s105
    %s109 = sphi 0, %s108
    %s125 = sphi 0, %s109
    %s133 = sphi 0, %s135
    %s136 = sphi 0, %s133
    %s137 = sphi 0, %s136
    %s153 = sphi 0, %s137
  $region4: #{res_four4_forward.10} parent=0 // loop_header_branch
    %14 = sbr.rel (%p12) target = $region8
  $region5: #{res_four4_forward.10} parent=0 // loop_body
    %s16 = ssub.s32 %s11, 1
    %s17 = ssub.s32 %s11, 2
    %s24 = sadd.s32 1, %s19
    %p25 = scmp.ge.s32.totalorder %s24, 1
    %s26 = scalar_select %p25, 0, %s24
    %s27 = sadd.s32 1, %s18
    %s28 = scalar_select %p25, %s27, %s18
    %p29 = scmp.ge.s32.totalorder %s28, 2
    %s30 = scalar_select %p29, 0, %s28
    %s31 = ssub.s32 %s18, %s30
    %s32 = ssub.s32 %s19, %s26
    %s33 = sor.u32 %s31, %s32
    %p34 = scmp.eq.s32.totalorder %s33, 0
    %s36 = sadd.s32 %s35, 1
    %s37 = scalar_select %p34, %s35, %s36
    %p40 = pneg %p34
    %p41 = scmp.eq.s32.totalorder %s11, 1
    %p42 = por %p40, %p41
    %p43 = scmp.ne.s32.totalorder %s35, %s38
    %p44 = scmp.eq.s32.totalorder %s11, 0
    %p45 = por %p43, %p44
    %p46 = scmp.ne.s32.totalorder %s35, %s38
    %p47 = scmp.eq.s32.totalorder %s16, 1
    %p48 = por %p46, %p47
    %p49 = scmp.ne.s32.totalorder %s38, %s39
    %p50 = scmp.eq.s32.totalorder %s16, 0
    %p51 = por %p49, %p50
    %p52 = scmp.ne.s32.totalorder %s38, %s39
    %p53 = scmp.eq.s32.totalorder %s17, 1
    %p54 = por %p52, %p53
    %p56 = scmp.ne.s32.totalorder %s39, %s55
    %p57 = scmp.eq.s32.totalorder %s17, 0
    %p58 = por %p56, %p57
    %s60 = sadd.s32 %s59, 1
    %p63 = scmp.eq.s32.totalorder %s11, 1
    %p64 = scmp.ne.s32.totalorder %s59, %s61
    %p65 = scmp.eq.s32.totalorder %s11, 0
    %p66 = por %p64, %p65
    %p67 = scmp.ne.s32.totalorder %s59, %s61
    %p68 = scmp.eq.s32.totalorder %s16, 1
    %p69 = por %p67, %p68
    %p70 = scmp.ne.s32.totalorder %s61, %s62
    %p71 = scmp.eq.s32.totalorder %s16, 0
    %p72 = por %p70, %p71
    %p73 = scmp.ne.s32.totalorder %s61, %s62
    %p74 = scmp.eq.s32.totalorder %s17, 1
    %p75 = por %p73, %p74
    %p77 = scmp.ne.s32.totalorder %s62, %s76
    %p78 = scmp.eq.s32.totalorder %s17, 0
    %p79 = por %p77, %p78
    %s81 = sadd.s32 %s80, 1
    %p84 = scmp.eq.s32.totalorder %s11, 1
    %p85 = scmp.ne.s32.totalorder %s80, %s82
    %p86 = scmp.eq.s32.totalorder %s11, 0
    %p87 = por %p85, %p86
    %p88 = scmp.ne.s32.totalorder %s80, %s82
    %p89 = scmp.eq.s32.totalorder %s16, 1
    %p90 = por %p88, %p89
    %p91 = scmp.ne.s32.totalorder %s82, %s83
    %p92 = scmp.eq.s32.totalorder %s16, 0
    %p93 = por %p91, %p92
    %p94 = scmp.ne.s32.totalorder %s82, %s83
    %p95 = scmp.eq.s32.totalorder %s17, 1
    %p96 = por %p94, %p95
    %p98 = scmp.ne.s32.totalorder %s83, %s97
    %p99 = scmp.eq.s32.totalorder %s17, 0
    %p100 = por %p98, %p99
    %s101 = ssub.s32 %s18, %s30
    %s102 = ssub.s32 %s19, %s26
    %s103 = sor.u32 %s101, %s102
    %p104 = scmp.eq.s32.totalorder %s103, 0
    %s106 = sadd.s32 %s105, 1
    %s107 = scalar_select %p104, %s105, %s106
    %p110 = pneg %p104
    %p111 = scmp.eq.s32.totalorder %s11, 1
    %p112 = por %p110, %p111
    %p113 = scmp.ne.s32.totalorder %s105, %s108
    %p114 = scmp.eq.s32.totalorder %s11, 0
    %p115 = por %p113, %p114
    %p116 = scmp.ne.s32.totalorder %s105, %s108
    %p117 = scmp.eq.s32.totalorder %s16, 1
    %p118 = por %p116, %p117
    %p119 = scmp.ne.s32.totalorder %s108, %s109
    %p120 = scmp.eq.s32.totalorder %s16, 0
    %p121 = por %p119, %p120
    %p122 = scmp.ne.s32.totalorder %s108, %s109
    %p123 = scmp.eq.s32.totalorder %s17, 1
    %p124 = por %p122, %p123
    %p126 = scmp.ne.s32.totalorder %s109, %s125
    %p127 = scmp.eq.s32.totalorder %s17, 0
    %p128 = por %p126, %p127
    %s129 = ssub.s32 %s18, %s30
    %s130 = ssub.s32 %s19, %s26
    %s131 = sor.u32 %s129, %s130
    %p132 = scmp.eq.s32.totalorder %s131, 0
    %s134 = sadd.s32 %s133, 1
    %s135 = scalar_select %p132, %s133, %s134
    %p138 = pneg %p132
    %p139 = scmp.eq.s32.totalorder %s11, 1
    %p140 = por %p138, %p139
    %p141 = scmp.ne.s32.totalorder %s133, %s136
    %p142 = scmp.eq.s32.totalorder %s11, 0
    %p143 = por %p141, %p142
    %p144 = scmp.ne.s32.totalorder %s133, %s136
    %p145 = scmp.eq.s32.totalorder %s16, 1
    %p146 = por %p144, %p145
    %p147 = scmp.ne.s32.totalorder %s136, %s137
    %p148 = scmp.eq.s32.totalorder %s16, 0
    %p149 = por %p147, %p148
    %p150 = scmp.ne.s32.totalorder %s136, %s137
    %p151 = scmp.eq.s32.totalorder %s17, 1
    %p152 = por %p150, %p151
    %p154 = scmp.ne.s32.totalorder %s137, %s153
    %p155 = scmp.eq.s32.totalorder %s17, 0
    %p156 = por %p154, %p155
    %p157 = scmp.le.s32.totalorder 1, %s11
    %p158 = scmp.lt.s32.totalorder %s11, 3
    %p159 = pnand %p157, %p158
    %p160 = pneg %p159
    // Predicated region
    $region9: #{res_four4_forward.10} parent=5 // pred_check
      _
    $region10: #{res_four4_forward.10} parent=5 // pred_check_branch
      %162 = sbr.rel (%p159) target = $region12
    $region11: #{res_four4_forward.10} parent=5 // pred_region
      %s163 = ssub.s32 %s11, 1
      // Predicated region
      $region13: #{res_four4_forward.10} parent=11 // pred_check
        %p164 = pneg %p72
      $region14: #{res_four4_forward.10} parent=11 // pred_check_branch
        %166 = sbr.rel (%p164) target = $region16
      $region15: #{res_four4_forward.10} parent=11 // pred_region
        _
      $region16: #{res_four4_forward.10} parent=11 // pred_fallthru
        _
      // Predicated region
      $region17: #{res_four4_forward.10} parent=11 // pred_check
        %p167 = pneg %p93
      $region18: #{res_four4_forward.10} parent=11 // pred_check_branch
        %169 = sbr.rel (%p167) target = $region20
      $region19: #{res_four4_forward.10} parent=11 // pred_region
        _
      $region20: #{res_four4_forward.10} parent=11 // pred_fallthru
        _
    $region12: #{res_four4_forward.10} parent=5 // pred_fallthru
      _
    %p170 = scmp.lt.s32.totalorder %s11, 2
    // Predicated region
    $region21: #{res_four4_forward.10} parent=5 // pred_check
      %p171 = pneg %p170
    $region22: #{res_four4_forward.10} parent=5 // pred_check_branch
      %173 = sbr.rel (%p171) target = $region24
    $region23: #{res_four4_forward.10} parent=5 // pred_region
      // Predicated region
      $region25: #{res_four4_forward.10} parent=23 // pred_check
        %p174 = pneg %p45
      $region26: #{res_four4_forward.10} parent=23 // pred_check_branch
        %176 = sbr.rel (%p174) target = $region28
      $region27: #{res_four4_forward.10} parent=23 // pred_region
        %s177 = smul.u32 2, %s19
        %p178 = scmp.lt.s32.totalorder %s18, 1
        %s179 = scalar_select %p178, %s18, 1
        %p180 = scmp.lt.s32.totalorder %s177, 1
        %s181 = scalar_select %p180, %s177, 1
        %s182 = smul.addr %s179, 2
        %s183 = sadd.s32 %s181, %s182
        %s184 = smul.addr %s183, 8
        %s185 = scalar_lea.vmem %s0, %s184
        %s186 = smul.u32 2, %s19
      $region28: #{res_four4_forward.10} parent=23 // pred_fallthru
        _
    $region24: #{res_four4_forward.10} parent=5 // pred_fallthru
      _
    %p187 = scmp.le.s32.totalorder 1, %s11
    %p188 = scmp.lt.s32.totalorder %s11, 3
    %p189 = pnand %p187, %p188
    %p190 = pneg %p189
    // Predicated region
    $region29: #{res_four4_forward.10} parent=5 // pred_check
      _
    $region30: #{res_four4_forward.10} parent=5 // pred_check_branch
      %192 = sbr.rel (%p189) target = $region32
    $region31: #{res_four4_forward.10} parent=5 // pred_region
      %s193 = ssub.s32 %s11, 1
      %s194 = smul.u32 2, %s21
      %p195 = scmp.lt.s32.totalorder %s20, 1
      %s196 = scalar_select %p195, %s20, 1
      %p197 = scmp.lt.s32.totalorder %s194, 1
      %s198 = scalar_select %p197, %s194, 1
      %s199 = smul.addr %s196, 2
      %s200 = sadd.s32 %s198, %s199
      %s201 = smul.addr %s200, 8
      %s202 = scalar_lea.vmem %s0, %s201
      %p203 = pneg %p51
      %p204 = pneg %p48
      %p205 = pneg %p72
      %p206 = pneg %p69
      %p207 = pneg %p93
      %p208 = pneg %p90
      %p209 = pneg %p121
      %p210 = pneg %p118
      %s211 = smul.u32 2, %s21
      %p212 = scmp.lt.s32.totalorder %s20, 1
      %s213 = scalar_select %p212, %s20, 1
      %p214 = scmp.lt.s32.totalorder %s211, 1
      %s215 = scalar_select %p214, %s211, 1
      %s216 = smul.addr %s213, 2
      %s217 = sadd.s32 %s215, %s216
      %s218 = smul.addr %s217, 4
      %s219 = scalar_lea.vmem %s3, %s218
      %p220 = pneg %p149
      %p221 = pneg %p146
      %s222 = smul.u32 2, %s21
      %p223 = scmp.lt.s32.totalorder %s20, 1
      %s224 = scalar_select %p223, %s20, 1
      %p225 = scmp.lt.s32.totalorder %s222, 1
      %s226 = scalar_select %p225, %s222, 1
      %s227 = smul.addr %s224, 2
      %s228 = sadd.s32 %s226, %s227
      %s229 = smul.addr %s228, 4
      %s230 = scalar_lea.vmem %s4, %s229
      %s231 = smul.u32 2, %s21
      %p232 = scmp.lt.s32.totalorder %s20, 1
      %s233 = scalar_select %p232, %s20, 1
      %p234 = scmp.lt.s32.totalorder %s231, 1
      %s235 = scalar_select %p234, %s231, 1
      %s236 = smul.addr %s233, 2
      %s237 = sadd.s32 %s235, %s236
      %s238 = smul.addr %s237, 8
      %s239 = scalar_lea.vmem %s0, %s238
      %s240 = smul.u32 2, %s21
      %s241 = smul.u32 2, %s21
      %p242 = scmp.lt.s32.totalorder %s20, 1
      %s243 = scalar_select %p242, %s20, 1
      %p244 = scmp.lt.s32.totalorder %s241, 1
      %s245 = scalar_select %p244, %s241, 1
      %s246 = smul.addr %s243, 2
      %s247 = sadd.s32 %s245, %s246
      %s248 = smul.addr %s247, 4
      %s249 = scalar_lea.vmem %s3, %s248
      %s250 = smul.u32 2, %s21
      %s251 = smul.u32 2, %s21
      %p252 = scmp.lt.s32.totalorder %s20, 1
      %s253 = scalar_select %p252, %s20, 1
      %p254 = scmp.lt.s32.totalorder %s251, 1
      %s255 = scalar_select %p254, %s251, 1
      %s256 = smul.addr %s253, 2
      %s257 = sadd.s32 %s255, %s256
      %s258 = smul.addr %s257, 4
      %s259 = scalar_lea.vmem %s4, %s258
      %s260 = smul.u32 2, %s21
      %v261 = vld [vmem:[%s1] sm:$0xff]
      %v262 = vld [vmem:[%s1 + $0x8] sm:$0xf]
      %v263 = vld [vmem:[%s239] sm:$0xff]
      %v264 = vld [vmem:[%s239 + $0x8] sm:$0xff]
      %v265 = vld [vmem:[%s2] sm:$0xff]
      %v266 = vld [vmem:[%s2 + $0x8] sm:$0xf]
      %268 = vset.pattern.permute.xlu0 0
      %269 = vperm.xlu0 %268, %v265
      %v270 = vpop.permute.xlu0 %269
      %273 = vset.pattern.permute.xlu0 0
      %274 = vperm.xlu0 %273, %v266
      %v275 = vpop.permute.xlu0 %274
      %vm277 = vcmask 64512
      %v279 = vsel %vm277, %v261, 0
      %v282 = vsel %vm277, %v262, 0
      %284 = vmatprep.subr.mxu0 0.0
      %285 = vmatpush1.msra.mxu0 0.0
      %286 = vmatprep.subr.mxu0 0.0
      %287 = vmatpush1.msra.mxu0 0.0
      %288 = vmatprep.subr.mxu0 0.0
      %289 = vmatpush1.msra.mxu0 0.0
      %290 = vmatprep.subr.mxu0 0.0
      %291 = vmatpush1.msra.mxu0 0.0
      %292 = vmatprep.subr.mxu0 0.0
      %293 = vmatpush1.msra.mxu0 0.0
      %294 = vmatprep.subr.mxu0 0.0
      %295 = vmatpush1.msra.mxu0 0.0
      %296 = vmatprep.subr.mxu0 0.0
      %297 = vmatpush1.msra.mxu0 0.0
      %298 = vmatprep.subr.mxu0 0.0
      %299 = vmatpush1.msra.mxu0 0.0
      %300 = vmatprep.subr.mxu0 0.0
      %301 = vmatpush1.msra.mxu0 0.0
      %302 = vmatprep.subr.mxu0 0.0
      %303 = vmatpush1.msra.mxu0 0.0
      %304 = vmatprep.subr.mxu0 0.0
      %305 = vmatpush1.msra.mxu0 0.0
      %306 = vmatprep.subr.mxu0 0.0
      %307 = vmatpush1.msra.mxu0 0.0
      %308 = vmatprep.subr.mxu0 0.0
      %309 = vmatpush1.msra.mxu0 0.0
      %310 = vmatprep.subr.mxu0 0.0
      %311 = vmatpush1.msra.mxu0 0.0
      %312 = vmatprep.subr.mxu0 0.0
      %313 = vmatpush1.msra.mxu0 0.0
      %314 = vmatprep.subr.mxu0 %v264
      %315 = vmatpush1.msra.mxu0 %v263
      %316 = vmatprep.subr.mxu0 0.0
      %317 = vmatpush2.msra.mxu0 0.0
      %318 = vmatprep.subr.mxu0 0.0
      %319 = vmatpush2.msra.mxu0 0.0
      %320 = vmatprep.subr.mxu0 0.0
      %321 = vmatpush2.msra.mxu0 0.0
      %322 = vmatprep.subr.mxu0 0.0
      %323 = vmatpush2.msra.mxu0 0.0
      %324 = vmatprep.subr.mxu0 0.0
      %325 = vmatpush2.msra.mxu0 0.0
      %326 = vmatprep.subr.mxu0 0.0
      %327 = vmatpush2.msra.mxu0 0.0
      %328 = vmatprep.subr.mxu0 0.0
      %329 = vmatpush2.msra.mxu0 0.0
      %330 = vmatprep.subr.mxu0 0.0
      %331 = vmatpush2.msra.mxu0 0.0
      %332 = vmatprep.subr.mxu0 0.0
      %333 = vmatpush2.msra.mxu0 0.0
      %334 = vmatprep.subr.mxu0 0.0
      %335 = vmatpush2.msra.mxu0 0.0
      %336 = vmatprep.subr.mxu0 0.0
      %337 = vmatpush2.msra.mxu0 0.0
      %338 = vmatprep.subr.mxu0 0.0
      %339 = vmatpush2.msra.mxu0 0.0
      %340 = vmatprep.subr.mxu0 0.0
      %341 = vmatpush2.msra.mxu0 0.0
      %342 = vmatprep.subr.mxu0 0.0
      %343 = vmatpush2.msra.mxu0 0.0
      %344 = vmatprep.subr.mxu0 0.0
      %345 = vmatpush2.msra.mxu0 0.0
      %346 = vmatprep.subr.mxu0 0.0
      %347 = vmatpush2.msra.mxu0 0.0
      %348 = vmatprep.mubr.f32.mxu0 0.0
      %349 = vmatmul.mubr.f32.gmra.mxu0 %v279
      %v350 = vpop.f32.mrf.mxu0
      %v351 = vadd.f32 %v270, %v350
      %v352 = vpop.f32.mrf.mxu0
      %v353 = vadd.f32 %v270, %v352
      %354 = vmatprep.mubr.f32.mxu0 0.0
      %355 = vmatmul.mubr.f32.gmra.mxu0 %v282
      %v356 = vpop.f32.mrf.mxu0
      %v357 = vadd.f32 %v275, %v356
      %v358 = vpop.f32.mrf.mxu0
      %v359 = vadd.f32 %v275, %v358
      %360 = vdwg.mxu0
      %v363 = vcombine.low %v351, %v353
      %365 = vst [vmem:[%s249] sm:$0xff] %v363
      %v366 = vxor.u32 %v357, 2147483648
      %v367 = vxor.u32 %v359, 2147483648
      %v368 = vmul.f32 %v366, 1.442695
      %v369 = vpow.pop %v368
      %v370 = vmul.f32 %v367, 1.442695
      %v371 = vpow.pop %v370
      %v372 = vadd.f32 %v369, 1.0
      %v373 = vadd.f32 %v371, 1.0
      %v374 = vrcp.pop %v372
      %v375 = vmul.f32 1.0, %v374
      %v376 = vrcp.pop %v373
      %v377 = vmul.f32 1.0, %v376
      %v378 = vmul.f32 %v357, %v375
      %v379 = vmul.f32 %v359, %v377
      %v382 = vcombine.low %v378, %v379
      %384 = vst [vmem:[%s259] sm:$0xff] %v382
      %s385 = smul.u32 2, %s21
      %p386 = scmp.lt.s32.totalorder %s20, 1
      %s387 = scalar_select %p386, %s20, 1
      %p388 = scmp.lt.s32.totalorder %s385, 1
      %s389 = scalar_select %p388, %s385, 1
      %s390 = smul.addr %s387, 2
      %s391 = sadd.s32 %s389, %s390
      %s392 = smul.addr %s391, 4
      %s393 = scalar_lea.vmem %s3, %s392
      %s394 = smul.u32 2, %s21
      %p395 = scmp.lt.s32.totalorder %s20, 1
      %s396 = scalar_select %p395, %s20, 1
      %p397 = scmp.lt.s32.totalorder %s394, 1
      %s398 = scalar_select %p397, %s394, 1
      %s399 = smul.addr %s396, 2
      %s400 = sadd.s32 %s398, %s399
      %s401 = smul.addr %s400, 4
      %s402 = scalar_lea.vmem %s4, %s401
      // Predicated region
      $region33: #{res_four4_forward.10} parent=31 // pred_check
        %p403 = pneg %p118
      $region34: #{res_four4_forward.10} parent=31 // pred_check_branch
        %405 = sbr.rel (%p403) target = $region36
      $region35: #{res_four4_forward.10} parent=31 // pred_region
        %s406 = smul.u32 2, %s21
      $region36: #{res_four4_forward.10} parent=31 // pred_fallthru
        _
      // Predicated region
      $region37: #{res_four4_forward.10} parent=31 // pred_check
        %p407 = pneg %p146
      $region38: #{res_four4_forward.10} parent=31 // pred_check_branch
        %409 = sbr.rel (%p407) target = $region40
      $region39: #{res_four4_forward.10} parent=31 // pred_region
        %s410 = smul.u32 2, %s21
      $region40: #{res_four4_forward.10} parent=31 // pred_fallthru
        _
    $region32: #{res_four4_forward.10} parent=5 // pred_fallthru
      _
    %p411 = scmp.le.s32.totalorder 2, %s11
    // Predicated region
    $region41: #{res_four4_forward.10} parent=5 // pred_check
      %p412 = pneg %p411
    $region42: #{res_four4_forward.10} parent=5 // pred_check_branch
      %414 = sbr.rel (%p412) target = $region44
    $region43: #{res_four4_forward.10} parent=5 // pred_region
      %s415 = ssub.s32 %s11, 2
      // Predicated region
      $region45: #{res_four4_forward.10} parent=43 // pred_check
        %p416 = pneg %p124
      $region46: #{res_four4_forward.10} parent=43 // pred_check_branch
        %418 = sbr.rel (%p416) target = $region48
      $region47: #{res_four4_forward.10} parent=43 // pred_region
        %s419 = smul.u32 2, %s23
        %p420 = scmp.lt.s32.totalorder %s22, 1
        %s421 = scalar_select %p420, %s22, 1
        %p422 = scmp.lt.s32.totalorder %s419, 1
        %s423 = scalar_select %p422, %s419, 1
        %s424 = smul.addr %s421, 2
        %s425 = sadd.s32 %s423, %s424
        %s426 = smul.addr %s425, 4
        %s427 = scalar_lea.vmem %s3, %s426
      $region48: #{res_four4_forward.10} parent=43 // pred_fallthru
        _
      // Predicated region
      $region49: #{res_four4_forward.10} parent=43 // pred_check
        %p428 = pneg %p152
      $region50: #{res_four4_forward.10} parent=43 // pred_check_branch
        %430 = sbr.rel (%p428) target = $region52
      $region51: #{res_four4_forward.10} parent=43 // pred_region
        %s431 = smul.u32 2, %s23
        %p432 = scmp.lt.s32.totalorder %s22, 1
        %s433 = scalar_select %p432, %s22, 1
        %p434 = scmp.lt.s32.totalorder %s431, 1
        %s435 = scalar_select %p434, %s431, 1
        %s436 = smul.addr %s433, 2
        %s437 = sadd.s32 %s435, %s436
        %s438 = smul.addr %s437, 4
        %s439 = scalar_lea.vmem %s4, %s438
      $region52: #{res_four4_forward.10} parent=43 // pred_fallthru
        _
    $region44: #{res_four4_forward.10} parent=5 // pred_fallthru
      _
  $region6: #{res_four4_forward.10} parent=0 // loop_footer
    %s15 = sadd.s32 1, %s11
  $region7: #{res_four4_forward.10} parent=0 // loop_footer_branch
    %10 = sbr.rel target = $region3
  $region8: #{res_four4_forward.10} parent=0 // loop_exit
    _

// kernel: reverse.1
$region0: #{reverse.1}
  %s0 = inlined_call_operand.vmem [shape: f32[2,4,16,7], index: 0, kind: input, shape index: {}]
  %s1 = inlined_call_operand.vmem [shape: f32[2,4,16,7], index: 1, kind: output, shape index: {}]
  $region1: #{reverse.1} parent=0
    #allocation0 [shape = 'u8[65536]{0}', space=vmem, size = 0x10000, scoped, tag = 'operand span for operand 0']
    #allocation1 [shape = 'u8[32768]{0}', space=vmem, size = 0x8000, scoped, tag = 'operand span for operand 1']
    %s2 = scalar_lea.vmem [#allocation0], 8
    // Predicated region
    $region2: #{reverse.1} parent=1 // pred_check
      _
    $region3: #{reverse.1} parent=1 // pred_check_branch
      %4 = sbr.rel (0) target = $region5
    $region4: #{reverse.1} parent=1 // pred_region
      // Predicated region
      $region6: #{reverse.1} parent=4 // pred_check
        _
      $region7: #{reverse.1} parent=4 // pred_check_branch
        %6 = sbr.rel (0) target = $region9
      $region8: #{reverse.1} parent=4 // pred_region
        // Predicated region
        $region21: #{reverse.1} parent=8 // pred_check
          _
        $region22: #{reverse.1} parent=8 // pred_check_branch
          %36 = sbr.rel (0) target = $region24
        $region23: #{reverse.1} parent=8 // pred_region
          loop: start=0, step=1, limit=1
          $region25: #{reverse.1} parent=23 // loop_pre_header
            _
          $region26: #{reverse.1} parent=23 // loop_header
            %s38 = sphi 0, %s42
            %p39 = scmp.ge.s32.totalorder %s38, 1
            %s43 = sphi %s0, %s0
            %s44 = sphi %s2, %s2
          $region27: #{reverse.1} parent=23 // loop_header_branch
            %41 = sbr.rel (%p39) target = $region31
          $region28: #{reverse.1} parent=23 // loop_body
            %v45 = vld [vmem:[%s43] sm:$0xff]
            %46 = vst [vmem:[%s44] sm:$0xff] %v45
            %v47 = vld [vmem:[%s43 + $0x8] sm:$0xff]
            %48 = vst [vmem:[%s44 + $0x10] sm:$0xff] %v47
            %v49 = vld [vmem:[%s43 + $0x10] sm:$0xff]
            %50 = vst [vmem:[%s44 + $0x20] sm:$0xff] %v49
            %v51 = vld [vmem:[%s43 + $0x18] sm:$0xff]
            %52 = vst [vmem:[%s44 + $0x30] sm:$0xff] %v51
            %v53 = vld [vmem:[%s43 + $0x20] sm:$0xff]
            %54 = vst [vmem:[%s44 + $0x40] sm:$0xff] %v53
            %v55 = vld [vmem:[%s43 + $0x28] sm:$0xff]
            %56 = vst [vmem:[%s44 + $0x50] sm:$0xff] %v55
            %v57 = vld [vmem:[%s43 + $0x30] sm:$0xff]
            %58 = vst [vmem:[%s44 + $0x60] sm:$0xff] %v57
            %v59 = vld [vmem:[%s43 + $0x38] sm:$0xff]
            %60 = vst [vmem:[%s44 + $0x70] sm:$0xff] %v59
          $region29: #{reverse.1} parent=23 // loop_footer
            %s42 = sadd.s32 1, %s38
          $region30: #{reverse.1} parent=23 // loop_footer_branch
            %37 = sbr.rel target = $region26
          $region31: #{reverse.1} parent=23 // loop_exit
            _
        $region24: #{reverse.1} parent=8 // pred_fallthru
          _
        // Predicated region
        $region32: #{reverse.1} parent=8 // pred_check
          _
        $region33: #{reverse.1} parent=8 // pred_check_branch
          %62 = sbr.rel target = $region35
        $region34: #{reverse.1} parent=8 // pred_region
          _
        $region35: #{reverse.1} parent=8 // pred_fallthru
          _
      $region9: #{reverse.1} parent=4 // pred_fallthru
        _
      // Predicated region
      $region10: #{reverse.1} parent=4 // pred_check
        _
      $region11: #{reverse.1} parent=4 // pred_check_branch
        %8 = sbr.rel target = $region13
      $region12: #{reverse.1} parent=4 // pred_region
        %s10 = ssub.s32 256, 1
        loop: start=0, step=1, limit=1
        $region14: #{reverse.1} parent=12 // loop_pre_header
          _
        $region15: #{reverse.1} parent=12 // loop_header
          %s12 = sphi 0, %s16
          %p13 = scmp.ge.s32.totalorder %s12, 1
          %s17 = sphi %s0, %s0
          %s18 = sphi %s2, %s2
        $region16: #{reverse.1} parent=12 // loop_header_branch
          %15 = sbr.rel (%p13) target = $region20
        $region17: #{reverse.1} parent=12 // loop_body
          %v19 = vld [vmem:[%s17] sm:%s10]
          %20 = vst [vmem:[%s18] sm:%s10] %v19
          %v21 = vld [vmem:[%s17 + $0x8] sm:%s10]
          %22 = vst [vmem:[%s18 + $0x10] sm:%s10] %v21
          %v23 = vld [vmem:[%s17 + $0x10] sm:%s10]
          %24 = vst [vmem:[%s18 + $0x20] sm:%s10] %v23
          %v25 = vld [vmem:[%s17 + $0x18] sm:%s10]
          %26 = vst [vmem:[%s18 + $0x30] sm:%s10] %v25
          %v27 = vld [vmem:[%s17 + $0x20] sm:%s10]
          %28 = vst [vmem:[%s18 + $0x40] sm:%s10] %v27
          %v29 = vld [vmem:[%s17 + $0x28] sm:%s10]
          %30 = vst [vmem:[%s18 + $0x50] sm:%s10] %v29
          %v31 = vld [vmem:[%s17 + $0x30] sm:%s10]
          %32 = vst [vmem:[%s18 + $0x60] sm:%s10] %v31
          %v33 = vld [vmem:[%s17 + $0x38] sm:%s10]
          %34 = vst [vmem:[%s18 + $0x70] sm:%s10] %v33
        $region18: #{reverse.1} parent=12 // loop_footer
          %s16 = sadd.s32 1, %s12
        $region19: #{reverse.1} parent=12 // loop_footer_branch
          %11 = sbr.rel target = $region15
        $region20: #{reverse.1} parent=12 // loop_exit
          _
      $region13: #{reverse.1} parent=4 // pred_fallthru
        _
    $region5: #{reverse.1} parent=1 // pred_fallthru
      _
    %63 = vnop
    %s64 = scalar_lea.vmem [#allocation0], 7
    %v65 = vld [vmem:[%s64] ss:$-1 sm:$0xff]
    %v66 = vrot.slane %v65, 1
    %67 = vst [vmem:[#allocation1] sm:$0xff] %v66
    %s68 = scalar_lea.vmem [#allocation0], 8
    %s69 = scalar_lea.vmem %s68, 7 [#allocation0]
    %v70 = vld [vmem:[%s69] ss:$-1 sm:$0xff]
    %v71 = vrot.slane %v70, 1
    %v72 = vlaneseq
    %v73 = vshrl.u32 %v72, 7
    %vm74 = vcmp.lt.s32.totalorder %v73, 7
    %75 = vst.msk [vmem:[#allocation1] sm:$0xff] %vm74, %v71
    %s76 = scalar_lea.vmem [#allocation1], 8
    %s77 = scalar_lea.vmem [#allocation0], 16
    %s78 = scalar_lea.vmem %s77, 7 [#allocation0]
    %v79 = vld [vmem:[%s78] ss:$-1 sm:$0xff]
    %v80 = vrot.slane %v79, 1
    %81 = vst [vmem:[%s76] sm:$0xff] %v80
    %s82 = scalar_lea.vmem %s77, 8 [#allocation0]
    %s83 = scalar_lea.vmem %s82, 7 [#allocation0]
    %v84 = vld [vmem:[%s83] ss:$-1 sm:$0xff]
    %v85 = vrot.slane %v84, 1
    %v86 = vlaneseq
    %v87 = vshrl.u32 %v86, 7
    %vm88 = vcmp.lt.s32.totalorder %v87, 7
    %89 = vst.msk [vmem:[%s76] sm:$0xff] %vm88, %v85
    %s90 = scalar_lea.vmem [#allocation1], 16
    %s91 = scalar_lea.vmem [#allocation0], 32
    %s92 = scalar_lea.vmem %s91, 7 [#allocation0]
    %v93 = vld [vmem:[%s92] ss:$-1 sm:$0xff]
    %v94 = vrot.slane %v93, 1
    %95 = vst [vmem:[%s90] sm:$0xff] %v94
    %s96 = scalar_lea.vmem %s91, 8 [#allocation0]
    %s97 = scalar_lea.vmem %s96, 7 [#allocation0]
    %v98 = vld [vmem:[%s97] ss:$-1 sm:$0xff]
    %v99 = vrot.slane %v98, 1
    %v100 = vlaneseq
    %v101 = vshrl.u32 %v100, 7
    %vm102 = vcmp.lt.s32.totalorder %v101, 7
    %103 = vst.msk [vmem:[%s90] sm:$0xff] %vm102, %v99
    %s104 = scalar_lea.vmem [#allocation1], 24
    %s105 = scalar_lea.vmem [#allocation0], 48
    %s106 = scalar_lea.vmem %s105, 7 [#allocation0]
    %v107 = vld [vmem:[%s106] ss:$-1 sm:$0xff]
    %v108 = vrot.slane %v107, 1
    %109 = vst [vmem:[%s104] sm:$0xff] %v108
    %s110 = scalar_lea.vmem %s105, 8 [#allocation0]
    %s111 = scalar_lea.vmem %s110, 7 [#allocation0]
    %v112 = vld [vmem:[%s111] ss:$-1 sm:$0xff]
    %v113 = vrot.slane %v112, 1
    %v114 = vlaneseq
    %v115 = vshrl.u32 %v114, 7
    %vm116 = vcmp.lt.s32.totalorder %v115, 7
    %117 = vst.msk [vmem:[%s104] sm:$0xff] %vm116, %v113
    %s118 = scalar_lea.vmem [#allocation1], 32
    %s119 = scalar_lea.vmem [#allocation0], 64
    %s120 = scalar_lea.vmem %s119, 7 [#allocation0]
    %v121 = vld [vmem:[%s120] ss:$-1 sm:$0xff]
    %v122 = vrot.slane %v121, 1
    %123 = vst [vmem:[%s118] sm:$0xff] %v122
    %s124 = scalar_lea.vmem %s119, 8 [#allocation0]
    %s125 = scalar_lea.vmem %s124, 7 [#allocation0]
    %v126 = vld [vmem:[%s125] ss:$-1 sm:$0xff]
    %v127 = vrot.slane %v126, 1
    %v128 = vlaneseq
    %v129 = vshrl.u32 %v128, 7
    %vm130 = vcmp.lt.s32.totalorder %v129, 7
    %131 = vst.msk [vmem:[%s118] sm:$0xff] %vm130, %v127
    %s132 = scalar_lea.vmem [#allocation1], 40
    %s133 = scalar_lea.vmem [#allocation0], 80
    %s134 = scalar_lea.vmem %s133, 7 [#allocation0]
    %v135 = vld [vmem:[%s134] ss:$-1 sm:$0xff]
    %v136 = vrot.slane %v135, 1
    %137 = vst [vmem:[%s132] sm:$0xff] %v136
    %s138 = scalar_lea.vmem %s133, 8 [#allocation0]
    %s139 = scalar_lea.vmem %s138, 7 [#allocation0]
    %v140 = vld [vmem:[%s139] ss:$-1 sm:$0xff]
    %v141 = vrot.slane %v140, 1
    %v142 = vlaneseq
    %v143 = vshrl.u32 %v142, 7
    %vm144 = vcmp.lt.s32.totalorder %v143, 7
    %145 = vst.msk [vmem:[%s132] sm:$0xff] %vm144, %v141
    %s146 = scalar_lea.vmem [#allocation1], 48
    %s147 = scalar_lea.vmem [#allocation0], 96
    %s148 = scalar_lea.vmem %s147, 7 [#allocation0]
    %v149 = vld [vmem:[%s148] ss:$-1 sm:$0xff]
    %v150 = vrot.slane %v149, 1
    %151 = vst [vmem:[%s146] sm:$0xff] %v150
    %s152 = scalar_lea.vmem %s147, 8 [#allocation0]
    %s153 = scalar_lea.vmem %s152, 7 [#allocation0]
    %v154 = vld [vmem:[%s153] ss:$-1 sm:$0xff]
    %v155 = vrot.slane %v154, 1
    %v156 = vlaneseq
    %v157 = vshrl.u32 %v156, 7
    %vm158 = vcmp.lt.s32.totalorder %v157, 7
    %159 = vst.msk [vmem:[%s146] sm:$0xff] %vm158, %v155
    %s160 = scalar_lea.vmem [#allocation1], 56
    %s161 = scalar_lea.vmem [#allocation0], 112
    %s162 = scalar_lea.vmem %s161, 7 [#allocation0]
    %v163 = vld [vmem:[%s162] ss:$-1 sm:$0xff]
    %v164 = vrot.slane %v163, 1
    %165 = vst [vmem:[%s160] sm:$0xff] %v164
    %s166 = scalar_lea.vmem %s161, 8 [#allocation0]
    %s167 = scalar_lea.vmem %s166, 7 [#allocation0]
    %v168 = vld [vmem:[%s167] ss:$-1 sm:$0xff]
    %v169 = vrot.slane %v168, 1
    %v170 = vlaneseq
    %v171 = vshrl.u32 %v170, 7
    %vm172 = vcmp.lt.s32.totalorder %v171, 7
    %173 = vst.msk [vmem:[%s160] sm:$0xff] %vm172, %v169
    // Predicated region
    $region36: #{reverse.1} parent=1 // pred_check
      _
    $region37: #{reverse.1} parent=1 // pred_check_branch
      %175 = sbr.rel (0) target = $region39
    $region38: #{reverse.1} parent=1 // pred_region
      // Predicated region
      $region40: #{reverse.1} parent=38 // pred_check
        _
      $region41: #{reverse.1} parent=38 // pred_check_branch
        %177 = sbr.rel (0) target = $region43
      $region42: #{reverse.1} parent=38 // pred_region
        // Predicated region
        $region55: #{reverse.1} parent=42 // pred_check
          _
        $region56: #{reverse.1} parent=42 // pred_check_branch
          %207 = sbr.rel (0) target = $region58
        $region57: #{reverse.1} parent=42 // pred_region
          loop: start=0, step=1, limit=1
          $region59: #{reverse.1} parent=57 // loop_pre_header
            _
          $region60: #{reverse.1} parent=57 // loop_header
            %s209 = sphi 0, %s213
            %p210 = scmp.ge.s32.totalorder %s209, 1
            %s214 = sphi [#allocation1], [#allocation1]
            %s215 = sphi %s1, %s1
          $region61: #{reverse.1} parent=57 // loop_header_branch
            %212 = sbr.rel (%p210) target = $region65
          $region62: #{reverse.1} parent=57 // loop_body
            %v216 = vld [vmem:[%s214] sm:$0xff]
            %217 = vst [vmem:[%s215] sm:$0xff] %v216
            %v218 = vld [vmem:[%s214 + $0x8] sm:$0xff]
            %219 = vst [vmem:[%s215 + $0x8] sm:$0xff] %v218
            %v220 = vld [vmem:[%s214 + $0x10] sm:$0xff]
            %221 = vst [vmem:[%s215 + $0x10] sm:$0xff] %v220
            %v222 = vld [vmem:[%s214 + $0x18] sm:$0xff]
            %223 = vst [vmem:[%s215 + $0x18] sm:$0xff] %v222
            %v224 = vld [vmem:[%s214 + $0x20] sm:$0xff]
            %225 = vst [vmem:[%s215 + $0x20] sm:$0xff] %v224
            %v226 = vld [vmem:[%s214 + $0x28] sm:$0xff]
            %227 = vst [vmem:[%s215 + $0x28] sm:$0xff] %v226
            %v228 = vld [vmem:[%s214 + $0x30] sm:$0xff]
            %229 = vst [vmem:[%s215 + $0x30] sm:$0xff] %v228
            %v230 = vld [vmem:[%s214 + $0x38] sm:$0xff]
            %231 = vst [vmem:[%s215 + $0x38] sm:$0xff] %v230
          $region63: #{reverse.1} parent=57 // loop_footer
            %s213 = sadd.s32 1, %s209
          $region64: #{reverse.1} parent=57 // loop_footer_branch
            %208 = sbr.rel target = $region60
          $region65: #{reverse.1} parent=57 // loop_exit
            _
        $region58: #{reverse.1} parent=42 // pred_fallthru
          _
        // Predicated region
        $region66: #{reverse.1} parent=42 // pred_check
          _
        $region67: #{reverse.1} parent=42 // pred_check_branch
          %233 = sbr.rel target = $region69
        $region68: #{reverse.1} parent=42 // pred_region
          _
        $region69: #{reverse.1} parent=42 // pred_fallthru
          _
      $region43: #{reverse.1} parent=38 // pred_fallthru
        _
      // Predicated region
      $region44: #{reverse.1} parent=38 // pred_check
        _
      $region45: #{reverse.1} parent=38 // pred_check_branch
        %179 = sbr.rel target = $region47
      $region46: #{reverse.1} parent=38 // pred_region
        %s181 = ssub.s32 256, 1
        loop: start=0, step=1, limit=1
        $region48: #{reverse.1} parent=46 // loop_pre_header
          _
        $region49: #{reverse.1} parent=46 // loop_header
          %s183 = sphi 0, %s187
          %p184 = scmp.ge.s32.totalorder %s183, 1
          %s188 = sphi [#allocation1], [#allocation1]
          %s189 = sphi %s1, %s1
        $region50: #{reverse.1} parent=46 // loop_header_branch
          %186 = sbr.rel (%p184) target = $region54
        $region51: #{reverse.1} parent=46 // loop_body
          %v190 = vld [vmem:[%s188] sm:%s181]
          %191 = vst [vmem:[%s189] sm:%s181] %v190
          %v192 = vld [vmem:[%s188 + $0x8] sm:%s181]
          %193 = vst [vmem:[%s189 + $0x8] sm:%s181] %v192
          %v194 = vld [vmem:[%s188 + $0x10] sm:%s181]
          %195 = vst [vmem:[%s189 + $0x10] sm:%s181] %v194
          %v196 = vld [vmem:[%s188 + $0x18] sm:%s181]
          %197 = vst [vmem:[%s189 + $0x18] sm:%s181] %v196
          %v198 = vld [vmem:[%s188 + $0x20] sm:%s181]
          %199 = vst [vmem:[%s189 + $0x20] sm:%s181] %v198
          %v200 = vld [vmem:[%s188 + $0x28] sm:%s181]
          %201 = vst [vmem:[%s189 + $0x28] sm:%s181] %v200
          %v202 = vld [vmem:[%s188 + $0x30] sm:%s181]
          %203 = vst [vmem:[%s189 + $0x30] sm:%s181] %v202
          %v204 = vld [vmem:[%s188 + $0x38] sm:%s181]
          %205 = vst [vmem:[%s189 + $0x38] sm:%s181] %v204
        $region52: #{reverse.1} parent=46 // loop_footer
          %s187 = sadd.s32 1, %s183
        $region53: #{reverse.1} parent=46 // loop_footer_branch
          %182 = sbr.rel target = $region49
        $region54: #{reverse.1} parent=46 // loop_exit
          _
      $region47: #{reverse.1} parent=38 // pred_fallthru
        _
    $region39: #{reverse.1} parent=1 // pred_fallthru
      _
    %234 = vnop

// kernel: res_four4_forward.11
$region0: #{res_four4_forward.11}
  #allocation0 [shape = 'u32[]', space=smem, size = 0x4, offset = 0x4, fixed_abs, tag = 'smem constant byte address 0x4 - core index']
  #allocation1 [shape = 'u32[144,128]{1,0:T(1,128)}', space=vmem, size = 0x12000, scoped, tag = 'internal scratch']
  #allocation2 [shape = 'f32[16,144]{1,0:T(8,128)}', space=vmem, size = 0x4000, scoped, tag = 'scratch operand']
  %s0 = inlined_call_operand.vmem [shape: f32[2,4,144], index: 0, kind: input, shape index: {}]
  %s1 = inlined_call_operand.vmem [shape: f32[2,4,144], index: 1, kind: input, shape index: {}]
  %s2 = inlined_call_operand.vmem [shape: f32[2,4,144], index: 2, kind: input, shape index: {}]
  %s3 = inlined_call_operand.vmem [shape: f32[8,16], index: 3, kind: input, shape index: {}]
  %s4 = inlined_call_operand.vmem [shape: f32[8,1], index: 4, kind: input, shape index: {}]
  %s5 = inlined_call_operand.vmem [shape: f32[12,8], index: 5, kind: input, shape index: {}]
  %s6 = inlined_call_operand.vmem [shape: f32[12,1], index: 6, kind: input, shape index: {}]
  %s7 = inlined_call_operand.vmem [shape: f32[2,4,144], index: 7, kind: output, shape index: {0}]
  %s8 = inlined_call_operand.vmem [shape: f32[2,4,144], index: 8, kind: output, shape index: {1}]
  %9 = xla_tuple %s7, %s8
  %s10 = sld [smem:[#allocation0]]
  $region69: #{res_four4_forward.11} parent=0
    _
  %s12 = ssub.s32 1, %s10
  %s13 = scalar_select 0, %s12, %s10
  loop: start=0, step=1, limit=4
  $region2: #{res_four4_forward.11} parent=0 // loop_pre_header
    _
  $region3: #{res_four4_forward.11} parent=0 // loop_header
    %s15 = sphi 0, %s19
    %p16 = scmp.ge.s32.totalorder %s15, 4
    %s22 = sphi 0, %s34
    %s23 = sphi 0, %s30
    %s24 = sphi 0, %s22
    %s25 = sphi 0, %s23
    %s26 = sphi 0, %s24
    %s27 = sphi 0, %s25
    %s39 = sphi 0, %s41
    %s42 = sphi 0, %s39
    %s43 = sphi 0, %s42
    %s59 = sphi 0, %s43
    %s67 = sphi 0, %s69
    %s70 = sphi 0, %s67
    %s71 = sphi 0, %s70
    %s87 = sphi 0, %s71
    %s95 = sphi 0, %s97
    %s98 = sphi 0, %s95
    %s99 = sphi 0, %s98
    %s115 = sphi 0, %s99
    %s119 = sphi 0, %s119
    %s121 = sphi 0, %s119
    %s122 = sphi 0, %s121
    %s136 = sphi 0, %s122
    %s140 = sphi 0, %s140
    %s142 = sphi 0, %s140
    %s143 = sphi 0, %s142
    %s157 = sphi 0, %s143
    %s161 = sphi 0, %s161
    %s163 = sphi 0, %s161
    %s164 = sphi 0, %s163
    %s178 = sphi 0, %s164
    %s182 = sphi 0, %s182
    %s184 = sphi 0, %s182
    %s185 = sphi 0, %s184
    %s199 = sphi 0, %s185
    %s207 = sphi 0, %s209
    %s210 = sphi 0, %s207
    %s211 = sphi 0, %s210
    %s227 = sphi 0, %s211
    %s235 = sphi 0, %s237
    %s238 = sphi 0, %s235
    %s239 = sphi 0, %s238
    %s255 = sphi 0, %s239
  $region4: #{res_four4_forward.11} parent=0 // loop_header_branch
    %18 = sbr.rel (%p16) target = $region8
  $region5: #{res_four4_forward.11} parent=0 // loop_body
    %s20 = ssub.s32 %s15, 1
    %s21 = ssub.s32 %s15, 2
    %s28 = sadd.s32 1, %s23
    %p29 = scmp.ge.s32.totalorder %s28, 1
    %s30 = scalar_select %p29, 0, %s28
    %s31 = sadd.s32 1, %s22
    %s32 = scalar_select %p29, %s31, %s22
    %p33 = scmp.ge.s32.totalorder %s32, 2
    %s34 = scalar_select %p33, 0, %s32
    %s35 = ssub.s32 %s22, %s34
    %s36 = ssub.s32 %s23, %s30
    %s37 = sor.u32 %s35, %s36
    %p38 = scmp.eq.s32.totalorder %s37, 0
    %s40 = sadd.s32 %s39, 1
    %s41 = scalar_select %p38, %s39, %s40
    %p44 = pneg %p38
    %p45 = scmp.eq.s32.totalorder %s15, 1
    %p46 = por %p44, %p45
    %p47 = scmp.ne.s32.totalorder %s39, %s42
    %p48 = scmp.eq.s32.totalorder %s15, 0
    %p49 = por %p47, %p48
    %p50 = scmp.ne.s32.totalorder %s39, %s42
    %p51 = scmp.eq.s32.totalorder %s20, 1
    %p52 = por %p50, %p51
    %p53 = scmp.ne.s32.totalorder %s42, %s43
    %p54 = scmp.eq.s32.totalorder %s20, 0
    %p55 = por %p53, %p54
    %p56 = scmp.ne.s32.totalorder %s42, %s43
    %p57 = scmp.eq.s32.totalorder %s21, 1
    %p58 = por %p56, %p57
    %p60 = scmp.ne.s32.totalorder %s43, %s59
    %p61 = scmp.eq.s32.totalorder %s21, 0
    %p62 = por %p60, %p61
    %s63 = ssub.s32 %s22, %s34
    %s64 = ssub.s32 %s23, %s30
    %s65 = sor.u32 %s63, %s64
    %p66 = scmp.eq.s32.totalorder %s65, 0
    %s68 = sadd.s32 %s67, 1
    %s69 = scalar_select %p66, %s67, %s68
    %p72 = pneg %p66
    %p73 = scmp.eq.s32.totalorder %s15, 1
    %p74 = por %p72, %p73
    %p75 = scmp.ne.s32.totalorder %s67, %s70
    %p76 = scmp.eq.s32.totalorder %s15, 0
    %p77 = por %p75, %p76
    %p78 = scmp.ne.s32.totalorder %s67, %s70
    %p79 = scmp.eq.s32.totalorder %s20, 1
    %p80 = por %p78, %p79
    %p81 = scmp.ne.s32.totalorder %s70, %s71
    %p82 = scmp.eq.s32.totalorder %s20, 0
    %p83 = por %p81, %p82
    %p84 = scmp.ne.s32.totalorder %s70, %s71
    %p85 = scmp.eq.s32.totalorder %s21, 1
    %p86 = por %p84, %p85
    %p88 = scmp.ne.s32.totalorder %s71, %s87
    %p89 = scmp.eq.s32.totalorder %s21, 0
    %p90 = por %p88, %p89
    %s91 = ssub.s32 %s22, %s34
    %s92 = ssub.s32 %s23, %s30
    %s93 = sor.u32 %s91, %s92
    %p94 = scmp.eq.s32.totalorder %s93, 0
    %s96 = sadd.s32 %s95, 1
    %s97 = scalar_select %p94, %s95, %s96
    %p100 = pneg %p94
    %p101 = scmp.eq.s32.totalorder %s15, 1
    %p102 = por %p100, %p101
    %p103 = scmp.ne.s32.totalorder %s95, %s98
    %p104 = scmp.eq.s32.totalorder %s15, 0
    %p105 = por %p103, %p104
    %p106 = scmp.ne.s32.totalorder %s95, %s98
    %p107 = scmp.eq.s32.totalorder %s20, 1
    %p108 = por %p106, %p107
    %p109 = scmp.ne.s32.totalorder %s98, %s99
    %p110 = scmp.eq.s32.totalorder %s20, 0
    %p111 = por %p109, %p110
    %p112 = scmp.ne.s32.totalorder %s98, %s99
    %p113 = scmp.eq.s32.totalorder %s21, 1
    %p114 = por %p112, %p113
    %p116 = scmp.ne.s32.totalorder %s99, %s115
    %p117 = scmp.eq.s32.totalorder %s21, 0
    %p118 = por %p116, %p117
    %s120 = sadd.s32 %s119, 1
    %p123 = scmp.eq.s32.totalorder %s15, 1
    %p124 = scmp.ne.s32.totalorder %s119, %s121
    %p125 = scmp.eq.s32.totalorder %s15, 0
    %p126 = por %p124, %p125
    %p127 = scmp.ne.s32.totalorder %s119, %s121
    %p128 = scmp.eq.s32.totalorder %s20, 1
    %p129 = por %p127, %p128
    %p130 = scmp.ne.s32.totalorder %s121, %s122
    %p131 = scmp.eq.s32.totalorder %s20, 0
    %p132 = por %p130, %p131
    %p133 = scmp.ne.s32.totalorder %s121, %s122
    %p134 = scmp.eq.s32.totalorder %s21, 1
    %p135 = por %p133, %p134
    %p137 = scmp.ne.s32.totalorder %s122, %s136
    %p138 = scmp.eq.s32.totalorder %s21, 0
    %p139 = por %p137, %p138
    %s141 = sadd.s32 %s140, 1
    %p144 = scmp.eq.s32.totalorder %s15, 1
    %p145 = scmp.ne.s32.totalorder %s140, %s142
    %p146 = scmp.eq.s32.totalorder %s15, 0
    %p147 = por %p145, %p146
    %p148 = scmp.ne.s32.totalorder %s140, %s142
    %p149 = scmp.eq.s32.totalorder %s20, 1
    %p150 = por %p148, %p149
    %p151 = scmp.ne.s32.totalorder %s142, %s143
    %p152 = scmp.eq.s32.totalorder %s20, 0
    %p153 = por %p151, %p152
    %p154 = scmp.ne.s32.totalorder %s142, %s143
    %p155 = scmp.eq.s32.totalorder %s21, 1
    %p156 = por %p154, %p155
    %p158 = scmp.ne.s32.totalorder %s143, %s157
    %p159 = scmp.eq.s32.totalorder %s21, 0
    %p160 = por %p158, %p159
    %s162 = sadd.s32 %s161, 1
    %p165 = scmp.eq.s32.totalorder %s15, 1
    %p166 = scmp.ne.s32.totalorder %s161, %s163
    %p167 = scmp.eq.s32.totalorder %s15, 0
    %p168 = por %p166, %p167
    %p169 = scmp.ne.s32.totalorder %s161, %s163
    %p170 = scmp.eq.s32.totalorder %s20, 1
    %p171 = por %p169, %p170
    %p172 = scmp.ne.s32.totalorder %s163, %s164
    %p173 = scmp.eq.s32.totalorder %s20, 0
    %p174 = por %p172, %p173
    %p175 = scmp.ne.s32.totalorder %s163, %s164
    %p176 = scmp.eq.s32.totalorder %s21, 1
    %p177 = por %p175, %p176
    %p179 = scmp.ne.s32.totalorder %s164, %s178
    %p180 = scmp.eq.s32.totalorder %s21, 0
    %p181 = por %p179, %p180
    %s183 = sadd.s32 %s182, 1
    %p186 = scmp.eq.s32.totalorder %s15, 1
    %p187 = scmp.ne.s32.totalorder %s182, %s184
    %p188 = scmp.eq.s32.totalorder %s15, 0
    %p189 = por %p187, %p188
    %p190 = scmp.ne.s32.totalorder %s182, %s184
    %p191 = scmp.eq.s32.totalorder %s20, 1
    %p192 = por %p190, %p191
    %p193 = scmp.ne.s32.totalorder %s184, %s185
    %p194 = scmp.eq.s32.totalorder %s20, 0
    %p195 = por %p193, %p194
    %p196 = scmp.ne.s32.totalorder %s184, %s185
    %p197 = scmp.eq.s32.totalorder %s21, 1
    %p198 = por %p196, %p197
    %p200 = scmp.ne.s32.totalorder %s185, %s199
    %p201 = scmp.eq.s32.totalorder %s21, 0
    %p202 = por %p200, %p201
    %s203 = ssub.s32 %s22, %s34
    %s204 = ssub.s32 %s23, %s30
    %s205 = sor.u32 %s203, %s204
    %p206 = scmp.eq.s32.totalorder %s205, 0
    %s208 = sadd.s32 %s207, 1
    %s209 = scalar_select %p206, %s207, %s208
    %p212 = pneg %p206
    %p213 = scmp.eq.s32.totalorder %s15, 1
    %p214 = por %p212, %p213
    %p215 = scmp.ne.s32.totalorder %s207, %s210
    %p216 = scmp.eq.s32.totalorder %s15, 0
    %p217 = por %p215, %p216
    %p218 = scmp.ne.s32.totalorder %s207, %s210
    %p219 = scmp.eq.s32.totalorder %s20, 1
    %p220 = por %p218, %p219
    %p221 = scmp.ne.s32.totalorder %s210, %s211
    %p222 = scmp.eq.s32.totalorder %s20, 0
    %p223 = por %p221, %p222
    %p224 = scmp.ne.s32.totalorder %s210, %s211
    %p225 = scmp.eq.s32.totalorder %s21, 1
    %p226 = por %p224, %p225
    %p228 = scmp.ne.s32.totalorder %s211, %s227
    %p229 = scmp.eq.s32.totalorder %s21, 0
    %p230 = por %p228, %p229
    %s231 = ssub.s32 %s22, %s34
    %s232 = ssub.s32 %s23, %s30
    %s233 = sor.u32 %s231, %s232
    %p234 = scmp.eq.s32.totalorder %s233, 0
    %s236 = sadd.s32 %s235, 1
    %s237 = scalar_select %p234, %s235, %s236
    %p240 = pneg %p234
    %p241 = scmp.eq.s32.totalorder %s15, 1
    %p242 = por %p240, %p241
    %p243 = scmp.ne.s32.totalorder %s235, %s238
    %p244 = scmp.eq.s32.totalorder %s15, 0
    %p245 = por %p243, %p244
    %p246 = scmp.ne.s32.totalorder %s235, %s238
    %p247 = scmp.eq.s32.totalorder %s20, 1
    %p248 = por %p246, %p247
    %p249 = scmp.ne.s32.totalorder %s238, %s239
    %p250 = scmp.eq.s32.totalorder %s20, 0
    %p251 = por %p249, %p250
    %p252 = scmp.ne.s32.totalorder %s238, %s239
    %p253 = scmp.eq.s32.totalorder %s21, 1
    %p254 = por %p252, %p253
    %p256 = scmp.ne.s32.totalorder %s239, %s255
    %p257 = scmp.eq.s32.totalorder %s21, 0
    %p258 = por %p256, %p257
    %p259 = scmp.le.s32.totalorder 1, %s15
    %p260 = scmp.lt.s32.totalorder %s15, 3
    %p261 = pnand %p259, %p260
    %p262 = pneg %p261
    // Predicated region
    $region9: #{res_four4_forward.11} parent=5 // pred_check
      _
    $region10: #{res_four4_forward.11} parent=5 // pred_check_branch
      %264 = sbr.rel (%p261) target = $region12
    $region11: #{res_four4_forward.11} parent=5 // pred_region
      %s265 = ssub.s32 %s15, 1
      // Predicated region
      $region13: #{res_four4_forward.11} parent=11 // pred_check
        %p266 = pneg %p132
      $region14: #{res_four4_forward.11} parent=11 // pred_check_branch
        %268 = sbr.rel (%p266) target = $region16
      $region15: #{res_four4_forward.11} parent=11 // pred_region
        _
      $region16: #{res_four4_forward.11} parent=11 // pred_fallthru
        _
      // Predicated region
      $region17: #{res_four4_forward.11} parent=11 // pred_check
        %p269 = pneg %p153
      $region18: #{res_four4_forward.11} parent=11 // pred_check_branch
        %271 = sbr.rel (%p269) target = $region20
      $region19: #{res_four4_forward.11} parent=11 // pred_region
        _
      $region20: #{res_four4_forward.11} parent=11 // pred_fallthru
        _
      // Predicated region
      $region21: #{res_four4_forward.11} parent=11 // pred_check
        %p272 = pneg %p174
      $region22: #{res_four4_forward.11} parent=11 // pred_check_branch
        %274 = sbr.rel (%p272) target = $region24
      $region23: #{res_four4_forward.11} parent=11 // pred_region
        _
      $region24: #{res_four4_forward.11} parent=11 // pred_fallthru
        _
      // Predicated region
      $region25: #{res_four4_forward.11} parent=11 // pred_check
        %p275 = pneg %p195
      $region26: #{res_four4_forward.11} parent=11 // pred_check_branch
        %277 = sbr.rel (%p275) target = $region28
      $region27: #{res_four4_forward.11} parent=11 // pred_region
        _
      $region28: #{res_four4_forward.11} parent=11 // pred_fallthru
        _
    $region12: #{res_four4_forward.11} parent=5 // pred_fallthru
      _
    %p278 = scmp.lt.s32.totalorder %s15, 2
    // Predicated region
    $region29: #{res_four4_forward.11} parent=5 // pred_check
      %p279 = pneg %p278
    $region30: #{res_four4_forward.11} parent=5 // pred_check_branch
      %281 = sbr.rel (%p279) target = $region32
    $region31: #{res_four4_forward.11} parent=5 // pred_region
      // Predicated region
      $region33: #{res_four4_forward.11} parent=31 // pred_check
        %p282 = pneg %p49
      $region34: #{res_four4_forward.11} parent=31 // pred_check_branch
        %284 = sbr.rel (%p282) target = $region36
      $region35: #{res_four4_forward.11} parent=31 // pred_region
        %s285 = smul.u32 2, %s23
        %p286 = scmp.lt.s32.totalorder %s22, 1
        %s287 = scalar_select %p286, %s22, 1
        %p288 = scmp.lt.s32.totalorder %s285, 1
        %s289 = scalar_select %p288, %s285, 1
        %s290 = smul.addr %s287, 2
        %s291 = sadd.s32 %s289, %s290
        %s292 = smul.addr %s291, 4
        %s293 = scalar_lea.vmem %s0, %s292
        %s294 = smul.u32 2, %s23
      $region36: #{res_four4_forward.11} parent=31 // pred_fallthru
        _
      // Predicated region
      $region37: #{res_four4_forward.11} parent=31 // pred_check
        %p295 = pneg %p77
      $region38: #{res_four4_forward.11} parent=31 // pred_check_branch
        %297 = sbr.rel (%p295) target = $region40
      $region39: #{res_four4_forward.11} parent=31 // pred_region
        %s298 = smul.u32 2, %s23
        %p299 = scmp.lt.s32.totalorder %s22, 1
        %s300 = scalar_select %p299, %s22, 1
        %p301 = scmp.lt.s32.totalorder %s298, 1
        %s302 = scalar_select %p301, %s298, 1
        %s303 = smul.addr %s300, 2
        %s304 = sadd.s32 %s302, %s303
        %s305 = smul.addr %s304, 4
        %s306 = scalar_lea.vmem %s1, %s305
        %s307 = smul.u32 2, %s23
      $region40: #{res_four4_forward.11} parent=31 // pred_fallthru
        _
      // Predicated region
      $region41: #{res_four4_forward.11} parent=31 // pred_check
        %p308 = pneg %p105
      $region42: #{res_four4_forward.11} parent=31 // pred_check_branch
        %310 = sbr.rel (%p308) target = $region44
      $region43: #{res_four4_forward.11} parent=31 // pred_region
        %s311 = smul.u32 2, %s23
        %p312 = scmp.lt.s32.totalorder %s22, 1
        %s313 = scalar_select %p312, %s22, 1
        %p314 = scmp.lt.s32.totalorder %s311, 1
        %s315 = scalar_select %p314, %s311, 1
        %s316 = smul.addr %s313, 2
        %s317 = sadd.s32 %s315, %s316
        %s318 = smul.addr %s317, 4
        %s319 = scalar_lea.vmem %s2, %s318
        %s320 = smul.u32 2, %s23
      $region44: #{res_four4_forward.11} parent=31 // pred_fallthru
        _
    $region32: #{res_four4_forward.11} parent=5 // pred_fallthru
      _
    %p321 = scmp.le.s32.totalorder 1, %s15
    %p322 = scmp.lt.s32.totalorder %s15, 3
    %p323 = pnand %p321, %p322
    %p324 = pneg %p323
    // Predicated region
    $region45: #{res_four4_forward.11} parent=5 // pred_check
      _
    $region46: #{res_four4_forward.11} parent=5 // pred_check_branch
      %326 = sbr.rel (%p323) target = $region48
    $region47: #{res_four4_forward.11} parent=5 // pred_region
      %s327 = ssub.s32 %s15, 1
      %s328 = smul.u32 2, %s25
      %p329 = scmp.lt.s32.totalorder %s24, 1
      %s330 = scalar_select %p329, %s24, 1
      %p331 = scmp.lt.s32.totalorder %s328, 1
      %s332 = scalar_select %p331, %s328, 1
      %s333 = smul.addr %s330, 2
      %s334 = sadd.s32 %s332, %s333
      %s335 = smul.addr %s334, 4
      %s336 = scalar_lea.vmem %s0, %s335
      %p337 = pneg %p55
      %p338 = pneg %p52
      %s339 = smul.u32 2, %s25
      %p340 = scmp.lt.s32.totalorder %s24, 1
      %s341 = scalar_select %p340, %s24, 1
      %p342 = scmp.lt.s32.totalorder %s339, 1
      %s343 = scalar_select %p342, %s339, 1
      %s344 = smul.addr %s341, 2
      %s345 = sadd.s32 %s343, %s344
      %s346 = smul.addr %s345, 4
      %s347 = scalar_lea.vmem %s1, %s346
      %p348 = pneg %p83
      %p349 = pneg %p80
      %s350 = smul.u32 2, %s25
      %p351 = scmp.lt.s32.totalorder %s24, 1
      %s352 = scalar_select %p351, %s24, 1
      %p353 = scmp.lt.s32.totalorder %s350, 1
      %s354 = scalar_select %p353, %s350, 1
      %s355 = smul.addr %s352, 2
      %s356 = sadd.s32 %s354, %s355
      %s357 = smul.addr %s356, 4
      %s358 = scalar_lea.vmem %s2, %s357
      %p359 = pneg %p111
      %p360 = pneg %p108
      %p361 = pneg %p132
      %p362 = pneg %p129
      %p363 = pneg %p153
      %p364 = pneg %p150
      %p365 = pneg %p174
      %p366 = pneg %p171
      %p367 = pneg %p195
      %p368 = pneg %p192
      %p369 = pneg %p223
      %p370 = pneg %p220
      %s371 = smul.u32 2, %s25
      %p372 = scmp.lt.s32.totalorder %s24, 1
      %s373 = scalar_select %p372, %s24, 1
      %p374 = scmp.lt.s32.totalorder %s371, 1
      %s375 = scalar_select %p374, %s371, 1
      %s376 = smul.addr %s373, 2
      %s377 = sadd.s32 %s375, %s376
      %s378 = smul.addr %s377, 4
      %s379 = scalar_lea.vmem %s7, %s378
      %p380 = pneg %p251
      %p381 = pneg %p248
      %s382 = smul.u32 2, %s25
      %p383 = scmp.lt.s32.totalorder %s24, 1
      %s384 = scalar_select %p383, %s24, 1
      %p385 = scmp.lt.s32.totalorder %s382, 1
      %s386 = scalar_select %p385, %s382, 1
      %s387 = smul.addr %s384, 2
      %s388 = sadd.s32 %s386, %s387
      %s389 = smul.addr %s388, 4
      %s390 = scalar_lea.vmem %s8, %s389
      %s391 = smul.u32 2, %s25
      %p392 = scmp.lt.s32.totalorder %s24, 1
      %s393 = scalar_select %p392, %s24, 1
      %p394 = scmp.lt.s32.totalorder %s391, 1
      %s395 = scalar_select %p394, %s391, 1
      %s396 = smul.addr %s393, 2
      %s397 = sadd.s32 %s395, %s396
      %s398 = smul.addr %s397, 4
      %s399 = scalar_lea.vmem %s0, %s398
      %s400 = smul.u32 2, %s25
      %s401 = smul.u32 2, %s25
      %p402 = scmp.lt.s32.totalorder %s24, 1
      %s403 = scalar_select %p402, %s24, 1
      %p404 = scmp.lt.s32.totalorder %s401, 1
      %s405 = scalar_select %p404, %s401, 1
      %s406 = smul.addr %s403, 2
      %s407 = sadd.s32 %s405, %s406
      %s408 = smul.addr %s407, 4
      %s409 = scalar_lea.vmem %s1, %s408
      %s410 = smul.u32 2, %s25
      %s411 = smul.u32 2, %s25
      %p412 = scmp.lt.s32.totalorder %s24, 1
      %s413 = scalar_select %p412, %s24, 1
      %p414 = scmp.lt.s32.totalorder %s411, 1
      %s415 = scalar_select %p414, %s411, 1
      %s416 = smul.addr %s413, 2
      %s417 = sadd.s32 %s415, %s416
      %s418 = smul.addr %s417, 4
      %s419 = scalar_lea.vmem %s2, %s418
      %s420 = smul.u32 2, %s25
      %s421 = smul.u32 2, %s25
      %p422 = scmp.lt.s32.totalorder %s24, 1
      %s423 = scalar_select %p422, %s24, 1
      %p424 = scmp.lt.s32.totalorder %s421, 1
      %s425 = scalar_select %p424, %s421, 1
      %s426 = smul.addr %s423, 2
      %s427 = sadd.s32 %s425, %s426
      %s428 = smul.addr %s427, 4
      %s429 = scalar_lea.vmem %s7, %s428
      %s430 = smul.u32 2, %s25
      %s431 = smul.u32 2, %s25
      %p432 = scmp.lt.s32.totalorder %s24, 1
      %s433 = scalar_select %p432, %s24, 1
      %p434 = scmp.lt.s32.totalorder %s431, 1
      %s435 = scalar_select %p434, %s431, 1
      %s436 = smul.addr %s433, 2
      %s437 = sadd.s32 %s435, %s436
      %s438 = smul.addr %s437, 4
      %s439 = scalar_lea.vmem %s8, %s438
      %s440 = smul.u32 2, %s25
      %v441 = vld [vmem:[%s399] sm:$0xff]
      %v442 = vld [vmem:[%s409] sm:$0xff]
      %443 = vst [vmem:[#allocation2] sm:$0xff] 0.0
      %vm444 = vcmask 130048
      %445 = vst.msk [vmem:[#allocation2 + $0x8] sm:$0xff] %vm444, 0.0
      %446 = vst [vmem:[#allocation2 + $0x10] sm:$0xff] 0.0
      %447 = vst.msk [vmem:[#allocation2 + $0x18] sm:$0xff] %vm444, 0.0
      %v448 = vmul.f32 %v441, %v441
      %v449 = vmul.f32 %v442, %v442
      %v450 = vadd.f32 %v448, %v449
      %v451 = vrsqrt.pop %v450
      %v452 = vmul.f32 %v450, %v451
      %vm453 = vcmp.eq.f32.partialorder %v450, inf
      %v454 = vsel %vm453, %v450, %v452
      %vm455 = vcmp.eq.f32.partialorder %v450, 0.0
      %v456 = vand.u32 %v450, 2147483648
      %v457 = vsel %vm455, %v456, %v454
      %v459 = vcombine.high %v457, %v457
      %461 = vst [vmem:[#allocation2] sm:$0xf] %v457
      %vm462 = vcmask 125952
      %463 = vst.msk [vmem:[#allocation2 + $0x8] sm:$0xf] %vm462, %v459
      %v464 = vld [vmem:[%s419] sm:$0xff]
      %v466 = vcombine.high %v464, %v464
      %468 = vst [vmem:[#allocation2 + $0x10] sm:$0xf] %v464
      %469 = vst.msk [vmem:[#allocation2 + $0x18] sm:$0xf] %vm462, %v466
      %v470 = vld [vmem:[%s3] sm:$0xff]
      %v471 = vld [vmem:[#allocation2] sm:$0xff]
      %v472 = vld [vmem:[#allocation2 + $0x8] sm:$0xff]
      %v473 = vld [vmem:[#allocation2 + $0x10] sm:$0xff]
      %v474 = vld [vmem:[#allocation2 + $0x18] sm:$0xff]
      %v475 = vld [vmem:[%s4] sm:$0xff]
      %477 = vset.pattern.permute.xlu0 0
      %478 = vperm.xlu0 %477, %v475
      %v479 = vpop.permute.xlu0 %478
      %v482 = vsel %vm444, %v470, 0
      %484 = vmatprep.subr.mxu0 0.0
      %485 = vmatpush1.msra.mxu0 0.0
      %486 = vmatprep.subr.mxu0 0.0
      %487 = vmatpush1.msra.mxu0 0.0
      %488 = vmatprep.subr.mxu0 0.0
      %489 = vmatpush1.msra.mxu0 0.0
      %490 = vmatprep.subr.mxu0 0.0
      %491 = vmatpush1.msra.mxu0 0.0
      %492 = vmatprep.subr.mxu0 0.0
      %493 = vmatpush1.msra.mxu0 0.0
      %494 = vmatprep.subr.mxu0 0.0
      %495 = vmatpush1.msra.mxu0 0.0
      %496 = vmatprep.subr.mxu0 0.0
      %497 = vmatpush1.msra.mxu0 0.0
      %498 = vmatprep.subr.mxu0 0.0
      %499 = vmatpush1.msra.mxu0 0.0
      %500 = vmatprep.subr.mxu0 0.0
      %501 = vmatpush1.msra.mxu0 0.0
      %502 = vmatprep.subr.mxu0 0.0
      %503 = vmatpush1.msra.mxu0 0.0
      %504 = vmatprep.subr.mxu0 0.0
      %505 = vmatpush1.msra.mxu0 0.0
      %506 = vmatprep.subr.mxu0 0.0
      %507 = vmatpush1.msra.mxu0 0.0
      %508 = vmatprep.subr.mxu0 0.0
      %509 = vmatpush1.msra.mxu0 0.0
      %510 = vmatprep.subr.mxu0 0.0
      %511 = vmatpush1.msra.mxu0 0.0
      %512 = vmatprep.subr.mxu0 %v474
      %513 = vmatpush1.msra.mxu0 %v473
      %514 = vmatprep.subr.mxu0 %v472
      %515 = vmatpush1.msra.mxu0 %v471
      %516 = vmatprep.subr.mxu0 0.0
      %517 = vmatpush2.msra.mxu0 0.0
      %518 = vmatprep.subr.mxu0 0.0
      %519 = vmatpush2.msra.mxu0 0.0
      %520 = vmatprep.subr.mxu0 0.0
      %521 = vmatpush2.msra.mxu0 0.0
      %522 = vmatprep.subr.mxu0 0.0
      %523 = vmatpush2.msra.mxu0 0.0
      %524 = vmatprep.subr.mxu0 0.0
      %525 = vmatpush2.msra.mxu0 0.0
      %526 = vmatprep.subr.mxu0 0.0
      %527 = vmatpush2.msra.mxu0 0.0
      %528 = vmatprep.subr.mxu0 0.0
      %529 = vmatpush2.msra.mxu0 0.0
      %530 = vmatprep.subr.mxu0 0.0
      %531 = vmatpush2.msra.mxu0 0.0
      %532 = vmatprep.subr.mxu0 0.0
      %533 = vmatpush2.msra.mxu0 0.0
      %534 = vmatprep.subr.mxu0 0.0
      %535 = vmatpush2.msra.mxu0 0.0
      %536 = vmatprep.subr.mxu0 0.0
      %537 = vmatpush2.msra.mxu0 0.0
      %538 = vmatprep.subr.mxu0 0.0
      %539 = vmatpush2.msra.mxu0 0.0
      %540 = vmatprep.subr.mxu0 0.0
      %541 = vmatpush2.msra.mxu0 0.0
      %542 = vmatprep.subr.mxu0 0.0
      %543 = vmatpush2.msra.mxu0 0.0
      %544 = vmatprep.subr.mxu0 0.0
      %545 = vmatpush2.msra.mxu0 0.0
      %546 = vmatprep.subr.mxu0 0.0
      %547 = vmatpush2.msra.mxu0 0.0
      %548 = vmatprep.mubr.f32.mxu0 0.0
      %549 = vmatmul.mubr.f32.gmra.mxu0 %v482
      %v550 = vpop.f32.mrf.mxu0
      %v551 = vadd.f32 %v479, %v550
      %v552 = vpop.f32.mrf.mxu0
      %v553 = vadd.f32 %v479, %v552
      %554 = vdwg.mxu0
      %vm555 = vcmp.ge.f32.partialorder %v551, 0.0
      %vm556 = vcmp.ge.f32.partialorder %v553, 0.0
      %v557 = vmul.f32 %v551, 0.1
      %v558 = vmul.f32 %v553, 0.1
      %v559 = vsel %vm555, %v551, %v557
      %v560 = vsel %vm556, %v553, %v558
      %v561 = vld [vmem:[%s5] sm:$0xff]
      %v562 = vld [vmem:[%s5 + $0x8] sm:$0xf]
      %v563 = vld [vmem:[%s6] sm:$0xff]
      %v564 = vld [vmem:[%s6 + $0x8] sm:$0xf]
      %566 = vset.pattern.permute.xlu0 0
      %567 = vperm.xlu0 %566, %v563
      %v568 = vpop.permute.xlu0 %567
      %571 = vset.pattern.permute.xlu0 0
      %572 = vperm.xlu0 %571, %v564
      %v573 = vpop.permute.xlu0 %572
      %vm575 = vcmask 64512
      %v577 = vsel %vm575, %v561, 0
      %v580 = vsel %vm575, %v562, 0
      %582 = vmatprep.subr.mxu0 0.0
      %583 = vmatpush1.msra.mxu0 0.0
      %584 = vmatprep.subr.mxu0 0.0
      %585 = vmatpush1.msra.mxu0 0.0
      %586 = vmatprep.subr.mxu0 0.0
      %587 = vmatpush1.msra.mxu0 0.0
      %588 = vmatprep.subr.mxu0 0.0
      %589 = vmatpush1.msra.mxu0 0.0
      %590 = vmatprep.subr.mxu0 0.0
      %591 = vmatpush1.msra.mxu0 0.0
      %592 = vmatprep.subr.mxu0 0.0
      %593 = vmatpush1.msra.mxu0 0.0
      %594 = vmatprep.subr.mxu0 0.0
      %595 = vmatpush1.msra.mxu0 0.0
      %596 = vmatprep.subr.mxu0 0.0
      %597 = vmatpush1.msra.mxu0 0.0
      %598 = vmatprep.subr.mxu0 0.0
      %599 = vmatpush1.msra.mxu0 0.0
      %600 = vmatprep.subr.mxu0 0.0
      %601 = vmatpush1.msra.mxu0 0.0
      %602 = vmatprep.subr.mxu0 0.0
      %603 = vmatpush1.msra.mxu0 0.0
      %604 = vmatprep.subr.mxu0 0.0
      %605 = vmatpush1.msra.mxu0 0.0
      %606 = vmatprep.subr.mxu0 0.0
      %607 = vmatpush1.msra.mxu0 0.0
      %608 = vmatprep.subr.mxu0 0.0
      %609 = vmatpush1.msra.mxu0 0.0
      %610 = vmatprep.subr.mxu0 0.0
      %611 = vmatpush1.msra.mxu0 0.0
      %612 = vmatprep.subr.mxu0 %v560
      %613 = vmatpush1.msra.mxu0 %v559
      %614 = vmatprep.subr.mxu0 0.0
      %615 = vmatpush2.msra.mxu0 0.0
      %616 = vmatprep.subr.mxu0 0.0
      %617 = vmatpush2.msra.mxu0 0.0
      %618 = vmatprep.subr.mxu0 0.0
      %619 = vmatpush2.msra.mxu0 0.0
      %620 = vmatprep.subr.mxu0 0.0
      %621 = vmatpush2.msra.mxu0 0.0
      %622 = vmatprep.subr.mxu0 0.0
      %623 = vmatpush2.msra.mxu0 0.0
      %624 = vmatprep.subr.mxu0 0.0
      %625 = vmatpush2.msra.mxu0 0.0
      %626 = vmatprep.subr.mxu0 0.0
      %627 = vmatpush2.msra.mxu0 0.0
      %628 = vmatprep.subr.mxu0 0.0
      %629 = vmatpush2.msra.mxu0 0.0
      %630 = vmatprep.subr.mxu0 0.0
      %631 = vmatpush2.msra.mxu0 0.0
      %632 = vmatprep.subr.mxu0 0.0
      %633 = vmatpush2.msra.mxu0 0.0
      %634 = vmatprep.subr.mxu0 0.0
      %635 = vmatpush2.msra.mxu0 0.0
      %636 = vmatprep.subr.mxu0 0.0
      %637 = vmatpush2.msra.mxu0 0.0
      %638 = vmatprep.subr.mxu0 0.0
      %639 = vmatpush2.msra.mxu0 0.0
      %640 = vmatprep.subr.mxu0 0.0
      %641 = vmatpush2.msra.mxu0 0.0
      %642 = vmatprep.subr.mxu0 0.0
      %643 = vmatpush2.msra.mxu0 0.0
      %644 = vmatprep.subr.mxu0 0.0
      %645 = vmatpush2.msra.mxu0 0.0
      %646 = vmatprep.mubr.f32.mxu0 0.0
      %647 = vmatmul.mubr.f32.gmra.mxu0 %v577
      %v648 = vpop.f32.mrf.mxu0
      %v649 = vadd.f32 %v568, %v648
      %v650 = vpop.f32.mrf.mxu0
      %v651 = vadd.f32 %v568, %v650
      %652 = vmatprep.mubr.f32.mxu0 0.0
      %653 = vmatmul.mubr.f32.gmra.mxu0 %v580
      %v654 = vpop.f32.mrf.mxu0
      %v655 = vadd.f32 %v573, %v654
      %v656 = vpop.f32.mrf.mxu0
      %v657 = vadd.f32 %v573, %v656
      %658 = vdwg.mxu0
      %v659 = vand.u32 2147483647, %v655
      %vm660 = vcmp.le.f32.partialorder %v659, 0.7853982
      %vm661 = vcmp.lt.s32.totalorder %v655, 0
      %v662 = vand.u32 %v655, 2139095040
      %v663 = vshrl.u32 %v662, 23
      %v664 = vsub.s32 %v663, 127
      %v665 = vand.u32 2147483647, %v655
      %v666 = vand.u32 %v665, 8388607
      %v667 = vor.u32 %v666, 8388608
      %v668 = vsub.s32 0, %v667
      %v669 = vadd.s32 %v664, 1
      %vm670 = vcmp.gt.s32.totalorder %v669, 0
      %v671 = vsel %vm670, %v669, 0
      %v672 = vshrl.u32 %v671, 5
      %v673 = vand.u32 %v671, 31
      %v674 = vsub.s32 32, %v673
      %v675 = vshrl.u32 683565275, %v674
      %v676 = vshll.u32 683565275, %v673
      %v677 = vshrl.u32 2475754826, %v674
      %v678 = vor.u32 %v676, %v677
      %v679 = vshll.u32 2475754826, %v673
      %v680 = vshrl.u32 2131351028, %v674
      %v681 = vor.u32 %v679, %v680
      %v682 = vshll.u32 2131351028, %v673
      %v683 = vshrl.u32 2102212464, %v674
      %v684 = vor.u32 %v682, %v683
      %v685 = vshll.u32 2102212464, %v673
      %v686 = vshrl.u32 920167782, %v674
      %v687 = vor.u32 %v685, %v686
      %v688 = vshll.u32 920167782, %v673
      %v689 = vshrl.u32 1326507024, %v674
      %v690 = vor.u32 %v688, %v689
      %vm691 = vcmp.lt.s32.totalorder %v672, 1
      %vm692 = vcmp.lt.s32.totalorder %v672, 2
      %vm693 = vcmp.lt.s32.totalorder %v672, 3
      %vm694 = vcmp.lt.s32.totalorder %v672, 4
      %v695 = vsel %vm691, %v675, %v678
      %v696 = vsel %vm694, %v684, 2102212464
      %v697 = vsel %vm693, %v681, %v696
      %v698 = vsel %vm692, %v695, %v697
      %v699 = vsel %vm691, %v678, %v681
      %v700 = vsel %vm694, %v687, 920167782
      %v701 = vsel %vm693, %v684, %v700
      %v702 = vsel %vm692, %v699, %v701
      %v703 = vsel %vm691, %v681, %v684
      %v704 = vsel %vm694, %v690, 1326507024
      %v705 = vsel %vm693, %v687, %v704
      %v706 = vsel %vm692, %v703, %v705
      %v707 = vshll.u32 %v667, 8
      %v708 = vmul.u32.u64.compose %v707, %v706
      %v709 = vextract.low.u32 %v708
      %v710 = vextract.high.u32 %v708
      %v711 = vmul.u32.u64.compose %v707, %v702
      %v712 = vextract.low.u32 %v711
      %v713 = vextract.high.u32 %v711
      %v714 = vmul.u32 %v707, %v698
      %v715 = vadd.s32 %v710, %v712
      %vm716 = vc.u32 %v710, %v712
      %v717 = vadd.s32 %v713, 1
      %v718 = vsel %vm716, %v717, %v713
      %v719 = vadd.s32 %v714, %v718
      %v720 = vadd.s32 %v719, 536870912
      %v721 = vshrl.u32 %v720, 30
      %v722 = vshll.u32 %v721, 30
      %v723 = vsub.s32 %v719, %v722
      %vm724 = vcmp.lt.s32.totalorder %v723, 0
      %v725 = vsub.s32 0, %v723
      %v726 = vsel %vm724, %v725, %v723
      %v727 = vclz %v726
      %v728 = vsub.s32 %v727, 2
      %vm729 = vcmp.gt.s32.totalorder 0, %v728
      %v730 = vsel %vm729, 0, %v728
      %v731 = vsub.s32 32, %v730
      %v732 = vshll.u32 %v723, %v730
      %v733 = vshrl.u32 %v715, %v731
      %v734 = vor.u32 %v732, %v733
      %v735 = vsub.s32 4294967266, %v730
      %v736 = vadd.s32 %v735, 127
      %v737 = vshll.u32 %v736, 23
      %v738 = vor.u32 4788187, %v737
      %v739 = vand.u32 2147483647, %v738
      %v741 = vcvt.s32.f32 %v734
      %v742 = vmul.f32 %v741, %v739
      %v743 = vxor.u32 %v742, 2147483648
      %v744 = vsel %vm661, %v743, %v742
      %v745 = vsub.s32 4, %v721
      %v746 = vsel %vm661, %v745, %v721
      %v747 = vsel %vm660, %v655, %v744
      %v748 = vsel %vm660, 0, %v746
      %v749 = vcosq.f32.pop %v747
      %v750 = vsinq.f32.pop %v747
      %vm751 = vweird.f32 %v655
      %v752 = vand.u32 %v748, 3
      %vm753 = vcmp.lt.s32.totalorder %v752, 2
      %vm754 = vcmp.eq.s32.totalorder %v752, 0
      %v755 = vxor.u32 %v750, 2147483648
      %v756 = vsel %vm754, %v749, %v755
      %vm757 = vcmp.eq.s32.totalorder %v752, 2
      %v758 = vxor.u32 %v749, 2147483648
      %v759 = vsel %vm757, %v758, %v750
      %v760 = vsel %vm753, %v756, %v759
      %v761 = vsel %vm751, nan, %v760
      %v762 = vand.u32 2147483647, %v657
      %vm763 = vcmp.le.f32.partialorder %v762, 0.7853982
      %vm764 = vcmp.lt.s32.totalorder %v657, 0
      %v765 = vand.u32 %v657, 2139095040
      %v766 = vshrl.u32 %v765, 23
      %v767 = vsub.s32 %v766, 127
      %v768 = vand.u32 2147483647, %v657
      %v769 = vand.u32 %v768, 8388607
      %v770 = vor.u32 %v769, 8388608
      %v771 = vsub.s32 0, %v770
      %v772 = vadd.s32 %v767, 1
      %vm773 = vcmp.gt.s32.totalorder %v772, 0
      %v774 = vsel %vm773, %v772, 0
      %v775 = vshrl.u32 %v774, 5
      %v776 = vand.u32 %v774, 31
      %v777 = vsub.s32 32, %v776
      %v778 = vshrl.u32 683565275, %v777
      %v779 = vshll.u32 683565275, %v776
      %v780 = vshrl.u32 2475754826, %v777
      %v781 = vor.u32 %v779, %v780
      %v782 = vshll.u32 2475754826, %v776
      %v783 = vshrl.u32 2131351028, %v777
      %v784 = vor.u32 %v782, %v783
      %v785 = vshll.u32 2131351028, %v776
      %v786 = vshrl.u32 2102212464, %v777
      %v787 = vor.u32 %v785, %v786
      %v788 = vshll.u32 2102212464, %v776
      %v789 = vshrl.u32 920167782, %v777
      %v790 = vor.u32 %v788, %v789
      %v791 = vshll.u32 920167782, %v776
      %v792 = vshrl.u32 1326507024, %v777
      %v793 = vor.u32 %v791, %v792
      %vm794 = vcmp.lt.s32.totalorder %v775, 1
      %vm795 = vcmp.lt.s32.totalorder %v775, 2
      %vm796 = vcmp.lt.s32.totalorder %v775, 3
      %vm797 = vcmp.lt.s32.totalorder %v775, 4
      %v798 = vsel %vm794, %v778, %v781
      %v799 = vsel %vm797, %v787, 2102212464
      %v800 = vsel %vm796, %v784, %v799
      %v801 = vsel %vm795, %v798, %v800
      %v802 = vsel %vm794, %v781, %v784
      %v803 = vsel %vm797, %v790, 920167782
      %v804 = vsel %vm796, %v787, %v803
      %v805 = vsel %vm795, %v802, %v804
      %v806 = vsel %vm794, %v784, %v787
      %v807 = vsel %vm797, %v793, 1326507024
      %v808 = vsel %vm796, %v790, %v807
      %v809 = vsel %vm795, %v806, %v808
      %v810 = vshll.u32 %v770, 8
      %v811 = vmul.u32.u64.compose %v810, %v809
      %v812 = vextract.low.u32 %v811
      %v813 = vextract.high.u32 %v811
      %v814 = vmul.u32.u64.compose %v810, %v805
      %v815 = vextract.low.u32 %v814
      %v816 = vextract.high.u32 %v814
      %v817 = vmul.u32 %v810, %v801
      %v818 = vadd.s32 %v813, %v815
      %vm819 = vc.u32 %v813, %v815
      %v820 = vadd.s32 %v816, 1
      %v821 = vsel %vm819, %v820, %v816
      %v822 = vadd.s32 %v817, %v821
      %v823 = vadd.s32 %v822, 536870912
      %v824 = vshrl.u32 %v823, 30
      %v825 = vshll.u32 %v824, 30
      %v826 = vsub.s32 %v822, %v825
      %vm827 = vcmp.lt.s32.totalorder %v826, 0
      %v828 = vsub.s32 0, %v826
      %v829 = vsel %vm827, %v828, %v826
      %v830 = vclz %v829
      %v831 = vsub.s32 %v830, 2
      %vm832 = vcmp.gt.s32.totalorder 0, %v831
      %v833 = vsel %vm832, 0, %v831
      %v834 = vsub.s32 32, %v833
      %v835 = vshll.u32 %v826, %v833
      %v836 = vshrl.u32 %v818, %v834
      %v837 = vor.u32 %v835, %v836
      %v838 = vsub.s32 4294967266, %v833
      %v839 = vadd.s32 %v838, 127
      %v840 = vshll.u32 %v839, 23
      %v841 = vor.u32 4788187, %v840
      %v842 = vand.u32 2147483647, %v841
      %v844 = vcvt.s32.f32 %v837
      %v845 = vmul.f32 %v844, %v842
      %v846 = vxor.u32 %v845, 2147483648
      %v847 = vsel %vm764, %v846, %v845
      %v848 = vsub.s32 4, %v824
      %v849 = vsel %vm764, %v848, %v824
      %v850 = vsel %vm763, %v657, %v847
      %v851 = vsel %vm763, 0, %v849
      %v852 = vcosq.f32.pop %v850
      %v853 = vsinq.f32.pop %v850
      %vm854 = vweird.f32 %v657
      %v855 = vand.u32 %v851, 3
      %vm856 = vcmp.lt.s32.totalorder %v855, 2
      %vm857 = vcmp.eq.s32.totalorder %v855, 0
      %v858 = vxor.u32 %v853, 2147483648
      %v859 = vsel %vm857, %v852, %v858
      %vm860 = vcmp.eq.s32.totalorder %v855, 2
      %v861 = vxor.u32 %v852, 2147483648
      %v862 = vsel %vm860, %v861, %v853
      %v863 = vsel %vm856, %v859, %v862
      %v864 = vsel %vm854, nan, %v863
      %v865 = vmul.f32 %v649, %v761
      %v866 = vmul.f32 %v651, %v864
      %v867 = vand.u32 2147483647, %v655
      %vm868 = vcmp.le.f32.partialorder %v867, 0.7853982
      %vm869 = vcmp.lt.s32.totalorder %v655, 0
      %v870 = vand.u32 %v655, 2139095040
      %v871 = vshrl.u32 %v870, 23
      %v872 = vsub.s32 %v871, 127
      %v873 = vand.u32 2147483647, %v655
      %v874 = vand.u32 %v873, 8388607
      %v875 = vor.u32 %v874, 8388608
      %v876 = vsub.s32 0, %v875
      %v877 = vadd.s32 %v872, 1
      %vm878 = vcmp.gt.s32.totalorder %v877, 0
      %v879 = vsel %vm878, %v877, 0
      %v880 = vshrl.u32 %v879, 5
      %v881 = vand.u32 %v879, 31
      %v882 = vsub.s32 32, %v881
      %v883 = vshrl.u32 683565275, %v882
      %v884 = vshll.u32 683565275, %v881
      %v885 = vshrl.u32 2475754826, %v882
      %v886 = vor.u32 %v884, %v885
      %v887 = vshll.u32 2475754826, %v881
      %v888 = vshrl.u32 2131351028, %v882
      %v889 = vor.u32 %v887, %v888
      %v890 = vshll.u32 2131351028, %v881
      %v891 = vshrl.u32 2102212464, %v882
      %v892 = vor.u32 %v890, %v891
      %v893 = vshll.u32 2102212464, %v881
      %v894 = vshrl.u32 920167782, %v882
      %v895 = vor.u32 %v893, %v894
      %v896 = vshll.u32 920167782, %v881
      %v897 = vshrl.u32 1326507024, %v882
      %v898 = vor.u32 %v896, %v897
      %vm899 = vcmp.lt.s32.totalorder %v880, 1
      %vm900 = vcmp.lt.s32.totalorder %v880, 2
      %vm901 = vcmp.lt.s32.totalorder %v880, 3
      %vm902 = vcmp.lt.s32.totalorder %v880, 4
      %v903 = vsel %vm899, %v883, %v886
      %v904 = vsel %vm902, %v892, 2102212464
      %v905 = vsel %vm901, %v889, %v904
      %v906 = vsel %vm900, %v903, %v905
      %v907 = vsel %vm899, %v886, %v889
      %v908 = vsel %vm902, %v895, 920167782
      %v909 = vsel %vm901, %v892, %v908
      %v910 = vsel %vm900, %v907, %v909
      %v911 = vsel %vm899, %v889, %v892
      %v912 = vsel %vm902, %v898, 1326507024
      %v913 = vsel %vm901, %v895, %v912
      %v914 = vsel %vm900, %v911, %v913
      %v915 = vshll.u32 %v875, 8
      %v916 = vmul.u32.u64.compose %v915, %v914
      %v917 = vextract.low.u32 %v916
      %v918 = vextract.high.u32 %v916
      %v919 = vmul.u32.u64.compose %v915, %v910
      %v920 = vextract.low.u32 %v919
      %v921 = vextract.high.u32 %v919
      %v922 = vmul.u32 %v915, %v906
      %v923 = vadd.s32 %v918, %v920
      %vm924 = vc.u32 %v918, %v920
      %v925 = vadd.s32 %v921, 1
      %v926 = vsel %vm924, %v925, %v921
      %v927 = vadd.s32 %v922, %v926
      %v928 = vadd.s32 %v927, 536870912
      %v929 = vshrl.u32 %v928, 30
      %v930 = vshll.u32 %v929, 30
      %v931 = vsub.s32 %v927, %v930
      %vm932 = vcmp.lt.s32.totalorder %v931, 0
      %v933 = vsub.s32 0, %v931
      %v934 = vsel %vm932, %v933, %v931
      %v935 = vclz %v934
      %v936 = vsub.s32 %v935, 2
      %vm937 = vcmp.gt.s32.totalorder 0, %v936
      %v938 = vsel %vm937, 0, %v936
      %v939 = vsub.s32 32, %v938
      %v940 = vshll.u32 %v931, %v938
      %v941 = vshrl.u32 %v923, %v939
      %v942 = vor.u32 %v940, %v941
      %v943 = vsub.s32 4294967266, %v938
      %v944 = vadd.s32 %v943, 127
      %v945 = vshll.u32 %v944, 23
      %v946 = vor.u32 4788187, %v945
      %v947 = vand.u32 2147483647, %v946
      %v949 = vcvt.s32.f32 %v942
      %v950 = vmul.f32 %v949, %v947
      %v951 = vxor.u32 %v950, 2147483648
      %v952 = vsel %vm869, %v951, %v950
      %v953 = vsub.s32 4, %v929
      %v954 = vsel %vm869, %v953, %v929
      %v955 = vsel %vm868, %v655, %v952
      %v956 = vsel %vm868, 0, %v954
      %v957 = vcosq.f32.pop %v955
      %v958 = vsinq.f32.pop %v955
      %vm959 = vweird.f32 %v655
      %v960 = vadd.s32 %v956, 3
      %v961 = vand.u32 %v960, 3
      %vm962 = vcmp.lt.s32.totalorder %v961, 2
      %vm963 = vcmp.eq.s32.totalorder %v961, 0
      %v964 = vxor.u32 %v958, 2147483648
      %v965 = vsel %vm963, %v957, %v964
      %vm966 = vcmp.eq.s32.totalorder %v961, 2
      %v967 = vxor.u32 %v957, 2147483648
      %v968 = vsel %vm966, %v967, %v958
      %v969 = vsel %vm962, %v965, %v968
      %v970 = vsel %vm959, nan, %v969
      %v971 = vand.u32 2147483647, %v657
      %vm972 = vcmp.le.f32.partialorder %v971, 0.7853982
      %vm973 = vcmp.lt.s32.totalorder %v657, 0
      %v974 = vand.u32 %v657, 2139095040
      %v975 = vshrl.u32 %v974, 23
      %v976 = vsub.s32 %v975, 127
      %v977 = vand.u32 2147483647, %v657
      %v978 = vand.u32 %v977, 8388607
      %v979 = vor.u32 %v978, 8388608
      %v980 = vsub.s32 0, %v979
      %v981 = vadd.s32 %v976, 1
      %vm982 = vcmp.gt.s32.totalorder %v981, 0
      %v983 = vsel %vm982, %v981, 0
      %v984 = vshrl.u32 %v983, 5
      %v985 = vand.u32 %v983, 31
      %v986 = vsub.s32 32, %v985
      %v987 = vshrl.u32 683565275, %v986
      %v988 = vshll.u32 683565275, %v985
      %v989 = vshrl.u32 2475754826, %v986
      %v990 = vor.u32 %v988, %v989
      %v991 = vshll.u32 2475754826, %v985
      %v992 = vshrl.u32 2131351028, %v986
      %v993 = vor.u32 %v991, %v992
      %v994 = vshll.u32 2131351028, %v985
      %v995 = vshrl.u32 2102212464, %v986
      %v996 = vor.u32 %v994, %v995
      %v997 = vshll.u32 2102212464, %v985
      %v998 = vshrl.u32 920167782, %v986
      %v999 = vor.u32 %v997, %v998
      %v1000 = vshll.u32 920167782, %v985
      %v1001 = vshrl.u32 1326507024, %v986
      %v1002 = vor.u32 %v1000, %v1001
      %vm1003 = vcmp.lt.s32.totalorder %v984, 1
      %vm1004 = vcmp.lt.s32.totalorder %v984, 2
      %vm1005 = vcmp.lt.s32.totalorder %v984, 3
      %vm1006 = vcmp.lt.s32.totalorder %v984, 4
      %v1007 = vsel %vm1003, %v987, %v990
      %v1008 = vsel %vm1006, %v996, 2102212464
      %v1009 = vsel %vm1005, %v993, %v1008
      %v1010 = vsel %vm1004, %v1007, %v1009
      %v1011 = vsel %vm1003, %v990, %v993
      %v1012 = vsel %vm1006, %v999, 920167782
      %v1013 = vsel %vm1005, %v996, %v1012
      %v1014 = vsel %vm1004, %v1011, %v1013
      %v1015 = vsel %vm1003, %v993, %v996
      %v1016 = vsel %vm1006, %v1002, 1326507024
      %v1017 = vsel %vm1005, %v999, %v1016
      %v1018 = vsel %vm1004, %v1015, %v1017
      %v1019 = vshll.u32 %v979, 8
      %v1020 = vmul.u32.u64.compose %v1019, %v1018
      %v1021 = vextract.low.u32 %v1020
      %v1022 = vextract.high.u32 %v1020
      %v1023 = vmul.u32.u64.compose %v1019, %v1014
      %v1024 = vextract.low.u32 %v1023
      %v1025 = vextract.high.u32 %v1023
      %v1026 = vmul.u32 %v1019, %v1010
      %v1027 = vadd.s32 %v1022, %v1024
      %vm1028 = vc.u32 %v1022, %v1024
      %v1029 = vadd.s32 %v1025, 1
      %v1030 = vsel %vm1028, %v1029, %v1025
      %v1031 = vadd.s32 %v1026, %v1030
      %v1032 = vadd.s32 %v1031, 536870912
      %v1033 = vshrl.u32 %v1032, 30
      %v1034 = vshll.u32 %v1033, 30
      %v1035 = vsub.s32 %v1031, %v1034
      %vm1036 = vcmp.lt.s32.totalorder %v1035, 0
      %v1037 = vsub.s32 0, %v1035
      %v1038 = vsel %vm1036, %v1037, %v1035
      %v1039 = vclz %v1038
      %v1040 = vsub.s32 %v1039, 2
      %vm1041 = vcmp.gt.s32.totalorder 0, %v1040
      %v1042 = vsel %vm1041, 0, %v1040
      %v1043 = vsub.s32 32, %v1042
      %v1044 = vshll.u32 %v1035, %v1042
      %v1045 = vshrl.u32 %v1027, %v1043
      %v1046 = vor.u32 %v1044, %v1045
      %v1047 = vsub.s32 4294967266, %v1042
      %v1048 = vadd.s32 %v1047, 127
      %v1049 = vshll.u32 %v1048, 23
      %v1050 = vor.u32 4788187, %v1049
      %v1051 = vand.u32 2147483647, %v1050
      %v1053 = vcvt.s32.f32 %v1046
      %v1054 = vmul.f32 %v1053, %v1051
      %v1055 = vxor.u32 %v1054, 2147483648
      %v1056 = vsel %vm973, %v1055, %v1054
      %v1057 = vsub.s32 4, %v1033
      %v1058 = vsel %vm973, %v1057, %v1033
      %v1059 = vsel %vm972, %v657, %v1056
      %v1060 = vsel %vm972, 0, %v1058
      %v1061 = vcosq.f32.pop %v1059
      %v1062 = vsinq.f32.pop %v1059
      %vm1063 = vweird.f32 %v657
      %v1064 = vadd.s32 %v1060, 3
      %v1065 = vand.u32 %v1064, 3
      %vm1066 = vcmp.lt.s32.totalorder %v1065, 2
      %vm1067 = vcmp.eq.s32.totalorder %v1065, 0
      %v1068 = vxor.u32 %v1062, 2147483648
      %v1069 = vsel %vm1067, %v1061, %v1068
      %vm1070 = vcmp.eq.s32.totalorder %v1065, 2
      %v1071 = vxor.u32 %v1061, 2147483648
      %v1072 = vsel %vm1070, %v1071, %v1062
      %v1073 = vsel %vm1066, %v1069, %v1072
      %v1074 = vsel %vm1063, nan, %v1073
      %v1075 = vmul.f32 %v649, %v970
      %v1076 = vmul.f32 %v651, %v1074
      %v1078 = vcombine.high %v441, %v441
      %v1080 = vmul.f32 %v865, %v441
      %v1081 = vmul.f32 %v866, %v1078
      %v1083 = vcombine.high %v442, %v442
      %v1085 = vmul.f32 %v1075, %v442
      %v1086 = vmul.f32 %v1076, %v1083
      %v1087 = vsub.f32 %v1080, %v1085
      %v1088 = vsub.f32 %v1081, %v1086
      %v1089 = vmul.f32 %v865, %v442
      %v1090 = vmul.f32 %v866, %v1083
      %v1091 = vmul.f32 %v1075, %v441
      %v1092 = vmul.f32 %v1076, %v1078
      %v1093 = vadd.f32 %v1089, %v1091
      %v1094 = vadd.f32 %v1090, %v1092
      %v1097 = vcombine.low %v1087, %v1088
      %vm1099 = vcmask 1043456
      %vm1100 = vcmask 130052
      %vm1101 = vmor %vm1100, %vm1099
      %1102 = vst.msk [vmem:[%s429] sm:$0xff] %vm1101, %v1097
      %v1105 = vcombine.low %v1093, %v1094
      %1107 = vst.msk [vmem:[%s439] sm:$0xff] %vm1101, %v1105
      %s1108 = smul.u32 2, %s25
      %p1109 = scmp.lt.s32.totalorder %s24, 1
      %s1110 = scalar_select %p1109, %s24, 1
      %p1111 = scmp.lt.s32.totalorder %s1108, 1
      %s1112 = scalar_select %p1111, %s1108, 1
      %s1113 = smul.addr %s1110, 2
      %s1114 = sadd.s32 %s1112, %s1113
      %s1115 = smul.addr %s1114, 4
      %s1116 = scalar_lea.vmem %s7, %s1115
      %s1117 = smul.u32 2, %s25
      %p1118 = scmp.lt.s32.totalorder %s24, 1
      %s1119 = scalar_select %p1118, %s24, 1
      %p1120 = scmp.lt.s32.totalorder %s1117, 1
      %s1121 = scalar_select %p1120, %s1117, 1
      %s1122 = smul.addr %s1119, 2
      %s1123 = sadd.s32 %s1121, %s1122
      %s1124 = smul.addr %s1123, 4
      %s1125 = scalar_lea.vmem %s8, %s1124
      // Predicated region
      $region49: #{res_four4_forward.11} parent=47 // pred_check
        %p1126 = pneg %p220
      $region50: #{res_four4_forward.11} parent=47 // pred_check_branch
        %1128 = sbr.rel (%p1126) target = $region52
      $region51: #{res_four4_forward.11} parent=47 // pred_region
        %s1129 = smul.u32 2, %s25
      $region52: #{res_four4_forward.11} parent=47 // pred_fallthru
        _
      // Predicated region
      $region53: #{res_four4_forward.11} parent=47 // pred_check
        %p1130 = pneg %p248
      $region54: #{res_four4_forward.11} parent=47 // pred_check_branch
        %1132 = sbr.rel (%p1130) target = $region56
      $region55: #{res_four4_forward.11} parent=47 // pred_region
        %s1133 = smul.u32 2, %s25
      $region56: #{res_four4_forward.11} parent=47 // pred_fallthru
        _
    $region48: #{res_four4_forward.11} parent=5 // pred_fallthru
      _
    %p1134 = scmp.le.s32.totalorder 2, %s15
    // Predicated region
    $region57: #{res_four4_forward.11} parent=5 // pred_check
      %p1135 = pneg %p1134
    $region58: #{res_four4_forward.11} parent=5 // pred_check_branch
      %1137 = sbr.rel (%p1135) target = $region60
    $region59: #{res_four4_forward.11} parent=5 // pred_region
      %s1138 = ssub.s32 %s15, 2
      // Predicated region
      $region61: #{res_four4_forward.11} parent=59 // pred_check
        %p1139 = pneg %p226
      $region62: #{res_four4_forward.11} parent=59 // pred_check_branch
        %1141 = sbr.rel (%p1139) target = $region64
      $region63: #{res_four4_forward.11} parent=59 // pred_region
        %s1142 = smul.u32 2, %s27
        %p1143 = scmp.lt.s32.totalorder %s26, 1
        %s1144 = scalar_select %p1143, %s26, 1
        %p1145 = scmp.lt.s32.totalorder %s1142, 1
        %s1146 = scalar_select %p1145, %s1142, 1
        %s1147 = smul.addr %s1144, 2
        %s1148 = sadd.s32 %s1146, %s1147
        %s1149 = smul.addr %s1148, 4
        %s1150 = scalar_lea.vmem %s7, %s1149
      $region64: #{res_four4_forward.11} parent=59 // pred_fallthru
        _
      // Predicated region
      $region65: #{res_four4_forward.11} parent=59 // pred_check
        %p1151 = pneg %p254
      $region66: #{res_four4_forward.11} parent=59 // pred_check_branch
        %1153 = sbr.rel (%p1151) target = $region68
      $region67: #{res_four4_forward.11} parent=59 // pred_region
        %s1154 = smul.u32 2, %s27
        %p1155 = scmp.lt.s32.totalorder %s26, 1
        %s1156 = scalar_select %p1155, %s26, 1
        %p1157 = scmp.lt.s32.totalorder %s1154, 1
        %s1158 = scalar_select %p1157, %s1154, 1
        %s1159 = smul.addr %s1156, 2
        %s1160 = sadd.s32 %s1158, %s1159
        %s1161 = smul.addr %s1160, 4
        %s1162 = scalar_lea.vmem %s8, %s1161
      $region68: #{res_four4_forward.11} parent=59 // pred_fallthru
        _
    $region60: #{res_four4_forward.11} parent=5 // pred_fallthru
      _
  $region6: #{res_four4_forward.11} parent=0 // loop_footer
    %s19 = sadd.s32 1, %s15
  $region7: #{res_four4_forward.11} parent=0 // loop_footer_branch
    %14 = sbr.rel target = $region3
  $region8: #{res_four4_forward.11} parent=0 // loop_exit
    _

// kernel: res_four4_forward.13
$region0: #{res_four4_forward.13}
  #allocation0 [shape = 'u32[]', space=smem, size = 0x4, offset = 0x4, fixed_abs, tag = 'smem constant byte address 0x4 - core index']
  #allocation1 [shape = 'u32[144,128]{1,0:T(1,128)}', space=vmem, size = 0x12000, scoped, tag = 'internal scratch']
  %s0 = inlined_call_operand.vmem [shape: f32[2,4,256], index: 0, kind: input, shape index: {}]
  %s1 = inlined_call_operand.vmem [shape: f32[4,1], index: 1, kind: input, shape index: {}]
  %s2 = inlined_call_operand.vmem [shape: f32[4,1], index: 2, kind: input, shape index: {}]
  %s3 = inlined_call_operand.vmem [shape: f32[4,4], index: 3, kind: input, shape index: {}]
  %s4 = inlined_call_operand.vmem [shape: f32[2,4,256], index: 4, kind: output, shape index: {}]
  %s5 = sld [smem:[#allocation0]]
  $region49: #{res_four4_forward.13} parent=0
    _
  %s7 = ssub.s32 1, %s5
  %s8 = scalar_select 0, %s7, %s5
  loop: start=0, step=1, limit=4
  $region2: #{res_four4_forward.13} parent=0 // loop_pre_header
    _
  $region3: #{res_four4_forward.13} parent=0 // loop_header
    %s10 = sphi 0, %s14
    %p11 = scmp.ge.s32.totalorder %s10, 4
    %s20 = sphi 0, %s22
    %s23 = sphi 0, %s20
    %s24 = sphi 0, %s23
    %s40 = sphi 0, %s24
    %s44 = sphi 0, %s44
    %s46 = sphi 0, %s44
    %s47 = sphi 0, %s46
    %s61 = sphi 0, %s47
    %s65 = sphi 0, %s65
    %s67 = sphi 0, %s65
    %s68 = sphi 0, %s67
    %s82 = sphi 0, %s68
    %s86 = sphi 0, %s86
    %s88 = sphi 0, %s86
    %s89 = sphi 0, %s88
    %s103 = sphi 0, %s89
    %s109 = sphi 0, %s111
    %s112 = sphi 0, %s109
    %s113 = sphi 0, %s112
    %s129 = sphi 0, %s113
  $region4: #{res_four4_forward.13} parent=0 // loop_header_branch
    %13 = sbr.rel (%p11) target = $region8
  $region5: #{res_four4_forward.13} parent=0 // loop_body
    %s15 = ssub.s32 %s10, 1
    %s16 = ssub.s32 %s10, 2
    %s17 = sadd.s32 %s10, 1
    %s18 = ssub.s32 %s10, %s17
    %p19 = scmp.eq.s32.totalorder %s18, 0
    %s21 = sadd.s32 %s20, 1
    %s22 = scalar_select %p19, %s20, %s21
    %p25 = pneg %p19
    %p26 = scmp.eq.s32.totalorder %s10, 1
    %p27 = por %p25, %p26
    %p28 = scmp.ne.s32.totalorder %s20, %s23
    %p29 = scmp.eq.s32.totalorder %s10, 0
    %p30 = por %p28, %p29
    %p31 = scmp.ne.s32.totalorder %s20, %s23
    %p32 = scmp.eq.s32.totalorder %s15, 1
    %p33 = por %p31, %p32
    %p34 = scmp.ne.s32.totalorder %s23, %s24
    %p35 = scmp.eq.s32.totalorder %s15, 0
    %p36 = por %p34, %p35
    %p37 = scmp.ne.s32.totalorder %s23, %s24
    %p38 = scmp.eq.s32.totalorder %s16, 1
    %p39 = por %p37, %p38
    %p41 = scmp.ne.s32.totalorder %s24, %s40
    %p42 = scmp.eq.s32.totalorder %s16, 0
    %p43 = por %p41, %p42
    %s45 = sadd.s32 %s44, 1
    %p48 = scmp.eq.s32.totalorder %s10, 1
    %p49 = scmp.ne.s32.totalorder %s44, %s46
    %p50 = scmp.eq.s32.totalorder %s10, 0
    %p51 = por %p49, %p50
    %p52 = scmp.ne.s32.totalorder %s44, %s46
    %p53 = scmp.eq.s32.totalorder %s15, 1
    %p54 = por %p52, %p53
    %p55 = scmp.ne.s32.totalorder %s46, %s47
    %p56 = scmp.eq.s32.totalorder %s15, 0
    %p57 = por %p55, %p56
    %p58 = scmp.ne.s32.totalorder %s46, %s47
    %p59 = scmp.eq.s32.totalorder %s16, 1
    %p60 = por %p58, %p59
    %p62 = scmp.ne.s32.totalorder %s47, %s61
    %p63 = scmp.eq.s32.totalorder %s16, 0
    %p64 = por %p62, %p63
    %s66 = sadd.s32 %s65, 1
    %p69 = scmp.eq.s32.totalorder %s10, 1
    %p70 = scmp.ne.s32.totalorder %s65, %s67
    %p71 = scmp.eq.s32.totalorder %s10, 0
    %p72 = por %p70, %p71
    %p73 = scmp.ne.s32.totalorder %s65, %s67
    %p74 = scmp.eq.s32.totalorder %s15, 1
    %p75 = por %p73, %p74
    %p76 = scmp.ne.s32.totalorder %s67, %s68
    %p77 = scmp.eq.s32.totalorder %s15, 0
    %p78 = por %p76, %p77
    %p79 = scmp.ne.s32.totalorder %s67, %s68
    %p80 = scmp.eq.s32.totalorder %s16, 1
    %p81 = por %p79, %p80
    %p83 = scmp.ne.s32.totalorder %s68, %s82
    %p84 = scmp.eq.s32.totalorder %s16, 0
    %p85 = por %p83, %p84
    %s87 = sadd.s32 %s86, 1
    %p90 = scmp.eq.s32.totalorder %s10, 1
    %p91 = scmp.ne.s32.totalorder %s86, %s88
    %p92 = scmp.eq.s32.totalorder %s10, 0
    %p93 = por %p91, %p92
    %p94 = scmp.ne.s32.totalorder %s86, %s88
    %p95 = scmp.eq.s32.totalorder %s15, 1
    %p96 = por %p94, %p95
    %p97 = scmp.ne.s32.totalorder %s88, %s89
    %p98 = scmp.eq.s32.totalorder %s15, 0
    %p99 = por %p97, %p98
    %p100 = scmp.ne.s32.totalorder %s88, %s89
    %p101 = scmp.eq.s32.totalorder %s16, 1
    %p102 = por %p100, %p101
    %p104 = scmp.ne.s32.totalorder %s89, %s103
    %p105 = scmp.eq.s32.totalorder %s16, 0
    %p106 = por %p104, %p105
    %s107 = ssub.s32 %s10, %s17
    %p108 = scmp.eq.s32.totalorder %s107, 0
    %s110 = sadd.s32 %s109, 1
    %s111 = scalar_select %p108, %s109, %s110
    %p114 = pneg %p108
    %p115 = scmp.eq.s32.totalorder %s10, 1
    %p116 = por %p114, %p115
    %p117 = scmp.ne.s32.totalorder %s109, %s112
    %p118 = scmp.eq.s32.totalorder %s10, 0
    %p119 = por %p117, %p118
    %p120 = scmp.ne.s32.totalorder %s109, %s112
    %p121 = scmp.eq.s32.totalorder %s15, 1
    %p122 = por %p120, %p121
    %p123 = scmp.ne.s32.totalorder %s112, %s113
    %p124 = scmp.eq.s32.totalorder %s15, 0
    %p125 = por %p123, %p124
    %p126 = scmp.ne.s32.totalorder %s112, %s113
    %p127 = scmp.eq.s32.totalorder %s16, 1
    %p128 = por %p126, %p127
    %p130 = scmp.ne.s32.totalorder %s113, %s129
    %p131 = scmp.eq.s32.totalorder %s16, 0
    %p132 = por %p130, %p131
    %p133 = scmp.le.s32.totalorder 1, %s10
    %p134 = scmp.lt.s32.totalorder %s10, 3
    %p135 = pnand %p133, %p134
    %p136 = pneg %p135
    // Predicated region
    $region9: #{res_four4_forward.13} parent=5 // pred_check
      _
    $region10: #{res_four4_forward.13} parent=5 // pred_check_branch
      %138 = sbr.rel (%p135) target = $region12
    $region11: #{res_four4_forward.13} parent=5 // pred_region
      %s139 = ssub.s32 %s10, 1
      // Predicated region
      $region13: #{res_four4_forward.13} parent=11 // pred_check
        %p140 = pneg %p57
      $region14: #{res_four4_forward.13} parent=11 // pred_check_branch
        %142 = sbr.rel (%p140) target = $region16
      $region15: #{res_four4_forward.13} parent=11 // pred_region
        _
      $region16: #{res_four4_forward.13} parent=11 // pred_fallthru
        _
      // Predicated region
      $region17: #{res_four4_forward.13} parent=11 // pred_check
        %p143 = pneg %p78
      $region18: #{res_four4_forward.13} parent=11 // pred_check_branch
        %145 = sbr.rel (%p143) target = $region20
      $region19: #{res_four4_forward.13} parent=11 // pred_region
        _
      $region20: #{res_four4_forward.13} parent=11 // pred_fallthru
        _
      // Predicated region
      $region21: #{res_four4_forward.13} parent=11 // pred_check
        %p146 = pneg %p99
      $region22: #{res_four4_forward.13} parent=11 // pred_check_branch
        %148 = sbr.rel (%p146) target = $region24
      $region23: #{res_four4_forward.13} parent=11 // pred_region
        _
      $region24: #{res_four4_forward.13} parent=11 // pred_fallthru
        _
    $region12: #{res_four4_forward.13} parent=5 // pred_fallthru
      _
    %p149 = scmp.lt.s32.totalorder %s10, 2
    // Predicated region
    $region25: #{res_four4_forward.13} parent=5 // pred_check
      %p150 = pneg %p149
    $region26: #{res_four4_forward.13} parent=5 // pred_check_branch
      %152 = sbr.rel (%p150) target = $region28
    $region27: #{res_four4_forward.13} parent=5 // pred_region
      // Predicated region
      $region29: #{res_four4_forward.13} parent=27 // pred_check
        %p153 = pneg %p30
      $region30: #{res_four4_forward.13} parent=27 // pred_check_branch
        %155 = sbr.rel (%p153) target = $region32
      $region31: #{res_four4_forward.13} parent=27 // pred_region
        %p156 = scmp.lt.s32.totalorder %s10, 1
        %s157 = scalar_select %p156, %s10, 1
        %s158 = smul.addr %s157, 2
        %s159 = smul.addr %s158, 4
        %s160 = scalar_lea.vmem %s0, %s159
      $region32: #{res_four4_forward.13} parent=27 // pred_fallthru
        _
    $region28: #{res_four4_forward.13} parent=5 // pred_fallthru
      _
    %p161 = scmp.le.s32.totalorder 1, %s10
    %p162 = scmp.lt.s32.totalorder %s10, 3
    %p163 = pnand %p161, %p162
    %p164 = pneg %p163
    // Predicated region
    $region33: #{res_four4_forward.13} parent=5 // pred_check
      _
    $region34: #{res_four4_forward.13} parent=5 // pred_check_branch
      %166 = sbr.rel (%p163) target = $region36
    $region35: #{res_four4_forward.13} parent=5 // pred_region
      %s167 = ssub.s32 %s10, 1
      %p168 = scmp.lt.s32.totalorder %s15, 1
      %s169 = scalar_select %p168, %s15, 1
      %s170 = smul.addr %s169, 2
      %s171 = smul.addr %s170, 4
      %s172 = scalar_lea.vmem %s0, %s171
      %p173 = pneg %p36
      %p174 = pneg %p33
      %p175 = pneg %p57
      %p176 = pneg %p54
      %p177 = pneg %p78
      %p178 = pneg %p75
      %p179 = pneg %p99
      %p180 = pneg %p96
      %p181 = pneg %p125
      %p182 = pneg %p122
      %p183 = scmp.lt.s32.totalorder %s15, 1
      %s184 = scalar_select %p183, %s15, 1
      %s185 = smul.addr %s184, 2
      %s186 = smul.addr %s185, 4
      %s187 = scalar_lea.vmem %s4, %s186
      %p188 = scmp.lt.s32.totalorder %s15, 1
      %s189 = scalar_select %p188, %s15, 1
      %s190 = smul.addr %s189, 2
      %s191 = smul.addr %s190, 4
      %s192 = scalar_lea.vmem %s0, %s191
      %p193 = scmp.lt.s32.totalorder %s15, 1
      %s194 = scalar_select %p193, %s15, 1
      %s195 = smul.addr %s194, 2
      %s196 = smul.addr %s195, 4
      %s197 = scalar_lea.vmem %s4, %s196
      %v198 = vld [vmem:[%s192] sm:$0xff]
      %v199 = vld [vmem:[%s3] sm:$0xf]
      %v201 = vcombine.high %v198, %v198
      %vm202 = vcmask 31744
      %v204 = vsel %vm202, %v199, 0
      %vm206 = vcmask 1043456
      %v207 = vsel %vm206, %v198, 0
      %v209 = vsel %vm206, %v201, 0
      %211 = vmatprep.subr.mxu0 0.0
      %212 = vmatpush1.msra.mxu0 0.0
      %213 = vmatprep.subr.mxu0 0.0
      %214 = vmatpush1.msra.mxu0 0.0
      %215 = vmatprep.subr.mxu0 0.0
      %216 = vmatpush1.msra.mxu0 0.0
      %217 = vmatprep.subr.mxu0 0.0
      %218 = vmatpush1.msra.mxu0 0.0
      %219 = vmatprep.subr.mxu0 0.0
      %220 = vmatpush1.msra.mxu0 0.0
      %221 = vmatprep.subr.mxu0 0.0
      %222 = vmatpush1.msra.mxu0 0.0
      %223 = vmatprep.subr.mxu0 0.0
      %224 = vmatpush1.msra.mxu0 0.0
      %225 = vmatprep.subr.mxu0 0.0
      %226 = vmatpush1.msra.mxu0 0.0
      %227 = vmatprep.subr.mxu0 0.0
      %228 = vmatpush1.msra.mxu0 0.0
      %229 = vmatprep.subr.mxu0 0.0
      %230 = vmatpush1.msra.mxu0 0.0
      %231 = vmatprep.subr.mxu0 0.0
      %232 = vmatpush1.msra.mxu0 0.0
      %233 = vmatprep.subr.mxu0 0.0
      %234 = vmatpush1.msra.mxu0 0.0
      %235 = vmatprep.subr.mxu0 0.0
      %236 = vmatpush1.msra.mxu0 0.0
      %237 = vmatprep.subr.mxu0 0.0
      %238 = vmatpush1.msra.mxu0 0.0
      %239 = vmatprep.subr.mxu0 0.0
      %240 = vmatpush1.msra.mxu0 0.0
      %241 = vmatprep.subr.mxu0 %v209
      %242 = vmatpush1.msra.mxu0 %v207
      %243 = vmatprep.subr.mxu0 0.0
      %244 = vmatpush2.msra.mxu0 0.0
      %245 = vmatprep.subr.mxu0 0.0
      %246 = vmatpush2.msra.mxu0 0.0
      %247 = vmatprep.subr.mxu0 0.0
      %248 = vmatpush2.msra.mxu0 0.0
      %249 = vmatprep.subr.mxu0 0.0
      %250 = vmatpush2.msra.mxu0 0.0
      %251 = vmatprep.subr.mxu0 0.0
      %252 = vmatpush2.msra.mxu0 0.0
      %253 = vmatprep.subr.mxu0 0.0
      %254 = vmatpush2.msra.mxu0 0.0
      %255 = vmatprep.subr.mxu0 0.0
      %256 = vmatpush2.msra.mxu0 0.0
      %257 = vmatprep.subr.mxu0 0.0
      %258 = vmatpush2.msra.mxu0 0.0
      %259 = vmatprep.subr.mxu0 0.0
      %260 = vmatpush2.msra.mxu0 0.0
      %261 = vmatprep.subr.mxu0 0.0
      %262 = vmatpush2.msra.mxu0 0.0
      %263 = vmatprep.subr.mxu0 0.0
      %264 = vmatpush2.msra.mxu0 0.0
      %265 = vmatprep.subr.mxu0 0.0
      %266 = vmatpush2.msra.mxu0 0.0
      %267 = vmatprep.subr.mxu0 0.0
      %268 = vmatpush2.msra.mxu0 0.0
      %269 = vmatprep.subr.mxu0 0.0
      %270 = vmatpush2.msra.mxu0 0.0
      %271 = vmatprep.subr.mxu0 0.0
      %272 = vmatpush2.msra.mxu0 0.0
      %273 = vmatprep.subr.mxu0 0.0
      %274 = vmatpush2.msra.mxu0 0.0
      %275 = vmatprep.mubr.f32.mxu0 0.0
      %276 = vmatmul.mubr.f32.gmra.mxu0 %v204
      %v277 = vpop.f32.mrf.mxu0
      %v278 = vadd.f32 0.0, %v277
      %v279 = vpop.f32.mrf.mxu0
      %v280 = vadd.f32 0.0, %v279
      %281 = vdwg.mxu0
      %v282 = vsel %vm206, %v278, 0.0
      %v283 = vsel %vm206, %v280, 0.0
      %v284 = vadd.f32 %v282, %v283
      %285 = vadd.xlane.f32.xlu0 %v284
      %v286 = vpop.xlane.xlu0 %285
      %v287 = vmul.f32 %v286, 0.00390625
      %v290 = vunpack.c.l.s4 839922192
      %v291 = vunpack.c.0.s8 %v290
      %v292 = vlaneseq
      %v293 = vshrl.u32 %v292, 7
      %v294 = vsub.s32 %v291, %v293
      %v295 = vrot.slane %v287, %v294
      %v297 = vsub.f32 %v198, %v295
      %v298 = vmul.f32 %v297, %v297
      %v300 = vcombine.high %v298, %v298
      %v301 = vsel %vm206, %v298, 0
      %v303 = vsel %vm206, %v300, 0
      %305 = vmatprep.subr.mxu0 0.0
      %306 = vmatpush1.msra.mxu0 0.0
      %307 = vmatprep.subr.mxu0 0.0
      %308 = vmatpush1.msra.mxu0 0.0
      %309 = vmatprep.subr.mxu0 0.0
      %310 = vmatpush1.msra.mxu0 0.0
      %311 = vmatprep.subr.mxu0 0.0
      %312 = vmatpush1.msra.mxu0 0.0
      %313 = vmatprep.subr.mxu0 0.0
      %314 = vmatpush1.msra.mxu0 0.0
      %315 = vmatprep.subr.mxu0 0.0
      %316 = vmatpush1.msra.mxu0 0.0
      %317 = vmatprep.subr.mxu0 0.0
      %318 = vmatpush1.msra.mxu0 0.0
      %319 = vmatprep.subr.mxu0 0.0
      %320 = vmatpush1.msra.mxu0 0.0
      %321 = vmatprep.subr.mxu0 0.0
      %322 = vmatpush1.msra.mxu0 0.0
      %323 = vmatprep.subr.mxu0 0.0
      %324 = vmatpush1.msra.mxu0 0.0
      %325 = vmatprep.subr.mxu0 0.0
      %326 = vmatpush1.msra.mxu0 0.0
      %327 = vmatprep.subr.mxu0 0.0
      %328 = vmatpush1.msra.mxu0 0.0
      %329 = vmatprep.subr.mxu0 0.0
      %330 = vmatpush1.msra.mxu0 0.0
      %331 = vmatprep.subr.mxu0 0.0
      %332 = vmatpush1.msra.mxu0 0.0
      %333 = vmatprep.subr.mxu0 0.0
      %334 = vmatpush1.msra.mxu0 0.0
      %335 = vmatprep.subr.mxu0 %v303
      %336 = vmatpush1.msra.mxu0 %v301
      %337 = vmatprep.subr.mxu0 0.0
      %338 = vmatpush2.msra.mxu0 0.0
      %339 = vmatprep.subr.mxu0 0.0
      %340 = vmatpush2.msra.mxu0 0.0
      %341 = vmatprep.subr.mxu0 0.0
      %342 = vmatpush2.msra.mxu0 0.0
      %343 = vmatprep.subr.mxu0 0.0
      %344 = vmatpush2.msra.mxu0 0.0
      %345 = vmatprep.subr.mxu0 0.0
      %346 = vmatpush2.msra.mxu0 0.0
      %347 = vmatprep.subr.mxu0 0.0
      %348 = vmatpush2.msra.mxu0 0.0
      %349 = vmatprep.subr.mxu0 0.0
      %350 = vmatpush2.msra.mxu0 0.0
      %351 = vmatprep.subr.mxu0 0.0
      %352 = vmatpush2.msra.mxu0 0.0
      %353 = vmatprep.subr.mxu0 0.0
      %354 = vmatpush2.msra.mxu0 0.0
      %355 = vmatprep.subr.mxu0 0.0
      %356 = vmatpush2.msra.mxu0 0.0
      %357 = vmatprep.subr.mxu0 0.0
      %358 = vmatpush2.msra.mxu0 0.0
      %359 = vmatprep.subr.mxu0 0.0
      %360 = vmatpush2.msra.mxu0 0.0
      %361 = vmatprep.subr.mxu0 0.0
      %362 = vmatpush2.msra.mxu0 0.0
      %363 = vmatprep.subr.mxu0 0.0
      %364 = vmatpush2.msra.mxu0 0.0
      %365 = vmatprep.subr.mxu0 0.0
      %366 = vmatpush2.msra.mxu0 0.0
      %367 = vmatprep.subr.mxu0 0.0
      %368 = vmatpush2.msra.mxu0 0.0
      %369 = vmatprep.mubr.f32.mxu0 0.0
      %370 = vmatmul.mubr.f32.gmra.mxu0 %v204
      %v371 = vpop.f32.mrf.mxu0
      %v372 = vadd.f32 0.0, %v371
      %v373 = vpop.f32.mrf.mxu0
      %v374 = vadd.f32 0.0, %v373
      %375 = vdwg.mxu0
      %v376 = vsel %vm206, %v372, 0.0
      %v377 = vsel %vm206, %v374, 0.0
      %v378 = vadd.f32 %v376, %v377
      %379 = vadd.xlane.f32.xlu0 %v378
      %v380 = vpop.xlane.xlu0 %379
      %v381 = vmul.f32 %v380, 0.00390625
      %v382 = vadd.f32 %v381, 1e-06
      %v383 = vrsqrt.pop %v382
      %v386 = vunpack.c.l.s4 839922192
      %v387 = vunpack.c.0.s8 %v386
      %v388 = vlaneseq
      %v389 = vshrl.u32 %v388, 7
      %v390 = vsub.s32 %v387, %v389
      %v391 = vrot.slane %v383, %v390
      %v393 = vmul.f32 %v297, %v391
      %v394 = vld [vmem:[%s1] sm:$0xf]
      %396 = vset.pattern.permute.xlu0 0
      %397 = vperm.xlu0 %396, %v394
      %v398 = vpop.permute.xlu0 %397
      %v400 = vunpack.c.l.s4 839922192
      %v401 = vunpack.c.0.s8 %v400
      %v402 = vlaneseq
      %v403 = vshrl.u32 %v402, 7
      %v404 = vsub.s32 %v401, %v403
      %v405 = vrot.slane %v398, %v404
      %v407 = vmul.f32 %v393, %v405
      %v408 = vld [vmem:[%s2] sm:$0xf]
      %410 = vset.pattern.permute.xlu0 0
      %411 = vperm.xlu0 %410, %v408
      %v412 = vpop.permute.xlu0 %411
      %v414 = vunpack.c.l.s4 839922192
      %v415 = vunpack.c.0.s8 %v414
      %v416 = vlaneseq
      %v417 = vshrl.u32 %v416, 7
      %v418 = vsub.s32 %v415, %v417
      %v419 = vrot.slane %v412, %v418
      %v421 = vadd.f32 %v407, %v419
      %v422 = vxor.u32 %v421, 2147483648
      %v423 = vmul.f32 %v422, 1.442695
      %v424 = vpow.pop %v423
      %v425 = vadd.f32 %v424, 1.0
      %v426 = vrcp.pop %v425
      %v427 = vmul.f32 1.0, %v426
      %v428 = vmul.f32 %v421, %v427
      %429 = vst [vmem:[%s197] sm:$0xff] %v428
      %p430 = scmp.lt.s32.totalorder %s15, 1
      %s431 = scalar_select %p430, %s15, 1
      %s432 = smul.addr %s431, 2
      %s433 = smul.addr %s432, 4
      %s434 = scalar_lea.vmem %s4, %s433
      // Predicated region
      $region37: #{res_four4_forward.13} parent=35 // pred_check
        %p435 = pneg %p122
      $region38: #{res_four4_forward.13} parent=35 // pred_check_branch
        %437 = sbr.rel (%p435) target = $region40
      $region39: #{res_four4_forward.13} parent=35 // pred_region
        _
      $region40: #{res_four4_forward.13} parent=35 // pred_fallthru
        _
    $region36: #{res_four4_forward.13} parent=5 // pred_fallthru
      _
    %p438 = scmp.le.s32.totalorder 2, %s10
    // Predicated region
    $region41: #{res_four4_forward.13} parent=5 // pred_check
      %p439 = pneg %p438
    $region42: #{res_four4_forward.13} parent=5 // pred_check_branch
      %441 = sbr.rel (%p439) target = $region44
    $region43: #{res_four4_forward.13} parent=5 // pred_region
      %s442 = ssub.s32 %s10, 2
      // Predicated region
      $region45: #{res_four4_forward.13} parent=43 // pred_check
        %p443 = pneg %p128
      $region46: #{res_four4_forward.13} parent=43 // pred_check_branch
        %445 = sbr.rel (%p443) target = $region48
      $region47: #{res_four4_forward.13} parent=43 // pred_region
        %p446 = scmp.lt.s32.totalorder %s16, 1
        %s447 = scalar_select %p446, %s16, 1
        %s448 = smul.addr %s447, 2
        %s449 = smul.addr %s448, 4
        %s450 = scalar_lea.vmem %s4, %s449
      $region48: #{res_four4_forward.13} parent=43 // pred_fallthru
        _
    $region44: #{res_four4_forward.13} parent=5 // pred_fallthru
      _
  $region6: #{res_four4_forward.13} parent=0 // loop_footer
    %s14 = sadd.s32 1, %s10
  $region7: #{res_four4_forward.13} parent=0 // loop_footer_branch
    %9 = sbr.rel target = $region3
  $region8: #{res_four4_forward.13} parent=0 // loop_exit
    _

// kernel: res_four4_forward.15
$region0: #{res_four4_forward.15}
  #allocation0 [shape = 'u32[]', space=smem, size = 0x4, offset = 0x4, fixed_abs, tag = 'smem constant byte address 0x4 - core index']
  #allocation1 [shape = 'u32[144,128]{1,0:T(1,128)}', space=vmem, size = 0x12000, scoped, tag = 'internal scratch']
  #allocation2 [shape = 'f32[12,256]{1,0:T(8,128)}', space=vmem, size = 0x4000, scoped, tag = 'scratch operand']
  %s0 = inlined_call_operand.vmem [shape: f32[2,8,256], index: 0, kind: input, shape index: {}]
  %s1 = inlined_call_operand.vmem [shape: f32[2,4,256], index: 1, kind: input, shape index: {}]
  %s2 = inlined_call_operand.vmem [shape: f32[2,4,256], index: 2, kind: input, shape index: {}]
  %s3 = inlined_call_operand.vmem [shape: f32[2,4,256], index: 3, kind: input, shape index: {}]
  %s4 = inlined_call_operand.vmem [shape: f32[8,12], index: 4, kind: input, shape index: {}]
  %s5 = inlined_call_operand.vmem [shape: f32[8,1], index: 5, kind: input, shape index: {}]
  %s6 = inlined_call_operand.vmem [shape: f32[2,8,256], index: 6, kind: output, shape index: {}]
  %s7 = sld [smem:[#allocation0]]
  $region57: #{res_four4_forward.15} parent=0
    _
  %s9 = ssub.s32 1, %s7
  %s10 = scalar_select 0, %s9, %s7
  loop: start=0, step=1, limit=4
  $region2: #{res_four4_forward.15} parent=0 // loop_pre_header
    _
  $region3: #{res_four4_forward.15} parent=0 // loop_header
    %s12 = sphi 0, %s16
    %p13 = scmp.ge.s32.totalorder %s12, 4
    %s19 = sphi 0, %s31
    %s20 = sphi 0, %s27
    %s21 = sphi 0, %s19
    %s22 = sphi 0, %s20
    %s23 = sphi 0, %s21
    %s24 = sphi 0, %s22
    %s36 = sphi 0, %s38
    %s39 = sphi 0, %s36
    %s40 = sphi 0, %s39
    %s56 = sphi 0, %s40
    %s64 = sphi 0, %s66
    %s67 = sphi 0, %s64
    %s68 = sphi 0, %s67
    %s84 = sphi 0, %s68
    %s92 = sphi 0, %s94
    %s95 = sphi 0, %s92
    %s96 = sphi 0, %s95
    %s112 = sphi 0, %s96
    %s120 = sphi 0, %s122
    %s123 = sphi 0, %s120
    %s124 = sphi 0, %s123
    %s140 = sphi 0, %s124
    %s144 = sphi 0, %s144
    %s146 = sphi 0, %s144
    %s147 = sphi 0, %s146
    %s161 = sphi 0, %s147
    %s165 = sphi 0, %s165
    %s167 = sphi 0, %s165
    %s168 = sphi 0, %s167
    %s182 = sphi 0, %s168
    %s190 = sphi 0, %s192
    %s193 = sphi 0, %s190
    %s194 = sphi 0, %s193
    %s210 = sphi 0, %s194
  $region4: #{res_four4_forward.15} parent=0 // loop_header_branch
    %15 = sbr.rel (%p13) target = $region8
  $region5: #{res_four4_forward.15} parent=0 // loop_body
    %s17 = ssub.s32 %s12, 1
    %s18 = ssub.s32 %s12, 2
    %s25 = sadd.s32 1, %s20
    %p26 = scmp.ge.s32.totalorder %s25, 1
    %s27 = scalar_select %p26, 0, %s25
    %s28 = sadd.s32 1, %s19
    %s29 = scalar_select %p26, %s28, %s19
    %p30 = scmp.ge.s32.totalorder %s29, 2
    %s31 = scalar_select %p30, 0, %s29
    %s32 = ssub.s32 %s19, %s31
    %s33 = ssub.s32 %s20, %s27
    %s34 = sor.u32 %s32, %s33
    %p35 = scmp.eq.s32.totalorder %s34, 0
    %s37 = sadd.s32 %s36, 1
    %s38 = scalar_select %p35, %s36, %s37
    %p41 = pneg %p35
    %p42 = scmp.eq.s32.totalorder %s12, 1
    %p43 = por %p41, %p42
    %p44 = scmp.ne.s32.totalorder %s36, %s39
    %p45 = scmp.eq.s32.totalorder %s12, 0
    %p46 = por %p44, %p45
    %p47 = scmp.ne.s32.totalorder %s36, %s39
    %p48 = scmp.eq.s32.totalorder %s17, 1
    %p49 = por %p47, %p48
    %p50 = scmp.ne.s32.totalorder %s39, %s40
    %p51 = scmp.eq.s32.totalorder %s17, 0
    %p52 = por %p50, %p51
    %p53 = scmp.ne.s32.totalorder %s39, %s40
    %p54 = scmp.eq.s32.totalorder %s18, 1
    %p55 = por %p53, %p54
    %p57 = scmp.ne.s32.totalorder %s40, %s56
    %p58 = scmp.eq.s32.totalorder %s18, 0
    %p59 = por %p57, %p58
    %s60 = ssub.s32 %s19, %s31
    %s61 = ssub.s32 %s20, %s27
    %s62 = sor.u32 %s60, %s61
    %p63 = scmp.eq.s32.totalorder %s62, 0
    %s65 = sadd.s32 %s64, 1
    %s66 = scalar_select %p63, %s64, %s65
    %p69 = pneg %p63
    %p70 = scmp.eq.s32.totalorder %s12, 1
    %p71 = por %p69, %p70
    %p72 = scmp.ne.s32.totalorder %s64, %s67
    %p73 = scmp.eq.s32.totalorder %s12, 0
    %p74 = por %p72, %p73
    %p75 = scmp.ne.s32.totalorder %s64, %s67
    %p76 = scmp.eq.s32.totalorder %s17, 1
    %p77 = por %p75, %p76
    %p78 = scmp.ne.s32.totalorder %s67, %s68
    %p79 = scmp.eq.s32.totalorder %s17, 0
    %p80 = por %p78, %p79
    %p81 = scmp.ne.s32.totalorder %s67, %s68
    %p82 = scmp.eq.s32.totalorder %s18, 1
    %p83 = por %p81, %p82
    %p85 = scmp.ne.s32.totalorder %s68, %s84
    %p86 = scmp.eq.s32.totalorder %s18, 0
    %p87 = por %p85, %p86
    %s88 = ssub.s32 %s19, %s31
    %s89 = ssub.s32 %s20, %s27
    %s90 = sor.u32 %s88, %s89
    %p91 = scmp.eq.s32.totalorder %s90, 0
    %s93 = sadd.s32 %s92, 1
    %s94 = scalar_select %p91, %s92, %s93
    %p97 = pneg %p91
    %p98 = scmp.eq.s32.totalorder %s12, 1
    %p99 = por %p97, %p98
    %p100 = scmp.ne.s32.totalorder %s92, %s95
    %p101 = scmp.eq.s32.totalorder %s12, 0
    %p102 = por %p100, %p101
    %p103 = scmp.ne.s32.totalorder %s92, %s95
    %p104 = scmp.eq.s32.totalorder %s17, 1
    %p105 = por %p103, %p104
    %p106 = scmp.ne.s32.totalorder %s95, %s96
    %p107 = scmp.eq.s32.totalorder %s17, 0
    %p108 = por %p106, %p107
    %p109 = scmp.ne.s32.totalorder %s95, %s96
    %p110 = scmp.eq.s32.totalorder %s18, 1
    %p111 = por %p109, %p110
    %p113 = scmp.ne.s32.totalorder %s96, %s112
    %p114 = scmp.eq.s32.totalorder %s18, 0
    %p115 = por %p113, %p114
    %s116 = ssub.s32 %s19, %s31
    %s117 = ssub.s32 %s20, %s27
    %s118 = sor.u32 %s116, %s117
    %p119 = scmp.eq.s32.totalorder %s118, 0
    %s121 = sadd.s32 %s120, 1
    %s122 = scalar_select %p119, %s120, %s121
    %p125 = pneg %p119
    %p126 = scmp.eq.s32.totalorder %s12, 1
    %p127 = por %p125, %p126
    %p128 = scmp.ne.s32.totalorder %s120, %s123
    %p129 = scmp.eq.s32.totalorder %s12, 0
    %p130 = por %p128, %p129
    %p131 = scmp.ne.s32.totalorder %s120, %s123
    %p132 = scmp.eq.s32.totalorder %s17, 1
    %p133 = por %p131, %p132
    %p134 = scmp.ne.s32.totalorder %s123, %s124
    %p135 = scmp.eq.s32.totalorder %s17, 0
    %p136 = por %p134, %p135
    %p137 = scmp.ne.s32.totalorder %s123, %s124
    %p138 = scmp.eq.s32.totalorder %s18, 1
    %p139 = por %p137, %p138
    %p141 = scmp.ne.s32.totalorder %s124, %s140
    %p142 = scmp.eq.s32.totalorder %s18, 0
    %p143 = por %p141, %p142
    %s145 = sadd.s32 %s144, 1
    %p148 = scmp.eq.s32.totalorder %s12, 1
    %p149 = scmp.ne.s32.totalorder %s144, %s146
    %p150 = scmp.eq.s32.totalorder %s12, 0
    %p151 = por %p149, %p150
    %p152 = scmp.ne.s32.totalorder %s144, %s146
    %p153 = scmp.eq.s32.totalorder %s17, 1
    %p154 = por %p152, %p153
    %p155 = scmp.ne.s32.totalorder %s146, %s147
    %p156 = scmp.eq.s32.totalorder %s17, 0
    %p157 = por %p155, %p156
    %p158 = scmp.ne.s32.totalorder %s146, %s147
    %p159 = scmp.eq.s32.totalorder %s18, 1
    %p160 = por %p158, %p159
    %p162 = scmp.ne.s32.totalorder %s147, %s161
    %p163 = scmp.eq.s32.totalorder %s18, 0
    %p164 = por %p162, %p163
    %s166 = sadd.s32 %s165, 1
    %p169 = scmp.eq.s32.totalorder %s12, 1
    %p170 = scmp.ne.s32.totalorder %s165, %s167
    %p171 = scmp.eq.s32.totalorder %s12, 0
    %p172 = por %p170, %p171
    %p173 = scmp.ne.s32.totalorder %s165, %s167
    %p174 = scmp.eq.s32.totalorder %s17, 1
    %p175 = por %p173, %p174
    %p176 = scmp.ne.s32.totalorder %s167, %s168
    %p177 = scmp.eq.s32.totalorder %s17, 0
    %p178 = por %p176, %p177
    %p179 = scmp.ne.s32.totalorder %s167, %s168
    %p180 = scmp.eq.s32.totalorder %s18, 1
    %p181 = por %p179, %p180
    %p183 = scmp.ne.s32.totalorder %s168, %s182
    %p184 = scmp.eq.s32.totalorder %s18, 0
    %p185 = por %p183, %p184
    %s186 = ssub.s32 %s19, %s31
    %s187 = ssub.s32 %s20, %s27
    %s188 = sor.u32 %s186, %s187
    %p189 = scmp.eq.s32.totalorder %s188, 0
    %s191 = sadd.s32 %s190, 1
    %s192 = scalar_select %p189, %s190, %s191
    %p195 = pneg %p189
    %p196 = scmp.eq.s32.totalorder %s12, 1
    %p197 = por %p195, %p196
    %p198 = scmp.ne.s32.totalorder %s190, %s193
    %p199 = scmp.eq.s32.totalorder %s12, 0
    %p200 = por %p198, %p199
    %p201 = scmp.ne.s32.totalorder %s190, %s193
    %p202 = scmp.eq.s32.totalorder %s17, 1
    %p203 = por %p201, %p202
    %p204 = scmp.ne.s32.totalorder %s193, %s194
    %p205 = scmp.eq.s32.totalorder %s17, 0
    %p206 = por %p204, %p205
    %p207 = scmp.ne.s32.totalorder %s193, %s194
    %p208 = scmp.eq.s32.totalorder %s18, 1
    %p209 = por %p207, %p208
    %p211 = scmp.ne.s32.totalorder %s194, %s210
    %p212 = scmp.eq.s32.totalorder %s18, 0
    %p213 = por %p211, %p212
    %p214 = scmp.le.s32.totalorder 1, %s12
    %p215 = scmp.lt.s32.totalorder %s12, 3
    %p216 = pnand %p214, %p215
    %p217 = pneg %p216
    // Predicated region
    $region9: #{res_four4_forward.15} parent=5 // pred_check
      _
    $region10: #{res_four4_forward.15} parent=5 // pred_check_branch
      %219 = sbr.rel (%p216) target = $region12
    $region11: #{res_four4_forward.15} parent=5 // pred_region
      %s220 = ssub.s32 %s12, 1
      // Predicated region
      $region13: #{res_four4_forward.15} parent=11 // pred_check
        %p221 = pneg %p157
      $region14: #{res_four4_forward.15} parent=11 // pred_check_branch
        %223 = sbr.rel (%p221) target = $region16
      $region15: #{res_four4_forward.15} parent=11 // pred_region
        _
      $region16: #{res_four4_forward.15} parent=11 // pred_fallthru
        _
      // Predicated region
      $region17: #{res_four4_forward.15} parent=11 // pred_check
        %p224 = pneg %p178
      $region18: #{res_four4_forward.15} parent=11 // pred_check_branch
        %226 = sbr.rel (%p224) target = $region20
      $region19: #{res_four4_forward.15} parent=11 // pred_region
        _
      $region20: #{res_four4_forward.15} parent=11 // pred_fallthru
        _
    $region12: #{res_four4_forward.15} parent=5 // pred_fallthru
      _
    %p227 = scmp.lt.s32.totalorder %s12, 2
    // Predicated region
    $region21: #{res_four4_forward.15} parent=5 // pred_check
      %p228 = pneg %p227
    $region22: #{res_four4_forward.15} parent=5 // pred_check_branch
      %230 = sbr.rel (%p228) target = $region24
    $region23: #{res_four4_forward.15} parent=5 // pred_region
      // Predicated region
      $region25: #{res_four4_forward.15} parent=23 // pred_check
        %p231 = pneg %p46
      $region26: #{res_four4_forward.15} parent=23 // pred_check_branch
        %233 = sbr.rel (%p231) target = $region28
      $region27: #{res_four4_forward.15} parent=23 // pred_region
        %s234 = smul.u32 2, %s20
        %p235 = scmp.lt.s32.totalorder %s19, 1
        %s236 = scalar_select %p235, %s19, 1
        %p237 = scmp.lt.s32.totalorder %s234, 1
        %s238 = scalar_select %p237, %s234, 1
        %s239 = smul.addr %s236, 2
        %s240 = sadd.s32 %s238, %s239
        %s241 = smul.addr %s240, 8
        %s242 = scalar_lea.vmem %s0, %s241
        %s243 = smul.u32 2, %s20
      $region28: #{res_four4_forward.15} parent=23 // pred_fallthru
        _
      // Predicated region
      $region29: #{res_four4_forward.15} parent=23 // pred_check
        %p244 = pneg %p74
      $region30: #{res_four4_forward.15} parent=23 // pred_check_branch
        %246 = sbr.rel (%p244) target = $region32
      $region31: #{res_four4_forward.15} parent=23 // pred_region
        %s247 = smul.u32 2, %s20
        %p248 = scmp.lt.s32.totalorder %s19, 1
        %s249 = scalar_select %p248, %s19, 1
        %p250 = scmp.lt.s32.totalorder %s247, 1
        %s251 = scalar_select %p250, %s247, 1
        %s252 = smul.addr %s249, 2
        %s253 = sadd.s32 %s251, %s252
        %s254 = smul.addr %s253, 4
        %s255 = scalar_lea.vmem %s1, %s254
        %s256 = smul.u32 2, %s20
      $region32: #{res_four4_forward.15} parent=23 // pred_fallthru
        _
      // Predicated region
      $region33: #{res_four4_forward.15} parent=23 // pred_check
        %p257 = pneg %p102
      $region34: #{res_four4_forward.15} parent=23 // pred_check_branch
        %259 = sbr.rel (%p257) target = $region36
      $region35: #{res_four4_forward.15} parent=23 // pred_region
        %s260 = smul.u32 2, %s20
        %p261 = scmp.lt.s32.totalorder %s19, 1
        %s262 = scalar_select %p261, %s19, 1
        %p263 = scmp.lt.s32.totalorder %s260, 1
        %s264 = scalar_select %p263, %s260, 1
        %s265 = smul.addr %s262, 2
        %s266 = sadd.s32 %s264, %s265
        %s267 = smul.addr %s266, 4
        %s268 = scalar_lea.vmem %s2, %s267
        %s269 = smul.u32 2, %s20
      $region36: #{res_four4_forward.15} parent=23 // pred_fallthru
        _
      // Predicated region
      $region37: #{res_four4_forward.15} parent=23 // pred_check
        %p270 = pneg %p130
      $region38: #{res_four4_forward.15} parent=23 // pred_check_branch
        %272 = sbr.rel (%p270) target = $region40
      $region39: #{res_four4_forward.15} parent=23 // pred_region
        %s273 = smul.u32 2, %s20
        %p274 = scmp.lt.s32.totalorder %s19, 1
        %s275 = scalar_select %p274, %s19, 1
        %p276 = scmp.lt.s32.totalorder %s273, 1
        %s277 = scalar_select %p276, %s273, 1
        %s278 = smul.addr %s275, 2
        %s279 = sadd.s32 %s277, %s278
        %s280 = smul.addr %s279, 4
        %s281 = scalar_lea.vmem %s3, %s280
        %s282 = smul.u32 2, %s20
      $region40: #{res_four4_forward.15} parent=23 // pred_fallthru
        _
    $region24: #{res_four4_forward.15} parent=5 // pred_fallthru
      _
    %p283 = scmp.le.s32.totalorder 1, %s12
    %p284 = scmp.lt.s32.totalorder %s12, 3
    %p285 = pnand %p283, %p284
    %p286 = pneg %p285
    // Predicated region
    $region41: #{res_four4_forward.15} parent=5 // pred_check
      _
    $region42: #{res_four4_forward.15} parent=5 // pred_check_branch
      %288 = sbr.rel (%p285) target = $region44
    $region43: #{res_four4_forward.15} parent=5 // pred_region
      %s289 = ssub.s32 %s12, 1
      %s290 = smul.u32 2, %s22
      %p291 = scmp.lt.s32.totalorder %s21, 1
      %s292 = scalar_select %p291, %s21, 1
      %p293 = scmp.lt.s32.totalorder %s290, 1
      %s294 = scalar_select %p293, %s290, 1
      %s295 = smul.addr %s292, 2
      %s296 = sadd.s32 %s294, %s295
      %s297 = smul.addr %s296, 8
      %s298 = scalar_lea.vmem %s0, %s297
      %p299 = pneg %p52
      %p300 = pneg %p49
      %s301 = smul.u32 2, %s22
      %p302 = scmp.lt.s32.totalorder %s21, 1
      %s303 = scalar_select %p302, %s21, 1
      %p304 = scmp.lt.s32.totalorder %s301, 1
      %s305 = scalar_select %p304, %s301, 1
      %s306 = smul.addr %s303, 2
      %s307 = sadd.s32 %s305, %s306
      %s308 = smul.addr %s307, 4
      %s309 = scalar_lea.vmem %s1, %s308
      %p310 = pneg %p80
      %p311 = pneg %p77
      %s312 = smul.u32 2, %s22
      %p313 = scmp.lt.s32.totalorder %s21, 1
      %s314 = scalar_select %p313, %s21, 1
      %p315 = scmp.lt.s32.totalorder %s312, 1
      %s316 = scalar_select %p315, %s312, 1
      %s317 = smul.addr %s314, 2
      %s318 = sadd.s32 %s316, %s317
      %s319 = smul.addr %s318, 4
      %s320 = scalar_lea.vmem %s2, %s319
      %p321 = pneg %p108
      %p322 = pneg %p105
      %s323 = smul.u32 2, %s22
      %p324 = scmp.lt.s32.totalorder %s21, 1
      %s325 = scalar_select %p324, %s21, 1
      %p326 = scmp.lt.s32.totalorder %s323, 1
      %s327 = scalar_select %p326, %s323, 1
      %s328 = smul.addr %s325, 2
      %s329 = sadd.s32 %s327, %s328
      %s330 = smul.addr %s329, 4
      %s331 = scalar_lea.vmem %s3, %s330
      %p332 = pneg %p136
      %p333 = pneg %p133
      %p334 = pneg %p157
      %p335 = pneg %p154
      %p336 = pneg %p178
      %p337 = pneg %p175
      %p338 = pneg %p206
      %p339 = pneg %p203
      %s340 = smul.u32 2, %s22
      %p341 = scmp.lt.s32.totalorder %s21, 1
      %s342 = scalar_select %p341, %s21, 1
      %p343 = scmp.lt.s32.totalorder %s340, 1
      %s344 = scalar_select %p343, %s340, 1
      %s345 = smul.addr %s342, 2
      %s346 = sadd.s32 %s344, %s345
      %s347 = smul.addr %s346, 8
      %s348 = scalar_lea.vmem %s6, %s347
      %s349 = smul.u32 2, %s22
      %p350 = scmp.lt.s32.totalorder %s21, 1
      %s351 = scalar_select %p350, %s21, 1
      %p352 = scmp.lt.s32.totalorder %s349, 1
      %s353 = scalar_select %p352, %s349, 1
      %s354 = smul.addr %s351, 2
      %s355 = sadd.s32 %s353, %s354
      %s356 = smul.addr %s355, 8
      %s357 = scalar_lea.vmem %s0, %s356
      %s358 = smul.u32 2, %s22
      %s359 = smul.u32 2, %s22
      %p360 = scmp.lt.s32.totalorder %s21, 1
      %s361 = scalar_select %p360, %s21, 1
      %p362 = scmp.lt.s32.totalorder %s359, 1
      %s363 = scalar_select %p362, %s359, 1
      %s364 = smul.addr %s361, 2
      %s365 = sadd.s32 %s363, %s364
      %s366 = smul.addr %s365, 4
      %s367 = scalar_lea.vmem %s1, %s366
      %s368 = smul.u32 2, %s22
      %s369 = smul.u32 2, %s22
      %p370 = scmp.lt.s32.totalorder %s21, 1
      %s371 = scalar_select %p370, %s21, 1
      %p372 = scmp.lt.s32.totalorder %s369, 1
      %s373 = scalar_select %p372, %s369, 1
      %s374 = smul.addr %s371, 2
      %s375 = sadd.s32 %s373, %s374
      %s376 = smul.addr %s375, 4
      %s377 = scalar_lea.vmem %s2, %s376
      %s378 = smul.u32 2, %s22
      %s379 = smul.u32 2, %s22
      %p380 = scmp.lt.s32.totalorder %s21, 1
      %s381 = scalar_select %p380, %s21, 1
      %p382 = scmp.lt.s32.totalorder %s379, 1
      %s383 = scalar_select %p382, %s379, 1
      %s384 = smul.addr %s381, 2
      %s385 = sadd.s32 %s383, %s384
      %s386 = smul.addr %s385, 4
      %s387 = scalar_lea.vmem %s3, %s386
      %s388 = smul.u32 2, %s22
      %s389 = smul.u32 2, %s22
      %p390 = scmp.lt.s32.totalorder %s21, 1
      %s391 = scalar_select %p390, %s21, 1
      %p392 = scmp.lt.s32.totalorder %s389, 1
      %s393 = scalar_select %p392, %s389, 1
      %s394 = smul.addr %s391, 2
      %s395 = sadd.s32 %s393, %s394
      %s396 = smul.addr %s395, 8
      %s397 = scalar_lea.vmem %s6, %s396
      %s398 = smul.u32 2, %s22
      %399 = vst [vmem:[#allocation2] sm:$0xff] 0.0
      %400 = vst [vmem:[#allocation2 + $0x8] sm:$0xff] 0.0
      %401 = vst [vmem:[#allocation2 + $0x10] sm:$0xf] 0.0
      %402 = vst [vmem:[#allocation2 + $0x18] sm:$0xf] 0.0
      %v403 = vld [vmem:[%s367] sm:$0xff]
      %v404 = vld [vmem:[%s377] sm:$0xff]
      %v405 = vadd.f32 %v403, %v404
      %v407 = vcombine.high %v405, %v405
      %409 = vst [vmem:[#allocation2] sm:$0xf] %v405
      %410 = vst [vmem:[#allocation2 + $0x8] sm:$0xf] %v407
      %v411 = vld [vmem:[%s387] sm:$0xff]
      %v413 = vcombine.high %v411, %v411
      %415 = vst [vmem:[#allocation2 + $0x10] sm:$0xf] %v411
      %416 = vst [vmem:[#allocation2 + $0x18] sm:$0xf] %v413
      %v417 = vld [vmem:[%s4] sm:$0xff]
      %v418 = vld [vmem:[#allocation2] sm:$0xff]
      %v419 = vld [vmem:[#allocation2 + $0x8] sm:$0xff]
      %v420 = vld [vmem:[#allocation2 + $0x10] sm:$0xf]
      %v421 = vld [vmem:[#allocation2 + $0x18] sm:$0xf]
      %v422 = vld [vmem:[%s5] sm:$0xff]
      %424 = vset.pattern.permute.xlu0 0
      %425 = vperm.xlu0 %424, %v422
      %v426 = vpop.permute.xlu0 %425
      %vm428 = vcmask 97280
      %v430 = vsel %vm428, %v417, 0
      %vm432 = vcmask 1043456
      %v434 = vsel %vm432, %v420, 0
      %v437 = vsel %vm432, %v421, 0
      %439 = vmatprep.subr.mxu0 0.0
      %440 = vmatpush1.msra.mxu0 0.0
      %441 = vmatprep.subr.mxu0 0.0
      %442 = vmatpush1.msra.mxu0 0.0
      %443 = vmatprep.subr.mxu0 0.0
      %444 = vmatpush1.msra.mxu0 0.0
      %445 = vmatprep.subr.mxu0 0.0
      %446 = vmatpush1.msra.mxu0 0.0
      %447 = vmatprep.subr.mxu0 0.0
      %448 = vmatpush1.msra.mxu0 0.0
      %449 = vmatprep.subr.mxu0 0.0
      %450 = vmatpush1.msra.mxu0 0.0
      %451 = vmatprep.subr.mxu0 0.0
      %452 = vmatpush1.msra.mxu0 0.0
      %453 = vmatprep.subr.mxu0 0.0
      %454 = vmatpush1.msra.mxu0 0.0
      %455 = vmatprep.subr.mxu0 0.0
      %456 = vmatpush1.msra.mxu0 0.0
      %457 = vmatprep.subr.mxu0 0.0
      %458 = vmatpush1.msra.mxu0 0.0
      %459 = vmatprep.subr.mxu0 0.0
      %460 = vmatpush1.msra.mxu0 0.0
      %461 = vmatprep.subr.mxu0 0.0
      %462 = vmatpush1.msra.mxu0 0.0
      %463 = vmatprep.subr.mxu0 0.0
      %464 = vmatpush1.msra.mxu0 0.0
      %465 = vmatprep.subr.mxu0 0.0
      %466 = vmatpush1.msra.mxu0 0.0
      %467 = vmatprep.subr.mxu0 %v437
      %468 = vmatpush1.msra.mxu0 %v434
      %469 = vmatprep.subr.mxu0 %v419
      %470 = vmatpush1.msra.mxu0 %v418
      %471 = vmatprep.subr.mxu0 0.0
      %472 = vmatpush2.msra.mxu0 0.0
      %473 = vmatprep.subr.mxu0 0.0
      %474 = vmatpush2.msra.mxu0 0.0
      %475 = vmatprep.subr.mxu0 0.0
      %476 = vmatpush2.msra.mxu0 0.0
      %477 = vmatprep.subr.mxu0 0.0
      %478 = vmatpush2.msra.mxu0 0.0
      %479 = vmatprep.subr.mxu0 0.0
      %480 = vmatpush2.msra.mxu0 0.0
      %481 = vmatprep.subr.mxu0 0.0
      %482 = vmatpush2.msra.mxu0 0.0
      %483 = vmatprep.subr.mxu0 0.0
      %484 = vmatpush2.msra.mxu0 0.0
      %485 = vmatprep.subr.mxu0 0.0
      %486 = vmatpush2.msra.mxu0 0.0
      %487 = vmatprep.subr.mxu0 0.0
      %488 = vmatpush2.msra.mxu0 0.0
      %489 = vmatprep.subr.mxu0 0.0
      %490 = vmatpush2.msra.mxu0 0.0
      %491 = vmatprep.subr.mxu0 0.0
      %492 = vmatpush2.msra.mxu0 0.0
      %493 = vmatprep.subr.mxu0 0.0
      %494 = vmatpush2.msra.mxu0 0.0
      %495 = vmatprep.subr.mxu0 0.0
      %496 = vmatpush2.msra.mxu0 0.0
      %497 = vmatprep.subr.mxu0 0.0
      %498 = vmatpush2.msra.mxu0 0.0
      %499 = vmatprep.subr.mxu0 0.0
      %500 = vmatpush2.msra.mxu0 0.0
      %501 = vmatprep.subr.mxu0 0.0
      %502 = vmatpush2.msra.mxu0 0.0
      %503 = vmatprep.mubr.f32.mxu0 0.0
      %504 = vmatmul.mubr.f32.gmra.mxu0 %v430
      %v505 = vpop.f32.mrf.mxu0
      %v506 = vadd.f32 %v426, %v505
      %v507 = vpop.f32.mrf.mxu0
      %v508 = vadd.f32 %v426, %v507
      %509 = vdwg.mxu0
      %v510 = vld [vmem:[%s357] sm:$0xff]
      %v511 = vld [vmem:[%s357 + $0x8] sm:$0xff]
      %v512 = vadd.f32 %v506, %v510
      %v513 = vadd.f32 %v508, %v511
      %514 = vst [vmem:[%s397] sm:$0xff] %v512
      %515 = vst [vmem:[%s397 + $0x8] sm:$0xff] %v513
      %s516 = smul.u32 2, %s22
      %p517 = scmp.lt.s32.totalorder %s21, 1
      %s518 = scalar_select %p517, %s21, 1
      %p519 = scmp.lt.s32.totalorder %s516, 1
      %s520 = scalar_select %p519, %s516, 1
      %s521 = smul.addr %s518, 2
      %s522 = sadd.s32 %s520, %s521
      %s523 = smul.addr %s522, 8
      %s524 = scalar_lea.vmem %s6, %s523
      // Predicated region
      $region45: #{res_four4_forward.15} parent=43 // pred_check
        %p525 = pneg %p203
      $region46: #{res_four4_forward.15} parent=43 // pred_check_branch
        %527 = sbr.rel (%p525) target = $region48
      $region47: #{res_four4_forward.15} parent=43 // pred_region
        %s528 = smul.u32 2, %s22
      $region48: #{res_four4_forward.15} parent=43 // pred_fallthru
        _
    $region44: #{res_four4_forward.15} parent=5 // pred_fallthru
      _
    %p529 = scmp.le.s32.totalorder 2, %s12
    // Predicated region
    $region49: #{res_four4_forward.15} parent=5 // pred_check
      %p530 = pneg %p529
    $region50: #{res_four4_forward.15} parent=5 // pred_check_branch
      %532 = sbr.rel (%p530) target = $region52
    $region51: #{res_four4_forward.15} parent=5 // pred_region
      %s533 = ssub.s32 %s12, 2
      // Predicated region
      $region53: #{res_four4_forward.15} parent=51 // pred_check
        %p534 = pneg %p209
      $region54: #{res_four4_forward.15} parent=51 // pred_check_branch
        %536 = sbr.rel (%p534) target = $region56
      $region55: #{res_four4_forward.15} parent=51 // pred_region
        %s537 = smul.u32 2, %s24
        %p538 = scmp.lt.s32.totalorder %s23, 1
        %s539 = scalar_select %p538, %s23, 1
        %p540 = scmp.lt.s32.totalorder %s537, 1
        %s541 = scalar_select %p540, %s537, 1
        %s542 = smul.addr %s539, 2
        %s543 = sadd.s32 %s541, %s542
        %s544 = smul.addr %s543, 8
        %s545 = scalar_lea.vmem %s6, %s544
      $region56: #{res_four4_forward.15} parent=51 // pred_fallthru
        _
    $region52: #{res_four4_forward.15} parent=5 // pred_fallthru
      _
  $region6: #{res_four4_forward.15} parent=0 // loop_footer
    %s16 = sadd.s32 1, %s12
  $region7: #{res_four4_forward.15} parent=0 // loop_footer_branch
    %11 = sbr.rel target = $region3
  $region8: #{res_four4_forward.15} parent=0 // loop_exit
    _

// kernel: res_four4_forward.12
$region0: #{res_four4_forward.12}
  #allocation0 [shape = 'u32[]', space=smem, size = 0x4, offset = 0x4, fixed_abs, tag = 'smem constant byte address 0x4 - core index']
  #allocation1 [shape = 'u32[144,128]{1,0:T(1,128)}', space=vmem, size = 0x12000, scoped, tag = 'internal scratch']
  %s0 = inlined_call_operand.vmem [shape: f32[2,4,290], index: 0, kind: input, shape index: {}]
  %s1 = inlined_call_operand.vmem [shape: f32[1,256], index: 1, kind: input, shape index: {}]
  %s2 = inlined_call_operand.vmem [shape: f32[1,256], index: 2, kind: input, shape index: {}]
  %s3 = inlined_call_operand.vmem [shape: f32[9,4,4], index: 3, kind: input, shape index: {}]
  %s4 = inlined_call_operand.vmem [shape: f32[4,1], index: 4, kind: input, shape index: {}]
  %s5 = inlined_call_operand.vmem [shape: f32[2,4,256], index: 5, kind: output, shape index: {}]
  %s6 = sld [smem:[#allocation0]]
  $region53: #{res_four4_forward.12} parent=0
    _
  %s8 = ssub.s32 1, %s6
  %s9 = scalar_select 0, %s8, %s6
  loop: start=0, step=1, limit=4
  $region2: #{res_four4_forward.12} parent=0 // loop_pre_header
    _
  $region3: #{res_four4_forward.12} parent=0 // loop_header
    %s11 = sphi 0, %s15
    %p12 = scmp.ge.s32.totalorder %s11, 4
    %s21 = sphi 0, %s23
    %s24 = sphi 0, %s21
    %s25 = sphi 0, %s24
    %s41 = sphi 0, %s25
    %s45 = sphi 0, %s45
    %s47 = sphi 0, %s45
    %s48 = sphi 0, %s47
    %s62 = sphi 0, %s48
    %s66 = sphi 0, %s66
    %s68 = sphi 0, %s66
    %s69 = sphi 0, %s68
    %s83 = sphi 0, %s69
    %s87 = sphi 0, %s87
    %s89 = sphi 0, %s87
    %s90 = sphi 0, %s89
    %s104 = sphi 0, %s90
    %s108 = sphi 0, %s108
    %s110 = sphi 0, %s108
    %s111 = sphi 0, %s110
    %s125 = sphi 0, %s111
    %s131 = sphi 0, %s133
    %s134 = sphi 0, %s131
    %s135 = sphi 0, %s134
    %s151 = sphi 0, %s135
  $region4: #{res_four4_forward.12} parent=0 // loop_header_branch
    %14 = sbr.rel (%p12) target = $region8
  $region5: #{res_four4_forward.12} parent=0 // loop_body
    %s16 = ssub.s32 %s11, 1
    %s17 = ssub.s32 %s11, 2
    %s18 = sadd.s32 %s11, 1
    %s19 = ssub.s32 %s11, %s18
    %p20 = scmp.eq.s32.totalorder %s19, 0
    %s22 = sadd.s32 %s21, 1
    %s23 = scalar_select %p20, %s21, %s22
    %p26 = pneg %p20
    %p27 = scmp.eq.s32.totalorder %s11, 1
    %p28 = por %p26, %p27
    %p29 = scmp.ne.s32.totalorder %s21, %s24
    %p30 = scmp.eq.s32.totalorder %s11, 0
    %p31 = por %p29, %p30
    %p32 = scmp.ne.s32.totalorder %s21, %s24
    %p33 = scmp.eq.s32.totalorder %s16, 1
    %p34 = por %p32, %p33
    %p35 = scmp.ne.s32.totalorder %s24, %s25
    %p36 = scmp.eq.s32.totalorder %s16, 0
    %p37 = por %p35, %p36
    %p38 = scmp.ne.s32.totalorder %s24, %s25
    %p39 = scmp.eq.s32.totalorder %s17, 1
    %p40 = por %p38, %p39
    %p42 = scmp.ne.s32.totalorder %s25, %s41
    %p43 = scmp.eq.s32.totalorder %s17, 0
    %p44 = por %p42, %p43
    %s46 = sadd.s32 %s45, 1
    %p49 = scmp.eq.s32.totalorder %s11, 1
    %p50 = scmp.ne.s32.totalorder %s45, %s47
    %p51 = scmp.eq.s32.totalorder %s11, 0
    %p52 = por %p50, %p51
    %p53 = scmp.ne.s32.totalorder %s45, %s47
    %p54 = scmp.eq.s32.totalorder %s16, 1
    %p55 = por %p53, %p54
    %p56 = scmp.ne.s32.totalorder %s47, %s48
    %p57 = scmp.eq.s32.totalorder %s16, 0
    %p58 = por %p56, %p57
    %p59 = scmp.ne.s32.totalorder %s47, %s48
    %p60 = scmp.eq.s32.totalorder %s17, 1
    %p61 = por %p59, %p60
    %p63 = scmp.ne.s32.totalorder %s48, %s62
    %p64 = scmp.eq.s32.totalorder %s17, 0
    %p65 = por %p63, %p64
    %s67 = sadd.s32 %s66, 1
    %p70 = scmp.eq.s32.totalorder %s11, 1
    %p71 = scmp.ne.s32.totalorder %s66, %s68
    %p72 = scmp.eq.s32.totalorder %s11, 0
    %p73 = por %p71, %p72
    %p74 = scmp.ne.s32.totalorder %s66, %s68
    %p75 = scmp.eq.s32.totalorder %s16, 1
    %p76 = por %p74, %p75
    %p77 = scmp.ne.s32.totalorder %s68, %s69
    %p78 = scmp.eq.s32.totalorder %s16, 0
    %p79 = por %p77, %p78
    %p80 = scmp.ne.s32.totalorder %s68, %s69
    %p81 = scmp.eq.s32.totalorder %s17, 1
    %p82 = por %p80, %p81
    %p84 = scmp.ne.s32.totalorder %s69, %s83
    %p85 = scmp.eq.s32.totalorder %s17, 0
    %p86 = por %p84, %p85
    %s88 = sadd.s32 %s87, 1
    %p91 = scmp.eq.s32.totalorder %s11, 1
    %p92 = scmp.ne.s32.totalorder %s87, %s89
    %p93 = scmp.eq.s32.totalorder %s11, 0
    %p94 = por %p92, %p93
    %p95 = scmp.ne.s32.totalorder %s87, %s89
    %p96 = scmp.eq.s32.totalorder %s16, 1
    %p97 = por %p95, %p96
    %p98 = scmp.ne.s32.totalorder %s89, %s90
    %p99 = scmp.eq.s32.totalorder %s16, 0
    %p100 = por %p98, %p99
    %p101 = scmp.ne.s32.totalorder %s89, %s90
    %p102 = scmp.eq.s32.totalorder %s17, 1
    %p103 = por %p101, %p102
    %p105 = scmp.ne.s32.totalorder %s90, %s104
    %p106 = scmp.eq.s32.totalorder %s17, 0
    %p107 = por %p105, %p106
    %s109 = sadd.s32 %s108, 1
    %p112 = scmp.eq.s32.totalorder %s11, 1
    %p113 = scmp.ne.s32.totalorder %s108, %s110
    %p114 = scmp.eq.s32.totalorder %s11, 0
    %p115 = por %p113, %p114
    %p116 = scmp.ne.s32.totalorder %s108, %s110
    %p117 = scmp.eq.s32.totalorder %s16, 1
    %p118 = por %p116, %p117
    %p119 = scmp.ne.s32.totalorder %s110, %s111
    %p120 = scmp.eq.s32.totalorder %s16, 0
    %p121 = por %p119, %p120
    %p122 = scmp.ne.s32.totalorder %s110, %s111
    %p123 = scmp.eq.s32.totalorder %s17, 1
    %p124 = por %p122, %p123
    %p126 = scmp.ne.s32.totalorder %s111, %s125
    %p127 = scmp.eq.s32.totalorder %s17, 0
    %p128 = por %p126, %p127
    %s129 = ssub.s32 %s11, %s18
    %p130 = scmp.eq.s32.totalorder %s129, 0
    %s132 = sadd.s32 %s131, 1
    %s133 = scalar_select %p130, %s131, %s132
    %p136 = pneg %p130
    %p137 = scmp.eq.s32.totalorder %s11, 1
    %p138 = por %p136, %p137
    %p139 = scmp.ne.s32.totalorder %s131, %s134
    %p140 = scmp.eq.s32.totalorder %s11, 0
    %p141 = por %p139, %p140
    %p142 = scmp.ne.s32.totalorder %s131, %s134
    %p143 = scmp.eq.s32.totalorder %s16, 1
    %p144 = por %p142, %p143
    %p145 = scmp.ne.s32.totalorder %s134, %s135
    %p146 = scmp.eq.s32.totalorder %s16, 0
    %p147 = por %p145, %p146
    %p148 = scmp.ne.s32.totalorder %s134, %s135
    %p149 = scmp.eq.s32.totalorder %s17, 1
    %p150 = por %p148, %p149
    %p152 = scmp.ne.s32.totalorder %s135, %s151
    %p153 = scmp.eq.s32.totalorder %s17, 0
    %p154 = por %p152, %p153
    %p155 = scmp.le.s32.totalorder 1, %s11
    %p156 = scmp.lt.s32.totalorder %s11, 3
    %p157 = pnand %p155, %p156
    %p158 = pneg %p157
    // Predicated region
    $region9: #{res_four4_forward.12} parent=5 // pred_check
      _
    $region10: #{res_four4_forward.12} parent=5 // pred_check_branch
      %160 = sbr.rel (%p157) target = $region12
    $region11: #{res_four4_forward.12} parent=5 // pred_region
      %s161 = ssub.s32 %s11, 1
      // Predicated region
      $region13: #{res_four4_forward.12} parent=11 // pred_check
        %p162 = pneg %p58
      $region14: #{res_four4_forward.12} parent=11 // pred_check_branch
        %164 = sbr.rel (%p162) target = $region16
      $region15: #{res_four4_forward.12} parent=11 // pred_region
        _
      $region16: #{res_four4_forward.12} parent=11 // pred_fallthru
        _
      // Predicated region
      $region17: #{res_four4_forward.12} parent=11 // pred_check
        %p165 = pneg %p79
      $region18: #{res_four4_forward.12} parent=11 // pred_check_branch
        %167 = sbr.rel (%p165) target = $region20
      $region19: #{res_four4_forward.12} parent=11 // pred_region
        _
      $region20: #{res_four4_forward.12} parent=11 // pred_fallthru
        _
      // Predicated region
      $region21: #{res_four4_forward.12} parent=11 // pred_check
        %p168 = pneg %p100
      $region22: #{res_four4_forward.12} parent=11 // pred_check_branch
        %170 = sbr.rel (%p168) target = $region24
      $region23: #{res_four4_forward.12} parent=11 // pred_region
        _
      $region24: #{res_four4_forward.12} parent=11 // pred_fallthru
        _
      // Predicated region
      $region25: #{res_four4_forward.12} parent=11 // pred_check
        %p171 = pneg %p121
      $region26: #{res_four4_forward.12} parent=11 // pred_check_branch
        %173 = sbr.rel (%p171) target = $region28
      $region27: #{res_four4_forward.12} parent=11 // pred_region
        _
      $region28: #{res_four4_forward.12} parent=11 // pred_fallthru
        _
    $region12: #{res_four4_forward.12} parent=5 // pred_fallthru
      _
    %p174 = scmp.lt.s32.totalorder %s11, 2
    // Predicated region
    $region29: #{res_four4_forward.12} parent=5 // pred_check
      %p175 = pneg %p174
    $region30: #{res_four4_forward.12} parent=5 // pred_check_branch
      %177 = sbr.rel (%p175) target = $region32
    $region31: #{res_four4_forward.12} parent=5 // pred_region
      // Predicated region
      $region33: #{res_four4_forward.12} parent=31 // pred_check
        %p178 = pneg %p31
      $region34: #{res_four4_forward.12} parent=31 // pred_check_branch
        %180 = sbr.rel (%p178) target = $region36
      $region35: #{res_four4_forward.12} parent=31 // pred_region
        %p181 = scmp.lt.s32.totalorder %s11, 1
        %s182 = scalar_select %p181, %s11, 1
        %s183 = smul.addr %s182, 3
        %s184 = smul.addr %s183, 4
        %s185 = scalar_lea.vmem %s0, %s184
      $region36: #{res_four4_forward.12} parent=31 // pred_fallthru
        _
    $region32: #{res_four4_forward.12} parent=5 // pred_fallthru
      _
    %p186 = scmp.le.s32.totalorder 1, %s11
    %p187 = scmp.lt.s32.totalorder %s11, 3
    %p188 = pnand %p186, %p187
    %p189 = pneg %p188
    // Predicated region
    $region37: #{res_four4_forward.12} parent=5 // pred_check
      _
    $region38: #{res_four4_forward.12} parent=5 // pred_check_branch
      %191 = sbr.rel (%p188) target = $region40
    $region39: #{res_four4_forward.12} parent=5 // pred_region
      %s192 = ssub.s32 %s11, 1
      %p193 = scmp.lt.s32.totalorder %s16, 1
      %s194 = scalar_select %p193, %s16, 1
      %s195 = smul.addr %s194, 3
      %s196 = smul.addr %s195, 4
      %s197 = scalar_lea.vmem %s0, %s196
      %p198 = pneg %p37
      %p199 = pneg %p34
      %p200 = pneg %p58
      %p201 = pneg %p55
      %p202 = pneg %p79
      %p203 = pneg %p76
      %p204 = pneg %p100
      %p205 = pneg %p97
      %p206 = pneg %p121
      %p207 = pneg %p118
      %p208 = pneg %p147
      %p209 = pneg %p144
      %p210 = scmp.lt.s32.totalorder %s16, 1
      %s211 = scalar_select %p210, %s16, 1
      %s212 = smul.addr %s211, 2
      %s213 = smul.addr %s212, 4
      %s214 = scalar_lea.vmem %s5, %s213
      %p215 = scmp.lt.s32.totalorder %s16, 1
      %s216 = scalar_select %p215, %s16, 1
      %s217 = smul.addr %s216, 3
      %s218 = smul.addr %s217, 4
      %s219 = scalar_lea.vmem %s0, %s218
      %p220 = scmp.lt.s32.totalorder %s16, 1
      %s221 = scalar_select %p220, %s16, 1
      %s222 = smul.addr %s221, 2
      %s223 = smul.addr %s222, 4
      %s224 = scalar_lea.vmem %s5, %s223
      %v225 = vld [vmem:[%s219] sm:$0xff]
      %v226 = vld [vmem:[%s219 + $0x8] sm:$0xf]
      %v227 = vld [vmem:[%s3] sm:$0xf]
      %s228 = scalar_lea.vmem %s3, 12
      %v229 = vld [vmem:[%s228] sm:$0xf]
      %v232 = vcombine.high %v225, %v225
      %233 = vrot.lane.b32.xlu0 %v225, 112
      %v234 = vpop.permute.xlu0 %233
      %235 = vrot.lane.b32.xlu0 %v232, 112
      %v236 = vpop.permute.xlu0 %235
      %237 = vrot.lane.b32.xlu0 %v226, 112
      %v238 = vpop.permute.xlu0 %237
      %vm239 = vcmask 916480
      %v240 = vsel %vm239, %v234, %v236
      %v241 = vsel %vm239, %v236, %v238
      %vm242 = vcmask 31744
      %v244 = vsel %vm242, %v229, 0
      %vm246 = vcmask 1043456
      %v247 = vsel %vm246, %v240, 0
      %v249 = vsel %vm246, %v241, 0
      %251 = vmatprep.subr.mxu0 0.0
      %252 = vmatpush1.msra.mxu0 0.0
      %253 = vmatprep.subr.mxu0 0.0
      %254 = vmatpush1.msra.mxu0 0.0
      %255 = vmatprep.subr.mxu0 0.0
      %256 = vmatpush1.msra.mxu0 0.0
      %257 = vmatprep.subr.mxu0 0.0
      %258 = vmatpush1.msra.mxu0 0.0
      %259 = vmatprep.subr.mxu0 0.0
      %260 = vmatpush1.msra.mxu0 0.0
      %261 = vmatprep.subr.mxu0 0.0
      %262 = vmatpush1.msra.mxu0 0.0
      %263 = vmatprep.subr.mxu0 0.0
      %264 = vmatpush1.msra.mxu0 0.0
      %265 = vmatprep.subr.mxu0 0.0
      %266 = vmatpush1.msra.mxu0 0.0
      %267 = vmatprep.subr.mxu0 0.0
      %268 = vmatpush1.msra.mxu0 0.0
      %269 = vmatprep.subr.mxu0 0.0
      %270 = vmatpush1.msra.mxu0 0.0
      %271 = vmatprep.subr.mxu0 0.0
      %272 = vmatpush1.msra.mxu0 0.0
      %273 = vmatprep.subr.mxu0 0.0
      %274 = vmatpush1.msra.mxu0 0.0
      %275 = vmatprep.subr.mxu0 0.0
      %276 = vmatpush1.msra.mxu0 0.0
      %277 = vmatprep.subr.mxu0 0.0
      %278 = vmatpush1.msra.mxu0 0.0
      %279 = vmatprep.subr.mxu0 0.0
      %280 = vmatpush1.msra.mxu0 0.0
      %281 = vmatprep.subr.mxu0 %v249
      %282 = vmatpush1.msra.mxu0 %v247
      %283 = vmatprep.subr.mxu0 0.0
      %284 = vmatpush2.msra.mxu0 0.0
      %285 = vmatprep.subr.mxu0 0.0
      %286 = vmatpush2.msra.mxu0 0.0
      %287 = vmatprep.subr.mxu0 0.0
      %288 = vmatpush2.msra.mxu0 0.0
      %289 = vmatprep.subr.mxu0 0.0
      %290 = vmatpush2.msra.mxu0 0.0
      %291 = vmatprep.subr.mxu0 0.0
      %292 = vmatpush2.msra.mxu0 0.0
      %293 = vmatprep.subr.mxu0 0.0
      %294 = vmatpush2.msra.mxu0 0.0
      %295 = vmatprep.subr.mxu0 0.0
      %296 = vmatpush2.msra.mxu0 0.0
      %297 = vmatprep.subr.mxu0 0.0
      %298 = vmatpush2.msra.mxu0 0.0
      %299 = vmatprep.subr.mxu0 0.0
      %300 = vmatpush2.msra.mxu0 0.0
      %301 = vmatprep.subr.mxu0 0.0
      %302 = vmatpush2.msra.mxu0 0.0
      %303 = vmatprep.subr.mxu0 0.0
      %304 = vmatpush2.msra.mxu0 0.0
      %305 = vmatprep.subr.mxu0 0.0
      %306 = vmatpush2.msra.mxu0 0.0
      %307 = vmatprep.subr.mxu0 0.0
      %308 = vmatpush2.msra.mxu0 0.0
      %309 = vmatprep.subr.mxu0 0.0
      %310 = vmatpush2.msra.mxu0 0.0
      %311 = vmatprep.subr.mxu0 0.0
      %312 = vmatpush2.msra.mxu0 0.0
      %313 = vmatprep.subr.mxu0 0.0
      %314 = vmatpush2.msra.mxu0 0.0
      %315 = vmatprep.mubr.f32.mxu0 0.0
      %316 = vmatmul.mubr.f32.gmra.mxu0 %v244
      %v317 = vpop.f32.mrf.mxu0
      %v318 = vadd.f32 0.0, %v317
      %v319 = vpop.f32.mrf.mxu0
      %v320 = vadd.f32 0.0, %v319
      %321 = vdwg.mxu0
      %v323 = vsel %vm242, %v227, 0
      %v325 = vsel %vm246, %v225, 0
      %v327 = vsel %vm246, %v232, 0
      %329 = vmatprep.subr.mxu0 0.0
      %330 = vmatpush1.msra.mxu0 0.0
      %331 = vmatprep.subr.mxu0 0.0
      %332 = vmatpush1.msra.mxu0 0.0
      %333 = vmatprep.subr.mxu0 0.0
      %334 = vmatpush1.msra.mxu0 0.0
      %335 = vmatprep.subr.mxu0 0.0
      %336 = vmatpush1.msra.mxu0 0.0
      %337 = vmatprep.subr.mxu0 0.0
      %338 = vmatpush1.msra.mxu0 0.0
      %339 = vmatprep.subr.mxu0 0.0
      %340 = vmatpush1.msra.mxu0 0.0
      %341 = vmatprep.subr.mxu0 0.0
      %342 = vmatpush1.msra.mxu0 0.0
      %343 = vmatprep.subr.mxu0 0.0
      %344 = vmatpush1.msra.mxu0 0.0
      %345 = vmatprep.subr.mxu0 0.0
      %346 = vmatpush1.msra.mxu0 0.0
      %347 = vmatprep.subr.mxu0 0.0
      %348 = vmatpush1.msra.mxu0 0.0
      %349 = vmatprep.subr.mxu0 0.0
      %350 = vmatpush1.msra.mxu0 0.0
      %351 = vmatprep.subr.mxu0 0.0
      %352 = vmatpush1.msra.mxu0 0.0
      %353 = vmatprep.subr.mxu0 0.0
      %354 = vmatpush1.msra.mxu0 0.0
      %355 = vmatprep.subr.mxu0 0.0
      %356 = vmatpush1.msra.mxu0 0.0
      %357 = vmatprep.subr.mxu0 0.0
      %358 = vmatpush1.msra.mxu0 0.0
      %359 = vmatprep.subr.mxu0 %v327
      %360 = vmatpush1.msra.mxu0 %v325
      %361 = vmatprep.subr.mxu0 0.0
      %362 = vmatpush2.msra.mxu0 0.0
      %363 = vmatprep.subr.mxu0 0.0
      %364 = vmatpush2.msra.mxu0 0.0
      %365 = vmatprep.subr.mxu0 0.0
      %366 = vmatpush2.msra.mxu0 0.0
      %367 = vmatprep.subr.mxu0 0.0
      %368 = vmatpush2.msra.mxu0 0.0
      %369 = vmatprep.subr.mxu0 0.0
      %370 = vmatpush2.msra.mxu0 0.0
      %371 = vmatprep.subr.mxu0 0.0
      %372 = vmatpush2.msra.mxu0 0.0
      %373 = vmatprep.subr.mxu0 0.0
      %374 = vmatpush2.msra.mxu0 0.0
      %375 = vmatprep.subr.mxu0 0.0
      %376 = vmatpush2.msra.mxu0 0.0
      %377 = vmatprep.subr.mxu0 0.0
      %378 = vmatpush2.msra.mxu0 0.0
      %379 = vmatprep.subr.mxu0 0.0
      %380 = vmatpush2.msra.mxu0 0.0
      %381 = vmatprep.subr.mxu0 0.0
      %382 = vmatpush2.msra.mxu0 0.0
      %383 = vmatprep.subr.mxu0 0.0
      %384 = vmatpush2.msra.mxu0 0.0
      %385 = vmatprep.subr.mxu0 0.0
      %386 = vmatpush2.msra.mxu0 0.0
      %387 = vmatprep.subr.mxu0 0.0
      %388 = vmatpush2.msra.mxu0 0.0
      %389 = vmatprep.subr.mxu0 0.0
      %390 = vmatpush2.msra.mxu0 0.0
      %391 = vmatprep.subr.mxu0 0.0
      %392 = vmatpush2.msra.mxu0 0.0
      %393 = vmatprep.mubr.f32.mxu0 0.0
      %394 = vmatmul.mubr.f32.gmra.mxu0 %v323
      %v395 = vpop.f32.mrf.mxu0
      %v396 = vadd.f32 %v318, %v395
      %v397 = vpop.f32.mrf.mxu0
      %v398 = vadd.f32 %v320, %v397
      %399 = vdwg.mxu0
      %s400 = scalar_lea.vmem %s3, 24
      %v401 = vld [vmem:[%s400] sm:$0xf]
      %402 = vrot.lane.b32.xlu0 %v225, 96
      %v403 = vpop.permute.xlu0 %402
      %404 = vrot.lane.b32.xlu0 %v232, 96
      %v405 = vpop.permute.xlu0 %404
      %406 = vrot.lane.b32.xlu0 %v226, 96
      %v407 = vpop.permute.xlu0 %406
      %vm408 = vcmask 785408
      %v409 = vsel %vm408, %v403, %v405
      %v410 = vsel %vm408, %v405, %v407
      %v412 = vsel %vm242, %v401, 0
      %v414 = vsel %vm246, %v409, 0
      %v416 = vsel %vm246, %v410, 0
      %418 = vmatprep.subr.mxu0 0.0
      %419 = vmatpush1.msra.mxu0 0.0
      %420 = vmatprep.subr.mxu0 0.0
      %421 = vmatpush1.msra.mxu0 0.0
      %422 = vmatprep.subr.mxu0 0.0
      %423 = vmatpush1.msra.mxu0 0.0
      %424 = vmatprep.subr.mxu0 0.0
      %425 = vmatpush1.msra.mxu0 0.0
      %426 = vmatprep.subr.mxu0 0.0
      %427 = vmatpush1.msra.mxu0 0.0
      %428 = vmatprep.subr.mxu0 0.0
      %429 = vmatpush1.msra.mxu0 0.0
      %430 = vmatprep.subr.mxu0 0.0
      %431 = vmatpush1.msra.mxu0 0.0
      %432 = vmatprep.subr.mxu0 0.0
      %433 = vmatpush1.msra.mxu0 0.0
      %434 = vmatprep.subr.mxu0 0.0
      %435 = vmatpush1.msra.mxu0 0.0
      %436 = vmatprep.subr.mxu0 0.0
      %437 = vmatpush1.msra.mxu0 0.0
      %438 = vmatprep.subr.mxu0 0.0
      %439 = vmatpush1.msra.mxu0 0.0
      %440 = vmatprep.subr.mxu0 0.0
      %441 = vmatpush1.msra.mxu0 0.0
      %442 = vmatprep.subr.mxu0 0.0
      %443 = vmatpush1.msra.mxu0 0.0
      %444 = vmatprep.subr.mxu0 0.0
      %445 = vmatpush1.msra.mxu0 0.0
      %446 = vmatprep.subr.mxu0 0.0
      %447 = vmatpush1.msra.mxu0 0.0
      %448 = vmatprep.subr.mxu0 %v416
      %449 = vmatpush1.msra.mxu0 %v414
      %450 = vmatprep.subr.mxu0 0.0
      %451 = vmatpush2.msra.mxu0 0.0
      %452 = vmatprep.subr.mxu0 0.0
      %453 = vmatpush2.msra.mxu0 0.0
      %454 = vmatprep.subr.mxu0 0.0
      %455 = vmatpush2.msra.mxu0 0.0
      %456 = vmatprep.subr.mxu0 0.0
      %457 = vmatpush2.msra.mxu0 0.0
      %458 = vmatprep.subr.mxu0 0.0
      %459 = vmatpush2.msra.mxu0 0.0
      %460 = vmatprep.subr.mxu0 0.0
      %461 = vmatpush2.msra.mxu0 0.0
      %462 = vmatprep.subr.mxu0 0.0
      %463 = vmatpush2.msra.mxu0 0.0
      %464 = vmatprep.subr.mxu0 0.0
      %465 = vmatpush2.msra.mxu0 0.0
      %466 = vmatprep.subr.mxu0 0.0
      %467 = vmatpush2.msra.mxu0 0.0
      %468 = vmatprep.subr.mxu0 0.0
      %469 = vmatpush2.msra.mxu0 0.0
      %470 = vmatprep.subr.mxu0 0.0
      %471 = vmatpush2.msra.mxu0 0.0
      %472 = vmatprep.subr.mxu0 0.0
      %473 = vmatpush2.msra.mxu0 0.0
      %474 = vmatprep.subr.mxu0 0.0
      %475 = vmatpush2.msra.mxu0 0.0
      %476 = vmatprep.subr.mxu0 0.0
      %477 = vmatpush2.msra.mxu0 0.0
      %478 = vmatprep.subr.mxu0 0.0
      %479 = vmatpush2.msra.mxu0 0.0
      %480 = vmatprep.subr.mxu0 0.0
      %481 = vmatpush2.msra.mxu0 0.0
      %482 = vmatprep.mubr.f32.mxu0 0.0
      %483 = vmatmul.mubr.f32.gmra.mxu0 %v412
      %v484 = vpop.f32.mrf.mxu0
      %v485 = vadd.f32 0.0, %v484
      %v486 = vpop.f32.mrf.mxu0
      %v487 = vadd.f32 0.0, %v486
      %488 = vdwg.mxu0
      %v489 = vadd.f32 %v396, %v485
      %v490 = vadd.f32 %v398, %v487
      %s491 = scalar_lea.vmem %s3, 4
      %v492 = vld [vmem:[%s491] sm:$0xf]
      %s493 = scalar_lea.vmem %s3, 16
      %v494 = vld [vmem:[%s493] sm:$0xf]
      %495 = vrot.lane.b32.xlu0 %v225, 111
      %v496 = vpop.permute.xlu0 %495
      %497 = vrot.lane.b32.xlu0 %v232, 111
      %v498 = vpop.permute.xlu0 %497
      %499 = vrot.lane.b32.xlu0 %v226, 111
      %v500 = vpop.permute.xlu0 %499
      %vm501 = vcmask 908288
      %v502 = vsel %vm501, %v496, %v498
      %v503 = vsel %vm501, %v498, %v500
      %v505 = vsel %vm242, %v494, 0
      %v507 = vsel %vm246, %v502, 0
      %v509 = vsel %vm246, %v503, 0
      %511 = vmatprep.subr.mxu0 0.0
      %512 = vmatpush1.msra.mxu0 0.0
      %513 = vmatprep.subr.mxu0 0.0
      %514 = vmatpush1.msra.mxu0 0.0
      %515 = vmatprep.subr.mxu0 0.0
      %516 = vmatpush1.msra.mxu0 0.0
      %517 = vmatprep.subr.mxu0 0.0
      %518 = vmatpush1.msra.mxu0 0.0
      %519 = vmatprep.subr.mxu0 0.0
      %520 = vmatpush1.msra.mxu0 0.0
      %521 = vmatprep.subr.mxu0 0.0
      %522 = vmatpush1.msra.mxu0 0.0
      %523 = vmatprep.subr.mxu0 0.0
      %524 = vmatpush1.msra.mxu0 0.0
      %525 = vmatprep.subr.mxu0 0.0
      %526 = vmatpush1.msra.mxu0 0.0
      %527 = vmatprep.subr.mxu0 0.0
      %528 = vmatpush1.msra.mxu0 0.0
      %529 = vmatprep.subr.mxu0 0.0
      %530 = vmatpush1.msra.mxu0 0.0
      %531 = vmatprep.subr.mxu0 0.0
      %532 = vmatpush1.msra.mxu0 0.0
      %533 = vmatprep.subr.mxu0 0.0
      %534 = vmatpush1.msra.mxu0 0.0
      %535 = vmatprep.subr.mxu0 0.0
      %536 = vmatpush1.msra.mxu0 0.0
      %537 = vmatprep.subr.mxu0 0.0
      %538 = vmatpush1.msra.mxu0 0.0
      %539 = vmatprep.subr.mxu0 0.0
      %540 = vmatpush1.msra.mxu0 0.0
      %541 = vmatprep.subr.mxu0 %v509
      %542 = vmatpush1.msra.mxu0 %v507
      %543 = vmatprep.subr.mxu0 0.0
      %544 = vmatpush2.msra.mxu0 0.0
      %545 = vmatprep.subr.mxu0 0.0
      %546 = vmatpush2.msra.mxu0 0.0
      %547 = vmatprep.subr.mxu0 0.0
      %548 = vmatpush2.msra.mxu0 0.0
      %549 = vmatprep.subr.mxu0 0.0
      %550 = vmatpush2.msra.mxu0 0.0
      %551 = vmatprep.subr.mxu0 0.0
      %552 = vmatpush2.msra.mxu0 0.0
      %553 = vmatprep.subr.mxu0 0.0
      %554 = vmatpush2.msra.mxu0 0.0
      %555 = vmatprep.subr.mxu0 0.0
      %556 = vmatpush2.msra.mxu0 0.0
      %557 = vmatprep.subr.mxu0 0.0
      %558 = vmatpush2.msra.mxu0 0.0
      %559 = vmatprep.subr.mxu0 0.0
      %560 = vmatpush2.msra.mxu0 0.0
      %561 = vmatprep.subr.mxu0 0.0
      %562 = vmatpush2.msra.mxu0 0.0
      %563 = vmatprep.subr.mxu0 0.0
      %564 = vmatpush2.msra.mxu0 0.0
      %565 = vmatprep.subr.mxu0 0.0
      %566 = vmatpush2.msra.mxu0 0.0
      %567 = vmatprep.subr.mxu0 0.0
      %568 = vmatpush2.msra.mxu0 0.0
      %569 = vmatprep.subr.mxu0 0.0
      %570 = vmatpush2.msra.mxu0 0.0
      %571 = vmatprep.subr.mxu0 0.0
      %572 = vmatpush2.msra.mxu0 0.0
      %573 = vmatprep.subr.mxu0 0.0
      %574 = vmatpush2.msra.mxu0 0.0
      %575 = vmatprep.mubr.f32.mxu0 0.0
      %576 = vmatmul.mubr.f32.gmra.mxu0 %v505
      %v577 = vpop.f32.mrf.mxu0
      %v578 = vadd.f32 0.0, %v577
      %v579 = vpop.f32.mrf.mxu0
      %v580 = vadd.f32 0.0, %v579
      %581 = vdwg.mxu0
      %582 = vrot.lane.b32.xlu0 %v225, 127
      %v583 = vpop.permute.xlu0 %582
      %584 = vrot.lane.b32.xlu0 %v232, 127
      %v585 = vpop.permute.xlu0 %584
      %586 = vrot.lane.b32.xlu0 %v226, 127
      %v587 = vpop.permute.xlu0 %586
      %vm588 = vcmask 1039360
      %v589 = vsel %vm588, %v583, %v585
      %v590 = vsel %vm588, %v585, %v587
      %v592 = vsel %vm242, %v492, 0
      %v594 = vsel %vm246, %v589, 0
      %v596 = vsel %vm246, %v590, 0
      %598 = vmatprep.subr.mxu0 0.0
      %599 = vmatpush1.msra.mxu0 0.0
      %600 = vmatprep.subr.mxu0 0.0
      %601 = vmatpush1.msra.mxu0 0.0
      %602 = vmatprep.subr.mxu0 0.0
      %603 = vmatpush1.msra.mxu0 0.0
      %604 = vmatprep.subr.mxu0 0.0
      %605 = vmatpush1.msra.mxu0 0.0
      %606 = vmatprep.subr.mxu0 0.0
      %607 = vmatpush1.msra.mxu0 0.0
      %608 = vmatprep.subr.mxu0 0.0
      %609 = vmatpush1.msra.mxu0 0.0
      %610 = vmatprep.subr.mxu0 0.0
      %611 = vmatpush1.msra.mxu0 0.0
      %612 = vmatprep.subr.mxu0 0.0
      %613 = vmatpush1.msra.mxu0 0.0
      %614 = vmatprep.subr.mxu0 0.0
      %615 = vmatpush1.msra.mxu0 0.0
      %616 = vmatprep.subr.mxu0 0.0
      %617 = vmatpush1.msra.mxu0 0.0
      %618 = vmatprep.subr.mxu0 0.0
      %619 = vmatpush1.msra.mxu0 0.0
      %620 = vmatprep.subr.mxu0 0.0
      %621 = vmatpush1.msra.mxu0 0.0
      %622 = vmatprep.subr.mxu0 0.0
      %623 = vmatpush1.msra.mxu0 0.0
      %624 = vmatprep.subr.mxu0 0.0
      %625 = vmatpush1.msra.mxu0 0.0
      %626 = vmatprep.subr.mxu0 0.0
      %627 = vmatpush1.msra.mxu0 0.0
      %628 = vmatprep.subr.mxu0 %v596
      %629 = vmatpush1.msra.mxu0 %v594
      %630 = vmatprep.subr.mxu0 0.0
      %631 = vmatpush2.msra.mxu0 0.0
      %632 = vmatprep.subr.mxu0 0.0
      %633 = vmatpush2.msra.mxu0 0.0
      %634 = vmatprep.subr.mxu0 0.0
      %635 = vmatpush2.msra.mxu0 0.0
      %636 = vmatprep.subr.mxu0 0.0
      %637 = vmatpush2.msra.mxu0 0.0
      %638 = vmatprep.subr.mxu0 0.0
      %639 = vmatpush2.msra.mxu0 0.0
      %640 = vmatprep.subr.mxu0 0.0
      %641 = vmatpush2.msra.mxu0 0.0
      %642 = vmatprep.subr.mxu0 0.0
      %643 = vmatpush2.msra.mxu0 0.0
      %644 = vmatprep.subr.mxu0 0.0
      %645 = vmatpush2.msra.mxu0 0.0
      %646 = vmatprep.subr.mxu0 0.0
      %647 = vmatpush2.msra.mxu0 0.0
      %648 = vmatprep.subr.mxu0 0.0
      %649 = vmatpush2.msra.mxu0 0.0
      %650 = vmatprep.subr.mxu0 0.0
      %651 = vmatpush2.msra.mxu0 0.0
      %652 = vmatprep.subr.mxu0 0.0
      %653 = vmatpush2.msra.mxu0 0.0
      %654 = vmatprep.subr.mxu0 0.0
      %655 = vmatpush2.msra.mxu0 0.0
      %656 = vmatprep.subr.mxu0 0.0
      %657 = vmatpush2.msra.mxu0 0.0
      %658 = vmatprep.subr.mxu0 0.0
      %659 = vmatpush2.msra.mxu0 0.0
      %660 = vmatprep.subr.mxu0 0.0
      %661 = vmatpush2.msra.mxu0 0.0
      %662 = vmatprep.mubr.f32.mxu0 0.0
      %663 = vmatmul.mubr.f32.gmra.mxu0 %v592
      %v664 = vpop.f32.mrf.mxu0
      %v665 = vadd.f32 %v578, %v664
      %v666 = vpop.f32.mrf.mxu0
      %v667 = vadd.f32 %v580, %v666
      %668 = vdwg.mxu0
      %s669 = scalar_lea.vmem %s3, 28
      %v670 = vld [vmem:[%s669] sm:$0xf]
      %671 = vrot.lane.b32.xlu0 %v225, 95
      %v672 = vpop.permute.xlu0 %671
      %673 = vrot.lane.b32.xlu0 %v232, 95
      %v674 = vpop.permute.xlu0 %673
      %675 = vrot.lane.b32.xlu0 %v226, 95
      %v676 = vpop.permute.xlu0 %675
      %vm677 = vcmask 777216
      %v678 = vsel %vm677, %v672, %v674
      %v679 = vsel %vm677, %v674, %v676
      %v681 = vsel %vm242, %v670, 0
      %v683 = vsel %vm246, %v678, 0
      %v685 = vsel %vm246, %v679, 0
      %687 = vmatprep.subr.mxu0 0.0
      %688 = vmatpush1.msra.mxu0 0.0
      %689 = vmatprep.subr.mxu0 0.0
      %690 = vmatpush1.msra.mxu0 0.0
      %691 = vmatprep.subr.mxu0 0.0
      %692 = vmatpush1.msra.mxu0 0.0
      %693 = vmatprep.subr.mxu0 0.0
      %694 = vmatpush1.msra.mxu0 0.0
      %695 = vmatprep.subr.mxu0 0.0
      %696 = vmatpush1.msra.mxu0 0.0
      %697 = vmatprep.subr.mxu0 0.0
      %698 = vmatpush1.msra.mxu0 0.0
      %699 = vmatprep.subr.mxu0 0.0
      %700 = vmatpush1.msra.mxu0 0.0
      %701 = vmatprep.subr.mxu0 0.0
      %702 = vmatpush1.msra.mxu0 0.0
      %703 = vmatprep.subr.mxu0 0.0
      %704 = vmatpush1.msra.mxu0 0.0
      %705 = vmatprep.subr.mxu0 0.0
      %706 = vmatpush1.msra.mxu0 0.0
      %707 = vmatprep.subr.mxu0 0.0
      %708 = vmatpush1.msra.mxu0 0.0
      %709 = vmatprep.subr.mxu0 0.0
      %710 = vmatpush1.msra.mxu0 0.0
      %711 = vmatprep.subr.mxu0 0.0
      %712 = vmatpush1.msra.mxu0 0.0
      %713 = vmatprep.subr.mxu0 0.0
      %714 = vmatpush1.msra.mxu0 0.0
      %715 = vmatprep.subr.mxu0 0.0
      %716 = vmatpush1.msra.mxu0 0.0
      %717 = vmatprep.subr.mxu0 %v685
      %718 = vmatpush1.msra.mxu0 %v683
      %719 = vmatprep.subr.mxu0 0.0
      %720 = vmatpush2.msra.mxu0 0.0
      %721 = vmatprep.subr.mxu0 0.0
      %722 = vmatpush2.msra.mxu0 0.0
      %723 = vmatprep.subr.mxu0 0.0
      %724 = vmatpush2.msra.mxu0 0.0
      %725 = vmatprep.subr.mxu0 0.0
      %726 = vmatpush2.msra.mxu0 0.0
      %727 = vmatprep.subr.mxu0 0.0
      %728 = vmatpush2.msra.mxu0 0.0
      %729 = vmatprep.subr.mxu0 0.0
      %730 = vmatpush2.msra.mxu0 0.0
      %731 = vmatprep.subr.mxu0 0.0
      %732 = vmatpush2.msra.mxu0 0.0
      %733 = vmatprep.subr.mxu0 0.0
      %734 = vmatpush2.msra.mxu0 0.0
      %735 = vmatprep.subr.mxu0 0.0
      %736 = vmatpush2.msra.mxu0 0.0
      %737 = vmatprep.subr.mxu0 0.0
      %738 = vmatpush2.msra.mxu0 0.0
      %739 = vmatprep.subr.mxu0 0.0
      %740 = vmatpush2.msra.mxu0 0.0
      %741 = vmatprep.subr.mxu0 0.0
      %742 = vmatpush2.msra.mxu0 0.0
      %743 = vmatprep.subr.mxu0 0.0
      %744 = vmatpush2.msra.mxu0 0.0
      %745 = vmatprep.subr.mxu0 0.0
      %746 = vmatpush2.msra.mxu0 0.0
      %747 = vmatprep.subr.mxu0 0.0
      %748 = vmatpush2.msra.mxu0 0.0
      %749 = vmatprep.subr.mxu0 0.0
      %750 = vmatpush2.msra.mxu0 0.0
      %751 = vmatprep.mubr.f32.mxu0 0.0
      %752 = vmatmul.mubr.f32.gmra.mxu0 %v681
      %v753 = vpop.f32.mrf.mxu0
      %v754 = vadd.f32 0.0, %v753
      %v755 = vpop.f32.mrf.mxu0
      %v756 = vadd.f32 0.0, %v755
      %757 = vdwg.mxu0
      %v758 = vadd.f32 %v665, %v754
      %v759 = vadd.f32 %v667, %v756
      %s760 = scalar_lea.vmem %s3, 8
      %v761 = vld [vmem:[%s760] sm:$0xf]
      %s762 = scalar_lea.vmem %s3, 20
      %v763 = vld [vmem:[%s762] sm:$0xf]
      %764 = vrot.lane.b32.xlu0 %v225, 110
      %v765 = vpop.permute.xlu0 %764
      %766 = vrot.lane.b32.xlu0 %v232, 110
      %v767 = vpop.permute.xlu0 %766
      %768 = vrot.lane.b32.xlu0 %v226, 110
      %v769 = vpop.permute.xlu0 %768
      %vm770 = vcmask 900096
      %v771 = vsel %vm770, %v765, %v767
      %v772 = vsel %vm770, %v767, %v769
      %v774 = vsel %vm242, %v763, 0
      %v776 = vsel %vm246, %v771, 0
      %v778 = vsel %vm246, %v772, 0
      %780 = vmatprep.subr.mxu0 0.0
      %781 = vmatpush1.msra.mxu0 0.0
      %782 = vmatprep.subr.mxu0 0.0
      %783 = vmatpush1.msra.mxu0 0.0
      %784 = vmatprep.subr.mxu0 0.0
      %785 = vmatpush1.msra.mxu0 0.0
      %786 = vmatprep.subr.mxu0 0.0
      %787 = vmatpush1.msra.mxu0 0.0
      %788 = vmatprep.subr.mxu0 0.0
      %789 = vmatpush1.msra.mxu0 0.0
      %790 = vmatprep.subr.mxu0 0.0
      %791 = vmatpush1.msra.mxu0 0.0
      %792 = vmatprep.subr.mxu0 0.0
      %793 = vmatpush1.msra.mxu0 0.0
      %794 = vmatprep.subr.mxu0 0.0
      %795 = vmatpush1.msra.mxu0 0.0
      %796 = vmatprep.subr.mxu0 0.0
      %797 = vmatpush1.msra.mxu0 0.0
      %798 = vmatprep.subr.mxu0 0.0
      %799 = vmatpush1.msra.mxu0 0.0
      %800 = vmatprep.subr.mxu0 0.0
      %801 = vmatpush1.msra.mxu0 0.0
      %802 = vmatprep.subr.mxu0 0.0
      %803 = vmatpush1.msra.mxu0 0.0
      %804 = vmatprep.subr.mxu0 0.0
      %805 = vmatpush1.msra.mxu0 0.0
      %806 = vmatprep.subr.mxu0 0.0
      %807 = vmatpush1.msra.mxu0 0.0
      %808 = vmatprep.subr.mxu0 0.0
      %809 = vmatpush1.msra.mxu0 0.0
      %810 = vmatprep.subr.mxu0 %v778
      %811 = vmatpush1.msra.mxu0 %v776
      %812 = vmatprep.subr.mxu0 0.0
      %813 = vmatpush2.msra.mxu0 0.0
      %814 = vmatprep.subr.mxu0 0.0
      %815 = vmatpush2.msra.mxu0 0.0
      %816 = vmatprep.subr.mxu0 0.0
      %817 = vmatpush2.msra.mxu0 0.0
      %818 = vmatprep.subr.mxu0 0.0
      %819 = vmatpush2.msra.mxu0 0.0
      %820 = vmatprep.subr.mxu0 0.0
      %821 = vmatpush2.msra.mxu0 0.0
      %822 = vmatprep.subr.mxu0 0.0
      %823 = vmatpush2.msra.mxu0 0.0
      %824 = vmatprep.subr.mxu0 0.0
      %825 = vmatpush2.msra.mxu0 0.0
      %826 = vmatprep.subr.mxu0 0.0
      %827 = vmatpush2.msra.mxu0 0.0
      %828 = vmatprep.subr.mxu0 0.0
      %829 = vmatpush2.msra.mxu0 0.0
      %830 = vmatprep.subr.mxu0 0.0
      %831 = vmatpush2.msra.mxu0 0.0
      %832 = vmatprep.subr.mxu0 0.0
      %833 = vmatpush2.msra.mxu0 0.0
      %834 = vmatprep.subr.mxu0 0.0
      %835 = vmatpush2.msra.mxu0 0.0
      %836 = vmatprep.subr.mxu0 0.0
      %837 = vmatpush2.msra.mxu0 0.0
      %838 = vmatprep.subr.mxu0 0.0
      %839 = vmatpush2.msra.mxu0 0.0
      %840 = vmatprep.subr.mxu0 0.0
      %841 = vmatpush2.msra.mxu0 0.0
      %842 = vmatprep.subr.mxu0 0.0
      %843 = vmatpush2.msra.mxu0 0.0
      %844 = vmatprep.mubr.f32.mxu0 0.0
      %845 = vmatmul.mubr.f32.gmra.mxu0 %v774
      %v846 = vpop.f32.mrf.mxu0
      %v847 = vadd.f32 0.0, %v846
      %v848 = vpop.f32.mrf.mxu0
      %v849 = vadd.f32 0.0, %v848
      %850 = vdwg.mxu0
      %851 = vrot.lane.b32.xlu0 %v225, 126
      %v852 = vpop.permute.xlu0 %851
      %853 = vrot.lane.b32.xlu0 %v232, 126
      %v854 = vpop.permute.xlu0 %853
      %855 = vrot.lane.b32.xlu0 %v226, 126
      %v856 = vpop.permute.xlu0 %855
      %vm857 = vcmask 1031168
      %v858 = vsel %vm857, %v852, %v854
      %v859 = vsel %vm857, %v854, %v856
      %v861 = vsel %vm242, %v761, 0
      %v863 = vsel %vm246, %v858, 0
      %v865 = vsel %vm246, %v859, 0
      %867 = vmatprep.subr.mxu0 0.0
      %868 = vmatpush1.msra.mxu0 0.0
      %869 = vmatprep.subr.mxu0 0.0
      %870 = vmatpush1.msra.mxu0 0.0
      %871 = vmatprep.subr.mxu0 0.0
      %872 = vmatpush1.msra.mxu0 0.0
      %873 = vmatprep.subr.mxu0 0.0
      %874 = vmatpush1.msra.mxu0 0.0
      %875 = vmatprep.subr.mxu0 0.0
      %876 = vmatpush1.msra.mxu0 0.0
      %877 = vmatprep.subr.mxu0 0.0
      %878 = vmatpush1.msra.mxu0 0.0
      %879 = vmatprep.subr.mxu0 0.0
      %880 = vmatpush1.msra.mxu0 0.0
      %881 = vmatprep.subr.mxu0 0.0
      %882 = vmatpush1.msra.mxu0 0.0
      %883 = vmatprep.subr.mxu0 0.0
      %884 = vmatpush1.msra.mxu0 0.0
      %885 = vmatprep.subr.mxu0 0.0
      %886 = vmatpush1.msra.mxu0 0.0
      %887 = vmatprep.subr.mxu0 0.0
      %888 = vmatpush1.msra.mxu0 0.0
      %889 = vmatprep.subr.mxu0 0.0
      %890 = vmatpush1.msra.mxu0 0.0
      %891 = vmatprep.subr.mxu0 0.0
      %892 = vmatpush1.msra.mxu0 0.0
      %893 = vmatprep.subr.mxu0 0.0
      %894 = vmatpush1.msra.mxu0 0.0
      %895 = vmatprep.subr.mxu0 0.0
      %896 = vmatpush1.msra.mxu0 0.0
      %897 = vmatprep.subr.mxu0 %v865
      %898 = vmatpush1.msra.mxu0 %v863
      %899 = vmatprep.subr.mxu0 0.0
      %900 = vmatpush2.msra.mxu0 0.0
      %901 = vmatprep.subr.mxu0 0.0
      %902 = vmatpush2.msra.mxu0 0.0
      %903 = vmatprep.subr.mxu0 0.0
      %904 = vmatpush2.msra.mxu0 0.0
      %905 = vmatprep.subr.mxu0 0.0
      %906 = vmatpush2.msra.mxu0 0.0
      %907 = vmatprep.subr.mxu0 0.0
      %908 = vmatpush2.msra.mxu0 0.0
      %909 = vmatprep.subr.mxu0 0.0
      %910 = vmatpush2.msra.mxu0 0.0
      %911 = vmatprep.subr.mxu0 0.0
      %912 = vmatpush2.msra.mxu0 0.0
      %913 = vmatprep.subr.mxu0 0.0
      %914 = vmatpush2.msra.mxu0 0.0
      %915 = vmatprep.subr.mxu0 0.0
      %916 = vmatpush2.msra.mxu0 0.0
      %917 = vmatprep.subr.mxu0 0.0
      %918 = vmatpush2.msra.mxu0 0.0
      %919 = vmatprep.subr.mxu0 0.0
      %920 = vmatpush2.msra.mxu0 0.0
      %921 = vmatprep.subr.mxu0 0.0
      %922 = vmatpush2.msra.mxu0 0.0
      %923 = vmatprep.subr.mxu0 0.0
      %924 = vmatpush2.msra.mxu0 0.0
      %925 = vmatprep.subr.mxu0 0.0
      %926 = vmatpush2.msra.mxu0 0.0
      %927 = vmatprep.subr.mxu0 0.0
      %928 = vmatpush2.msra.mxu0 0.0
      %929 = vmatprep.subr.mxu0 0.0
      %930 = vmatpush2.msra.mxu0 0.0
      %931 = vmatprep.mubr.f32.mxu0 0.0
      %932 = vmatmul.mubr.f32.gmra.mxu0 %v861
      %v933 = vpop.f32.mrf.mxu0
      %v934 = vadd.f32 %v847, %v933
      %v935 = vpop.f32.mrf.mxu0
      %v936 = vadd.f32 %v849, %v935
      %937 = vdwg.mxu0
      %s938 = scalar_lea.vmem %s3, 32
      %v939 = vld [vmem:[%s938] sm:$0xf]
      %940 = vrot.lane.b32.xlu0 %v225, 94
      %v941 = vpop.permute.xlu0 %940
      %942 = vrot.lane.b32.xlu0 %v232, 94
      %v943 = vpop.permute.xlu0 %942
      %944 = vrot.lane.b32.xlu0 %v226, 94
      %v945 = vpop.permute.xlu0 %944
      %vm946 = vcmask 769024
      %v947 = vsel %vm946, %v941, %v943
      %v948 = vsel %vm946, %v943, %v945
      %v950 = vsel %vm242, %v939, 0
      %v952 = vsel %vm246, %v947, 0
      %v954 = vsel %vm246, %v948, 0
      %956 = vmatprep.subr.mxu0 0.0
      %957 = vmatpush1.msra.mxu0 0.0
      %958 = vmatprep.subr.mxu0 0.0
      %959 = vmatpush1.msra.mxu0 0.0
      %960 = vmatprep.subr.mxu0 0.0
      %961 = vmatpush1.msra.mxu0 0.0
      %962 = vmatprep.subr.mxu0 0.0
      %963 = vmatpush1.msra.mxu0 0.0
      %964 = vmatprep.subr.mxu0 0.0
      %965 = vmatpush1.msra.mxu0 0.0
      %966 = vmatprep.subr.mxu0 0.0
      %967 = vmatpush1.msra.mxu0 0.0
      %968 = vmatprep.subr.mxu0 0.0
      %969 = vmatpush1.msra.mxu0 0.0
      %970 = vmatprep.subr.mxu0 0.0
      %971 = vmatpush1.msra.mxu0 0.0
      %972 = vmatprep.subr.mxu0 0.0
      %973 = vmatpush1.msra.mxu0 0.0
      %974 = vmatprep.subr.mxu0 0.0
      %975 = vmatpush1.msra.mxu0 0.0
      %976 = vmatprep.subr.mxu0 0.0
      %977 = vmatpush1.msra.mxu0 0.0
      %978 = vmatprep.subr.mxu0 0.0
      %979 = vmatpush1.msra.mxu0 0.0
      %980 = vmatprep.subr.mxu0 0.0
      %981 = vmatpush1.msra.mxu0 0.0
      %982 = vmatprep.subr.mxu0 0.0
      %983 = vmatpush1.msra.mxu0 0.0
      %984 = vmatprep.subr.mxu0 0.0
      %985 = vmatpush1.msra.mxu0 0.0
      %986 = vmatprep.subr.mxu0 %v954
      %987 = vmatpush1.msra.mxu0 %v952
      %988 = vmatprep.subr.mxu0 0.0
      %989 = vmatpush2.msra.mxu0 0.0
      %990 = vmatprep.subr.mxu0 0.0
      %991 = vmatpush2.msra.mxu0 0.0
      %992 = vmatprep.subr.mxu0 0.0
      %993 = vmatpush2.msra.mxu0 0.0
      %994 = vmatprep.subr.mxu0 0.0
      %995 = vmatpush2.msra.mxu0 0.0
      %996 = vmatprep.subr.mxu0 0.0
      %997 = vmatpush2.msra.mxu0 0.0
      %998 = vmatprep.subr.mxu0 0.0
      %999 = vmatpush2.msra.mxu0 0.0
      %1000 = vmatprep.subr.mxu0 0.0
      %1001 = vmatpush2.msra.mxu0 0.0
      %1002 = vmatprep.subr.mxu0 0.0
      %1003 = vmatpush2.msra.mxu0 0.0
      %1004 = vmatprep.subr.mxu0 0.0
      %1005 = vmatpush2.msra.mxu0 0.0
      %1006 = vmatprep.subr.mxu0 0.0
      %1007 = vmatpush2.msra.mxu0 0.0
      %1008 = vmatprep.subr.mxu0 0.0
      %1009 = vmatpush2.msra.mxu0 0.0
      %1010 = vmatprep.subr.mxu0 0.0
      %1011 = vmatpush2.msra.mxu0 0.0
      %1012 = vmatprep.subr.mxu0 0.0
      %1013 = vmatpush2.msra.mxu0 0.0
      %1014 = vmatprep.subr.mxu0 0.0
      %1015 = vmatpush2.msra.mxu0 0.0
      %1016 = vmatprep.subr.mxu0 0.0
      %1017 = vmatpush2.msra.mxu0 0.0
      %1018 = vmatprep.subr.mxu0 0.0
      %1019 = vmatpush2.msra.mxu0 0.0
      %1020 = vmatprep.mubr.f32.mxu0 0.0
      %1021 = vmatmul.mubr.f32.gmra.mxu0 %v950
      %v1022 = vpop.f32.mrf.mxu0
      %v1023 = vadd.f32 0.0, %v1022
      %v1024 = vpop.f32.mrf.mxu0
      %v1025 = vadd.f32 0.0, %v1024
      %1026 = vdwg.mxu0
      %v1027 = vadd.f32 %v934, %v1023
      %v1028 = vadd.f32 %v936, %v1025
      %v1029 = vld [vmem:[%s1] sm:$0x3]
      %v1031 = vlaneseq
      %v1032 = vshrl.u32 %v1031, 7
      %v1033 = vsub.s32 0, %v1032
      %v1034 = vrot.slane %v1029, %v1033
      %v1035 = vlaneseq
      %v1036 = vshrl.u32 %v1035, 7
      %v1037 = vsub.s32 1, %v1036
      %v1038 = vrot.slane %v1029, %v1037
      %v1041 = vmul.f32 %v1034, %v489
      %v1042 = vmul.f32 %v1038, %v490
      %v1043 = vadd.f32 %v758, %v1041
      %v1044 = vadd.f32 %v759, %v1042
      %v1045 = vld [vmem:[%s2] sm:$0x3]
      %v1047 = vlaneseq
      %v1048 = vshrl.u32 %v1047, 7
      %v1049 = vsub.s32 0, %v1048
      %v1050 = vrot.slane %v1045, %v1049
      %v1051 = vlaneseq
      %v1052 = vshrl.u32 %v1051, 7
      %v1053 = vsub.s32 1, %v1052
      %v1054 = vrot.slane %v1045, %v1053
      %v1057 = vmul.f32 %v1050, %v1027
      %v1058 = vmul.f32 %v1054, %v1028
      %v1059 = vadd.f32 %v1043, %v1057
      %v1060 = vadd.f32 %v1044, %v1058
      %v1061 = vld [vmem:[%s4] sm:$0xf]
      %1063 = vset.pattern.permute.xlu0 0
      %1064 = vperm.xlu0 %1063, %v1061
      %v1065 = vpop.permute.xlu0 %1064
      %v1067 = vadd.f32 %v1059, %v1065
      %v1068 = vadd.f32 %v1060, %v1065
      %v1071 = vcombine.low %v1067, %v1068
      %1073 = vst [vmem:[%s224] sm:$0xff] %v1071
      %p1074 = scmp.lt.s32.totalorder %s16, 1
      %s1075 = scalar_select %p1074, %s16, 1
      %s1076 = smul.addr %s1075, 2
      %s1077 = smul.addr %s1076, 4
      %s1078 = scalar_lea.vmem %s5, %s1077
      // Predicated region
      $region41: #{res_four4_forward.12} parent=39 // pred_check
        %p1079 = pneg %p144
      $region42: #{res_four4_forward.12} parent=39 // pred_check_branch
        %1081 = sbr.rel (%p1079) target = $region44
      $region43: #{res_four4_forward.12} parent=39 // pred_region
        _
      $region44: #{res_four4_forward.12} parent=39 // pred_fallthru
        _
    $region40: #{res_four4_forward.12} parent=5 // pred_fallthru
      _
    %p1082 = scmp.le.s32.totalorder 2, %s11
    // Predicated region
    $region45: #{res_four4_forward.12} parent=5 // pred_check
      %p1083 = pneg %p1082
    $region46: #{res_four4_forward.12} parent=5 // pred_check_branch
      %1085 = sbr.rel (%p1083) target = $region48
    $region47: #{res_four4_forward.12} parent=5 // pred_region
      %s1086 = ssub.s32 %s11, 2
      // Predicated region
      $region49: #{res_four4_forward.12} parent=47 // pred_check
        %p1087 = pneg %p150
      $region50: #{res_four4_forward.12} parent=47 // pred_check_branch
        %1089 = sbr.rel (%p1087) target = $region52
      $region51: #{res_four4_forward.12} parent=47 // pred_region
        %p1090 = scmp.lt.s32.totalorder %s17, 1
        %s1091 = scalar_select %p1090, %s17, 1
        %s1092 = smul.addr %s1091, 2
        %s1093 = smul.addr %s1092, 4
        %s1094 = scalar_lea.vmem %s5, %s1093
      $region52: #{res_four4_forward.12} parent=47 // pred_fallthru
        _
    $region48: #{res_four4_forward.12} parent=5 // pred_fallthru
      _
  $region6: #{res_four4_forward.12} parent=0 // loop_footer
    %s15 = sadd.s32 1, %s11
  $region7: #{res_four4_forward.12} parent=0 // loop_footer_branch
    %10 = sbr.rel target = $region3
  $region8: #{res_four4_forward.12} parent=0 // loop_exit
    _

</llo_original>
